<compile_context>
chip_gen: v7x
topology: tpu7x:2x2x1
jax: 0.10.0
libtpu: 0.0.40
codegen_flags: <defaults>
</compile_context>

<pallas_src>
import functools

import jax
import jax.numpy as jnp
from jax.experimental import pallas as pl
from jax.experimental.pallas import tpu as pltpu

F32 = jnp.float32
LANE = 128          # TPU vreg lane width; all channel dims padded to this.


# ----------------------------------------------------------------------------
# Small helpers
# ----------------------------------------------------------------------------
def _relu(v):
    return jnp.maximum(v, 0.0)


def pad_to(a, shape):
    """Zero-pad array `a` up to `shape` (per-dim trailing pad)."""
    return jnp.pad(a, [(0, s - d) for d, s in zip(a.shape, shape)])


def round_up(x, m):
    return ((x + m - 1) // m) * m


def _bspec_batched(tail):
    """(B, *tail) array, one batch element per grid step (leading dim squeezed)."""
    n = len(tail)
    return pl.BlockSpec((None,) + tuple(tail), lambda b, _n=n: (b,) + (0,) * _n)


def _bspec_shared(shape):
    """Whole array resident, same block every grid step (weights/constants)."""
    n = len(shape)
    return pl.BlockSpec(tuple(shape), lambda b, _n=n: (0,) * _n)


def _conv_taps(h, masks_ref, w_ref, b_ref, offsets, relu):
    """Dilated 'same' Conv1d: per-tap XLU sublane roll + boundary mask + MXU matmul.

    out[t] = sum_k h[t + off_k] @ W_k + b, with out-of-range rows treated as 0
    (masks_ref[k] is the precomputed (T,1) in-range indicator for tap k).
    """
    T = h.shape[0]
    acc = jnp.zeros((T, w_ref.shape[-1]), F32)
    for k, off in enumerate(offsets):                       # static unroll, K in {3,5}
        if off == 0:
            hk = h
        else:
            hk = pltpu.roll(h, shift=(-off) % T, axis=0) * masks_ref[k]
        acc = acc + jnp.dot(hk, w_ref[k], preferred_element_type=F32)
    acc = acc + b_ref[...]
    return _relu(acc) if relu else acc


# ----------------------------------------------------------------------------
# Fused kernel: speaker/pitch/cond encoders + VQVAE + VQ + decoder
#               + nearest interp + RoPE + channel mapping + CFM loss
# ----------------------------------------------------------------------------
def _fused_kernel(*refs, sigma_min, offs2, offs4, offsm, half):
    (x_ref, xv_ref, spk_ref, pitch_ref, vflag_ref, mvalid_ref, mel_ref, noise_ref,
     t_ref,
     spk_w, spk_b, pitch_w, pitch_b,
     spk_proj_w, vqc_b, cw_pe, cw_v, cond_b,
     m2_ref, m4_ref, mm_ref,
     e0w, e0b, e1w, e1b, e2w, e2b,
     cb_ref,
     d0w, d0b, d1w, d1b, d2w, d2b,
     g_ref, cos_ref, sinh_ref, sinl_ref,
     mw, mb,
     w1y, w1m, w1c, w1t, b1, w2, b2,
     xrec_ref, vqnum_ref, cfmnum_ref) = refs

    t_scalar = t_ref[pl.program_id(0), 0]                   # f32 scalar from SMEM

    # ---- speaker encoder + pitch encoder + cond 1x1 conv -------------------
    enc_spk = _relu(jnp.dot(spk_ref[...], spk_w[...],
                            preferred_element_type=F32) + spk_b[...])       # (1,128)
    # enc_spk feeds two 1x1 projections -> single (1,128)@(128,256) matmul
    both = jnp.dot(enc_spk, spk_proj_w[...], preferred_element_type=F32)    # (1,256)
    cproj = both[:, :LANE] + vqc_b[...]            # VQ-encoder speaker conditioning
    spk_part = both[:, LANE:]                      # cond_channel_mapping spk rows
    # PitchEncoder: rank-1 embedding on the VPU (broadcast mul-add)
    pe = _relu(pitch_ref[...] * pitch_w[...] + pitch_b[...])                # (Tc,128)
    mvalid = mvalid_ref[...]                                                # (Tc,1)
    pitch_part = (jnp.dot(pe, cw_pe[...], preferred_element_type=F32)
                  + vflag_ref[...] * cw_v[...]) * mvalid
    cond = _relu(spk_part + pitch_part + cond_b[...]) * mvalid              # (Tc,128)

    # ---- VQVAE encoder (k=3 d=2, k=3 d=4, k=1) + speaker conditioning ------
    xv = xv_ref[...]                                                        # (Tp,1)
    h = x_ref[...] * xv
    h = _conv_taps(h, m2_ref, e0w, e0b, offs2, relu=True)
    h = h + cproj
    h = _conv_taps(h, m4_ref, e1w, e1b, offs4, relu=True)
    z_e = (jnp.dot(h, e2w[...], preferred_element_type=F32) + e2b[...]) * xv

    # ---- vector quantisation (padded channels are 0 -> distances OK) -------
    cb = cb_ref[...]                                                        # (E,128)
    z_sq = jnp.sum(z_e * z_e, axis=-1, keepdims=True)
    c_sq = jnp.sum(cb * cb, axis=-1)[None, :]
    dots = jax.lax.dot_general(z_e, cb, (((1,), (1,)), ((), ())),
                               preferred_element_type=F32)
    dist = z_sq - 2.0 * dots + c_sq
    E = dist.shape[-1]
    min_d = jnp.min(dist, axis=-1, keepdims=True)
    iota = jax.lax.broadcasted_iota(jnp.int32, dist.shape, 1)
    idx = jnp.min(jnp.where(dist <= min_d, iota, E), axis=-1, keepdims=True)
    onehot = (iota == idx).astype(F32)
    zq = jnp.dot(onehot, cb, preferred_element_type=F32) * xv
    diff = zq - z_e                                  # zero on padded frames (both masked)
    vqnum_ref[...] = jnp.ones((1, LANE), F32) * jnp.sum(diff * diff)   # SSE partial

    # ---- decoder (k=1, k=3 d=4, k=3 d=2) ------------------------------------
    d = _relu(jnp.dot(zq, d0w[...], preferred_element_type=F32) + d0b[...])
    d = _conv_taps(d, m4_ref, d1w, d1b, offs4, relu=True)
    xr = _conv_taps(d, m2_ref, d2w, d2b, offs2, relu=False)
    xrec_ref[...] = xr * xv

    # ---- nearest interp + RoPE + channel mapping ----------------------------
    # TODO(synk): joint_flag=False detaches z_q here in the reference; forward
    # values are identical, so the flag only matters for the backward pass.
    z_diff = jnp.dot(g_ref[...], zq, preferred_element_type=F32) * mvalid   # (Tc,128)
    # rotate-half via two lane rolls; sign & lane selection folded into sin tables
    roll_p = pltpu.roll(z_diff, shift=half, axis=1)
    roll_m = pltpu.roll(z_diff, shift=LANE - half, axis=1)
    z_pos = (z_diff * cos_ref[...] + roll_p * sinh_ref[...]
             + roll_m * sinl_ref[...])
    mu = _conv_taps(z_pos, mm_ref, mw, mb, offsm, relu=False) * mvalid

    # ---- conditional flow matching loss -------------------------------------
    x1 = mel_ref[...]
    zn = noise_ref[...]
    y = (1.0 - (1.0 - sigma_min) * t_scalar) * zn + t_scalar * x1
    u = x1 - (1.0 - sigma_min) * zn
    h1 = _relu(jnp.dot(y, w1y[...], preferred_element_type=F32)
               + jnp.dot(mu, w1m[...], preferred_element_type=F32)
               + jnp.dot(cond, w1c[...], preferred_element_type=F32)
               + t_scalar * w1t[...] + b1[...])
    pred = jnp.dot(h1, w2[...], preferred_element_type=F32) + b2[...]
    dmse = (pred - u) * mvalid
    cfmnum_ref[...] = jnp.ones((1, LANE), F32) * jnp.sum(dmse * dmse)  # SSE partial


def fused_forward(P, C, batched, t_smem, *, sigma_min, offs2, offs4, offsm, half):
    B, Tp, _ = batched[0].shape
    Tc = batched[3].shape[1]
    shared = [
        P["spk_w"], P["spk_b"], P["pitch_w"], P["pitch_b"],
        P["spk_proj_w"], P["vq_cond_b"], P["cw_pe"], P["cw_v"], P["cond_b"],
        C["mask_d2"], C["mask_d4"], C["mask_map"],
        P["enc0_w"], P["enc0_b"], P["enc1_w"], P["enc1_b"], P["enc2_w"], P["enc2_b"],
        P["codebook"],
        P["dec0_w"], P["dec0_b"], P["dec1_w"], P["dec1_b"], P["dec2_w"], P["dec2_b"],
        C["interp"], C["rope_cos"], C["rope_sin_hi"], C["rope_sin_lo"],
        P["map_w"], P["map_b"],
        P["w1_y"], P["w1_mu"], P["w1_c"], P["w1_t"], P["b1"], P["w2"], P["b2"],
    ]
    in_specs = ([_bspec_batched(a.shape[1:]) for a in batched]
                + [pl.BlockSpec(memory_space=pltpu.MemorySpace.SMEM)]
                + [_bspec_shared(a.shape) for a in shared])
    out_shape = (jax.ShapeDtypeStruct((B, Tp, LANE), F32),
                 jax.ShapeDtypeStruct((B, 1, LANE), F32),
                 jax.ShapeDtypeStruct((B, 1, LANE), F32))
    out_specs = (_bspec_batched((Tp, LANE)),
                 _bspec_batched((1, LANE)),
                 _bspec_batched((1, LANE)))
    kernel = functools.partial(_fused_kernel, sigma_min=sigma_min,
                               offs2=offs2, offs4=offs4, offsm=offsm, half=half)
    return pl.pallas_call(
        kernel, out_shape=out_shape, grid=(B,),
        in_specs=in_specs, out_specs=out_specs,
        compiler_params=pltpu.CompilerParams(
            dimension_semantics=("parallel",),
            vmem_limit_bytes=32 * 1024 * 1024),
    )(*batched, t_smem, *shared)


# ----------------------------------------------------------------------------
# Parameter init (synthetic), lane padding, and static constants
# ----------------------------------------------------------------------------
def init_params(key, *, ppg_dim, encode_dim, spk_emb_size, spk_emb_enc_dim,
                pitch_emb_size, num_emb, target_dim, hidden_kernel_size,
                est_hidden):
    def dense(k, shape):
        fan_in = shape[0] if len(shape) == 2 else shape[0] * shape[1]
        return jax.random.normal(k, shape, F32) / jnp.sqrt(F32(fan_in))

    ks = jax.random.split(key, 16)
    cond_in = spk_emb_enc_dim + pitch_emb_size + 1
    return {
        "spk_w": dense(ks[0], (spk_emb_size, spk_emb_enc_dim)),
        "spk_b": jnp.zeros((spk_emb_enc_dim,), F32),
        "pitch_w": dense(ks[1], (1, pitch_emb_size)),
        "pitch_b": jnp.zeros((pitch_emb_size,), F32),
        "cond_w": dense(ks[2], (cond_in, encode_dim)),
        "cond_b": jnp.zeros((encode_dim,), F32),
        "enc0_w": dense(ks[3], (3, ppg_dim, encode_dim)),
        "enc0_b": jnp.zeros((encode_dim,), F32),
        "enc1_w": dense(ks[4], (3, encode_dim, encode_dim)),
        "enc1_b": jnp.zeros((encode_dim,), F32),
        "enc2_w": dense(ks[5], (1, encode_dim, encode_dim)),
        "enc2_b": jnp.zeros((encode_dim,), F32),
        "vq_cond_w": dense(ks[6], (spk_emb_enc_dim, encode_dim)),
        "vq_cond_b": jnp.zeros((encode_dim,), F32),
        "codebook": jax.random.normal(ks[7], (num_emb, encode_dim), F32),
        "dec0_w": dense(ks[8], (1, encode_dim, encode_dim)),
        "dec0_b": jnp.zeros((encode_dim,), F32),
        "dec1_w": dense(ks[9], (3, encode_dim, encode_dim)),
        "dec1_b": jnp.zeros((encode_dim,), F32),
        "dec2_w": dense(ks[10], (3, encode_dim, ppg_dim)),
        "dec2_b": jnp.zeros((ppg_dim,), F32),
        "map_w": dense(ks[11], (hidden_kernel_size, encode_dim, target_dim)),
        "map_b": jnp.zeros((target_dim,), F32),
        "est_w1": dense(ks[12], (2 * target_dim + encode_dim + 1, est_hidden)),
        "est_b1": jnp.zeros((est_hidden,), F32),
        "est_w2": dense(ks[13], (est_hidden, target_dim)),
        "est_b2": jnp.zeros((target_dim,), F32),
    }


def pad_params(p, *, encode_dim, spk_emb_enc_dim, pitch_emb_size, target_dim):
    """Zero-pad every weight to 128-lane slabs (done once, host side)."""
    P = {}
    P["spk_w"] = pad_to(p["spk_w"], (LANE, LANE))
    P["spk_b"] = pad_to(p["spk_b"][None, :], (1, LANE))
    P["pitch_w"] = pad_to(p["pitch_w"], (1, LANE))
    P["pitch_b"] = pad_to(p["pitch_b"][None, :], (1, LANE))
    s, pe = spk_emb_enc_dim, pitch_emb_size
    cw = p["cond_w"]                       # rows: [spk | pitch_emb | voicing]
    # enc_spk feeds two 1x1 projections -> fuse weights into one (128,256) slab
    P["spk_proj_w"] = jnp.concatenate(
        [pad_to(p["vq_cond_w"], (LANE, LANE)), pad_to(cw[:s], (LANE, LANE))], axis=1)
    P["vq_cond_b"] = pad_to(p["vq_cond_b"][None, :], (1, LANE))
    P["cw_pe"] = pad_to(cw[s:s + pe], (LANE, LANE))
    P["cw_v"] = pad_to(cw[s + pe:s + pe + 1], (1, LANE))
    P["cond_b"] = pad_to(p["cond_b"][None, :], (1, LANE))
    for name in ("enc0", "enc1", "dec1", "dec2"):
        w = p[name + "_w"]
        P[name + "_w"] = pad_to(w, (w.shape[0], LANE, LANE))
        P[name + "_b"] = pad_to(p[name + "_b"][None, :], (1, LANE))
    P["enc2_w"] = pad_to(p["enc2_w"][0], (LANE, LANE))
    P["enc2_b"] = pad_to(p["enc2_b"][None, :], (1, LANE))
    P["dec0_w"] = pad_to(p["dec0_w"][0], (LANE, LANE))
    P["dec0_b"] = pad_to(p["dec0_b"][None, :], (1, LANE))
    P["codebook"] = pad_to(p["codebook"], (p["codebook"].shape[0], LANE))
    P["map_w"] = pad_to(p["map_w"], (p["map_w"].shape[0], LANE, LANE))
    P["map_b"] = pad_to(p["map_b"][None, :], (1, LANE))
    w1, td, ed = p["est_w1"], target_dim, encode_dim
    P["w1_y"] = pad_to(w1[:td], (LANE, LANE))
    P["w1_mu"] = pad_to(w1[td:2 * td], (LANE, LANE))
    P["w1_c"] = pad_to(w1[2 * td:2 * td + ed], (LANE, LANE))
    P["w1_t"] = pad_to(w1[2 * td + ed:], (1, LANE))
    P["b1"] = pad_to(p["est_b1"][None, :], (1, LANE))
    P["w2"] = pad_to(p["est_w2"], (LANE, LANE))
    P["b2"] = pad_to(p["est_b2"][None, :], (1, LANE))
    return P


def tap_masks_and_offsets(T_pad, K, dil, bound):
    """Per-tap in-range masks for a 'same' conv computed over the logical length."""
    pad_l = dil * (K - 1) // 2
    offs = tuple(k * dil - pad_l for k in range(K))
    t = jnp.arange(T_pad)
    m = jnp.stack([((t + o >= 0) & (t + o < bound)).astype(F32) for o in offs])
    return m[..., None], offs                               # (K, T_pad, 1)


def build_constants(*, t_ppg, t_mel, encode_dim, hidden_kernel_size):
    """Static tables (tap masks, interp one-hots, RoPE) built once host-side."""
    Tp = round_up(t_ppg, 8)                 # sublane-dense ppg length
    Tc = round_up(t_mel, 8)                 # even + sublane-dense mel length
    C = {}
    C["mask_d2"], offs2 = tap_masks_and_offsets(Tp, 3, 2, t_ppg)
    C["mask_d4"], offs4 = tap_masks_and_offsets(Tp, 3, 4, t_ppg)
    C["mask_map"], offsm = tap_masks_and_offsets(Tc, hidden_kernel_size, 1, t_mel)

    # nearest interpolation T_ppg -> T_mel as a one-hot gather matrix
    # TODO(synk): at very long sequences this O(Tc*Tp) matmul should become a
    # scalar-prefetch row gather; kept as a single matmul here for robustness.
    src = (jnp.arange(t_mel) * t_ppg // t_mel).astype(jnp.int32)
    G = jax.nn.one_hot(src, t_ppg, dtype=F32)
    C["interp"] = pad_to(G, (Tc, Tp))

    # RoPE tables; rotate-half = two lane rolls with sign/selection folded in
    half = encode_dim // 2
    inv_freq = 1.0 / (10000.0 ** (jnp.arange(0, half, dtype=F32) * 2.0 / encode_dim))
    ang = jnp.arange(Tc, dtype=F32)[:, None] * inv_freq[None, :]
    ang = jnp.concatenate([ang, ang], axis=-1)              # (Tc, encode_dim)
    cos = jnp.cos(ang)
    sin = jnp.sin(ang)
    C["rope_cos"] = pad_to(cos, (Tc, LANE))
    C["rope_sin_hi"] = jnp.zeros((Tc, LANE), F32).at[:, half:2 * half].set(sin[:, half:])
    C["rope_sin_lo"] = jnp.zeros((Tc, LANE), F32).at[:, :half].set(-sin[:, :half])
    offsets = {"d2": offs2, "d4": offs4, "map": offsm}
    return C, offsets, Tp, Tc


# ----------------------------------------------------------------------------
# VQVAEMatcha forward
# ----------------------------------------------------------------------------
def vqvae_matcha_forward(P, C, x, spk_emb, pitch_target, v_flag, mel_target,
                         mel_mask, x_mask, cfm_rng, *, joint_flag,
                         pitch_min, pitch_max, sigma_min,
                         encode_dim, target_dim, offs2, offs4, offsm):
    B, T_ppg, ppg_dim = x.shape
    _, T_mel = pitch_target.shape
    Tp = C["mask_d2"].shape[1]
    Tc = C["mask_map"].shape[1]
    half = encode_dim // 2

    # ---- host-side input prep (lane/sublane padding + masks -> float) ------
    x_pad = pad_to(x.astype(F32), (B, Tp, LANE))
    x_valid = pad_to((~x_mask).astype(F32)[..., None], (B, Tp, 1))
    spk_pad = pad_to(spk_emb.astype(F32)[:, None, :], (B, 1, LANE))
    # TODO(synk): exact PitchEncoder architecture unavailable; approximated as a
    # normalized-pitch embedding combined with the voicing flag.
    norm_pitch = jnp.clip((pitch_target - pitch_min) / (pitch_max - pitch_min),
                          0.0, 1.0).astype(F32)[..., None]
    norm_pitch = pad_to(norm_pitch, (B, Tc, 1))
    vflag = pad_to(v_flag.astype(F32)[..., None], (B, Tc, 1))
    mel_valid = pad_to((~mel_mask).astype(F32)[..., None], (B, Tc, 1))
    mel_c = pad_to(mel_target.astype(F32), (B, Tc, LANE))

    # flow-matching randoms (host RNG); padded channel lanes stay zero so they
    # never enter the loss
    k_t, k_z = jax.random.split(cfm_rng)
    t = jax.random.uniform(k_t, (B, 1), dtype=F32)          # SMEM scalar per batch
    noise = pad_to(jax.random.normal(k_z, (B, Tc, target_dim), F32), (B, Tc, LANE))

    # TODO(synk): joint_flag=False detaches z_q before the CFM branch; forward
    # values are identical, so the flag only matters for the backward pass.
    # TODO(synk): HiddenEncoder transformer stack and the Matcha U-Net estimator
    # are approximated by the masked Conv1d channel mapping + a pointwise MLP.
    batched = [x_pad, x_valid, spk_pad, norm_pitch, vflag, mel_valid, mel_c, noise]
    x_rec_pad, vq_sse, cfm_sse = fused_forward(
        P, C, batched, t, sigma_min=sigma_min,
        offs2=offs2, offs4=offs4, offsm=offsm, half=half)

    x_rec = x_rec_pad[:, :T_ppg, :ppg_dim]
    n_valid_ppg = jnp.maximum(jnp.sum(x_valid), 1.0)
    emb_loss = jnp.sum(vq_sse[:, 0, 0]) / (n_valid_ppg * encode_dim)
    # TODO(synk): straight-through estimator / stop_gradient split between the
    # codebook and commitment terms is a backward-pass concern; forward values
    # are identical.
    commitment = emb_loss
    den = jnp.maximum(jnp.sum(mel_valid), 1.0) * target_dim
    loss = jnp.sum(cfm_sse[:, 0, 0]) / den
    return loss, x_rec, emb_loss, commitment


# ----------------------------------------------------------------------------
if __name__ == "__main__":
    PPG_DIM = 32
    ENCODE_DIM = 16
    SPK_EMB_SIZE = 24
    SPK_EMB_ENC_DIM = 8
    PITCH_EMB_SIZE = 7
    NUM_EMB = 32
    TARGET_DIM = 80
    HIDDEN_KERNEL_SIZE = 5
    PITCH_MIN, PITCH_MAX = 80.0, 400.0
    SIGMA_MIN = 1e-4
    EST_HIDDEN = 64

    B, T_PPG, T_MEL = 2, 12, 16

    root = jax.random.PRNGKey(0)
    kp, kx, ks, kpit, kv, kmel, kcfm = jax.random.split(root, 7)

    raw = init_params(
        kp, ppg_dim=PPG_DIM, encode_dim=ENCODE_DIM, spk_emb_size=SPK_EMB_SIZE,
        spk_emb_enc_dim=SPK_EMB_ENC_DIM, pitch_emb_size=PITCH_EMB_SIZE,
        num_emb=NUM_EMB, target_dim=TARGET_DIM,
        hidden_kernel_size=HIDDEN_KERNEL_SIZE, est_hidden=EST_HIDDEN)
    P = pad_params(raw, encode_dim=ENCODE_DIM, spk_emb_enc_dim=SPK_EMB_ENC_DIM,
                   pitch_emb_size=PITCH_EMB_SIZE, target_dim=TARGET_DIM)
    C, offsets, _, _ = build_constants(t_ppg=T_PPG, t_mel=T_MEL,
                                       encode_dim=ENCODE_DIM,
                                       hidden_kernel_size=HIDDEN_KERNEL_SIZE)

    x = jax.random.normal(kx, (B, T_PPG, PPG_DIM), F32)
    spk_emb = jax.random.normal(ks, (B, SPK_EMB_SIZE), F32)
    pitch_target = jax.random.uniform(kpit, (B, T_MEL), F32,
                                      minval=PITCH_MIN, maxval=PITCH_MAX)
    v_flag = (jax.random.uniform(kv, (B, T_MEL)) > 0.3).astype(F32)
    mel_target = jax.random.normal(kmel, (B, T_MEL, TARGET_DIM), F32)
    mel_mask = jnp.zeros((B, T_MEL), bool).at[1, -3:].set(True)   # True = pad
    x_mask = jnp.zeros((B, T_PPG), bool).at[1, -2:].set(True)     # True = pad

    fwd = jax.jit(functools.partial(
        vqvae_matcha_forward, joint_flag=True,
        pitch_min=PITCH_MIN, pitch_max=PITCH_MAX, sigma_min=SIGMA_MIN,
        encode_dim=ENCODE_DIM, target_dim=TARGET_DIM,
        offs2=offsets["d2"], offs4=offsets["d4"], offsm=offsets["map"]))

    loss, x_rec, emb_loss, commitment = fwd(
        P, C, x, spk_emb, pitch_target, v_flag, mel_target, mel_mask, x_mask, kcfm)

    jax.block_until_ready((loss, x_rec, emb_loss, commitment))
    assert x_rec.shape == (B, T_PPG, PPG_DIM)
    assert loss.shape == () and emb_loss.shape == () and commitment.shape == ()
    assert bool(jnp.isfinite(loss)) and bool(jnp.isfinite(emb_loss))
    print("KERNEL_OK")
</pallas_src>

<mosaic_0001>
module attributes {stable_mosaic.version = 11 : i64} {
  func.func @_fused_kernel(%arg0: i32, %arg1: memref<1x16x128xf32, #tpu.memory_space<vmem>>, %arg2: memref<1x16x1xf32, #tpu.memory_space<vmem>>, %arg3: memref<1x1x128xf32, #tpu.memory_space<vmem>>, %arg4: memref<1x16x1xf32, #tpu.memory_space<vmem>>, %arg5: memref<1x16x1xf32, #tpu.memory_space<vmem>>, %arg6: memref<1x16x1xf32, #tpu.memory_space<vmem>>, %arg7: memref<1x16x128xf32, #tpu.memory_space<vmem>>, %arg8: memref<1x16x128xf32, #tpu.memory_space<vmem>>, %arg9: memref<2x1xf32, #tpu.memory_space<smem>>, %arg10: memref<128x128xf32, #tpu.memory_space<vmem>>, %arg11: memref<1x128xf32, #tpu.memory_space<vmem>>, %arg12: memref<1x128xf32, #tpu.memory_space<vmem>>, %arg13: memref<1x128xf32, #tpu.memory_space<vmem>>, %arg14: memref<128x256xf32, #tpu.memory_space<vmem>>, %arg15: memref<1x128xf32, #tpu.memory_space<vmem>>, %arg16: memref<128x128xf32, #tpu.memory_space<vmem>>, %arg17: memref<1x128xf32, #tpu.memory_space<vmem>>, %arg18: memref<1x128xf32, #tpu.memory_space<vmem>>, %arg19: memref<3x16x1xf32, #tpu.memory_space<vmem>>, %arg20: memref<3x16x1xf32, #tpu.memory_space<vmem>>, %arg21: memref<5x16x1xf32, #tpu.memory_space<vmem>>, %arg22: memref<3x128x128xf32, #tpu.memory_space<vmem>>, %arg23: memref<1x128xf32, #tpu.memory_space<vmem>>, %arg24: memref<3x128x128xf32, #tpu.memory_space<vmem>>, %arg25: memref<1x128xf32, #tpu.memory_space<vmem>>, %arg26: memref<128x128xf32, #tpu.memory_space<vmem>>, %arg27: memref<1x128xf32, #tpu.memory_space<vmem>>, %arg28: memref<32x128xf32, #tpu.memory_space<vmem>>, %arg29: memref<128x128xf32, #tpu.memory_space<vmem>>, %arg30: memref<1x128xf32, #tpu.memory_space<vmem>>, %arg31: memref<3x128x128xf32, #tpu.memory_space<vmem>>, %arg32: memref<1x128xf32, #tpu.memory_space<vmem>>, %arg33: memref<3x128x128xf32, #tpu.memory_space<vmem>>, %arg34: memref<1x128xf32, #tpu.memory_space<vmem>>, %arg35: memref<16x16xf32, #tpu.memory_space<vmem>>, %arg36: memref<16x128xf32, #tpu.memory_space<vmem>>, %arg37: memref<16x128xf32, #tpu.memory_space<vmem>>, %arg38: memref<16x128xf32, #tpu.memory_space<vmem>>, %arg39: memref<5x128x128xf32, #tpu.memory_space<vmem>>, %arg40: memref<1x128xf32, #tpu.memory_space<vmem>>, %arg41: memref<128x128xf32, #tpu.memory_space<vmem>>, %arg42: memref<128x128xf32, #tpu.memory_space<vmem>>, %arg43: memref<128x128xf32, #tpu.memory_space<vmem>>, %arg44: memref<1x128xf32, #tpu.memory_space<vmem>>, %arg45: memref<1x128xf32, #tpu.memory_space<vmem>>, %arg46: memref<128x128xf32, #tpu.memory_space<vmem>>, %arg47: memref<1x128xf32, #tpu.memory_space<vmem>>, %arg48: memref<1x16x128xf32, #tpu.memory_space<vmem>>, %arg49: memref<1x1x128xf32, #tpu.memory_space<vmem>>, %arg50: memref<1x1x128xf32, #tpu.memory_space<vmem>>) attributes {dimension_semantics = [#tpu.dimension_semantics<parallel>], iteration_bounds = array<i64: 2>, scalar_prefetch = 0 : i64, scratch_operands = 0 : i64, tpu.core_type = #tpu.core_type<tc>, window_params = [{transform_indices = @transform_0, window_bounds = array<i64: 1, 16, 128>}, {transform_indices = @transform_1, window_bounds = array<i64: 1, 16, 1>}, {transform_indices = @transform_2, window_bounds = array<i64: 1, 1, 128>}, {transform_indices = @transform_3, window_bounds = array<i64: 1, 16, 1>}, {transform_indices = @transform_4, window_bounds = array<i64: 1, 16, 1>}, {transform_indices = @transform_5, window_bounds = array<i64: 1, 16, 1>}, {transform_indices = @transform_6, window_bounds = array<i64: 1, 16, 128>}, {transform_indices = @transform_7, window_bounds = array<i64: 1, 16, 128>}, {transform_indices = @transform_8, window_bounds = array<i64: 2, 1>}, {pipeline_mode = #tpu.pipeline_mode<synchronous>, transform_indices = @transform_9, window_bounds = array<i64: 128, 128>}, {pipeline_mode = #tpu.pipeline_mode<synchronous>, transform_indices = @transform_10, window_bounds = array<i64: 1, 128>}, {pipeline_mode = #tpu.pipeline_mode<synchronous>, transform_indices = @transform_11, window_bounds = array<i64: 1, 128>}, {pipeline_mode = #tpu.pipeline_mode<synchronous>, transform_indices = @transform_12, window_bounds = array<i64: 1, 128>}, {pipeline_mode = #tpu.pipeline_mode<synchronous>, transform_indices = @transform_13, window_bounds = array<i64: 128, 256>}, {pipeline_mode = #tpu.pipeline_mode<synchronous>, transform_indices = @transform_14, window_bounds = array<i64: 1, 128>}, {pipeline_mode = #tpu.pipeline_mode<synchronous>, transform_indices = @transform_15, window_bounds = array<i64: 128, 128>}, {pipeline_mode = #tpu.pipeline_mode<synchronous>, transform_indices = @transform_16, window_bounds = array<i64: 1, 128>}, {pipeline_mode = #tpu.pipeline_mode<synchronous>, transform_indices = @transform_17, window_bounds = array<i64: 1, 128>}, {pipeline_mode = #tpu.pipeline_mode<synchronous>, transform_indices = @transform_18, window_bounds = array<i64: 3, 16, 1>}, {pipeline_mode = #tpu.pipeline_mode<synchronous>, transform_indices = @transform_19, window_bounds = array<i64: 3, 16, 1>}, {pipeline_mode = #tpu.pipeline_mode<synchronous>, transform_indices = @transform_20, window_bounds = array<i64: 5, 16, 1>}, {pipeline_mode = #tpu.pipeline_mode<synchronous>, transform_indices = @transform_21, window_bounds = array<i64: 3, 128, 128>}, {pipeline_mode = #tpu.pipeline_mode<synchronous>, transform_indices = @transform_22, window_bounds = array<i64: 1, 128>}, {pipeline_mode = #tpu.pipeline_mode<synchronous>, transform_indices = @transform_23, window_bounds = array<i64: 3, 128, 128>}, {pipeline_mode = #tpu.pipeline_mode<synchronous>, transform_indices = @transform_24, window_bounds = array<i64: 1, 128>}, {pipeline_mode = #tpu.pipeline_mode<synchronous>, transform_indices = @transform_25, window_bounds = array<i64: 128, 128>}, {pipeline_mode = #tpu.pipeline_mode<synchronous>, transform_indices = @transform_26, window_bounds = array<i64: 1, 128>}, {pipeline_mode = #tpu.pipeline_mode<synchronous>, transform_indices = @transform_27, window_bounds = array<i64: 32, 128>}, {pipeline_mode = #tpu.pipeline_mode<synchronous>, transform_indices = @transform_28, window_bounds = array<i64: 128, 128>}, {pipeline_mode = #tpu.pipeline_mode<synchronous>, transform_indices = @transform_29, window_bounds = array<i64: 1, 128>}, {pipeline_mode = #tpu.pipeline_mode<synchronous>, transform_indices = @transform_30, window_bounds = array<i64: 3, 128, 128>}, {pipeline_mode = #tpu.pipeline_mode<synchronous>, transform_indices = @transform_31, window_bounds = array<i64: 1, 128>}, {pipeline_mode = #tpu.pipeline_mode<synchronous>, transform_indices = @transform_32, window_bounds = array<i64: 3, 128, 128>}, {pipeline_mode = #tpu.pipeline_mode<synchronous>, transform_indices = @transform_33, window_bounds = array<i64: 1, 128>}, {pipeline_mode = #tpu.pipeline_mode<synchronous>, transform_indices = @transform_34, window_bounds = array<i64: 16, 16>}, {pipeline_mode = #tpu.pipeline_mode<synchronous>, transform_indices = @transform_35, window_bounds = array<i64: 16, 128>}, {pipeline_mode = #tpu.pipeline_mode<synchronous>, transform_indices = @transform_36, window_bounds = array<i64: 16, 128>}, {pipeline_mode = #tpu.pipeline_mode<synchronous>, transform_indices = @transform_37, window_bounds = array<i64: 16, 128>}, {pipeline_mode = #tpu.pipeline_mode<synchronous>, transform_indices = @transform_38, window_bounds = array<i64: 5, 128, 128>}, {pipeline_mode = #tpu.pipeline_mode<synchronous>, transform_indices = @transform_39, window_bounds = array<i64: 1, 128>}, {pipeline_mode = #tpu.pipeline_mode<synchronous>, transform_indices = @transform_40, window_bounds = array<i64: 128, 128>}, {pipeline_mode = #tpu.pipeline_mode<synchronous>, transform_indices = @transform_41, window_bounds = array<i64: 128, 128>}, {pipeline_mode = #tpu.pipeline_mode<synchronous>, transform_indices = @transform_42, window_bounds = array<i64: 128, 128>}, {pipeline_mode = #tpu.pipeline_mode<synchronous>, transform_indices = @transform_43, window_bounds = array<i64: 1, 128>}, {pipeline_mode = #tpu.pipeline_mode<synchronous>, transform_indices = @transform_44, window_bounds = array<i64: 1, 128>}, {pipeline_mode = #tpu.pipeline_mode<synchronous>, transform_indices = @transform_45, window_bounds = array<i64: 128, 128>}, {pipeline_mode = #tpu.pipeline_mode<synchronous>, transform_indices = @transform_46, window_bounds = array<i64: 1, 128>}, {transform_indices = @transform_47, window_bounds = array<i64: 1, 16, 128>}, {transform_indices = @transform_48, window_bounds = array<i64: 1, 1, 128>}, {transform_indices = @transform_49, window_bounds = array<i64: 1, 1, 128>}]} {
    %0 = arith.index_cast %arg0 : i32 to index
    %c0 = arith.constant 0 : index
    %1 = memref.load %arg9[%0, %c0] : memref<2x1xf32, #tpu.memory_space<smem>>
    %c0_0 = arith.constant 0 : index
    %c0_1 = arith.constant 0 : index
    %c0_2 = arith.constant 0 : index
    %2 = vector.load %arg3[%c0_0, %c0_1, %c0_2] : memref<1x1x128xf32, #tpu.memory_space<vmem>>, vector<1x1x128xf32>
    %3 = vector.shape_cast %2 : vector<1x1x128xf32> to vector<1x128xf32>
    %c0_3 = arith.constant 0 : index
    %c0_4 = arith.constant 0 : index
    %4 = vector.load %arg10[%c0_3, %c0_4] : memref<128x128xf32, #tpu.memory_space<vmem>>, vector<128x128xf32>
    %cst = arith.constant dense<0.000000e+00> : vector<1x128xf32>
    %5 = tpu.matmul %3, %4, %cst {dimension_numbers = #tpu.dot_dimension_numbers<[1], [0], [0], [1], [0, 0, 1, 1], [], []>} : vector<1x128xf32>, vector<128x128xf32>, vector<1x128xf32> -> vector<1x128xf32>
    %c0_5 = arith.constant 0 : index
    %c0_6 = arith.constant 0 : index
    %6 = vector.load %arg11[%c0_5, %c0_6] : memref<1x128xf32, #tpu.memory_space<vmem>>, vector<1x128xf32>
    %7 = arith.addf %5, %6 : vector<1x128xf32>
    %cst_7 = arith.constant 0.000000e+00 : f32
    %8 = vector.broadcast %cst_7 : f32 to vector<1x128xf32>
    %9 = arith.maximumf %7, %8 : vector<1x128xf32>
    %c0_8 = arith.constant 0 : index
    %c0_9 = arith.constant 0 : index
    %10 = vector.load %arg14[%c0_8, %c0_9] : memref<128x256xf32, #tpu.memory_space<vmem>>, vector<128x256xf32>
    %cst_10 = arith.constant dense<0.000000e+00> : vector<1x256xf32>
    %11 = tpu.matmul %9, %10, %cst_10 {dimension_numbers = #tpu.dot_dimension_numbers<[1], [0], [0], [1], [0, 0, 1, 1], [], []>} : vector<1x128xf32>, vector<128x256xf32>, vector<1x256xf32> -> vector<1x256xf32>
    %12 = vector.extract_strided_slice %11 {offsets = [0, 0], sizes = [1, 128], strides = [1, 1]} : vector<1x256xf32> to vector<1x128xf32>
    %c0_11 = arith.constant 0 : index
    %c0_12 = arith.constant 0 : index
    %13 = vector.load %arg15[%c0_11, %c0_12] : memref<1x128xf32, #tpu.memory_space<vmem>>, vector<1x128xf32>
    %14 = arith.addf %12, %13 : vector<1x128xf32>
    %15 = vector.extract_strided_slice %11 {offsets = [0, 128], sizes = [1, 128], strides = [1, 1]} : vector<1x256xf32> to vector<1x128xf32>
    %c0_13 = arith.constant 0 : index
    %c0_14 = arith.constant 0 : index
    %c0_15 = arith.constant 0 : index
    %16 = vector.load %arg4[%c0_13, %c0_14, %c0_15] : memref<1x16x1xf32, #tpu.memory_space<vmem>>, vector<1x16x1xf32>
    %17 = vector.shape_cast %16 : vector<1x16x1xf32> to vector<16x1xf32>
    %c0_16 = arith.constant 0 : index
    %c0_17 = arith.constant 0 : index
    %18 = vector.load %arg12[%c0_16, %c0_17] : memref<1x128xf32, #tpu.memory_space<vmem>>, vector<1x128xf32>
    %19 = vector.broadcast %17 : vector<16x1xf32> to vector<16x128xf32>
    %20 = vector.broadcast %18 : vector<1x128xf32> to vector<16x128xf32>
    %21 = arith.mulf %19, %20 : vector<16x128xf32>
    %c0_18 = arith.constant 0 : index
    %c0_19 = arith.constant 0 : index
    %22 = vector.load %arg13[%c0_18, %c0_19] : memref<1x128xf32, #tpu.memory_space<vmem>>, vector<1x128xf32>
    %23 = vector.broadcast %22 : vector<1x128xf32> to vector<16x128xf32>
    %24 = arith.addf %21, %23 : vector<16x128xf32>
    %cst_20 = arith.constant 0.000000e+00 : f32
    %25 = vector.broadcast %cst_20 : f32 to vector<16x128xf32>
    %26 = arith.maximumf %24, %25 : vector<16x128xf32>
    %c0_21 = arith.constant 0 : index
    %c0_22 = arith.constant 0 : index
    %c0_23 = arith.constant 0 : index
    %27 = vector.load %arg6[%c0_21, %c0_22, %c0_23] : memref<1x16x1xf32, #tpu.memory_space<vmem>>, vector<1x16x1xf32>
    %28 = vector.shape_cast %27 : vector<1x16x1xf32> to vector<16x1xf32>
    %c0_24 = arith.constant 0 : index
    %c0_25 = arith.constant 0 : index
    %29 = vector.load %arg16[%c0_24, %c0_25] : memref<128x128xf32, #tpu.memory_space<vmem>>, vector<128x128xf32>
    %cst_26 = arith.constant dense<0.000000e+00> : vector<16x128xf32>
    %30 = tpu.matmul %26, %29, %cst_26 {dimension_numbers = #tpu.dot_dimension_numbers<[1], [0], [0], [1], [0, 0, 1, 1], [], []>} : vector<16x128xf32>, vector<128x128xf32>, vector<16x128xf32> -> vector<16x128xf32>
    %c0_27 = arith.constant 0 : index
    %c0_28 = arith.constant 0 : index
    %c0_29 = arith.constant 0 : index
    %31 = vector.load %arg5[%c0_27, %c0_28, %c0_29] : memref<1x16x1xf32, #tpu.memory_space<vmem>>, vector<1x16x1xf32>
    %32 = vector.shape_cast %31 : vector<1x16x1xf32> to vector<16x1xf32>
    %c0_30 = arith.constant 0 : index
    %c0_31 = arith.constant 0 : index
    %33 = vector.load %arg17[%c0_30, %c0_31] : memref<1x128xf32, #tpu.memory_space<vmem>>, vector<1x128xf32>
    %34 = vector.broadcast %32 : vector<16x1xf32> to vector<16x128xf32>
    %35 = vector.broadcast %33 : vector<1x128xf32> to vector<16x128xf32>
    %36 = arith.mulf %34, %35 : vector<16x128xf32>
    %37 = arith.addf %30, %36 : vector<16x128xf32>
    %38 = vector.broadcast %28 : vector<16x1xf32> to vector<16x128xf32>
    %39 = arith.mulf %37, %38 : vector<16x128xf32>
    %40 = vector.broadcast %15 : vector<1x128xf32> to vector<16x128xf32>
    %41 = arith.addf %40, %39 : vector<16x128xf32>
    %c0_32 = arith.constant 0 : index
    %c0_33 = arith.constant 0 : index
    %42 = vector.load %arg18[%c0_32, %c0_33] : memref<1x128xf32, #tpu.memory_space<vmem>>, vector<1x128xf32>
    %43 = vector.broadcast %42 : vector<1x128xf32> to vector<16x128xf32>
    %44 = arith.addf %41, %43 : vector<16x128xf32>
    %cst_34 = arith.constant 0.000000e+00 : f32
    %45 = vector.broadcast %cst_34 : f32 to vector<16x128xf32>
    %46 = arith.maximumf %44, %45 : vector<16x128xf32>
    %47 = vector.broadcast %28 : vector<16x1xf32> to vector<16x128xf32>
    %48 = arith.mulf %46, %47 : vector<16x128xf32>
    %c0_35 = arith.constant 0 : index
    %c0_36 = arith.constant 0 : index
    %c0_37 = arith.constant 0 : index
    %49 = vector.load %arg2[%c0_35, %c0_36, %c0_37] : memref<1x16x1xf32, #tpu.memory_space<vmem>>, vector<1x16x1xf32>
    %50 = vector.shape_cast %49 : vector<1x16x1xf32> to vector<16x1xf32>
    %c0_38 = arith.constant 0 : index
    %c0_39 = arith.constant 0 : index
    %c0_40 = arith.constant 0 : index
    %51 = vector.load %arg1[%c0_38, %c0_39, %c0_40] : memref<1x16x128xf32, #tpu.memory_space<vmem>>, vector<1x16x128xf32>
    %52 = vector.shape_cast %51 : vector<1x16x128xf32> to vector<16x128xf32>
    %53 = vector.broadcast %50 : vector<16x1xf32> to vector<16x128xf32>
    %54 = arith.mulf %52, %53 : vector<16x128xf32>
    %cst_41 = arith.constant 0.000000e+00 : f32
    %55 = vector.broadcast %cst_41 : f32 to vector<16x128xf32>
    %c2_i32 = arith.constant 2 : i32
    %56 = tpu.dynamic_rotate %54 by %c2_i32 dim 0 : vector<16x128xf32>, i32 -> vector<16x128xf32>
    %c0_42 = arith.constant 0 : index
    %c0_43 = arith.constant 0 : index
    %c0_44 = arith.constant 0 : index
    %57 = vector.load %arg19[%c0_42, %c0_43, %c0_44] : memref<3x16x1xf32, #tpu.memory_space<vmem>>, vector<1x16x1xf32>
    %58 = vector.shape_cast %57 : vector<1x16x1xf32> to vector<16x1xf32>
    %59 = vector.broadcast %58 : vector<16x1xf32> to vector<16x128xf32>
    %60 = arith.mulf %56, %59 : vector<16x128xf32>
    %c0_45 = arith.constant 0 : index
    %c0_46 = arith.constant 0 : index
    %c0_47 = arith.constant 0 : index
    %61 = vector.load %arg22[%c0_45, %c0_46, %c0_47] : memref<3x128x128xf32, #tpu.memory_space<vmem>>, vector<1x128x128xf32>
    %62 = vector.shape_cast %61 : vector<1x128x128xf32> to vector<128x128xf32>
    %cst_48 = arith.constant dense<0.000000e+00> : vector<16x128xf32>
    %63 = tpu.matmul %60, %62, %cst_48 {dimension_numbers = #tpu.dot_dimension_numbers<[1], [0], [0], [1], [0, 0, 1, 1], [], []>} : vector<16x128xf32>, vector<128x128xf32>, vector<16x128xf32> -> vector<16x128xf32>
    %64 = arith.addf %55, %63 : vector<16x128xf32>
    %c1 = arith.constant 1 : index
    %c0_49 = arith.constant 0 : index
    %c0_50 = arith.constant 0 : index
    %65 = vector.load %arg22[%c1, %c0_49, %c0_50] : memref<3x128x128xf32, #tpu.memory_space<vmem>>, vector<1x128x128xf32>
    %66 = vector.shape_cast %65 : vector<1x128x128xf32> to vector<128x128xf32>
    %cst_51 = arith.constant dense<0.000000e+00> : vector<16x128xf32>
    %67 = tpu.matmul %54, %66, %cst_51 {dimension_numbers = #tpu.dot_dimension_numbers<[1], [0], [0], [1], [0, 0, 1, 1], [], []>} : vector<16x128xf32>, vector<128x128xf32>, vector<16x128xf32> -> vector<16x128xf32>
    %68 = arith.addf %64, %67 : vector<16x128xf32>
    %c14_i32 = arith.constant 14 : i32
    %69 = tpu.dynamic_rotate %54 by %c14_i32 dim 0 : vector<16x128xf32>, i32 -> vector<16x128xf32>
    %c2 = arith.constant 2 : index
    %c0_52 = arith.constant 0 : index
    %c0_53 = arith.constant 0 : index
    %70 = vector.load %arg19[%c2, %c0_52, %c0_53] : memref<3x16x1xf32, #tpu.memory_space<vmem>>, vector<1x16x1xf32>
    %71 = vector.shape_cast %70 : vector<1x16x1xf32> to vector<16x1xf32>
    %72 = vector.broadcast %71 : vector<16x1xf32> to vector<16x128xf32>
    %73 = arith.mulf %69, %72 : vector<16x128xf32>
    %c2_54 = arith.constant 2 : index
    %c0_55 = arith.constant 0 : index
    %c0_56 = arith.constant 0 : index
    %74 = vector.load %arg22[%c2_54, %c0_55, %c0_56] : memref<3x128x128xf32, #tpu.memory_space<vmem>>, vector<1x128x128xf32>
    %75 = vector.shape_cast %74 : vector<1x128x128xf32> to vector<128x128xf32>
    %cst_57 = arith.constant dense<0.000000e+00> : vector<16x128xf32>
    %76 = tpu.matmul %73, %75, %cst_57 {dimension_numbers = #tpu.dot_dimension_numbers<[1], [0], [0], [1], [0, 0, 1, 1], [], []>} : vector<16x128xf32>, vector<128x128xf32>, vector<16x128xf32> -> vector<16x128xf32>
    %77 = arith.addf %68, %76 : vector<16x128xf32>
    %c0_58 = arith.constant 0 : index
    %c0_59 = arith.constant 0 : index
    %78 = vector.load %arg23[%c0_58, %c0_59] : memref<1x128xf32, #tpu.memory_space<vmem>>, vector<1x128xf32>
    %79 = vector.broadcast %78 : vector<1x128xf32> to vector<16x128xf32>
    %80 = arith.addf %77, %79 : vector<16x128xf32>
    %cst_60 = arith.constant 0.000000e+00 : f32
    %81 = vector.broadcast %cst_60 : f32 to vector<16x128xf32>
    %82 = arith.maximumf %80, %81 : vector<16x128xf32>
    %83 = vector.broadcast %14 : vector<1x128xf32> to vector<16x128xf32>
    %84 = arith.addf %82, %83 : vector<16x128xf32>
    %cst_61 = arith.constant 0.000000e+00 : f32
    %85 = vector.broadcast %cst_61 : f32 to vector<16x128xf32>
    %c4_i32 = arith.constant 4 : i32
    %86 = tpu.dynamic_rotate %84 by %c4_i32 dim 0 : vector<16x128xf32>, i32 -> vector<16x128xf32>
    %c0_62 = arith.constant 0 : index
    %c0_63 = arith.constant 0 : index
    %c0_64 = arith.constant 0 : index
    %87 = vector.load %arg20[%c0_62, %c0_63, %c0_64] : memref<3x16x1xf32, #tpu.memory_space<vmem>>, vector<1x16x1xf32>
    %88 = vector.shape_cast %87 : vector<1x16x1xf32> to vector<16x1xf32>
    %89 = vector.broadcast %88 : vector<16x1xf32> to vector<16x128xf32>
    %90 = arith.mulf %86, %89 : vector<16x128xf32>
    %c0_65 = arith.constant 0 : index
    %c0_66 = arith.constant 0 : index
    %c0_67 = arith.constant 0 : index
    %91 = vector.load %arg24[%c0_65, %c0_66, %c0_67] : memref<3x128x128xf32, #tpu.memory_space<vmem>>, vector<1x128x128xf32>
    %92 = vector.shape_cast %91 : vector<1x128x128xf32> to vector<128x128xf32>
    %cst_68 = arith.constant dense<0.000000e+00> : vector<16x128xf32>
    %93 = tpu.matmul %90, %92, %cst_68 {dimension_numbers = #tpu.dot_dimension_numbers<[1], [0], [0], [1], [0, 0, 1, 1], [], []>} : vector<16x128xf32>, vector<128x128xf32>, vector<16x128xf32> -> vector<16x128xf32>
    %94 = arith.addf %85, %93 : vector<16x128xf32>
    %c1_69 = arith.constant 1 : index
    %c0_70 = arith.constant 0 : index
    %c0_71 = arith.constant 0 : index
    %95 = vector.load %arg24[%c1_69, %c0_70, %c0_71] : memref<3x128x128xf32, #tpu.memory_space<vmem>>, vector<1x128x128xf32>
    %96 = vector.shape_cast %95 : vector<1x128x128xf32> to vector<128x128xf32>
    %cst_72 = arith.constant dense<0.000000e+00> : vector<16x128xf32>
    %97 = tpu.matmul %84, %96, %cst_72 {dimension_numbers = #tpu.dot_dimension_numbers<[1], [0], [0], [1], [0, 0, 1, 1], [], []>} : vector<16x128xf32>, vector<128x128xf32>, vector<16x128xf32> -> vector<16x128xf32>
    %98 = arith.addf %94, %97 : vector<16x128xf32>
    %c12_i32 = arith.constant 12 : i32
    %99 = tpu.dynamic_rotate %84 by %c12_i32 dim 0 : vector<16x128xf32>, i32 -> vector<16x128xf32>
    %c2_73 = arith.constant 2 : index
    %c0_74 = arith.constant 0 : index
    %c0_75 = arith.constant 0 : index
    %100 = vector.load %arg20[%c2_73, %c0_74, %c0_75] : memref<3x16x1xf32, #tpu.memory_space<vmem>>, vector<1x16x1xf32>
    %101 = vector.shape_cast %100 : vector<1x16x1xf32> to vector<16x1xf32>
    %102 = vector.broadcast %101 : vector<16x1xf32> to vector<16x128xf32>
    %103 = arith.mulf %99, %102 : vector<16x128xf32>
    %c2_76 = arith.constant 2 : index
    %c0_77 = arith.constant 0 : index
    %c0_78 = arith.constant 0 : index
    %104 = vector.load %arg24[%c2_76, %c0_77, %c0_78] : memref<3x128x128xf32, #tpu.memory_space<vmem>>, vector<1x128x128xf32>
    %105 = vector.shape_cast %104 : vector<1x128x128xf32> to vector<128x128xf32>
    %cst_79 = arith.constant dense<0.000000e+00> : vector<16x128xf32>
    %106 = tpu.matmul %103, %105, %cst_79 {dimension_numbers = #tpu.dot_dimension_numbers<[1], [0], [0], [1], [0, 0, 1, 1], [], []>} : vector<16x128xf32>, vector<128x128xf32>, vector<16x128xf32> -> vector<16x128xf32>
    %107 = arith.addf %98, %106 : vector<16x128xf32>
    %c0_80 = arith.constant 0 : index
    %c0_81 = arith.constant 0 : index
    %108 = vector.load %arg25[%c0_80, %c0_81] : memref<1x128xf32, #tpu.memory_space<vmem>>, vector<1x128xf32>
    %109 = vector.broadcast %108 : vector<1x128xf32> to vector<16x128xf32>
    %110 = arith.addf %107, %109 : vector<16x128xf32>
    %cst_82 = arith.constant 0.000000e+00 : f32
    %111 = vector.broadcast %cst_82 : f32 to vector<16x128xf32>
    %112 = arith.maximumf %110, %111 : vector<16x128xf32>
    %c0_83 = arith.constant 0 : index
    %c0_84 = arith.constant 0 : index
    %113 = vector.load %arg26[%c0_83, %c0_84] : memref<128x128xf32, #tpu.memory_space<vmem>>, vector<128x128xf32>
    %cst_85 = arith.constant dense<0.000000e+00> : vector<16x128xf32>
    %114 = tpu.matmul %112, %113, %cst_85 {dimension_numbers = #tpu.dot_dimension_numbers<[1], [0], [0], [1], [0, 0, 1, 1], [], []>} : vector<16x128xf32>, vector<128x128xf32>, vector<16x128xf32> -> vector<16x128xf32>
    %c0_86 = arith.constant 0 : index
    %c0_87 = arith.constant 0 : index
    %115 = vector.load %arg27[%c0_86, %c0_87] : memref<1x128xf32, #tpu.memory_space<vmem>>, vector<1x128xf32>
    %116 = vector.broadcast %115 : vector<1x128xf32> to vector<16x128xf32>
    %117 = arith.addf %114, %116 : vector<16x128xf32>
    %118 = vector.broadcast %50 : vector<16x1xf32> to vector<16x128xf32>
    %119 = arith.mulf %117, %118 : vector<16x128xf32>
    %c0_88 = arith.constant 0 : index
    %c0_89 = arith.constant 0 : index
    %120 = vector.load %arg28[%c0_88, %c0_89] : memref<32x128xf32, #tpu.memory_space<vmem>>, vector<32x128xf32>
    %121 = arith.mulf %119, %119 : vector<16x128xf32>
    %cst_90 = arith.constant dense<0.000000e+00> : vector<16xf32>
    %122 = vector.multi_reduction <add>, %121, %cst_90 [1] : vector<16x128xf32> to vector<16xf32>
    %123 = vector.shape_cast %122 : vector<16xf32> to vector<16x1xf32>
    %124 = arith.mulf %120, %120 : vector<32x128xf32>
    %cst_91 = arith.constant dense<0.000000e+00> : vector<32xf32>
    %125 = vector.multi_reduction <add>, %124, %cst_91 [1] : vector<32x128xf32> to vector<32xf32>
    %126 = vector.shape_cast %125 : vector<32xf32> to vector<1x32xf32>
    %cst_92 = arith.constant dense<0.000000e+00> : vector<16x32xf32>
    %127 = tpu.matmul %119, %120, %cst_92 {dimension_numbers = #tpu.dot_dimension_numbers<[1], [1], [0], [0], [0, 0, 1, 0], [], []>} : vector<16x128xf32>, vector<32x128xf32>, vector<16x32xf32> -> vector<16x32xf32>
    %cst_93 = arith.constant 2.000000e+00 : f32
    %128 = vector.broadcast %cst_93 : f32 to vector<16x32xf32>
    %129 = arith.mulf %128, %127 : vector<16x32xf32>
    %130 = vector.broadcast %123 : vector<16x1xf32> to vector<16x32xf32>
    %131 = arith.subf %130, %129 : vector<16x32xf32>
    %132 = vector.broadcast %126 : vector<1x32xf32> to vector<16x32xf32>
    %133 = arith.addf %131, %132 : vector<16x32xf32>
    %cst_94 = arith.constant dense<0x7F800000> : vector<16xf32>
    %134 = vector.multi_reduction <minimumf>, %133, %cst_94 [1] : vector<16x32xf32> to vector<16xf32>
    %135 = vector.shape_cast %134 : vector<16xf32> to vector<16x1xf32>
    %136 = tpu.iota {dimensions = array<i32: 1>} : vector<16x32xi32>
    %137 = vector.broadcast %135 : vector<16x1xf32> to vector<16x32xf32>
    %138 = arith.cmpf ole, %133, %137 : vector<16x32xf32>
    %c32_i32 = arith.constant 32 : i32
    %139 = vector.broadcast %c32_i32 : i32 to vector<16x32xi32>
    %140 = arith.select %138, %136, %139 : vector<16x32xi1>, vector<16x32xi32>
    %cst_95 = arith.constant dense<2147483647> : vector<16xi32>
    %141 = vector.multi_reduction <minsi>, %140, %cst_95 [1] : vector<16x32xi32> to vector<16xi32>
    %142 = vector.shape_cast %141 : vector<16xi32> to vector<16x1xi32>
    %143 = vector.broadcast %142 : vector<16x1xi32> to vector<16x32xi32>
    %144 = arith.cmpi eq, %136, %143 : vector<16x32xi32>
    %145 = arith.extui %144 : vector<16x32xi1> to vector<16x32xi32>
    %146 = arith.sitofp %145 : vector<16x32xi32> to vector<16x32xf32>
    %cst_96 = arith.constant dense<0.000000e+00> : vector<16x128xf32>
    %147 = tpu.matmul %146, %120, %cst_96 {dimension_numbers = #tpu.dot_dimension_numbers<[1], [0], [0], [1], [0, 0, 1, 1], [], []>} : vector<16x32xf32>, vector<32x128xf32>, vector<16x128xf32> -> vector<16x128xf32>
    %148 = vector.broadcast %50 : vector<16x1xf32> to vector<16x128xf32>
    %149 = arith.mulf %147, %148 : vector<16x128xf32>
    %150 = arith.subf %149, %119 : vector<16x128xf32>
    %cst_97 = arith.constant 1.000000e+00 : f32
    %151 = vector.broadcast %cst_97 : f32 to vector<1x128xf32>
    %152 = arith.mulf %150, %150 : vector<16x128xf32>
    %153 = vector.shape_cast %152 : vector<16x128xf32> to vector<1x16x128xf32>
    %cst_98 = arith.constant dense<0.000000e+00> : vector<1xf32>
    %154 = vector.multi_reduction <add>, %153, %cst_98 [1, 2] : vector<1x16x128xf32> to vector<1xf32>
    %155 = vector.shape_cast %154 : vector<1xf32> to vector<1x1x1xf32>
    %156 = vector.extract %155[0, 0, 0] : f32 from vector<1x1x1xf32>
    %157 = vector.broadcast %156 : f32 to vector<1x128xf32>
    %158 = arith.mulf %151, %157 : vector<1x128xf32>
    %c0_99 = arith.constant 0 : index
    %c0_100 = arith.constant 0 : index
    %c0_101 = arith.constant 0 : index
    %159 = vector.load %arg49[%c0_99, %c0_100, %c0_101] : memref<1x1x128xf32, #tpu.memory_space<vmem>>, vector<1x1x128xf32>
    %160 = vector.shape_cast %159 : vector<1x1x128xf32> to vector<1x128xf32>
    %161 = vector.shape_cast %158 : vector<1x128xf32> to vector<1x1x128xf32>
    tpu.vector_store %arg49[%c0_99, %c0_100, %c0_101], %161 {strides = array<i32>} : memref<1x1x128xf32, #tpu.memory_space<vmem>>, vector<1x1x128xf32>,
    %c0_102 = arith.constant 0 : index
    %c0_103 = arith.constant 0 : index
    %162 = vector.load %arg29[%c0_102, %c0_103] : memref<128x128xf32, #tpu.memory_space<vmem>>, vector<128x128xf32>
    %cst_104 = arith.constant dense<0.000000e+00> : vector<16x128xf32>
    %163 = tpu.matmul %149, %162, %cst_104 {dimension_numbers = #tpu.dot_dimension_numbers<[1], [0], [0], [1], [0, 0, 1, 1], [], []>} : vector<16x128xf32>, vector<128x128xf32>, vector<16x128xf32> -> vector<16x128xf32>
    %c0_105 = arith.constant 0 : index
    %c0_106 = arith.constant 0 : index
    %164 = vector.load %arg30[%c0_105, %c0_106] : memref<1x128xf32, #tpu.memory_space<vmem>>, vector<1x128xf32>
    %165 = vector.broadcast %164 : vector<1x128xf32> to vector<16x128xf32>
    %166 = arith.addf %163, %165 : vector<16x128xf32>
    %cst_107 = arith.constant 0.000000e+00 : f32
    %167 = vector.broadcast %cst_107 : f32 to vector<16x128xf32>
    %168 = arith.maximumf %166, %167 : vector<16x128xf32>
    %cst_108 = arith.constant 0.000000e+00 : f32
    %169 = vector.broadcast %cst_108 : f32 to vector<16x128xf32>
    %c4_i32_109 = arith.constant 4 : i32
    %170 = tpu.dynamic_rotate %168 by %c4_i32_109 dim 0 : vector<16x128xf32>, i32 -> vector<16x128xf32>
    %c0_110 = arith.constant 0 : index
    %c0_111 = arith.constant 0 : index
    %c0_112 = arith.constant 0 : index
    %171 = vector.load %arg20[%c0_110, %c0_111, %c0_112] : memref<3x16x1xf32, #tpu.memory_space<vmem>>, vector<1x16x1xf32>
    %172 = vector.shape_cast %171 : vector<1x16x1xf32> to vector<16x1xf32>
    %173 = vector.broadcast %172 : vector<16x1xf32> to vector<16x128xf32>
    %174 = arith.mulf %170, %173 : vector<16x128xf32>
    %c0_113 = arith.constant 0 : index
    %c0_114 = arith.constant 0 : index
    %c0_115 = arith.constant 0 : index
    %175 = vector.load %arg31[%c0_113, %c0_114, %c0_115] : memref<3x128x128xf32, #tpu.memory_space<vmem>>, vector<1x128x128xf32>
    %176 = vector.shape_cast %175 : vector<1x128x128xf32> to vector<128x128xf32>
    %cst_116 = arith.constant dense<0.000000e+00> : vector<16x128xf32>
    %177 = tpu.matmul %174, %176, %cst_116 {dimension_numbers = #tpu.dot_dimension_numbers<[1], [0], [0], [1], [0, 0, 1, 1], [], []>} : vector<16x128xf32>, vector<128x128xf32>, vector<16x128xf32> -> vector<16x128xf32>
    %178 = arith.addf %169, %177 : vector<16x128xf32>
    %c1_117 = arith.constant 1 : index
    %c0_118 = arith.constant 0 : index
    %c0_119 = arith.constant 0 : index
    %179 = vector.load %arg31[%c1_117, %c0_118, %c0_119] : memref<3x128x128xf32, #tpu.memory_space<vmem>>, vector<1x128x128xf32>
    %180 = vector.shape_cast %179 : vector<1x128x128xf32> to vector<128x128xf32>
    %cst_120 = arith.constant dense<0.000000e+00> : vector<16x128xf32>
    %181 = tpu.matmul %168, %180, %cst_120 {dimension_numbers = #tpu.dot_dimension_numbers<[1], [0], [0], [1], [0, 0, 1, 1], [], []>} : vector<16x128xf32>, vector<128x128xf32>, vector<16x128xf32> -> vector<16x128xf32>
    %182 = arith.addf %178, %181 : vector<16x128xf32>
    %c12_i32_121 = arith.constant 12 : i32
    %183 = tpu.dynamic_rotate %168 by %c12_i32_121 dim 0 : vector<16x128xf32>, i32 -> vector<16x128xf32>
    %c2_122 = arith.constant 2 : index
    %c0_123 = arith.constant 0 : index
    %c0_124 = arith.constant 0 : index
    %184 = vector.load %arg20[%c2_122, %c0_123, %c0_124] : memref<3x16x1xf32, #tpu.memory_space<vmem>>, vector<1x16x1xf32>
    %185 = vector.shape_cast %184 : vector<1x16x1xf32> to vector<16x1xf32>
    %186 = vector.broadcast %185 : vector<16x1xf32> to vector<16x128xf32>
    %187 = arith.mulf %183, %186 : vector<16x128xf32>
    %c2_125 = arith.constant 2 : index
    %c0_126 = arith.constant 0 : index
    %c0_127 = arith.constant 0 : index
    %188 = vector.load %arg31[%c2_125, %c0_126, %c0_127] : memref<3x128x128xf32, #tpu.memory_space<vmem>>, vector<1x128x128xf32>
    %189 = vector.shape_cast %188 : vector<1x128x128xf32> to vector<128x128xf32>
    %cst_128 = arith.constant dense<0.000000e+00> : vector<16x128xf32>
    %190 = tpu.matmul %187, %189, %cst_128 {dimension_numbers = #tpu.dot_dimension_numbers<[1], [0], [0], [1], [0, 0, 1, 1], [], []>} : vector<16x128xf32>, vector<128x128xf32>, vector<16x128xf32> -> vector<16x128xf32>
    %191 = arith.addf %182, %190 : vector<16x128xf32>
    %c0_129 = arith.constant 0 : index
    %c0_130 = arith.constant 0 : index
    %192 = vector.load %arg32[%c0_129, %c0_130] : memref<1x128xf32, #tpu.memory_space<vmem>>, vector<1x128xf32>
    %193 = vector.broadcast %192 : vector<1x128xf32> to vector<16x128xf32>
    %194 = arith.addf %191, %193 : vector<16x128xf32>
    %cst_131 = arith.constant 0.000000e+00 : f32
    %195 = vector.broadcast %cst_131 : f32 to vector<16x128xf32>
    %196 = arith.maximumf %194, %195 : vector<16x128xf32>
    %cst_132 = arith.constant 0.000000e+00 : f32
    %197 = vector.broadcast %cst_132 : f32 to vector<16x128xf32>
    %c2_i32_133 = arith.constant 2 : i32
    %198 = tpu.dynamic_rotate %196 by %c2_i32_133 dim 0 : vector<16x128xf32>, i32 -> vector<16x128xf32>
    %c0_134 = arith.constant 0 : index
    %c0_135 = arith.constant 0 : index
    %c0_136 = arith.constant 0 : index
    %199 = vector.load %arg19[%c0_134, %c0_135, %c0_136] : memref<3x16x1xf32, #tpu.memory_space<vmem>>, vector<1x16x1xf32>
    %200 = vector.shape_cast %199 : vector<1x16x1xf32> to vector<16x1xf32>
    %201 = vector.broadcast %200 : vector<16x1xf32> to vector<16x128xf32>
    %202 = arith.mulf %198, %201 : vector<16x128xf32>
    %c0_137 = arith.constant 0 : index
    %c0_138 = arith.constant 0 : index
    %c0_139 = arith.constant 0 : index
    %203 = vector.load %arg33[%c0_137, %c0_138, %c0_139] : memref<3x128x128xf32, #tpu.memory_space<vmem>>, vector<1x128x128xf32>
    %204 = vector.shape_cast %203 : vector<1x128x128xf32> to vector<128x128xf32>
    %cst_140 = arith.constant dense<0.000000e+00> : vector<16x128xf32>
    %205 = tpu.matmul %202, %204, %cst_140 {dimension_numbers = #tpu.dot_dimension_numbers<[1], [0], [0], [1], [0, 0, 1, 1], [], []>} : vector<16x128xf32>, vector<128x128xf32>, vector<16x128xf32> -> vector<16x128xf32>
    %206 = arith.addf %197, %205 : vector<16x128xf32>
    %c1_141 = arith.constant 1 : index
    %c0_142 = arith.constant 0 : index
    %c0_143 = arith.constant 0 : index
    %207 = vector.load %arg33[%c1_141, %c0_142, %c0_143] : memref<3x128x128xf32, #tpu.memory_space<vmem>>, vector<1x128x128xf32>
    %208 = vector.shape_cast %207 : vector<1x128x128xf32> to vector<128x128xf32>
    %cst_144 = arith.constant dense<0.000000e+00> : vector<16x128xf32>
    %209 = tpu.matmul %196, %208, %cst_144 {dimension_numbers = #tpu.dot_dimension_numbers<[1], [0], [0], [1], [0, 0, 1, 1], [], []>} : vector<16x128xf32>, vector<128x128xf32>, vector<16x128xf32> -> vector<16x128xf32>
    %210 = arith.addf %206, %209 : vector<16x128xf32>
    %c14_i32_145 = arith.constant 14 : i32
    %211 = tpu.dynamic_rotate %196 by %c14_i32_145 dim 0 : vector<16x128xf32>, i32 -> vector<16x128xf32>
    %c2_146 = arith.constant 2 : index
    %c0_147 = arith.constant 0 : index
    %c0_148 = arith.constant 0 : index
    %212 = vector.load %arg19[%c2_146, %c0_147, %c0_148] : memref<3x16x1xf32, #tpu.memory_space<vmem>>, vector<1x16x1xf32>
    %213 = vector.shape_cast %212 : vector<1x16x1xf32> to vector<16x1xf32>
    %214 = vector.broadcast %213 : vector<16x1xf32> to vector<16x128xf32>
    %215 = arith.mulf %211, %214 : vector<16x128xf32>
    %c2_149 = arith.constant 2 : index
    %c0_150 = arith.constant 0 : index
    %c0_151 = arith.constant 0 : index
    %216 = vector.load %arg33[%c2_149, %c0_150, %c0_151] : memref<3x128x128xf32, #tpu.memory_space<vmem>>, vector<1x128x128xf32>
    %217 = vector.shape_cast %216 : vector<1x128x128xf32> to vector<128x128xf32>
    %cst_152 = arith.constant dense<0.000000e+00> : vector<16x128xf32>
    %218 = tpu.matmul %215, %217, %cst_152 {dimension_numbers = #tpu.dot_dimension_numbers<[1], [0], [0], [1], [0, 0, 1, 1], [], []>} : vector<16x128xf32>, vector<128x128xf32>, vector<16x128xf32> -> vector<16x128xf32>
    %219 = arith.addf %210, %218 : vector<16x128xf32>
    %c0_153 = arith.constant 0 : index
    %c0_154 = arith.constant 0 : index
    %220 = vector.load %arg34[%c0_153, %c0_154] : memref<1x128xf32, #tpu.memory_space<vmem>>, vector<1x128xf32>
    %221 = vector.broadcast %220 : vector<1x128xf32> to vector<16x128xf32>
    %222 = arith.addf %219, %221 : vector<16x128xf32>
    %223 = vector.broadcast %50 : vector<16x1xf32> to vector<16x128xf32>
    %224 = arith.mulf %222, %223 : vector<16x128xf32>
    %c0_155 = arith.constant 0 : index
    %c0_156 = arith.constant 0 : index
    %c0_157 = arith.constant 0 : index
    %225 = vector.load %arg48[%c0_155, %c0_156, %c0_157] : memref<1x16x128xf32, #tpu.memory_space<vmem>>, vector<1x16x128xf32>
    %226 = vector.shape_cast %225 : vector<1x16x128xf32> to vector<16x128xf32>
    %227 = vector.shape_cast %224 : vector<16x128xf32> to vector<1x16x128xf32>
    tpu.vector_store %arg48[%c0_155, %c0_156, %c0_157], %227 {strides = array<i32>} : memref<1x16x128xf32, #tpu.memory_space<vmem>>, vector<1x16x128xf32>,
    %c0_158 = arith.constant 0 : index
    %c0_159 = arith.constant 0 : index
    %228 = vector.load %arg35[%c0_158, %c0_159] : memref<16x16xf32, #tpu.memory_space<vmem>>, vector<16x16xf32>
    %cst_160 = arith.constant dense<0.000000e+00> : vector<16x128xf32>
    %229 = tpu.matmul %228, %149, %cst_160 {dimension_numbers = #tpu.dot_dimension_numbers<[1], [0], [0], [1], [0, 0, 1, 1], [], []>} : vector<16x16xf32>, vector<16x128xf32>, vector<16x128xf32> -> vector<16x128xf32>
    %230 = vector.broadcast %28 : vector<16x1xf32> to vector<16x128xf32>
    %231 = arith.mulf %229, %230 : vector<16x128xf32>
    %c8_i32 = arith.constant 8 : i32
    %232 = tpu.dynamic_rotate %231 by %c8_i32 dim 1 : vector<16x128xf32>, i32 -> vector<16x128xf32>
    %c120_i32 = arith.constant 120 : i32
    %233 = tpu.dynamic_rotate %231 by %c120_i32 dim 1 : vector<16x128xf32>, i32 -> vector<16x128xf32>
    %c0_161 = arith.constant 0 : index
    %c0_162 = arith.constant 0 : index
    %234 = vector.load %arg36[%c0_161, %c0_162] : memref<16x128xf32, #tpu.memory_space<vmem>>, vector<16x128xf32>
    %235 = arith.mulf %231, %234 : vector<16x128xf32>
    %c0_163 = arith.constant 0 : index
    %c0_164 = arith.constant 0 : index
    %236 = vector.load %arg37[%c0_163, %c0_164] : memref<16x128xf32, #tpu.memory_space<vmem>>, vector<16x128xf32>
    %237 = arith.mulf %232, %236 : vector<16x128xf32>
    %238 = arith.addf %235, %237 : vector<16x128xf32>
    %c0_165 = arith.constant 0 : index
    %c0_166 = arith.constant 0 : index
    %239 = vector.load %arg38[%c0_165, %c0_166] : memref<16x128xf32, #tpu.memory_space<vmem>>, vector<16x128xf32>
    %240 = arith.mulf %233, %239 : vector<16x128xf32>
    %241 = arith.addf %238, %240 : vector<16x128xf32>
    %cst_167 = arith.constant 0.000000e+00 : f32
    %242 = vector.broadcast %cst_167 : f32 to vector<16x128xf32>
    %c2_i32_168 = arith.constant 2 : i32
    %243 = tpu.dynamic_rotate %241 by %c2_i32_168 dim 0 : vector<16x128xf32>, i32 -> vector<16x128xf32>
    %c0_169 = arith.constant 0 : index
    %c0_170 = arith.constant 0 : index
    %c0_171 = arith.constant 0 : index
    %244 = vector.load %arg21[%c0_169, %c0_170, %c0_171] : memref<5x16x1xf32, #tpu.memory_space<vmem>>, vector<1x16x1xf32>
    %245 = vector.shape_cast %244 : vector<1x16x1xf32> to vector<16x1xf32>
    %246 = vector.broadcast %245 : vector<16x1xf32> to vector<16x128xf32>
    %247 = arith.mulf %243, %246 : vector<16x128xf32>
    %c0_172 = arith.constant 0 : index
    %c0_173 = arith.constant 0 : index
    %c0_174 = arith.constant 0 : index
    %248 = vector.load %arg39[%c0_172, %c0_173, %c0_174] : memref<5x128x128xf32, #tpu.memory_space<vmem>>, vector<1x128x128xf32>
    %249 = vector.shape_cast %248 : vector<1x128x128xf32> to vector<128x128xf32>
    %cst_175 = arith.constant dense<0.000000e+00> : vector<16x128xf32>
    %250 = tpu.matmul %247, %249, %cst_175 {dimension_numbers = #tpu.dot_dimension_numbers<[1], [0], [0], [1], [0, 0, 1, 1], [], []>} : vector<16x128xf32>, vector<128x128xf32>, vector<16x128xf32> -> vector<16x128xf32>
    %251 = arith.addf %242, %250 : vector<16x128xf32>
    %c1_i32 = arith.constant 1 : i32
    %252 = tpu.dynamic_rotate %241 by %c1_i32 dim 0 : vector<16x128xf32>, i32 -> vector<16x128xf32>
    %c1_176 = arith.constant 1 : index
    %c0_177 = arith.constant 0 : index
    %c0_178 = arith.constant 0 : index
    %253 = vector.load %arg21[%c1_176, %c0_177, %c0_178] : memref<5x16x1xf32, #tpu.memory_space<vmem>>, vector<1x16x1xf32>
    %254 = vector.shape_cast %253 : vector<1x16x1xf32> to vector<16x1xf32>
    %255 = vector.broadcast %254 : vector<16x1xf32> to vector<16x128xf32>
    %256 = arith.mulf %252, %255 : vector<16x128xf32>
    %c1_179 = arith.constant 1 : index
    %c0_180 = arith.constant 0 : index
    %c0_181 = arith.constant 0 : index
    %257 = vector.load %arg39[%c1_179, %c0_180, %c0_181] : memref<5x128x128xf32, #tpu.memory_space<vmem>>, vector<1x128x128xf32>
    %258 = vector.shape_cast %257 : vector<1x128x128xf32> to vector<128x128xf32>
    %cst_182 = arith.constant dense<0.000000e+00> : vector<16x128xf32>
    %259 = tpu.matmul %256, %258, %cst_182 {dimension_numbers = #tpu.dot_dimension_numbers<[1], [0], [0], [1], [0, 0, 1, 1], [], []>} : vector<16x128xf32>, vector<128x128xf32>, vector<16x128xf32> -> vector<16x128xf32>
    %260 = arith.addf %251, %259 : vector<16x128xf32>
    %c2_183 = arith.constant 2 : index
    %c0_184 = arith.constant 0 : index
    %c0_185 = arith.constant 0 : index
    %261 = vector.load %arg39[%c2_183, %c0_184, %c0_185] : memref<5x128x128xf32, #tpu.memory_space<vmem>>, vector<1x128x128xf32>
    %262 = vector.shape_cast %261 : vector<1x128x128xf32> to vector<128x128xf32>
    %cst_186 = arith.constant dense<0.000000e+00> : vector<16x128xf32>
    %263 = tpu.matmul %241, %262, %cst_186 {dimension_numbers = #tpu.dot_dimension_numbers<[1], [0], [0], [1], [0, 0, 1, 1], [], []>} : vector<16x128xf32>, vector<128x128xf32>, vector<16x128xf32> -> vector<16x128xf32>
    %264 = arith.addf %260, %263 : vector<16x128xf32>
    %c15_i32 = arith.constant 15 : i32
    %265 = tpu.dynamic_rotate %241 by %c15_i32 dim 0 : vector<16x128xf32>, i32 -> vector<16x128xf32>
    %c3 = arith.constant 3 : index
    %c0_187 = arith.constant 0 : index
    %c0_188 = arith.constant 0 : index
    %266 = vector.load %arg21[%c3, %c0_187, %c0_188] : memref<5x16x1xf32, #tpu.memory_space<vmem>>, vector<1x16x1xf32>
    %267 = vector.shape_cast %266 : vector<1x16x1xf32> to vector<16x1xf32>
    %268 = vector.broadcast %267 : vector<16x1xf32> to vector<16x128xf32>
    %269 = arith.mulf %265, %268 : vector<16x128xf32>
    %c3_189 = arith.constant 3 : index
    %c0_190 = arith.constant 0 : index
    %c0_191 = arith.constant 0 : index
    %270 = vector.load %arg39[%c3_189, %c0_190, %c0_191] : memref<5x128x128xf32, #tpu.memory_space<vmem>>, vector<1x128x128xf32>
    %271 = vector.shape_cast %270 : vector<1x128x128xf32> to vector<128x128xf32>
    %cst_192 = arith.constant dense<0.000000e+00> : vector<16x128xf32>
    %272 = tpu.matmul %269, %271, %cst_192 {dimension_numbers = #tpu.dot_dimension_numbers<[1], [0], [0], [1], [0, 0, 1, 1], [], []>} : vector<16x128xf32>, vector<128x128xf32>, vector<16x128xf32> -> vector<16x128xf32>
    %273 = arith.addf %264, %272 : vector<16x128xf32>
    %c14_i32_193 = arith.constant 14 : i32
    %274 = tpu.dynamic_rotate %241 by %c14_i32_193 dim 0 : vector<16x128xf32>, i32 -> vector<16x128xf32>
    %c4 = arith.constant 4 : index
    %c0_194 = arith.constant 0 : index
    %c0_195 = arith.constant 0 : index
    %275 = vector.load %arg21[%c4, %c0_194, %c0_195] : memref<5x16x1xf32, #tpu.memory_space<vmem>>, vector<1x16x1xf32>
    %276 = vector.shape_cast %275 : vector<1x16x1xf32> to vector<16x1xf32>
    %277 = vector.broadcast %276 : vector<16x1xf32> to vector<16x128xf32>
    %278 = arith.mulf %274, %277 : vector<16x128xf32>
    %c4_196 = arith.constant 4 : index
    %c0_197 = arith.constant 0 : index
    %c0_198 = arith.constant 0 : index
    %279 = vector.load %arg39[%c4_196, %c0_197, %c0_198] : memref<5x128x128xf32, #tpu.memory_space<vmem>>, vector<1x128x128xf32>
    %280 = vector.shape_cast %279 : vector<1x128x128xf32> to vector<128x128xf32>
    %cst_199 = arith.constant dense<0.000000e+00> : vector<16x128xf32>
    %281 = tpu.matmul %278, %280, %cst_199 {dimension_numbers = #tpu.dot_dimension_numbers<[1], [0], [0], [1], [0, 0, 1, 1], [], []>} : vector<16x128xf32>, vector<128x128xf32>, vector<16x128xf32> -> vector<16x128xf32>
    %282 = arith.addf %273, %281 : vector<16x128xf32>
    %c0_200 = arith.constant 0 : index
    %c0_201 = arith.constant 0 : index
    %283 = vector.load %arg40[%c0_200, %c0_201] : memref<1x128xf32, #tpu.memory_space<vmem>>, vector<1x128xf32>
    %284 = vector.broadcast %283 : vector<1x128xf32> to vector<16x128xf32>
    %285 = arith.addf %282, %284 : vector<16x128xf32>
    %286 = vector.broadcast %28 : vector<16x1xf32> to vector<16x128xf32>
    %287 = arith.mulf %285, %286 : vector<16x128xf32>
    %c0_202 = arith.constant 0 : index
    %c0_203 = arith.constant 0 : index
    %c0_204 = arith.constant 0 : index
    %288 = vector.load %arg7[%c0_202, %c0_203, %c0_204] : memref<1x16x128xf32, #tpu.memory_space<vmem>>, vector<1x16x128xf32>
    %289 = vector.shape_cast %288 : vector<1x16x128xf32> to vector<16x128xf32>
    %c0_205 = arith.constant 0 : index
    %c0_206 = arith.constant 0 : index
    %c0_207 = arith.constant 0 : index
    %290 = vector.load %arg8[%c0_205, %c0_206, %c0_207] : memref<1x16x128xf32, #tpu.memory_space<vmem>>, vector<1x16x128xf32>
    %291 = vector.shape_cast %290 : vector<1x16x128xf32> to vector<16x128xf32>
    %cst_208 = arith.constant 0.999899983 : f32
    %292 = arith.mulf %cst_208, %1 : f32
    %cst_209 = arith.constant 1.000000e+00 : f32
    %293 = arith.subf %cst_209, %292 : f32
    %294 = vector.broadcast %293 : f32 to vector<16x128xf32>
    %295 = arith.mulf %294, %291 : vector<16x128xf32>
    %296 = vector.broadcast %1 : f32 to vector<16x128xf32>
    %297 = arith.mulf %296, %289 : vector<16x128xf32>
    %298 = arith.addf %295, %297 : vector<16x128xf32>
    %cst_210 = arith.constant 0.999899983 : f32
    %299 = vector.broadcast %cst_210 : f32 to vector<16x128xf32>
    %300 = arith.mulf %299, %291 : vector<16x128xf32>
    %301 = arith.subf %289, %300 : vector<16x128xf32>
    %c0_211 = arith.constant 0 : index
    %c0_212 = arith.constant 0 : index
    %302 = vector.load %arg41[%c0_211, %c0_212] : memref<128x128xf32, #tpu.memory_space<vmem>>, vector<128x128xf32>
    %cst_213 = arith.constant dense<0.000000e+00> : vector<16x128xf32>
    %303 = tpu.matmul %298, %302, %cst_213 {dimension_numbers = #tpu.dot_dimension_numbers<[1], [0], [0], [1], [0, 0, 1, 1], [], []>} : vector<16x128xf32>, vector<128x128xf32>, vector<16x128xf32> -> vector<16x128xf32>
    %c0_214 = arith.constant 0 : index
    %c0_215 = arith.constant 0 : index
    %304 = vector.load %arg42[%c0_214, %c0_215] : memref<128x128xf32, #tpu.memory_space<vmem>>, vector<128x128xf32>
    %cst_216 = arith.constant dense<0.000000e+00> : vector<16x128xf32>
    %305 = tpu.matmul %287, %304, %cst_216 {dimension_numbers = #tpu.dot_dimension_numbers<[1], [0], [0], [1], [0, 0, 1, 1], [], []>} : vector<16x128xf32>, vector<128x128xf32>, vector<16x128xf32> -> vector<16x128xf32>
    %306 = arith.addf %303, %305 : vector<16x128xf32>
    %c0_217 = arith.constant 0 : index
    %c0_218 = arith.constant 0 : index
    %307 = vector.load %arg43[%c0_217, %c0_218] : memref<128x128xf32, #tpu.memory_space<vmem>>, vector<128x128xf32>
    %cst_219 = arith.constant dense<0.000000e+00> : vector<16x128xf32>
    %308 = tpu.matmul %48, %307, %cst_219 {dimension_numbers = #tpu.dot_dimension_numbers<[1], [0], [0], [1], [0, 0, 1, 1], [], []>} : vector<16x128xf32>, vector<128x128xf32>, vector<16x128xf32> -> vector<16x128xf32>
    %309 = arith.addf %306, %308 : vector<16x128xf32>
    %c0_220 = arith.constant 0 : index
    %c0_221 = arith.constant 0 : index
    %310 = vector.load %arg44[%c0_220, %c0_221] : memref<1x128xf32, #tpu.memory_space<vmem>>, vector<1x128xf32>
    %311 = vector.broadcast %1 : f32 to vector<1x128xf32>
    %312 = arith.mulf %311, %310 : vector<1x128xf32>
    %313 = vector.broadcast %312 : vector<1x128xf32> to vector<16x128xf32>
    %314 = arith.addf %309, %313 : vector<16x128xf32>
    %c0_222 = arith.constant 0 : index
    %c0_223 = arith.constant 0 : index
    %315 = vector.load %arg45[%c0_222, %c0_223] : memref<1x128xf32, #tpu.memory_space<vmem>>, vector<1x128xf32>
    %316 = vector.broadcast %315 : vector<1x128xf32> to vector<16x128xf32>
    %317 = arith.addf %314, %316 : vector<16x128xf32>
    %cst_224 = arith.constant 0.000000e+00 : f32
    %318 = vector.broadcast %cst_224 : f32 to vector<16x128xf32>
    %319 = arith.maximumf %317, %318 : vector<16x128xf32>
    %c0_225 = arith.constant 0 : index
    %c0_226 = arith.constant 0 : index
    %320 = vector.load %arg46[%c0_225, %c0_226] : memref<128x128xf32, #tpu.memory_space<vmem>>, vector<128x128xf32>
    %cst_227 = arith.constant dense<0.000000e+00> : vector<16x128xf32>
    %321 = tpu.matmul %319, %320, %cst_227 {dimension_numbers = #tpu.dot_dimension_numbers<[1], [0], [0], [1], [0, 0, 1, 1], [], []>} : vector<16x128xf32>, vector<128x128xf32>, vector<16x128xf32> -> vector<16x128xf32>
    %c0_228 = arith.constant 0 : index
    %c0_229 = arith.constant 0 : index
    %322 = vector.load %arg47[%c0_228, %c0_229] : memref<1x128xf32, #tpu.memory_space<vmem>>, vector<1x128xf32>
    %323 = vector.broadcast %322 : vector<1x128xf32> to vector<16x128xf32>
    %324 = arith.addf %321, %323 : vector<16x128xf32>
    %325 = arith.subf %324, %301 : vector<16x128xf32>
    %326 = vector.broadcast %28 : vector<16x1xf32> to vector<16x128xf32>
    %327 = arith.mulf %325, %326 : vector<16x128xf32>
    %cst_230 = arith.constant 1.000000e+00 : f32
    %328 = vector.broadcast %cst_230 : f32 to vector<1x128xf32>
    %329 = arith.mulf %327, %327 : vector<16x128xf32>
    %330 = vector.shape_cast %329 : vector<16x128xf32> to vector<1x16x128xf32>
    %cst_231 = arith.constant dense<0.000000e+00> : vector<1xf32>
    %331 = vector.multi_reduction <add>, %330, %cst_231 [1, 2] : vector<1x16x128xf32> to vector<1xf32>
    %332 = vector.shape_cast %331 : vector<1xf32> to vector<1x1x1xf32>
    %333 = vector.extract %332[0, 0, 0] : f32 from vector<1x1x1xf32>
    %334 = vector.broadcast %333 : f32 to vector<1x128xf32>
    %335 = arith.mulf %328, %334 : vector<1x128xf32>
    %c0_232 = arith.constant 0 : index
    %c0_233 = arith.constant 0 : index
    %c0_234 = arith.constant 0 : index
    %336 = vector.load %arg50[%c0_232, %c0_233, %c0_234] : memref<1x1x128xf32, #tpu.memory_space<vmem>>, vector<1x1x128xf32>
    %337 = vector.shape_cast %336 : vector<1x1x128xf32> to vector<1x128xf32>
    %338 = vector.shape_cast %335 : vector<1x128xf32> to vector<1x1x128xf32>
    tpu.vector_store %arg50[%c0_232, %c0_233, %c0_234], %338 {strides = array<i32>} : memref<1x1x128xf32, #tpu.memory_space<vmem>>, vector<1x1x128xf32>,
    return
  }
  func.func @transform_0(%arg0: i32) -> (i32, i32, i32) {
    %c0_i32 = arith.constant 0 : i32
    %c0_i32_0 = arith.constant 0 : i32
    %c0_i32_1 = arith.constant 0 : i32
    return %arg0, %c0_i32, %c0_i32_0 : i32, i32, i32
  }
  func.func @transform_1(%arg0: i32) -> (i32, i32, i32) {
    %c0_i32 = arith.constant 0 : i32
    %c0_i32_0 = arith.constant 0 : i32
    %c0_i32_1 = arith.constant 0 : i32
    return %arg0, %c0_i32, %c0_i32_0 : i32, i32, i32
  }
  func.func @transform_2(%arg0: i32) -> (i32, i32, i32) {
    %c0_i32 = arith.constant 0 : i32
    %c0_i32_0 = arith.constant 0 : i32
    %c0_i32_1 = arith.constant 0 : i32
    return %arg0, %c0_i32, %c0_i32_0 : i32, i32, i32
  }
  func.func @transform_3(%arg0: i32) -> (i32, i32, i32) {
    %c0_i32 = arith.constant 0 : i32
    %c0_i32_0 = arith.constant 0 : i32
    %c0_i32_1 = arith.constant 0 : i32
    return %arg0, %c0_i32, %c0_i32_0 : i32, i32, i32
  }
  func.func @transform_4(%arg0: i32) -> (i32, i32, i32) {
    %c0_i32 = arith.constant 0 : i32
    %c0_i32_0 = arith.constant 0 : i32
    %c0_i32_1 = arith.constant 0 : i32
    return %arg0, %c0_i32, %c0_i32_0 : i32, i32, i32
  }
  func.func @transform_5(%arg0: i32) -> (i32, i32, i32) {
    %c0_i32 = arith.constant 0 : i32
    %c0_i32_0 = arith.constant 0 : i32
    %c0_i32_1 = arith.constant 0 : i32
    return %arg0, %c0_i32, %c0_i32_0 : i32, i32, i32
  }
  func.func @transform_6(%arg0: i32) -> (i32, i32, i32) {
    %c0_i32 = arith.constant 0 : i32
    %c0_i32_0 = arith.constant 0 : i32
    %c0_i32_1 = arith.constant 0 : i32
    return %arg0, %c0_i32, %c0_i32_0 : i32, i32, i32
  }
  func.func @transform_7(%arg0: i32) -> (i32, i32, i32) {
    %c0_i32 = arith.constant 0 : i32
    %c0_i32_0 = arith.constant 0 : i32
    %c0_i32_1 = arith.constant 0 : i32
    return %arg0, %c0_i32, %c0_i32_0 : i32, i32, i32
  }
  func.func @transform_8(%arg0: i32) -> (i32, i32) {
    %c0_i32 = arith.constant 0 : i32
    %c0_i32_0 = arith.constant 0 : i32
    %c0_i32_1 = arith.constant 0 : i32
    return %c0_i32, %c0_i32_0 : i32, i32
  }
  func.func @transform_9(%arg0: i32) -> (i32, i32) {
    %c0_i32 = arith.constant 0 : i32
    %c0_i32_0 = arith.constant 0 : i32
    %c0_i32_1 = arith.constant 0 : i32
    return %c0_i32, %c0_i32_0 : i32, i32
  }
  func.func @transform_10(%arg0: i32) -> (i32, i32) {
    %c0_i32 = arith.constant 0 : i32
    %c0_i32_0 = arith.constant 0 : i32
    %c0_i32_1 = arith.constant 0 : i32
    return %c0_i32, %c0_i32_0 : i32, i32
  }
  func.func @transform_11(%arg0: i32) -> (i32, i32) {
    %c0_i32 = arith.constant 0 : i32
    %c0_i32_0 = arith.constant 0 : i32
    %c0_i32_1 = arith.constant 0 : i32
    return %c0_i32, %c0_i32_0 : i32, i32
  }
  func.func @transform_12(%arg0: i32) -> (i32, i32) {
    %c0_i32 = arith.constant 0 : i32
    %c0_i32_0 = arith.constant 0 : i32
    %c0_i32_1 = arith.constant 0 : i32
    return %c0_i32, %c0_i32_0 : i32, i32
  }
  func.func @transform_13(%arg0: i32) -> (i32, i32) {
    %c0_i32 = arith.constant 0 : i32
    %c0_i32_0 = arith.constant 0 : i32
    %c0_i32_1 = arith.constant 0 : i32
    return %c0_i32, %c0_i32_0 : i32, i32
  }
  func.func @transform_14(%arg0: i32) -> (i32, i32) {
    %c0_i32 = arith.constant 0 : i32
    %c0_i32_0 = arith.constant 0 : i32
    %c0_i32_1 = arith.constant 0 : i32
    return %c0_i32, %c0_i32_0 : i32, i32
  }
  func.func @transform_15(%arg0: i32) -> (i32, i32) {
    %c0_i32 = arith.constant 0 : i32
    %c0_i32_0 = arith.constant 0 : i32
    %c0_i32_1 = arith.constant 0 : i32
    return %c0_i32, %c0_i32_0 : i32, i32
  }
  func.func @transform_16(%arg0: i32) -> (i32, i32) {
    %c0_i32 = arith.constant 0 : i32
    %c0_i32_0 = arith.constant 0 : i32
    %c0_i32_1 = arith.constant 0 : i32
    return %c0_i32, %c0_i32_0 : i32, i32
  }
  func.func @transform_17(%arg0: i32) -> (i32, i32) {
    %c0_i32 = arith.constant 0 : i32
    %c0_i32_0 = arith.constant 0 : i32
    %c0_i32_1 = arith.constant 0 : i32
    return %c0_i32, %c0_i32_0 : i32, i32
  }
  func.func @transform_18(%arg0: i32) -> (i32, i32, i32) {
    %c0_i32 = arith.constant 0 : i32
    %c0_i32_0 = arith.constant 0 : i32
    %c0_i32_1 = arith.constant 0 : i32
    %c0_i32_2 = arith.constant 0 : i32
    return %c0_i32, %c0_i32_0, %c0_i32_1 : i32, i32, i32
  }
  func.func @transform_19(%arg0: i32) -> (i32, i32, i32) {
    %c0_i32 = arith.constant 0 : i32
    %c0_i32_0 = arith.constant 0 : i32
    %c0_i32_1 = arith.constant 0 : i32
    %c0_i32_2 = arith.constant 0 : i32
    return %c0_i32, %c0_i32_0, %c0_i32_1 : i32, i32, i32
  }
  func.func @transform_20(%arg0: i32) -> (i32, i32, i32) {
    %c0_i32 = arith.constant 0 : i32
    %c0_i32_0 = arith.constant 0 : i32
    %c0_i32_1 = arith.constant 0 : i32
    %c0_i32_2 = arith.constant 0 : i32
    return %c0_i32, %c0_i32_0, %c0_i32_1 : i32, i32, i32
  }
  func.func @transform_21(%arg0: i32) -> (i32, i32, i32) {
    %c0_i32 = arith.constant 0 : i32
    %c0_i32_0 = arith.constant 0 : i32
    %c0_i32_1 = arith.constant 0 : i32
    %c0_i32_2 = arith.constant 0 : i32
    return %c0_i32, %c0_i32_0, %c0_i32_1 : i32, i32, i32
  }
  func.func @transform_22(%arg0: i32) -> (i32, i32) {
    %c0_i32 = arith.constant 0 : i32
    %c0_i32_0 = arith.constant 0 : i32
    %c0_i32_1 = arith.constant 0 : i32
    return %c0_i32, %c0_i32_0 : i32, i32
  }
  func.func @transform_23(%arg0: i32) -> (i32, i32, i32) {
    %c0_i32 = arith.constant 0 : i32
    %c0_i32_0 = arith.constant 0 : i32
    %c0_i32_1 = arith.constant 0 : i32
    %c0_i32_2 = arith.constant 0 : i32
    return %c0_i32, %c0_i32_0, %c0_i32_1 : i32, i32, i32
  }
  func.func @transform_24(%arg0: i32) -> (i32, i32) {
    %c0_i32 = arith.constant 0 : i32
    %c0_i32_0 = arith.constant 0 : i32
    %c0_i32_1 = arith.constant 0 : i32
    return %c0_i32, %c0_i32_0 : i32, i32
  }
  func.func @transform_25(%arg0: i32) -> (i32, i32) {
    %c0_i32 = arith.constant 0 : i32
    %c0_i32_0 = arith.constant 0 : i32
    %c0_i32_1 = arith.constant 0 : i32
    return %c0_i32, %c0_i32_0 : i32, i32
  }
  func.func @transform_26(%arg0: i32) -> (i32, i32) {
    %c0_i32 = arith.constant 0 : i32
    %c0_i32_0 = arith.constant 0 : i32
    %c0_i32_1 = arith.constant 0 : i32
    return %c0_i32, %c0_i32_0 : i32, i32
  }
  func.func @transform_27(%arg0: i32) -> (i32, i32) {
    %c0_i32 = arith.constant 0 : i32
    %c0_i32_0 = arith.constant 0 : i32
    %c0_i32_1 = arith.constant 0 : i32
    return %c0_i32, %c0_i32_0 : i32, i32
  }
  func.func @transform_28(%arg0: i32) -> (i32, i32) {
    %c0_i32 = arith.constant 0 : i32
    %c0_i32_0 = arith.constant 0 : i32
    %c0_i32_1 = arith.constant 0 : i32
    return %c0_i32, %c0_i32_0 : i32, i32
  }
  func.func @transform_29(%arg0: i32) -> (i32, i32) {
    %c0_i32 = arith.constant 0 : i32
    %c0_i32_0 = arith.constant 0 : i32
    %c0_i32_1 = arith.constant 0 : i32
    return %c0_i32, %c0_i32_0 : i32, i32
  }
  func.func @transform_30(%arg0: i32) -> (i32, i32, i32) {
    %c0_i32 = arith.constant 0 : i32
    %c0_i32_0 = arith.constant 0 : i32
    %c0_i32_1 = arith.constant 0 : i32
    %c0_i32_2 = arith.constant 0 : i32
    return %c0_i32, %c0_i32_0, %c0_i32_1 : i32, i32, i32
  }
  func.func @transform_31(%arg0: i32) -> (i32, i32) {
    %c0_i32 = arith.constant 0 : i32
    %c0_i32_0 = arith.constant 0 : i32
    %c0_i32_1 = arith.constant 0 : i32
    return %c0_i32, %c0_i32_0 : i32, i32
  }
  func.func @transform_32(%arg0: i32) -> (i32, i32, i32) {
    %c0_i32 = arith.constant 0 : i32
    %c0_i32_0 = arith.constant 0 : i32
    %c0_i32_1 = arith.constant 0 : i32
    %c0_i32_2 = arith.constant 0 : i32
    return %c0_i32, %c0_i32_0, %c0_i32_1 : i32, i32, i32
  }
  func.func @transform_33(%arg0: i32) -> (i32, i32) {
    %c0_i32 = arith.constant 0 : i32
    %c0_i32_0 = arith.constant 0 : i32
    %c0_i32_1 = arith.constant 0 : i32
    return %c0_i32, %c0_i32_0 : i32, i32
  }
  func.func @transform_34(%arg0: i32) -> (i32, i32) {
    %c0_i32 = arith.constant 0 : i32
    %c0_i32_0 = arith.constant 0 : i32
    %c0_i32_1 = arith.constant 0 : i32
    return %c0_i32, %c0_i32_0 : i32, i32
  }
  func.func @transform_35(%arg0: i32) -> (i32, i32) {
    %c0_i32 = arith.constant 0 : i32
    %c0_i32_0 = arith.constant 0 : i32
    %c0_i32_1 = arith.constant 0 : i32
    return %c0_i32, %c0_i32_0 : i32, i32
  }
  func.func @transform_36(%arg0: i32) -> (i32, i32) {
    %c0_i32 = arith.constant 0 : i32
    %c0_i32_0 = arith.constant 0 : i32
    %c0_i32_1 = arith.constant 0 : i32
    return %c0_i32, %c0_i32_0 : i32, i32
  }
  func.func @transform_37(%arg0: i32) -> (i32, i32) {
    %c0_i32 = arith.constant 0 : i32
    %c0_i32_0 = arith.constant 0 : i32
    %c0_i32_1 = arith.constant 0 : i32
    return %c0_i32, %c0_i32_0 : i32, i32
  }
  func.func @transform_38(%arg0: i32) -> (i32, i32, i32) {
    %c0_i32 = arith.constant 0 : i32
    %c0_i32_0 = arith.constant 0 : i32
    %c0_i32_1 = arith.constant 0 : i32
    %c0_i32_2 = arith.constant 0 : i32
    return %c0_i32, %c0_i32_0, %c0_i32_1 : i32, i32, i32
  }
  func.func @transform_39(%arg0: i32) -> (i32, i32) {
    %c0_i32 = arith.constant 0 : i32
    %c0_i32_0 = arith.constant 0 : i32
    %c0_i32_1 = arith.constant 0 : i32
    return %c0_i32, %c0_i32_0 : i32, i32
  }
  func.func @transform_40(%arg0: i32) -> (i32, i32) {
    %c0_i32 = arith.constant 0 : i32
    %c0_i32_0 = arith.constant 0 : i32
    %c0_i32_1 = arith.constant 0 : i32
    return %c0_i32, %c0_i32_0 : i32, i32
  }
  func.func @transform_41(%arg0: i32) -> (i32, i32) {
    %c0_i32 = arith.constant 0 : i32
    %c0_i32_0 = arith.constant 0 : i32
    %c0_i32_1 = arith.constant 0 : i32
    return %c0_i32, %c0_i32_0 : i32, i32
  }
  func.func @transform_42(%arg0: i32) -> (i32, i32) {
    %c0_i32 = arith.constant 0 : i32
    %c0_i32_0 = arith.constant 0 : i32
    %c0_i32_1 = arith.constant 0 : i32
    return %c0_i32, %c0_i32_0 : i32, i32
  }
  func.func @transform_43(%arg0: i32) -> (i32, i32) {
    %c0_i32 = arith.constant 0 : i32
    %c0_i32_0 = arith.constant 0 : i32
    %c0_i32_1 = arith.constant 0 : i32
    return %c0_i32, %c0_i32_0 : i32, i32
  }
  func.func @transform_44(%arg0: i32) -> (i32, i32) {
    %c0_i32 = arith.constant 0 : i32
    %c0_i32_0 = arith.constant 0 : i32
    %c0_i32_1 = arith.constant 0 : i32
    return %c0_i32, %c0_i32_0 : i32, i32
  }
  func.func @transform_45(%arg0: i32) -> (i32, i32) {
    %c0_i32 = arith.constant 0 : i32
    %c0_i32_0 = arith.constant 0 : i32
    %c0_i32_1 = arith.constant 0 : i32
    return %c0_i32, %c0_i32_0 : i32, i32
  }
  func.func @transform_46(%arg0: i32) -> (i32, i32) {
    %c0_i32 = arith.constant 0 : i32
    %c0_i32_0 = arith.constant 0 : i32
    %c0_i32_1 = arith.constant 0 : i32
    return %c0_i32, %c0_i32_0 : i32, i32
  }
  func.func @transform_47(%arg0: i32) -> (i32, i32, i32) {
    %c0_i32 = arith.constant 0 : i32
    %c0_i32_0 = arith.constant 0 : i32
    %c0_i32_1 = arith.constant 0 : i32
    return %arg0, %c0_i32, %c0_i32_0 : i32, i32, i32
  }
  func.func @transform_48(%arg0: i32) -> (i32, i32, i32) {
    %c0_i32 = arith.constant 0 : i32
    %c0_i32_0 = arith.constant 0 : i32
    %c0_i32_1 = arith.constant 0 : i32
    return %arg0, %c0_i32, %c0_i32_0 : i32, i32, i32
  }
  func.func @transform_49(%arg0: i32) -> (i32, i32, i32) {
    %c0_i32 = arith.constant 0 : i32
    %c0_i32_0 = arith.constant 0 : i32
    %c0_i32_1 = arith.constant 0 : i32
    return %arg0, %c0_i32, %c0_i32_0 : i32, i32, i32
  }
}

</mosaic_0001>

<llo_original>
// kernel: vqvae_matcha_forward.3
$region0: #{vqvae_matcha_forward.3}
  #allocation0 [shape = 'u32[]', space=smem, size = 0x4, offset = 0x4, fixed_abs, tag = 'smem constant byte address 0x4 - core index']
  #allocation1 [shape = 'u32[144,128]{1,0:T(1,128)}', space=vmem, size = 0x12000, scoped, tag = 'internal scratch']
  %s0 = inlined_call_operand.smem [shape: u32[50], index: -1, kind: input, shape index: {}]
  %s1 = sld [smem:[%s0]]
  %s2 = scalar_lea.smem %s0, 1
  %s3 = sld [smem:[%s2]]
  %s4 = scalar_lea.smem %s0, 2
  %s5 = sld [smem:[%s4]]
  %s6 = scalar_lea.smem %s0, 3
  %s7 = sld [smem:[%s6]]
  %s8 = scalar_lea.smem %s0, 4
  %s9 = sld [smem:[%s8]]
  %s10 = scalar_lea.smem %s0, 5
  %s11 = sld [smem:[%s10]]
  %s12 = scalar_lea.smem %s0, 6
  %s13 = sld [smem:[%s12]]
  %s14 = scalar_lea.smem %s0, 7
  %s15 = sld [smem:[%s14]]
  %s16 = scalar_lea.smem %s0, 8
  %s17 = sld [smem:[%s16]]
  %s18 = scalar_lea.smem %s0, 9
  %s19 = sld [smem:[%s18]]
  %s20 = scalar_lea.smem %s0, 10
  %s21 = sld [smem:[%s20]]
  %s22 = scalar_lea.smem %s0, 11
  %s23 = sld [smem:[%s22]]
  %s24 = scalar_lea.smem %s0, 12
  %s25 = sld [smem:[%s24]]
  %s26 = scalar_lea.smem %s0, 13
  %s27 = sld [smem:[%s26]]
  %s28 = scalar_lea.smem %s0, 14
  %s29 = sld [smem:[%s28]]
  %s30 = scalar_lea.smem %s0, 15
  %s31 = sld [smem:[%s30]]
  %s32 = scalar_lea.smem %s0, 16
  %s33 = sld [smem:[%s32]]
  %s34 = scalar_lea.smem %s0, 17
  %s35 = sld [smem:[%s34]]
  %s36 = scalar_lea.smem %s0, 18
  %s37 = sld [smem:[%s36]]
  %s38 = scalar_lea.smem %s0, 19
  %s39 = sld [smem:[%s38]]
  %s40 = scalar_lea.smem %s0, 20
  %s41 = sld [smem:[%s40]]
  %s42 = scalar_lea.smem %s0, 21
  %s43 = sld [smem:[%s42]]
  %s44 = scalar_lea.smem %s0, 22
  %s45 = sld [smem:[%s44]]
  %s46 = scalar_lea.smem %s0, 23
  %s47 = sld [smem:[%s46]]
  %s48 = scalar_lea.smem %s0, 24
  %s49 = sld [smem:[%s48]]
  %s50 = scalar_lea.smem %s0, 25
  %s51 = sld [smem:[%s50]]
  %s52 = scalar_lea.smem %s0, 26
  %s53 = sld [smem:[%s52]]
  %s54 = scalar_lea.smem %s0, 27
  %s55 = sld [smem:[%s54]]
  %s56 = scalar_lea.smem %s0, 28
  %s57 = sld [smem:[%s56]]
  %s58 = scalar_lea.smem %s0, 29
  %s59 = sld [smem:[%s58]]
  %s60 = scalar_lea.smem %s0, 30
  %s61 = sld [smem:[%s60]]
  %s62 = scalar_lea.smem %s0, 31
  %s63 = sld [smem:[%s62]]
  %s64 = scalar_lea.smem %s0, 32
  %s65 = sld [smem:[%s64]]
  %s66 = scalar_lea.smem %s0, 33
  %s67 = sld [smem:[%s66]]
  %s68 = scalar_lea.smem %s0, 34
  %s69 = sld [smem:[%s68]]
  %s70 = scalar_lea.smem %s0, 35
  %s71 = sld [smem:[%s70]]
  %s72 = scalar_lea.smem %s0, 36
  %s73 = sld [smem:[%s72]]
  %s74 = scalar_lea.smem %s0, 37
  %s75 = sld [smem:[%s74]]
  %s76 = scalar_lea.smem %s0, 38
  %s77 = sld [smem:[%s76]]
  %s78 = scalar_lea.smem %s0, 39
  %s79 = sld [smem:[%s78]]
  %s80 = scalar_lea.smem %s0, 40
  %s81 = sld [smem:[%s80]]
  %s82 = scalar_lea.smem %s0, 41
  %s83 = sld [smem:[%s82]]
  %s84 = scalar_lea.smem %s0, 42
  %s85 = sld [smem:[%s84]]
  %s86 = scalar_lea.smem %s0, 43
  %s87 = sld [smem:[%s86]]
  %s88 = scalar_lea.smem %s0, 44
  %s89 = sld [smem:[%s88]]
  %s90 = scalar_lea.smem %s0, 45
  %s91 = sld [smem:[%s90]]
  %s92 = scalar_lea.smem %s0, 46
  %s93 = sld [smem:[%s92]]
  %s94 = scalar_lea.smem %s0, 47
  %s95 = sld [smem:[%s94]]
  %s96 = scalar_lea.smem %s0, 48
  %s97 = sld [smem:[%s96]]
  %s98 = scalar_lea.smem %s0, 49
  %s99 = sld [smem:[%s98]]
  %100 = xla_tuple %s95, %s97, %s99
  %s101 = sld [smem:[#allocation0]]
  $region353: #{vqvae_matcha_forward.3} parent=0
    _
  %s103 = ssub.s32 1, %s101
  %s104 = scalar_select 0, %s103, %s101
  $region1: #{vqvae_matcha_forward.3} parent=0
    #allocation2 [shape = 'u8[1024]{0}', space=smem, size = 0x400, scoped, tag = 'input window, operand 8, single buffered']
    #allocation3 [shape = 's32[2]{0}', space=sflag, size = 0x8, scoped, tag = 'scoped memory for vqvae_matcha_forward.3']
    #allocation4 [shape = 's32[2]{0}', space=sflag, size = 0x8, scoped, tag = 'scoped memory for vqvae_matcha_forward.3']
    #allocation5 [shape = 'u8[65536]{0}', space=vmem, size = 0x10000, scoped, tag = 'input window, operand 9, single buffered']
    #allocation6 [shape = 'u8[512]{0}', space=vmem, size = 0x400, scoped, tag = 'input window, operand 10, single buffered']
    #allocation7 [shape = 's32[1]{0}', space=sflag, size = 0x4, scoped, tag = 'scoped memory for vqvae_matcha_forward.3']
    #allocation8 [shape = 'u8[512]{0}', space=vmem, size = 0x400, scoped, tag = 'input window, operand 11, single buffered']
    #allocation9 [shape = 'u8[512]{0}', space=vmem, size = 0x400, scoped, tag = 'input window, operand 12, single buffered']
    #allocation10 [shape = 's32[1]{0}', space=sflag, size = 0x4, scoped, tag = 'scoped memory for vqvae_matcha_forward.3']
    #allocation11 [shape = 'u8[512]{0}', space=vmem, size = 0x400, scoped, tag = 'input window, operand 14, single buffered']
    #allocation12 [shape = 'u8[65536]{0}', space=vmem, size = 0x10000, scoped, tag = 'input window, operand 15, single buffered']
    #allocation13 [shape = 's32[1]{0}', space=sflag, size = 0x4, scoped, tag = 'scoped memory for vqvae_matcha_forward.3']
    #allocation14 [shape = 'u8[512]{0}', space=vmem, size = 0x400, scoped, tag = 'input window, operand 16, single buffered']
    #allocation15 [shape = 'u8[512]{0}', space=vmem, size = 0x400, scoped, tag = 'input window, operand 17, single buffered']
    #allocation16 [shape = 's32[1]{0}', space=sflag, size = 0x4, scoped, tag = 'scoped memory for vqvae_matcha_forward.3']
    #allocation17 [shape = 'u8[196608]{0}', space=vmem, size = 0x30000, scoped, tag = 'input window, operand 21, single buffered']
    #allocation18 [shape = 'u8[512]{0}', space=vmem, size = 0x400, scoped, tag = 'input window, operand 22, single buffered']
    #allocation19 [shape = 's32[1]{0}', space=sflag, size = 0x4, scoped, tag = 'scoped memory for vqvae_matcha_forward.3']
    #allocation20 [shape = 'u8[196608]{0}', space=vmem, size = 0x30000, scoped, tag = 'input window, operand 23, single buffered']
    #allocation21 [shape = 'u8[512]{0}', space=vmem, size = 0x400, scoped, tag = 'input window, operand 24, single buffered']
    #allocation22 [shape = 's32[1]{0}', space=sflag, size = 0x4, scoped, tag = 'scoped memory for vqvae_matcha_forward.3']
    #allocation23 [shape = 'u8[65536]{0}', space=vmem, size = 0x10000, scoped, tag = 'input window, operand 25, single buffered']
    #allocation24 [shape = 'u8[512]{0}', space=vmem, size = 0x400, scoped, tag = 'input window, operand 26, single buffered']
    #allocation25 [shape = 's32[1]{0}', space=sflag, size = 0x4, scoped, tag = 'scoped memory for vqvae_matcha_forward.3']
    #allocation26 [shape = 'u8[65536]{0}', space=vmem, size = 0x10000, scoped, tag = 'input window, operand 28, single buffered']
    #allocation27 [shape = 'u8[512]{0}', space=vmem, size = 0x400, scoped, tag = 'input window, operand 29, single buffered']
    #allocation28 [shape = 's32[1]{0}', space=sflag, size = 0x4, scoped, tag = 'scoped memory for vqvae_matcha_forward.3']
    #allocation29 [shape = 'u8[196608]{0}', space=vmem, size = 0x30000, scoped, tag = 'input window, operand 30, single buffered']
    #allocation30 [shape = 'u8[512]{0}', space=vmem, size = 0x400, scoped, tag = 'input window, operand 31, single buffered']
    #allocation31 [shape = 's32[1]{0}', space=sflag, size = 0x4, scoped, tag = 'scoped memory for vqvae_matcha_forward.3']
    #allocation32 [shape = 'u8[196608]{0}', space=vmem, size = 0x30000, scoped, tag = 'input window, operand 32, single buffered']
    #allocation33 [shape = 'u8[512]{0}', space=vmem, size = 0x400, scoped, tag = 'input window, operand 33, single buffered']
    #allocation34 [shape = 's32[1]{0}', space=sflag, size = 0x4, scoped, tag = 'scoped memory for vqvae_matcha_forward.3']
    #allocation35 [shape = 'u8[8192]{0}', space=vmem, size = 0x2000, scoped, tag = 'input window, operand 35, single buffered']
    #allocation36 [shape = 'u8[8192]{0}', space=vmem, size = 0x2000, scoped, tag = 'input window, operand 36, single buffered']
    #allocation37 [shape = 's32[1]{0}', space=sflag, size = 0x4, scoped, tag = 'scoped memory for vqvae_matcha_forward.3']
    #allocation38 [shape = 'u8[8192]{0}', space=vmem, size = 0x2000, scoped, tag = 'input window, operand 37, single buffered']
    #allocation39 [shape = 'u8[512]{0}', space=vmem, size = 0x400, scoped, tag = 'input window, operand 39, single buffered']
    #allocation40 [shape = 's32[1]{0}', space=sflag, size = 0x4, scoped, tag = 'scoped memory for vqvae_matcha_forward.3']
    #allocation41 [shape = 'u8[65536]{0}', space=vmem, size = 0x10000, scoped, tag = 'input window, operand 40, single buffered']
    #allocation42 [shape = 'u8[65536]{0}', space=vmem, size = 0x10000, scoped, tag = 'input window, operand 41, single buffered']
    #allocation43 [shape = 's32[1]{0}', space=sflag, size = 0x4, scoped, tag = 'scoped memory for vqvae_matcha_forward.3']
    #allocation44 [shape = 'u8[65536]{0}', space=vmem, size = 0x10000, scoped, tag = 'input window, operand 42, single buffered']
    #allocation45 [shape = 'u8[65536]{0}', space=vmem, size = 0x10000, scoped, tag = 'input window, operand 45, single buffered']
    #allocation46 [shape = 's32[1]{0}', space=sflag, size = 0x4, scoped, tag = 'scoped memory for vqvae_matcha_forward.3']
    %105 = vsyncpa [#allocation4], 0
    %106 = vsyncpa [#allocation3], 0
    %107 = vsyncpa [#allocation7], 0
    %108 = vsyncpa [#allocation10], 0
    %109 = vsyncpa [#allocation13], 0
    %110 = vsyncpa [#allocation16], 0
    %111 = vsyncpa [#allocation19], 0
    %112 = vsyncpa [#allocation22], 0
    %113 = vsyncpa [#allocation25], 0
    %114 = vsyncpa [#allocation28], 0
    %115 = vsyncpa [#allocation31], 0
    %116 = vsyncpa [#allocation34], 0
    %117 = vsyncpa [#allocation37], 0
    %118 = vsyncpa [#allocation40], 0
    %119 = vsyncpa [#allocation43], 0
    %120 = vsyncpa [#allocation46], 0
    loop: start=0, step=1, limit=4
    $region2: #{vqvae_matcha_forward.3} parent=1 // loop_pre_header
      _
    $region3: #{vqvae_matcha_forward.3} parent=1 // loop_header
      %s122 = sphi 0, %s126
      %p123 = scmp.ge.s32.totalorder %s122, 4
      %s132 = sphi 0, %s134
      %s135 = sphi 0, %s132
      %s136 = sphi 0, %s135
      %s152 = sphi 0, %s136
      %s158 = sphi 0, %s160
      %s161 = sphi 0, %s158
      %s162 = sphi 0, %s161
      %s178 = sphi 0, %s162
      %s184 = sphi 0, %s186
      %s187 = sphi 0, %s184
      %s188 = sphi 0, %s187
      %s204 = sphi 0, %s188
      %s210 = sphi 0, %s212
      %s213 = sphi 0, %s210
      %s214 = sphi 0, %s213
      %s230 = sphi 0, %s214
      %s236 = sphi 0, %s238
      %s239 = sphi 0, %s236
      %s240 = sphi 0, %s239
      %s256 = sphi 0, %s240
      %s262 = sphi 0, %s264
      %s265 = sphi 0, %s262
      %s266 = sphi 0, %s265
      %s282 = sphi 0, %s266
      %s288 = sphi 0, %s290
      %s291 = sphi 0, %s288
      %s292 = sphi 0, %s291
      %s308 = sphi 0, %s292
      %s314 = sphi 0, %s316
      %s317 = sphi 0, %s314
      %s318 = sphi 0, %s317
      %s334 = sphi 0, %s318
      %s338 = sphi 0, %s338
      %s340 = sphi 0, %s338
      %s341 = sphi 0, %s340
      %s355 = sphi 0, %s341
      %s359 = sphi 0, %s359
      %s361 = sphi 0, %s359
      %s362 = sphi 0, %s361
      %s376 = sphi 0, %s362
      %s380 = sphi 0, %s380
      %s382 = sphi 0, %s380
      %s383 = sphi 0, %s382
      %s397 = sphi 0, %s383
      %s401 = sphi 0, %s401
      %s403 = sphi 0, %s401
      %s404 = sphi 0, %s403
      %s418 = sphi 0, %s404
      %s422 = sphi 0, %s422
      %s424 = sphi 0, %s422
      %s425 = sphi 0, %s424
      %s439 = sphi 0, %s425
      %s443 = sphi 0, %s443
      %s445 = sphi 0, %s443
      %s446 = sphi 0, %s445
      %s460 = sphi 0, %s446
      %s464 = sphi 0, %s464
      %s466 = sphi 0, %s464
      %s467 = sphi 0, %s466
      %s481 = sphi 0, %s467
      %s485 = sphi 0, %s485
      %s487 = sphi 0, %s485
      %s488 = sphi 0, %s487
      %s502 = sphi 0, %s488
      %s506 = sphi 0, %s506
      %s508 = sphi 0, %s506
      %s509 = sphi 0, %s508
      %s523 = sphi 0, %s509
      %s527 = sphi 0, %s527
      %s529 = sphi 0, %s527
      %s530 = sphi 0, %s529
      %s544 = sphi 0, %s530
      %s548 = sphi 0, %s548
      %s550 = sphi 0, %s548
      %s551 = sphi 0, %s550
      %s565 = sphi 0, %s551
      %s569 = sphi 0, %s569
      %s571 = sphi 0, %s569
      %s572 = sphi 0, %s571
      %s586 = sphi 0, %s572
      %s590 = sphi 0, %s590
      %s592 = sphi 0, %s590
      %s593 = sphi 0, %s592
      %s607 = sphi 0, %s593
      %s611 = sphi 0, %s611
      %s613 = sphi 0, %s611
      %s614 = sphi 0, %s613
      %s628 = sphi 0, %s614
      %s632 = sphi 0, %s632
      %s634 = sphi 0, %s632
      %s635 = sphi 0, %s634
      %s649 = sphi 0, %s635
      %s653 = sphi 0, %s653
      %s655 = sphi 0, %s653
      %s656 = sphi 0, %s655
      %s670 = sphi 0, %s656
      %s674 = sphi 0, %s674
      %s676 = sphi 0, %s674
      %s677 = sphi 0, %s676
      %s691 = sphi 0, %s677
      %s695 = sphi 0, %s695
      %s697 = sphi 0, %s695
      %s698 = sphi 0, %s697
      %s712 = sphi 0, %s698
      %s716 = sphi 0, %s716
      %s718 = sphi 0, %s716
      %s719 = sphi 0, %s718
      %s733 = sphi 0, %s719
      %s737 = sphi 0, %s737
      %s739 = sphi 0, %s737
      %s740 = sphi 0, %s739
      %s754 = sphi 0, %s740
      %s758 = sphi 0, %s758
      %s760 = sphi 0, %s758
      %s761 = sphi 0, %s760
      %s775 = sphi 0, %s761
      %s779 = sphi 0, %s779
      %s781 = sphi 0, %s779
      %s782 = sphi 0, %s781
      %s796 = sphi 0, %s782
      %s800 = sphi 0, %s800
      %s802 = sphi 0, %s800
      %s803 = sphi 0, %s802
      %s817 = sphi 0, %s803
      %s821 = sphi 0, %s821
      %s823 = sphi 0, %s821
      %s824 = sphi 0, %s823
      %s838 = sphi 0, %s824
      %s842 = sphi 0, %s842
      %s844 = sphi 0, %s842
      %s845 = sphi 0, %s844
      %s859 = sphi 0, %s845
      %s863 = sphi 0, %s863
      %s865 = sphi 0, %s863
      %s866 = sphi 0, %s865
      %s880 = sphi 0, %s866
      %s884 = sphi 0, %s884
      %s886 = sphi 0, %s884
      %s887 = sphi 0, %s886
      %s901 = sphi 0, %s887
      %s905 = sphi 0, %s905
      %s907 = sphi 0, %s905
      %s908 = sphi 0, %s907
      %s922 = sphi 0, %s908
      %s926 = sphi 0, %s926
      %s928 = sphi 0, %s926
      %s929 = sphi 0, %s928
      %s943 = sphi 0, %s929
      %s947 = sphi 0, %s947
      %s949 = sphi 0, %s947
      %s950 = sphi 0, %s949
      %s964 = sphi 0, %s950
      %s968 = sphi 0, %s968
      %s970 = sphi 0, %s968
      %s971 = sphi 0, %s970
      %s985 = sphi 0, %s971
      %s989 = sphi 0, %s989
      %s991 = sphi 0, %s989
      %s992 = sphi 0, %s991
      %s1006 = sphi 0, %s992
      %s1010 = sphi 0, %s1010
      %s1012 = sphi 0, %s1010
      %s1013 = sphi 0, %s1012
      %s1027 = sphi 0, %s1013
      %s1031 = sphi 0, %s1031
      %s1033 = sphi 0, %s1031
      %s1034 = sphi 0, %s1033
      %s1048 = sphi 0, %s1034
      %s1052 = sphi 0, %s1052
      %s1054 = sphi 0, %s1052
      %s1055 = sphi 0, %s1054
      %s1069 = sphi 0, %s1055
      %s1073 = sphi 0, %s1073
      %s1075 = sphi 0, %s1073
      %s1076 = sphi 0, %s1075
      %s1090 = sphi 0, %s1076
      %s1094 = sphi 0, %s1094
      %s1096 = sphi 0, %s1094
      %s1097 = sphi 0, %s1096
      %s1111 = sphi 0, %s1097
      %s1115 = sphi 0, %s1115
      %s1117 = sphi 0, %s1115
      %s1118 = sphi 0, %s1117
      %s1132 = sphi 0, %s1118
      %s1136 = sphi 0, %s1136
      %s1138 = sphi 0, %s1136
      %s1139 = sphi 0, %s1138
      %s1153 = sphi 0, %s1139
      %s1159 = sphi 0, %s1161
      %s1162 = sphi 0, %s1159
      %s1163 = sphi 0, %s1162
      %s1179 = sphi 0, %s1163
      %s1185 = sphi 0, %s1187
      %s1188 = sphi 0, %s1185
      %s1189 = sphi 0, %s1188
      %s1205 = sphi 0, %s1189
      %s1211 = sphi 0, %s1213
      %s1214 = sphi 0, %s1211
      %s1215 = sphi 0, %s1214
      %s1231 = sphi 0, %s1215
    $region4: #{vqvae_matcha_forward.3} parent=1 // loop_header_branch
      %125 = sbr.rel (%p123) target = $region8
    $region5: #{vqvae_matcha_forward.3} parent=1 // loop_body
      %s127 = ssub.s32 %s122, 1
      %s128 = ssub.s32 %s122, 2
      %s129 = sadd.s32 %s122, 1
      %s130 = ssub.s32 %s122, %s129
      %p131 = scmp.eq.s32.totalorder %s130, 0
      %s133 = sadd.s32 %s132, 1
      %s134 = scalar_select %p131, %s132, %s133
      %p137 = pneg %p131
      %p138 = scmp.eq.s32.totalorder %s122, 1
      %p139 = por %p137, %p138
      %p140 = scmp.ne.s32.totalorder %s132, %s135
      %p141 = scmp.eq.s32.totalorder %s122, 0
      %p142 = por %p140, %p141
      %p143 = scmp.ne.s32.totalorder %s132, %s135
      %p144 = scmp.eq.s32.totalorder %s127, 1
      %p145 = por %p143, %p144
      %p146 = scmp.ne.s32.totalorder %s135, %s136
      %p147 = scmp.eq.s32.totalorder %s127, 0
      %p148 = por %p146, %p147
      %p149 = scmp.ne.s32.totalorder %s135, %s136
      %p150 = scmp.eq.s32.totalorder %s128, 1
      %p151 = por %p149, %p150
      %p153 = scmp.ne.s32.totalorder %s136, %s152
      %p154 = scmp.eq.s32.totalorder %s128, 0
      %p155 = por %p153, %p154
      %s156 = ssub.s32 %s122, %s129
      %p157 = scmp.eq.s32.totalorder %s156, 0
      %s159 = sadd.s32 %s158, 1
      %s160 = scalar_select %p157, %s158, %s159
      %p163 = pneg %p157
      %p164 = scmp.eq.s32.totalorder %s122, 1
      %p165 = por %p163, %p164
      %p166 = scmp.ne.s32.totalorder %s158, %s161
      %p167 = scmp.eq.s32.totalorder %s122, 0
      %p168 = por %p166, %p167
      %p169 = scmp.ne.s32.totalorder %s158, %s161
      %p170 = scmp.eq.s32.totalorder %s127, 1
      %p171 = por %p169, %p170
      %p172 = scmp.ne.s32.totalorder %s161, %s162
      %p173 = scmp.eq.s32.totalorder %s127, 0
      %p174 = por %p172, %p173
      %p175 = scmp.ne.s32.totalorder %s161, %s162
      %p176 = scmp.eq.s32.totalorder %s128, 1
      %p177 = por %p175, %p176
      %p179 = scmp.ne.s32.totalorder %s162, %s178
      %p180 = scmp.eq.s32.totalorder %s128, 0
      %p181 = por %p179, %p180
      %s182 = ssub.s32 %s122, %s129
      %p183 = scmp.eq.s32.totalorder %s182, 0
      %s185 = sadd.s32 %s184, 1
      %s186 = scalar_select %p183, %s184, %s185
      %p189 = pneg %p183
      %p190 = scmp.eq.s32.totalorder %s122, 1
      %p191 = por %p189, %p190
      %p192 = scmp.ne.s32.totalorder %s184, %s187
      %p193 = scmp.eq.s32.totalorder %s122, 0
      %p194 = por %p192, %p193
      %p195 = scmp.ne.s32.totalorder %s184, %s187
      %p196 = scmp.eq.s32.totalorder %s127, 1
      %p197 = por %p195, %p196
      %p198 = scmp.ne.s32.totalorder %s187, %s188
      %p199 = scmp.eq.s32.totalorder %s127, 0
      %p200 = por %p198, %p199
      %p201 = scmp.ne.s32.totalorder %s187, %s188
      %p202 = scmp.eq.s32.totalorder %s128, 1
      %p203 = por %p201, %p202
      %p205 = scmp.ne.s32.totalorder %s188, %s204
      %p206 = scmp.eq.s32.totalorder %s128, 0
      %p207 = por %p205, %p206
      %s208 = ssub.s32 %s122, %s129
      %p209 = scmp.eq.s32.totalorder %s208, 0
      %s211 = sadd.s32 %s210, 1
      %s212 = scalar_select %p209, %s210, %s211
      %p215 = pneg %p209
      %p216 = scmp.eq.s32.totalorder %s122, 1
      %p217 = por %p215, %p216
      %p218 = scmp.ne.s32.totalorder %s210, %s213
      %p219 = scmp.eq.s32.totalorder %s122, 0
      %p220 = por %p218, %p219
      %p221 = scmp.ne.s32.totalorder %s210, %s213
      %p222 = scmp.eq.s32.totalorder %s127, 1
      %p223 = por %p221, %p222
      %p224 = scmp.ne.s32.totalorder %s213, %s214
      %p225 = scmp.eq.s32.totalorder %s127, 0
      %p226 = por %p224, %p225
      %p227 = scmp.ne.s32.totalorder %s213, %s214
      %p228 = scmp.eq.s32.totalorder %s128, 1
      %p229 = por %p227, %p228
      %p231 = scmp.ne.s32.totalorder %s214, %s230
      %p232 = scmp.eq.s32.totalorder %s128, 0
      %p233 = por %p231, %p232
      %s234 = ssub.s32 %s122, %s129
      %p235 = scmp.eq.s32.totalorder %s234, 0
      %s237 = sadd.s32 %s236, 1
      %s238 = scalar_select %p235, %s236, %s237
      %p241 = pneg %p235
      %p242 = scmp.eq.s32.totalorder %s122, 1
      %p243 = por %p241, %p242
      %p244 = scmp.ne.s32.totalorder %s236, %s239
      %p245 = scmp.eq.s32.totalorder %s122, 0
      %p246 = por %p244, %p245
      %p247 = scmp.ne.s32.totalorder %s236, %s239
      %p248 = scmp.eq.s32.totalorder %s127, 1
      %p249 = por %p247, %p248
      %p250 = scmp.ne.s32.totalorder %s239, %s240
      %p251 = scmp.eq.s32.totalorder %s127, 0
      %p252 = por %p250, %p251
      %p253 = scmp.ne.s32.totalorder %s239, %s240
      %p254 = scmp.eq.s32.totalorder %s128, 1
      %p255 = por %p253, %p254
      %p257 = scmp.ne.s32.totalorder %s240, %s256
      %p258 = scmp.eq.s32.totalorder %s128, 0
      %p259 = por %p257, %p258
      %s260 = ssub.s32 %s122, %s129
      %p261 = scmp.eq.s32.totalorder %s260, 0
      %s263 = sadd.s32 %s262, 1
      %s264 = scalar_select %p261, %s262, %s263
      %p267 = pneg %p261
      %p268 = scmp.eq.s32.totalorder %s122, 1
      %p269 = por %p267, %p268
      %p270 = scmp.ne.s32.totalorder %s262, %s265
      %p271 = scmp.eq.s32.totalorder %s122, 0
      %p272 = por %p270, %p271
      %p273 = scmp.ne.s32.totalorder %s262, %s265
      %p274 = scmp.eq.s32.totalorder %s127, 1
      %p275 = por %p273, %p274
      %p276 = scmp.ne.s32.totalorder %s265, %s266
      %p277 = scmp.eq.s32.totalorder %s127, 0
      %p278 = por %p276, %p277
      %p279 = scmp.ne.s32.totalorder %s265, %s266
      %p280 = scmp.eq.s32.totalorder %s128, 1
      %p281 = por %p279, %p280
      %p283 = scmp.ne.s32.totalorder %s266, %s282
      %p284 = scmp.eq.s32.totalorder %s128, 0
      %p285 = por %p283, %p284
      %s286 = ssub.s32 %s122, %s129
      %p287 = scmp.eq.s32.totalorder %s286, 0
      %s289 = sadd.s32 %s288, 1
      %s290 = scalar_select %p287, %s288, %s289
      %p293 = pneg %p287
      %p294 = scmp.eq.s32.totalorder %s122, 1
      %p295 = por %p293, %p294
      %p296 = scmp.ne.s32.totalorder %s288, %s291
      %p297 = scmp.eq.s32.totalorder %s122, 0
      %p298 = por %p296, %p297
      %p299 = scmp.ne.s32.totalorder %s288, %s291
      %p300 = scmp.eq.s32.totalorder %s127, 1
      %p301 = por %p299, %p300
      %p302 = scmp.ne.s32.totalorder %s291, %s292
      %p303 = scmp.eq.s32.totalorder %s127, 0
      %p304 = por %p302, %p303
      %p305 = scmp.ne.s32.totalorder %s291, %s292
      %p306 = scmp.eq.s32.totalorder %s128, 1
      %p307 = por %p305, %p306
      %p309 = scmp.ne.s32.totalorder %s292, %s308
      %p310 = scmp.eq.s32.totalorder %s128, 0
      %p311 = por %p309, %p310
      %s312 = ssub.s32 %s122, %s129
      %p313 = scmp.eq.s32.totalorder %s312, 0
      %s315 = sadd.s32 %s314, 1
      %s316 = scalar_select %p313, %s314, %s315
      %p319 = pneg %p313
      %p320 = scmp.eq.s32.totalorder %s122, 1
      %p321 = por %p319, %p320
      %p322 = scmp.ne.s32.totalorder %s314, %s317
      %p323 = scmp.eq.s32.totalorder %s122, 0
      %p324 = por %p322, %p323
      %p325 = scmp.ne.s32.totalorder %s314, %s317
      %p326 = scmp.eq.s32.totalorder %s127, 1
      %p327 = por %p325, %p326
      %p328 = scmp.ne.s32.totalorder %s317, %s318
      %p329 = scmp.eq.s32.totalorder %s127, 0
      %p330 = por %p328, %p329
      %p331 = scmp.ne.s32.totalorder %s317, %s318
      %p332 = scmp.eq.s32.totalorder %s128, 1
      %p333 = por %p331, %p332
      %p335 = scmp.ne.s32.totalorder %s318, %s334
      %p336 = scmp.eq.s32.totalorder %s128, 0
      %p337 = por %p335, %p336
      %s339 = sadd.s32 %s338, 1
      %p342 = scmp.eq.s32.totalorder %s122, 1
      %p343 = scmp.ne.s32.totalorder %s338, %s340
      %p344 = scmp.eq.s32.totalorder %s122, 0
      %p345 = por %p343, %p344
      %p346 = scmp.ne.s32.totalorder %s338, %s340
      %p347 = scmp.eq.s32.totalorder %s127, 1
      %p348 = por %p346, %p347
      %p349 = scmp.ne.s32.totalorder %s340, %s341
      %p350 = scmp.eq.s32.totalorder %s127, 0
      %p351 = por %p349, %p350
      %p352 = scmp.ne.s32.totalorder %s340, %s341
      %p353 = scmp.eq.s32.totalorder %s128, 1
      %p354 = por %p352, %p353
      %p356 = scmp.ne.s32.totalorder %s341, %s355
      %p357 = scmp.eq.s32.totalorder %s128, 0
      %p358 = por %p356, %p357
      %s360 = sadd.s32 %s359, 1
      %p363 = scmp.eq.s32.totalorder %s122, 1
      %p364 = scmp.ne.s32.totalorder %s359, %s361
      %p365 = scmp.eq.s32.totalorder %s122, 0
      %p366 = por %p364, %p365
      %p367 = scmp.ne.s32.totalorder %s359, %s361
      %p368 = scmp.eq.s32.totalorder %s127, 1
      %p369 = por %p367, %p368
      %p370 = scmp.ne.s32.totalorder %s361, %s362
      %p371 = scmp.eq.s32.totalorder %s127, 0
      %p372 = por %p370, %p371
      %p373 = scmp.ne.s32.totalorder %s361, %s362
      %p374 = scmp.eq.s32.totalorder %s128, 1
      %p375 = por %p373, %p374
      %p377 = scmp.ne.s32.totalorder %s362, %s376
      %p378 = scmp.eq.s32.totalorder %s128, 0
      %p379 = por %p377, %p378
      %s381 = sadd.s32 %s380, 1
      %p384 = scmp.eq.s32.totalorder %s122, 1
      %p385 = scmp.ne.s32.totalorder %s380, %s382
      %p386 = scmp.eq.s32.totalorder %s122, 0
      %p387 = por %p385, %p386
      %p388 = scmp.ne.s32.totalorder %s380, %s382
      %p389 = scmp.eq.s32.totalorder %s127, 1
      %p390 = por %p388, %p389
      %p391 = scmp.ne.s32.totalorder %s382, %s383
      %p392 = scmp.eq.s32.totalorder %s127, 0
      %p393 = por %p391, %p392
      %p394 = scmp.ne.s32.totalorder %s382, %s383
      %p395 = scmp.eq.s32.totalorder %s128, 1
      %p396 = por %p394, %p395
      %p398 = scmp.ne.s32.totalorder %s383, %s397
      %p399 = scmp.eq.s32.totalorder %s128, 0
      %p400 = por %p398, %p399
      %s402 = sadd.s32 %s401, 1
      %p405 = scmp.eq.s32.totalorder %s122, 1
      %p406 = scmp.ne.s32.totalorder %s401, %s403
      %p407 = scmp.eq.s32.totalorder %s122, 0
      %p408 = por %p406, %p407
      %p409 = scmp.ne.s32.totalorder %s401, %s403
      %p410 = scmp.eq.s32.totalorder %s127, 1
      %p411 = por %p409, %p410
      %p412 = scmp.ne.s32.totalorder %s403, %s404
      %p413 = scmp.eq.s32.totalorder %s127, 0
      %p414 = por %p412, %p413
      %p415 = scmp.ne.s32.totalorder %s403, %s404
      %p416 = scmp.eq.s32.totalorder %s128, 1
      %p417 = por %p415, %p416
      %p419 = scmp.ne.s32.totalorder %s404, %s418
      %p420 = scmp.eq.s32.totalorder %s128, 0
      %p421 = por %p419, %p420
      %s423 = sadd.s32 %s422, 1
      %p426 = scmp.eq.s32.totalorder %s122, 1
      %p427 = scmp.ne.s32.totalorder %s422, %s424
      %p428 = scmp.eq.s32.totalorder %s122, 0
      %p429 = por %p427, %p428
      %p430 = scmp.ne.s32.totalorder %s422, %s424
      %p431 = scmp.eq.s32.totalorder %s127, 1
      %p432 = por %p430, %p431
      %p433 = scmp.ne.s32.totalorder %s424, %s425
      %p434 = scmp.eq.s32.totalorder %s127, 0
      %p435 = por %p433, %p434
      %p436 = scmp.ne.s32.totalorder %s424, %s425
      %p437 = scmp.eq.s32.totalorder %s128, 1
      %p438 = por %p436, %p437
      %p440 = scmp.ne.s32.totalorder %s425, %s439
      %p441 = scmp.eq.s32.totalorder %s128, 0
      %p442 = por %p440, %p441
      %s444 = sadd.s32 %s443, 1
      %p447 = scmp.eq.s32.totalorder %s122, 1
      %p448 = scmp.ne.s32.totalorder %s443, %s445
      %p449 = scmp.eq.s32.totalorder %s122, 0
      %p450 = por %p448, %p449
      %p451 = scmp.ne.s32.totalorder %s443, %s445
      %p452 = scmp.eq.s32.totalorder %s127, 1
      %p453 = por %p451, %p452
      %p454 = scmp.ne.s32.totalorder %s445, %s446
      %p455 = scmp.eq.s32.totalorder %s127, 0
      %p456 = por %p454, %p455
      %p457 = scmp.ne.s32.totalorder %s445, %s446
      %p458 = scmp.eq.s32.totalorder %s128, 1
      %p459 = por %p457, %p458
      %p461 = scmp.ne.s32.totalorder %s446, %s460
      %p462 = scmp.eq.s32.totalorder %s128, 0
      %p463 = por %p461, %p462
      %s465 = sadd.s32 %s464, 1
      %p468 = scmp.eq.s32.totalorder %s122, 1
      %p469 = scmp.ne.s32.totalorder %s464, %s466
      %p470 = scmp.eq.s32.totalorder %s122, 0
      %p471 = por %p469, %p470
      %p472 = scmp.ne.s32.totalorder %s464, %s466
      %p473 = scmp.eq.s32.totalorder %s127, 1
      %p474 = por %p472, %p473
      %p475 = scmp.ne.s32.totalorder %s466, %s467
      %p476 = scmp.eq.s32.totalorder %s127, 0
      %p477 = por %p475, %p476
      %p478 = scmp.ne.s32.totalorder %s466, %s467
      %p479 = scmp.eq.s32.totalorder %s128, 1
      %p480 = por %p478, %p479
      %p482 = scmp.ne.s32.totalorder %s467, %s481
      %p483 = scmp.eq.s32.totalorder %s128, 0
      %p484 = por %p482, %p483
      %s486 = sadd.s32 %s485, 1
      %p489 = scmp.eq.s32.totalorder %s122, 1
      %p490 = scmp.ne.s32.totalorder %s485, %s487
      %p491 = scmp.eq.s32.totalorder %s122, 0
      %p492 = por %p490, %p491
      %p493 = scmp.ne.s32.totalorder %s485, %s487
      %p494 = scmp.eq.s32.totalorder %s127, 1
      %p495 = por %p493, %p494
      %p496 = scmp.ne.s32.totalorder %s487, %s488
      %p497 = scmp.eq.s32.totalorder %s127, 0
      %p498 = por %p496, %p497
      %p499 = scmp.ne.s32.totalorder %s487, %s488
      %p500 = scmp.eq.s32.totalorder %s128, 1
      %p501 = por %p499, %p500
      %p503 = scmp.ne.s32.totalorder %s488, %s502
      %p504 = scmp.eq.s32.totalorder %s128, 0
      %p505 = por %p503, %p504
      %s507 = sadd.s32 %s506, 1
      %p510 = scmp.eq.s32.totalorder %s122, 1
      %p511 = scmp.ne.s32.totalorder %s506, %s508
      %p512 = scmp.eq.s32.totalorder %s122, 0
      %p513 = por %p511, %p512
      %p514 = scmp.ne.s32.totalorder %s506, %s508
      %p515 = scmp.eq.s32.totalorder %s127, 1
      %p516 = por %p514, %p515
      %p517 = scmp.ne.s32.totalorder %s508, %s509
      %p518 = scmp.eq.s32.totalorder %s127, 0
      %p519 = por %p517, %p518
      %p520 = scmp.ne.s32.totalorder %s508, %s509
      %p521 = scmp.eq.s32.totalorder %s128, 1
      %p522 = por %p520, %p521
      %p524 = scmp.ne.s32.totalorder %s509, %s523
      %p525 = scmp.eq.s32.totalorder %s128, 0
      %p526 = por %p524, %p525
      %s528 = sadd.s32 %s527, 1
      %p531 = scmp.eq.s32.totalorder %s122, 1
      %p532 = scmp.ne.s32.totalorder %s527, %s529
      %p533 = scmp.eq.s32.totalorder %s122, 0
      %p534 = por %p532, %p533
      %p535 = scmp.ne.s32.totalorder %s527, %s529
      %p536 = scmp.eq.s32.totalorder %s127, 1
      %p537 = por %p535, %p536
      %p538 = scmp.ne.s32.totalorder %s529, %s530
      %p539 = scmp.eq.s32.totalorder %s127, 0
      %p540 = por %p538, %p539
      %p541 = scmp.ne.s32.totalorder %s529, %s530
      %p542 = scmp.eq.s32.totalorder %s128, 1
      %p543 = por %p541, %p542
      %p545 = scmp.ne.s32.totalorder %s530, %s544
      %p546 = scmp.eq.s32.totalorder %s128, 0
      %p547 = por %p545, %p546
      %s549 = sadd.s32 %s548, 1
      %p552 = scmp.eq.s32.totalorder %s122, 1
      %p553 = scmp.ne.s32.totalorder %s548, %s550
      %p554 = scmp.eq.s32.totalorder %s122, 0
      %p555 = por %p553, %p554
      %p556 = scmp.ne.s32.totalorder %s548, %s550
      %p557 = scmp.eq.s32.totalorder %s127, 1
      %p558 = por %p556, %p557
      %p559 = scmp.ne.s32.totalorder %s550, %s551
      %p560 = scmp.eq.s32.totalorder %s127, 0
      %p561 = por %p559, %p560
      %p562 = scmp.ne.s32.totalorder %s550, %s551
      %p563 = scmp.eq.s32.totalorder %s128, 1
      %p564 = por %p562, %p563
      %p566 = scmp.ne.s32.totalorder %s551, %s565
      %p567 = scmp.eq.s32.totalorder %s128, 0
      %p568 = por %p566, %p567
      %s570 = sadd.s32 %s569, 1
      %p573 = scmp.eq.s32.totalorder %s122, 1
      %p574 = scmp.ne.s32.totalorder %s569, %s571
      %p575 = scmp.eq.s32.totalorder %s122, 0
      %p576 = por %p574, %p575
      %p577 = scmp.ne.s32.totalorder %s569, %s571
      %p578 = scmp.eq.s32.totalorder %s127, 1
      %p579 = por %p577, %p578
      %p580 = scmp.ne.s32.totalorder %s571, %s572
      %p581 = scmp.eq.s32.totalorder %s127, 0
      %p582 = por %p580, %p581
      %p583 = scmp.ne.s32.totalorder %s571, %s572
      %p584 = scmp.eq.s32.totalorder %s128, 1
      %p585 = por %p583, %p584
      %p587 = scmp.ne.s32.totalorder %s572, %s586
      %p588 = scmp.eq.s32.totalorder %s128, 0
      %p589 = por %p587, %p588
      %s591 = sadd.s32 %s590, 1
      %p594 = scmp.eq.s32.totalorder %s122, 1
      %p595 = scmp.ne.s32.totalorder %s590, %s592
      %p596 = scmp.eq.s32.totalorder %s122, 0
      %p597 = por %p595, %p596
      %p598 = scmp.ne.s32.totalorder %s590, %s592
      %p599 = scmp.eq.s32.totalorder %s127, 1
      %p600 = por %p598, %p599
      %p601 = scmp.ne.s32.totalorder %s592, %s593
      %p602 = scmp.eq.s32.totalorder %s127, 0
      %p603 = por %p601, %p602
      %p604 = scmp.ne.s32.totalorder %s592, %s593
      %p605 = scmp.eq.s32.totalorder %s128, 1
      %p606 = por %p604, %p605
      %p608 = scmp.ne.s32.totalorder %s593, %s607
      %p609 = scmp.eq.s32.totalorder %s128, 0
      %p610 = por %p608, %p609
      %s612 = sadd.s32 %s611, 1
      %p615 = scmp.eq.s32.totalorder %s122, 1
      %p616 = scmp.ne.s32.totalorder %s611, %s613
      %p617 = scmp.eq.s32.totalorder %s122, 0
      %p618 = por %p616, %p617
      %p619 = scmp.ne.s32.totalorder %s611, %s613
      %p620 = scmp.eq.s32.totalorder %s127, 1
      %p621 = por %p619, %p620
      %p622 = scmp.ne.s32.totalorder %s613, %s614
      %p623 = scmp.eq.s32.totalorder %s127, 0
      %p624 = por %p622, %p623
      %p625 = scmp.ne.s32.totalorder %s613, %s614
      %p626 = scmp.eq.s32.totalorder %s128, 1
      %p627 = por %p625, %p626
      %p629 = scmp.ne.s32.totalorder %s614, %s628
      %p630 = scmp.eq.s32.totalorder %s128, 0
      %p631 = por %p629, %p630
      %s633 = sadd.s32 %s632, 1
      %p636 = scmp.eq.s32.totalorder %s122, 1
      %p637 = scmp.ne.s32.totalorder %s632, %s634
      %p638 = scmp.eq.s32.totalorder %s122, 0
      %p639 = por %p637, %p638
      %p640 = scmp.ne.s32.totalorder %s632, %s634
      %p641 = scmp.eq.s32.totalorder %s127, 1
      %p642 = por %p640, %p641
      %p643 = scmp.ne.s32.totalorder %s634, %s635
      %p644 = scmp.eq.s32.totalorder %s127, 0
      %p645 = por %p643, %p644
      %p646 = scmp.ne.s32.totalorder %s634, %s635
      %p647 = scmp.eq.s32.totalorder %s128, 1
      %p648 = por %p646, %p647
      %p650 = scmp.ne.s32.totalorder %s635, %s649
      %p651 = scmp.eq.s32.totalorder %s128, 0
      %p652 = por %p650, %p651
      %s654 = sadd.s32 %s653, 1
      %p657 = scmp.eq.s32.totalorder %s122, 1
      %p658 = scmp.ne.s32.totalorder %s653, %s655
      %p659 = scmp.eq.s32.totalorder %s122, 0
      %p660 = por %p658, %p659
      %p661 = scmp.ne.s32.totalorder %s653, %s655
      %p662 = scmp.eq.s32.totalorder %s127, 1
      %p663 = por %p661, %p662
      %p664 = scmp.ne.s32.totalorder %s655, %s656
      %p665 = scmp.eq.s32.totalorder %s127, 0
      %p666 = por %p664, %p665
      %p667 = scmp.ne.s32.totalorder %s655, %s656
      %p668 = scmp.eq.s32.totalorder %s128, 1
      %p669 = por %p667, %p668
      %p671 = scmp.ne.s32.totalorder %s656, %s670
      %p672 = scmp.eq.s32.totalorder %s128, 0
      %p673 = por %p671, %p672
      %s675 = sadd.s32 %s674, 1
      %p678 = scmp.eq.s32.totalorder %s122, 1
      %p679 = scmp.ne.s32.totalorder %s674, %s676
      %p680 = scmp.eq.s32.totalorder %s122, 0
      %p681 = por %p679, %p680
      %p682 = scmp.ne.s32.totalorder %s674, %s676
      %p683 = scmp.eq.s32.totalorder %s127, 1
      %p684 = por %p682, %p683
      %p685 = scmp.ne.s32.totalorder %s676, %s677
      %p686 = scmp.eq.s32.totalorder %s127, 0
      %p687 = por %p685, %p686
      %p688 = scmp.ne.s32.totalorder %s676, %s677
      %p689 = scmp.eq.s32.totalorder %s128, 1
      %p690 = por %p688, %p689
      %p692 = scmp.ne.s32.totalorder %s677, %s691
      %p693 = scmp.eq.s32.totalorder %s128, 0
      %p694 = por %p692, %p693
      %s696 = sadd.s32 %s695, 1
      %p699 = scmp.eq.s32.totalorder %s122, 1
      %p700 = scmp.ne.s32.totalorder %s695, %s697
      %p701 = scmp.eq.s32.totalorder %s122, 0
      %p702 = por %p700, %p701
      %p703 = scmp.ne.s32.totalorder %s695, %s697
      %p704 = scmp.eq.s32.totalorder %s127, 1
      %p705 = por %p703, %p704
      %p706 = scmp.ne.s32.totalorder %s697, %s698
      %p707 = scmp.eq.s32.totalorder %s127, 0
      %p708 = por %p706, %p707
      %p709 = scmp.ne.s32.totalorder %s697, %s698
      %p710 = scmp.eq.s32.totalorder %s128, 1
      %p711 = por %p709, %p710
      %p713 = scmp.ne.s32.totalorder %s698, %s712
      %p714 = scmp.eq.s32.totalorder %s128, 0
      %p715 = por %p713, %p714
      %s717 = sadd.s32 %s716, 1
      %p720 = scmp.eq.s32.totalorder %s122, 1
      %p721 = scmp.ne.s32.totalorder %s716, %s718
      %p722 = scmp.eq.s32.totalorder %s122, 0
      %p723 = por %p721, %p722
      %p724 = scmp.ne.s32.totalorder %s716, %s718
      %p725 = scmp.eq.s32.totalorder %s127, 1
      %p726 = por %p724, %p725
      %p727 = scmp.ne.s32.totalorder %s718, %s719
      %p728 = scmp.eq.s32.totalorder %s127, 0
      %p729 = por %p727, %p728
      %p730 = scmp.ne.s32.totalorder %s718, %s719
      %p731 = scmp.eq.s32.totalorder %s128, 1
      %p732 = por %p730, %p731
      %p734 = scmp.ne.s32.totalorder %s719, %s733
      %p735 = scmp.eq.s32.totalorder %s128, 0
      %p736 = por %p734, %p735
      %s738 = sadd.s32 %s737, 1
      %p741 = scmp.eq.s32.totalorder %s122, 1
      %p742 = scmp.ne.s32.totalorder %s737, %s739
      %p743 = scmp.eq.s32.totalorder %s122, 0
      %p744 = por %p742, %p743
      %p745 = scmp.ne.s32.totalorder %s737, %s739
      %p746 = scmp.eq.s32.totalorder %s127, 1
      %p747 = por %p745, %p746
      %p748 = scmp.ne.s32.totalorder %s739, %s740
      %p749 = scmp.eq.s32.totalorder %s127, 0
      %p750 = por %p748, %p749
      %p751 = scmp.ne.s32.totalorder %s739, %s740
      %p752 = scmp.eq.s32.totalorder %s128, 1
      %p753 = por %p751, %p752
      %p755 = scmp.ne.s32.totalorder %s740, %s754
      %p756 = scmp.eq.s32.totalorder %s128, 0
      %p757 = por %p755, %p756
      %s759 = sadd.s32 %s758, 1
      %p762 = scmp.eq.s32.totalorder %s122, 1
      %p763 = scmp.ne.s32.totalorder %s758, %s760
      %p764 = scmp.eq.s32.totalorder %s122, 0
      %p765 = por %p763, %p764
      %p766 = scmp.ne.s32.totalorder %s758, %s760
      %p767 = scmp.eq.s32.totalorder %s127, 1
      %p768 = por %p766, %p767
      %p769 = scmp.ne.s32.totalorder %s760, %s761
      %p770 = scmp.eq.s32.totalorder %s127, 0
      %p771 = por %p769, %p770
      %p772 = scmp.ne.s32.totalorder %s760, %s761
      %p773 = scmp.eq.s32.totalorder %s128, 1
      %p774 = por %p772, %p773
      %p776 = scmp.ne.s32.totalorder %s761, %s775
      %p777 = scmp.eq.s32.totalorder %s128, 0
      %p778 = por %p776, %p777
      %s780 = sadd.s32 %s779, 1
      %p783 = scmp.eq.s32.totalorder %s122, 1
      %p784 = scmp.ne.s32.totalorder %s779, %s781
      %p785 = scmp.eq.s32.totalorder %s122, 0
      %p786 = por %p784, %p785
      %p787 = scmp.ne.s32.totalorder %s779, %s781
      %p788 = scmp.eq.s32.totalorder %s127, 1
      %p789 = por %p787, %p788
      %p790 = scmp.ne.s32.totalorder %s781, %s782
      %p791 = scmp.eq.s32.totalorder %s127, 0
      %p792 = por %p790, %p791
      %p793 = scmp.ne.s32.totalorder %s781, %s782
      %p794 = scmp.eq.s32.totalorder %s128, 1
      %p795 = por %p793, %p794
      %p797 = scmp.ne.s32.totalorder %s782, %s796
      %p798 = scmp.eq.s32.totalorder %s128, 0
      %p799 = por %p797, %p798
      %s801 = sadd.s32 %s800, 1
      %p804 = scmp.eq.s32.totalorder %s122, 1
      %p805 = scmp.ne.s32.totalorder %s800, %s802
      %p806 = scmp.eq.s32.totalorder %s122, 0
      %p807 = por %p805, %p806
      %p808 = scmp.ne.s32.totalorder %s800, %s802
      %p809 = scmp.eq.s32.totalorder %s127, 1
      %p810 = por %p808, %p809
      %p811 = scmp.ne.s32.totalorder %s802, %s803
      %p812 = scmp.eq.s32.totalorder %s127, 0
      %p813 = por %p811, %p812
      %p814 = scmp.ne.s32.totalorder %s802, %s803
      %p815 = scmp.eq.s32.totalorder %s128, 1
      %p816 = por %p814, %p815
      %p818 = scmp.ne.s32.totalorder %s803, %s817
      %p819 = scmp.eq.s32.totalorder %s128, 0
      %p820 = por %p818, %p819
      %s822 = sadd.s32 %s821, 1
      %p825 = scmp.eq.s32.totalorder %s122, 1
      %p826 = scmp.ne.s32.totalorder %s821, %s823
      %p827 = scmp.eq.s32.totalorder %s122, 0
      %p828 = por %p826, %p827
      %p829 = scmp.ne.s32.totalorder %s821, %s823
      %p830 = scmp.eq.s32.totalorder %s127, 1
      %p831 = por %p829, %p830
      %p832 = scmp.ne.s32.totalorder %s823, %s824
      %p833 = scmp.eq.s32.totalorder %s127, 0
      %p834 = por %p832, %p833
      %p835 = scmp.ne.s32.totalorder %s823, %s824
      %p836 = scmp.eq.s32.totalorder %s128, 1
      %p837 = por %p835, %p836
      %p839 = scmp.ne.s32.totalorder %s824, %s838
      %p840 = scmp.eq.s32.totalorder %s128, 0
      %p841 = por %p839, %p840
      %s843 = sadd.s32 %s842, 1
      %p846 = scmp.eq.s32.totalorder %s122, 1
      %p847 = scmp.ne.s32.totalorder %s842, %s844
      %p848 = scmp.eq.s32.totalorder %s122, 0
      %p849 = por %p847, %p848
      %p850 = scmp.ne.s32.totalorder %s842, %s844
      %p851 = scmp.eq.s32.totalorder %s127, 1
      %p852 = por %p850, %p851
      %p853 = scmp.ne.s32.totalorder %s844, %s845
      %p854 = scmp.eq.s32.totalorder %s127, 0
      %p855 = por %p853, %p854
      %p856 = scmp.ne.s32.totalorder %s844, %s845
      %p857 = scmp.eq.s32.totalorder %s128, 1
      %p858 = por %p856, %p857
      %p860 = scmp.ne.s32.totalorder %s845, %s859
      %p861 = scmp.eq.s32.totalorder %s128, 0
      %p862 = por %p860, %p861
      %s864 = sadd.s32 %s863, 1
      %p867 = scmp.eq.s32.totalorder %s122, 1
      %p868 = scmp.ne.s32.totalorder %s863, %s865
      %p869 = scmp.eq.s32.totalorder %s122, 0
      %p870 = por %p868, %p869
      %p871 = scmp.ne.s32.totalorder %s863, %s865
      %p872 = scmp.eq.s32.totalorder %s127, 1
      %p873 = por %p871, %p872
      %p874 = scmp.ne.s32.totalorder %s865, %s866
      %p875 = scmp.eq.s32.totalorder %s127, 0
      %p876 = por %p874, %p875
      %p877 = scmp.ne.s32.totalorder %s865, %s866
      %p878 = scmp.eq.s32.totalorder %s128, 1
      %p879 = por %p877, %p878
      %p881 = scmp.ne.s32.totalorder %s866, %s880
      %p882 = scmp.eq.s32.totalorder %s128, 0
      %p883 = por %p881, %p882
      %s885 = sadd.s32 %s884, 1
      %p888 = scmp.eq.s32.totalorder %s122, 1
      %p889 = scmp.ne.s32.totalorder %s884, %s886
      %p890 = scmp.eq.s32.totalorder %s122, 0
      %p891 = por %p889, %p890
      %p892 = scmp.ne.s32.totalorder %s884, %s886
      %p893 = scmp.eq.s32.totalorder %s127, 1
      %p894 = por %p892, %p893
      %p895 = scmp.ne.s32.totalorder %s886, %s887
      %p896 = scmp.eq.s32.totalorder %s127, 0
      %p897 = por %p895, %p896
      %p898 = scmp.ne.s32.totalorder %s886, %s887
      %p899 = scmp.eq.s32.totalorder %s128, 1
      %p900 = por %p898, %p899
      %p902 = scmp.ne.s32.totalorder %s887, %s901
      %p903 = scmp.eq.s32.totalorder %s128, 0
      %p904 = por %p902, %p903
      %s906 = sadd.s32 %s905, 1
      %p909 = scmp.eq.s32.totalorder %s122, 1
      %p910 = scmp.ne.s32.totalorder %s905, %s907
      %p911 = scmp.eq.s32.totalorder %s122, 0
      %p912 = por %p910, %p911
      %p913 = scmp.ne.s32.totalorder %s905, %s907
      %p914 = scmp.eq.s32.totalorder %s127, 1
      %p915 = por %p913, %p914
      %p916 = scmp.ne.s32.totalorder %s907, %s908
      %p917 = scmp.eq.s32.totalorder %s127, 0
      %p918 = por %p916, %p917
      %p919 = scmp.ne.s32.totalorder %s907, %s908
      %p920 = scmp.eq.s32.totalorder %s128, 1
      %p921 = por %p919, %p920
      %p923 = scmp.ne.s32.totalorder %s908, %s922
      %p924 = scmp.eq.s32.totalorder %s128, 0
      %p925 = por %p923, %p924
      %s927 = sadd.s32 %s926, 1
      %p930 = scmp.eq.s32.totalorder %s122, 1
      %p931 = scmp.ne.s32.totalorder %s926, %s928
      %p932 = scmp.eq.s32.totalorder %s122, 0
      %p933 = por %p931, %p932
      %p934 = scmp.ne.s32.totalorder %s926, %s928
      %p935 = scmp.eq.s32.totalorder %s127, 1
      %p936 = por %p934, %p935
      %p937 = scmp.ne.s32.totalorder %s928, %s929
      %p938 = scmp.eq.s32.totalorder %s127, 0
      %p939 = por %p937, %p938
      %p940 = scmp.ne.s32.totalorder %s928, %s929
      %p941 = scmp.eq.s32.totalorder %s128, 1
      %p942 = por %p940, %p941
      %p944 = scmp.ne.s32.totalorder %s929, %s943
      %p945 = scmp.eq.s32.totalorder %s128, 0
      %p946 = por %p944, %p945
      %s948 = sadd.s32 %s947, 1
      %p951 = scmp.eq.s32.totalorder %s122, 1
      %p952 = scmp.ne.s32.totalorder %s947, %s949
      %p953 = scmp.eq.s32.totalorder %s122, 0
      %p954 = por %p952, %p953
      %p955 = scmp.ne.s32.totalorder %s947, %s949
      %p956 = scmp.eq.s32.totalorder %s127, 1
      %p957 = por %p955, %p956
      %p958 = scmp.ne.s32.totalorder %s949, %s950
      %p959 = scmp.eq.s32.totalorder %s127, 0
      %p960 = por %p958, %p959
      %p961 = scmp.ne.s32.totalorder %s949, %s950
      %p962 = scmp.eq.s32.totalorder %s128, 1
      %p963 = por %p961, %p962
      %p965 = scmp.ne.s32.totalorder %s950, %s964
      %p966 = scmp.eq.s32.totalorder %s128, 0
      %p967 = por %p965, %p966
      %s969 = sadd.s32 %s968, 1
      %p972 = scmp.eq.s32.totalorder %s122, 1
      %p973 = scmp.ne.s32.totalorder %s968, %s970
      %p974 = scmp.eq.s32.totalorder %s122, 0
      %p975 = por %p973, %p974
      %p976 = scmp.ne.s32.totalorder %s968, %s970
      %p977 = scmp.eq.s32.totalorder %s127, 1
      %p978 = por %p976, %p977
      %p979 = scmp.ne.s32.totalorder %s970, %s971
      %p980 = scmp.eq.s32.totalorder %s127, 0
      %p981 = por %p979, %p980
      %p982 = scmp.ne.s32.totalorder %s970, %s971
      %p983 = scmp.eq.s32.totalorder %s128, 1
      %p984 = por %p982, %p983
      %p986 = scmp.ne.s32.totalorder %s971, %s985
      %p987 = scmp.eq.s32.totalorder %s128, 0
      %p988 = por %p986, %p987
      %s990 = sadd.s32 %s989, 1
      %p993 = scmp.eq.s32.totalorder %s122, 1
      %p994 = scmp.ne.s32.totalorder %s989, %s991
      %p995 = scmp.eq.s32.totalorder %s122, 0
      %p996 = por %p994, %p995
      %p997 = scmp.ne.s32.totalorder %s989, %s991
      %p998 = scmp.eq.s32.totalorder %s127, 1
      %p999 = por %p997, %p998
      %p1000 = scmp.ne.s32.totalorder %s991, %s992
      %p1001 = scmp.eq.s32.totalorder %s127, 0
      %p1002 = por %p1000, %p1001
      %p1003 = scmp.ne.s32.totalorder %s991, %s992
      %p1004 = scmp.eq.s32.totalorder %s128, 1
      %p1005 = por %p1003, %p1004
      %p1007 = scmp.ne.s32.totalorder %s992, %s1006
      %p1008 = scmp.eq.s32.totalorder %s128, 0
      %p1009 = por %p1007, %p1008
      %s1011 = sadd.s32 %s1010, 1
      %p1014 = scmp.eq.s32.totalorder %s122, 1
      %p1015 = scmp.ne.s32.totalorder %s1010, %s1012
      %p1016 = scmp.eq.s32.totalorder %s122, 0
      %p1017 = por %p1015, %p1016
      %p1018 = scmp.ne.s32.totalorder %s1010, %s1012
      %p1019 = scmp.eq.s32.totalorder %s127, 1
      %p1020 = por %p1018, %p1019
      %p1021 = scmp.ne.s32.totalorder %s1012, %s1013
      %p1022 = scmp.eq.s32.totalorder %s127, 0
      %p1023 = por %p1021, %p1022
      %p1024 = scmp.ne.s32.totalorder %s1012, %s1013
      %p1025 = scmp.eq.s32.totalorder %s128, 1
      %p1026 = por %p1024, %p1025
      %p1028 = scmp.ne.s32.totalorder %s1013, %s1027
      %p1029 = scmp.eq.s32.totalorder %s128, 0
      %p1030 = por %p1028, %p1029
      %s1032 = sadd.s32 %s1031, 1
      %p1035 = scmp.eq.s32.totalorder %s122, 1
      %p1036 = scmp.ne.s32.totalorder %s1031, %s1033
      %p1037 = scmp.eq.s32.totalorder %s122, 0
      %p1038 = por %p1036, %p1037
      %p1039 = scmp.ne.s32.totalorder %s1031, %s1033
      %p1040 = scmp.eq.s32.totalorder %s127, 1
      %p1041 = por %p1039, %p1040
      %p1042 = scmp.ne.s32.totalorder %s1033, %s1034
      %p1043 = scmp.eq.s32.totalorder %s127, 0
      %p1044 = por %p1042, %p1043
      %p1045 = scmp.ne.s32.totalorder %s1033, %s1034
      %p1046 = scmp.eq.s32.totalorder %s128, 1
      %p1047 = por %p1045, %p1046
      %p1049 = scmp.ne.s32.totalorder %s1034, %s1048
      %p1050 = scmp.eq.s32.totalorder %s128, 0
      %p1051 = por %p1049, %p1050
      %s1053 = sadd.s32 %s1052, 1
      %p1056 = scmp.eq.s32.totalorder %s122, 1
      %p1057 = scmp.ne.s32.totalorder %s1052, %s1054
      %p1058 = scmp.eq.s32.totalorder %s122, 0
      %p1059 = por %p1057, %p1058
      %p1060 = scmp.ne.s32.totalorder %s1052, %s1054
      %p1061 = scmp.eq.s32.totalorder %s127, 1
      %p1062 = por %p1060, %p1061
      %p1063 = scmp.ne.s32.totalorder %s1054, %s1055
      %p1064 = scmp.eq.s32.totalorder %s127, 0
      %p1065 = por %p1063, %p1064
      %p1066 = scmp.ne.s32.totalorder %s1054, %s1055
      %p1067 = scmp.eq.s32.totalorder %s128, 1
      %p1068 = por %p1066, %p1067
      %p1070 = scmp.ne.s32.totalorder %s1055, %s1069
      %p1071 = scmp.eq.s32.totalorder %s128, 0
      %p1072 = por %p1070, %p1071
      %s1074 = sadd.s32 %s1073, 1
      %p1077 = scmp.eq.s32.totalorder %s122, 1
      %p1078 = scmp.ne.s32.totalorder %s1073, %s1075
      %p1079 = scmp.eq.s32.totalorder %s122, 0
      %p1080 = por %p1078, %p1079
      %p1081 = scmp.ne.s32.totalorder %s1073, %s1075
      %p1082 = scmp.eq.s32.totalorder %s127, 1
      %p1083 = por %p1081, %p1082
      %p1084 = scmp.ne.s32.totalorder %s1075, %s1076
      %p1085 = scmp.eq.s32.totalorder %s127, 0
      %p1086 = por %p1084, %p1085
      %p1087 = scmp.ne.s32.totalorder %s1075, %s1076
      %p1088 = scmp.eq.s32.totalorder %s128, 1
      %p1089 = por %p1087, %p1088
      %p1091 = scmp.ne.s32.totalorder %s1076, %s1090
      %p1092 = scmp.eq.s32.totalorder %s128, 0
      %p1093 = por %p1091, %p1092
      %s1095 = sadd.s32 %s1094, 1
      %p1098 = scmp.eq.s32.totalorder %s122, 1
      %p1099 = scmp.ne.s32.totalorder %s1094, %s1096
      %p1100 = scmp.eq.s32.totalorder %s122, 0
      %p1101 = por %p1099, %p1100
      %p1102 = scmp.ne.s32.totalorder %s1094, %s1096
      %p1103 = scmp.eq.s32.totalorder %s127, 1
      %p1104 = por %p1102, %p1103
      %p1105 = scmp.ne.s32.totalorder %s1096, %s1097
      %p1106 = scmp.eq.s32.totalorder %s127, 0
      %p1107 = por %p1105, %p1106
      %p1108 = scmp.ne.s32.totalorder %s1096, %s1097
      %p1109 = scmp.eq.s32.totalorder %s128, 1
      %p1110 = por %p1108, %p1109
      %p1112 = scmp.ne.s32.totalorder %s1097, %s1111
      %p1113 = scmp.eq.s32.totalorder %s128, 0
      %p1114 = por %p1112, %p1113
      %s1116 = sadd.s32 %s1115, 1
      %p1119 = scmp.eq.s32.totalorder %s122, 1
      %p1120 = scmp.ne.s32.totalorder %s1115, %s1117
      %p1121 = scmp.eq.s32.totalorder %s122, 0
      %p1122 = por %p1120, %p1121
      %p1123 = scmp.ne.s32.totalorder %s1115, %s1117
      %p1124 = scmp.eq.s32.totalorder %s127, 1
      %p1125 = por %p1123, %p1124
      %p1126 = scmp.ne.s32.totalorder %s1117, %s1118
      %p1127 = scmp.eq.s32.totalorder %s127, 0
      %p1128 = por %p1126, %p1127
      %p1129 = scmp.ne.s32.totalorder %s1117, %s1118
      %p1130 = scmp.eq.s32.totalorder %s128, 1
      %p1131 = por %p1129, %p1130
      %p1133 = scmp.ne.s32.totalorder %s1118, %s1132
      %p1134 = scmp.eq.s32.totalorder %s128, 0
      %p1135 = por %p1133, %p1134
      %s1137 = sadd.s32 %s1136, 1
      %p1140 = scmp.eq.s32.totalorder %s122, 1
      %p1141 = scmp.ne.s32.totalorder %s1136, %s1138
      %p1142 = scmp.eq.s32.totalorder %s122, 0
      %p1143 = por %p1141, %p1142
      %p1144 = scmp.ne.s32.totalorder %s1136, %s1138
      %p1145 = scmp.eq.s32.totalorder %s127, 1
      %p1146 = por %p1144, %p1145
      %p1147 = scmp.ne.s32.totalorder %s1138, %s1139
      %p1148 = scmp.eq.s32.totalorder %s127, 0
      %p1149 = por %p1147, %p1148
      %p1150 = scmp.ne.s32.totalorder %s1138, %s1139
      %p1151 = scmp.eq.s32.totalorder %s128, 1
      %p1152 = por %p1150, %p1151
      %p1154 = scmp.ne.s32.totalorder %s1139, %s1153
      %p1155 = scmp.eq.s32.totalorder %s128, 0
      %p1156 = por %p1154, %p1155
      %s1157 = ssub.s32 %s122, %s129
      %p1158 = scmp.eq.s32.totalorder %s1157, 0
      %s1160 = sadd.s32 %s1159, 1
      %s1161 = scalar_select %p1158, %s1159, %s1160
      %p1164 = pneg %p1158
      %p1165 = scmp.eq.s32.totalorder %s122, 1
      %p1166 = por %p1164, %p1165
      %p1167 = scmp.ne.s32.totalorder %s1159, %s1162
      %p1168 = scmp.eq.s32.totalorder %s122, 0
      %p1169 = por %p1167, %p1168
      %p1170 = scmp.ne.s32.totalorder %s1159, %s1162
      %p1171 = scmp.eq.s32.totalorder %s127, 1
      %p1172 = por %p1170, %p1171
      %p1173 = scmp.ne.s32.totalorder %s1162, %s1163
      %p1174 = scmp.eq.s32.totalorder %s127, 0
      %p1175 = por %p1173, %p1174
      %p1176 = scmp.ne.s32.totalorder %s1162, %s1163
      %p1177 = scmp.eq.s32.totalorder %s128, 1
      %p1178 = por %p1176, %p1177
      %p1180 = scmp.ne.s32.totalorder %s1163, %s1179
      %p1181 = scmp.eq.s32.totalorder %s128, 0
      %p1182 = por %p1180, %p1181
      %s1183 = ssub.s32 %s122, %s129
      %p1184 = scmp.eq.s32.totalorder %s1183, 0
      %s1186 = sadd.s32 %s1185, 1
      %s1187 = scalar_select %p1184, %s1185, %s1186
      %p1190 = pneg %p1184
      %p1191 = scmp.eq.s32.totalorder %s122, 1
      %p1192 = por %p1190, %p1191
      %p1193 = scmp.ne.s32.totalorder %s1185, %s1188
      %p1194 = scmp.eq.s32.totalorder %s122, 0
      %p1195 = por %p1193, %p1194
      %p1196 = scmp.ne.s32.totalorder %s1185, %s1188
      %p1197 = scmp.eq.s32.totalorder %s127, 1
      %p1198 = por %p1196, %p1197
      %p1199 = scmp.ne.s32.totalorder %s1188, %s1189
      %p1200 = scmp.eq.s32.totalorder %s127, 0
      %p1201 = por %p1199, %p1200
      %p1202 = scmp.ne.s32.totalorder %s1188, %s1189
      %p1203 = scmp.eq.s32.totalorder %s128, 1
      %p1204 = por %p1202, %p1203
      %p1206 = scmp.ne.s32.totalorder %s1189, %s1205
      %p1207 = scmp.eq.s32.totalorder %s128, 0
      %p1208 = por %p1206, %p1207
      %s1209 = ssub.s32 %s122, %s129
      %p1210 = scmp.eq.s32.totalorder %s1209, 0
      %s1212 = sadd.s32 %s1211, 1
      %s1213 = scalar_select %p1210, %s1211, %s1212
      %p1216 = pneg %p1210
      %p1217 = scmp.eq.s32.totalorder %s122, 1
      %p1218 = por %p1216, %p1217
      %p1219 = scmp.ne.s32.totalorder %s1211, %s1214
      %p1220 = scmp.eq.s32.totalorder %s122, 0
      %p1221 = por %p1219, %p1220
      %p1222 = scmp.ne.s32.totalorder %s1211, %s1214
      %p1223 = scmp.eq.s32.totalorder %s127, 1
      %p1224 = por %p1222, %p1223
      %p1225 = scmp.ne.s32.totalorder %s1214, %s1215
      %p1226 = scmp.eq.s32.totalorder %s127, 0
      %p1227 = por %p1225, %p1226
      %p1228 = scmp.ne.s32.totalorder %s1214, %s1215
      %p1229 = scmp.eq.s32.totalorder %s128, 1
      %p1230 = por %p1228, %p1229
      %p1232 = scmp.ne.s32.totalorder %s1215, %s1231
      %p1233 = scmp.eq.s32.totalorder %s128, 0
      %p1234 = por %p1232, %p1233
      %p1235 = scmp.le.s32.totalorder 1, %s122
      %p1236 = scmp.lt.s32.totalorder %s122, 3
      %p1237 = pnand %p1235, %p1236
      %p1238 = pneg %p1237
      // Predicated region
      $region9: #{vqvae_matcha_forward.3} parent=5 // pred_check
        _
      $region10: #{vqvae_matcha_forward.3} parent=5 // pred_check_branch
        %1240 = sbr.rel (%p1237) target = $region12
      $region11: #{vqvae_matcha_forward.3} parent=5 // pred_region
        %s1241 = ssub.s32 %s122, 1
        // Predicated region
        $region13: #{vqvae_matcha_forward.3} parent=11 // pred_check
          %p1242 = pneg %p351
        $region14: #{vqvae_matcha_forward.3} parent=11 // pred_check_branch
          %1244 = sbr.rel (%p1242) target = $region16
        $region15: #{vqvae_matcha_forward.3} parent=11 // pred_region
          %s1246 = ssub.s32 32, 32
          %1247 = vsyncadd [#allocation4], %s1246
          %s1249 = sshll.u32 %s17, 4
          %s1250 = int_to_ptr.vmem [resolvable:$true] %s1249
          %1252 = dma.vmem_to_smem %s1250, 32, [#allocation2], [#allocation4]
        $region16: #{vqvae_matcha_forward.3} parent=11 // pred_fallthru
          _
        // Predicated region
        $region17: #{vqvae_matcha_forward.3} parent=11 // pred_check
          %p1253 = pneg %p372
        $region18: #{vqvae_matcha_forward.3} parent=11 // pred_check_branch
          %1255 = sbr.rel (%p1253) target = $region20
        $region19: #{vqvae_matcha_forward.3} parent=11 // pred_region
          %s1257 = ssub.s32 2048, 2048
          %1258 = vsyncadd [#allocation3], %s1257
          %s1259 = sshll.u32 [#allocation5], 4
          %s1260 = int_to_ptr.vmem [resolvable:$true] %s1259
          %1265 = dma.hbm_to_vmem [thread:$0]  %s19, 2048, %s1260, [#allocation3], 128, 128, 8
        $region20: #{vqvae_matcha_forward.3} parent=11 // pred_fallthru
          _
        // Predicated region
        $region21: #{vqvae_matcha_forward.3} parent=11 // pred_check
          %p1266 = pneg %p393
        $region22: #{vqvae_matcha_forward.3} parent=11 // pred_check_branch
          %1268 = sbr.rel (%p1266) target = $region24
        $region23: #{vqvae_matcha_forward.3} parent=11 // pred_region
          %s1270 = ssub.s32 16, 16
          %1271 = vsyncadd [#allocation7], %s1270
          %s1273 = sshll.u32 [#allocation6], 4
          %s1274 = int_to_ptr.vmem [resolvable:$true] %s1273
          %1276 = dma.hbm_to_vmem [thread:$0]  %s21, 16, %s1274, [#allocation7]
        $region24: #{vqvae_matcha_forward.3} parent=11 // pred_fallthru
          _
        // Predicated region
        $region25: #{vqvae_matcha_forward.3} parent=11 // pred_check
          %p1277 = pneg %p414
        $region26: #{vqvae_matcha_forward.3} parent=11 // pred_check_branch
          %1279 = sbr.rel (%p1277) target = $region28
        $region27: #{vqvae_matcha_forward.3} parent=11 // pred_region
          %s1281 = ssub.s32 16, 16
          %1282 = vsyncadd [#allocation7], %s1281
          %s1284 = sshll.u32 [#allocation8], 4
          %s1285 = int_to_ptr.vmem [resolvable:$true] %s1284
          %1287 = dma.hbm_to_vmem [thread:$0]  %s23, 16, %s1285, [#allocation7]
        $region28: #{vqvae_matcha_forward.3} parent=11 // pred_fallthru
          _
        // Predicated region
        $region29: #{vqvae_matcha_forward.3} parent=11 // pred_check
          %p1288 = pneg %p435
        $region30: #{vqvae_matcha_forward.3} parent=11 // pred_check_branch
          %1290 = sbr.rel (%p1288) target = $region32
        $region31: #{vqvae_matcha_forward.3} parent=11 // pred_region
          %s1292 = ssub.s32 16, 16
          %1293 = vsyncadd [#allocation10], %s1292
          %s1295 = sshll.u32 [#allocation9], 4
          %s1296 = int_to_ptr.vmem [resolvable:$true] %s1295
          %1298 = dma.hbm_to_vmem [thread:$0]  %s25, 16, %s1296, [#allocation10]
        $region32: #{vqvae_matcha_forward.3} parent=11 // pred_fallthru
          _
        // Predicated region
        $region33: #{vqvae_matcha_forward.3} parent=11 // pred_check
          %p1299 = pneg %p456
        $region34: #{vqvae_matcha_forward.3} parent=11 // pred_check_branch
          %1301 = sbr.rel (%p1299) target = $region36
        $region35: #{vqvae_matcha_forward.3} parent=11 // pred_region
          _
        $region36: #{vqvae_matcha_forward.3} parent=11 // pred_fallthru
          _
        // Predicated region
        $region37: #{vqvae_matcha_forward.3} parent=11 // pred_check
          %p1302 = pneg %p477
        $region38: #{vqvae_matcha_forward.3} parent=11 // pred_check_branch
          %1304 = sbr.rel (%p1302) target = $region40
        $region39: #{vqvae_matcha_forward.3} parent=11 // pred_region
          %s1306 = ssub.s32 16, 16
          %1307 = vsyncadd [#allocation10], %s1306
          %s1309 = sshll.u32 [#allocation11], 4
          %s1310 = int_to_ptr.vmem [resolvable:$true] %s1309
          %1312 = dma.hbm_to_vmem [thread:$0]  %s29, 16, %s1310, [#allocation10]
        $region40: #{vqvae_matcha_forward.3} parent=11 // pred_fallthru
          _
        // Predicated region
        $region41: #{vqvae_matcha_forward.3} parent=11 // pred_check
          %p1313 = pneg %p498
        $region42: #{vqvae_matcha_forward.3} parent=11 // pred_check_branch
          %1315 = sbr.rel (%p1313) target = $region44
        $region43: #{vqvae_matcha_forward.3} parent=11 // pred_region
          %s1317 = ssub.s32 2048, 2048
          %1318 = vsyncadd [#allocation13], %s1317
          %s1319 = sshll.u32 [#allocation12], 4
          %s1320 = int_to_ptr.vmem [resolvable:$true] %s1319
          %1325 = dma.hbm_to_vmem [thread:$0]  %s31, 2048, %s1320, [#allocation13], 128, 128, 8
        $region44: #{vqvae_matcha_forward.3} parent=11 // pred_fallthru
          _
        // Predicated region
        $region45: #{vqvae_matcha_forward.3} parent=11 // pred_check
          %p1326 = pneg %p519
        $region46: #{vqvae_matcha_forward.3} parent=11 // pred_check_branch
          %1328 = sbr.rel (%p1326) target = $region48
        $region47: #{vqvae_matcha_forward.3} parent=11 // pred_region
          %s1330 = ssub.s32 16, 16
          %1331 = vsyncadd [#allocation13], %s1330
          %s1333 = sshll.u32 [#allocation14], 4
          %s1334 = int_to_ptr.vmem [resolvable:$true] %s1333
          %1336 = dma.hbm_to_vmem [thread:$0]  %s33, 16, %s1334, [#allocation13]
        $region48: #{vqvae_matcha_forward.3} parent=11 // pred_fallthru
          _
        // Predicated region
        $region49: #{vqvae_matcha_forward.3} parent=11 // pred_check
          %p1337 = pneg %p540
        $region50: #{vqvae_matcha_forward.3} parent=11 // pred_check_branch
          %1339 = sbr.rel (%p1337) target = $region52
        $region51: #{vqvae_matcha_forward.3} parent=11 // pred_region
          %s1341 = ssub.s32 16, 16
          %1342 = vsyncadd [#allocation16], %s1341
          %s1344 = sshll.u32 [#allocation15], 4
          %s1345 = int_to_ptr.vmem [resolvable:$true] %s1344
          %1347 = dma.hbm_to_vmem [thread:$0]  %s35, 16, %s1345, [#allocation16]
        $region52: #{vqvae_matcha_forward.3} parent=11 // pred_fallthru
          _
        // Predicated region
        $region53: #{vqvae_matcha_forward.3} parent=11 // pred_check
          %p1348 = pneg %p561
        $region54: #{vqvae_matcha_forward.3} parent=11 // pred_check_branch
          %1350 = sbr.rel (%p1348) target = $region56
        $region55: #{vqvae_matcha_forward.3} parent=11 // pred_region
          _
        $region56: #{vqvae_matcha_forward.3} parent=11 // pred_fallthru
          _
        // Predicated region
        $region57: #{vqvae_matcha_forward.3} parent=11 // pred_check
          %p1351 = pneg %p582
        $region58: #{vqvae_matcha_forward.3} parent=11 // pred_check_branch
          %1353 = sbr.rel (%p1351) target = $region60
        $region59: #{vqvae_matcha_forward.3} parent=11 // pred_region
          _
        $region60: #{vqvae_matcha_forward.3} parent=11 // pred_fallthru
          _
        // Predicated region
        $region61: #{vqvae_matcha_forward.3} parent=11 // pred_check
          %p1354 = pneg %p603
        $region62: #{vqvae_matcha_forward.3} parent=11 // pred_check_branch
          %1356 = sbr.rel (%p1354) target = $region64
        $region63: #{vqvae_matcha_forward.3} parent=11 // pred_region
          _
        $region64: #{vqvae_matcha_forward.3} parent=11 // pred_fallthru
          _
        // Predicated region
        $region65: #{vqvae_matcha_forward.3} parent=11 // pred_check
          %p1357 = pneg %p624
        $region66: #{vqvae_matcha_forward.3} parent=11 // pred_check_branch
          %1359 = sbr.rel (%p1357) target = $region68
        $region67: #{vqvae_matcha_forward.3} parent=11 // pred_region
          %s1361 = ssub.s32 6144, 6144
          %1362 = vsyncadd [#allocation16], %s1361
          %s1363 = sshll.u32 [#allocation17], 4
          %s1364 = int_to_ptr.vmem [resolvable:$true] %s1363
          %1369 = dma.hbm_to_vmem [thread:$0]  %s43, 6144, %s1364, [#allocation16], 128, 128, 8
        $region68: #{vqvae_matcha_forward.3} parent=11 // pred_fallthru
          _
        // Predicated region
        $region69: #{vqvae_matcha_forward.3} parent=11 // pred_check
          %p1370 = pneg %p645
        $region70: #{vqvae_matcha_forward.3} parent=11 // pred_check_branch
          %1372 = sbr.rel (%p1370) target = $region72
        $region71: #{vqvae_matcha_forward.3} parent=11 // pred_region
          %s1374 = ssub.s32 16, 16
          %1375 = vsyncadd [#allocation19], %s1374
          %s1377 = sshll.u32 [#allocation18], 4
          %s1378 = int_to_ptr.vmem [resolvable:$true] %s1377
          %1380 = dma.hbm_to_vmem [thread:$0]  %s45, 16, %s1378, [#allocation19]
        $region72: #{vqvae_matcha_forward.3} parent=11 // pred_fallthru
          _
        // Predicated region
        $region73: #{vqvae_matcha_forward.3} parent=11 // pred_check
          %p1381 = pneg %p666
        $region74: #{vqvae_matcha_forward.3} parent=11 // pred_check_branch
          %1383 = sbr.rel (%p1381) target = $region76
        $region75: #{vqvae_matcha_forward.3} parent=11 // pred_region
          %s1385 = ssub.s32 6144, 6144
          %1386 = vsyncadd [#allocation19], %s1385
          %s1387 = sshll.u32 [#allocation20], 4
          %s1388 = int_to_ptr.vmem [resolvable:$true] %s1387
          %1393 = dma.hbm_to_vmem [thread:$0]  %s47, 6144, %s1388, [#allocation19], 128, 128, 8
        $region76: #{vqvae_matcha_forward.3} parent=11 // pred_fallthru
          _
        // Predicated region
        $region77: #{vqvae_matcha_forward.3} parent=11 // pred_check
          %p1394 = pneg %p687
        $region78: #{vqvae_matcha_forward.3} parent=11 // pred_check_branch
          %1396 = sbr.rel (%p1394) target = $region80
        $region79: #{vqvae_matcha_forward.3} parent=11 // pred_region
          %s1398 = ssub.s32 16, 16
          %1399 = vsyncadd [#allocation22], %s1398
          %s1401 = sshll.u32 [#allocation21], 4
          %s1402 = int_to_ptr.vmem [resolvable:$true] %s1401
          %1404 = dma.hbm_to_vmem [thread:$0]  %s49, 16, %s1402, [#allocation22]
        $region80: #{vqvae_matcha_forward.3} parent=11 // pred_fallthru
          _
        // Predicated region
        $region81: #{vqvae_matcha_forward.3} parent=11 // pred_check
          %p1405 = pneg %p708
        $region82: #{vqvae_matcha_forward.3} parent=11 // pred_check_branch
          %1407 = sbr.rel (%p1405) target = $region84
        $region83: #{vqvae_matcha_forward.3} parent=11 // pred_region
          %s1409 = ssub.s32 2048, 2048
          %1410 = vsyncadd [#allocation22], %s1409
          %s1411 = sshll.u32 [#allocation23], 4
          %s1412 = int_to_ptr.vmem [resolvable:$true] %s1411
          %1417 = dma.hbm_to_vmem [thread:$0]  %s51, 2048, %s1412, [#allocation22], 128, 128, 8
        $region84: #{vqvae_matcha_forward.3} parent=11 // pred_fallthru
          _
        // Predicated region
        $region85: #{vqvae_matcha_forward.3} parent=11 // pred_check
          %p1418 = pneg %p729
        $region86: #{vqvae_matcha_forward.3} parent=11 // pred_check_branch
          %1420 = sbr.rel (%p1418) target = $region88
        $region87: #{vqvae_matcha_forward.3} parent=11 // pred_region
          %s1422 = ssub.s32 16, 16
          %1423 = vsyncadd [#allocation25], %s1422
          %s1425 = sshll.u32 [#allocation24], 4
          %s1426 = int_to_ptr.vmem [resolvable:$true] %s1425
          %1428 = dma.hbm_to_vmem [thread:$0]  %s53, 16, %s1426, [#allocation25]
        $region88: #{vqvae_matcha_forward.3} parent=11 // pred_fallthru
          _
        // Predicated region
        $region89: #{vqvae_matcha_forward.3} parent=11 // pred_check
          %p1429 = pneg %p750
        $region90: #{vqvae_matcha_forward.3} parent=11 // pred_check_branch
          %1431 = sbr.rel (%p1429) target = $region92
        $region91: #{vqvae_matcha_forward.3} parent=11 // pred_region
          _
        $region92: #{vqvae_matcha_forward.3} parent=11 // pred_fallthru
          _
        // Predicated region
        $region93: #{vqvae_matcha_forward.3} parent=11 // pred_check
          %p1432 = pneg %p771
        $region94: #{vqvae_matcha_forward.3} parent=11 // pred_check_branch
          %1434 = sbr.rel (%p1432) target = $region96
        $region95: #{vqvae_matcha_forward.3} parent=11 // pred_region
          %s1436 = ssub.s32 2048, 2048
          %1437 = vsyncadd [#allocation25], %s1436
          %s1438 = sshll.u32 [#allocation26], 4
          %s1439 = int_to_ptr.vmem [resolvable:$true] %s1438
          %1444 = dma.hbm_to_vmem [thread:$0]  %s57, 2048, %s1439, [#allocation25], 128, 128, 8
        $region96: #{vqvae_matcha_forward.3} parent=11 // pred_fallthru
          _
        // Predicated region
        $region97: #{vqvae_matcha_forward.3} parent=11 // pred_check
          %p1445 = pneg %p792
        $region98: #{vqvae_matcha_forward.3} parent=11 // pred_check_branch
          %1447 = sbr.rel (%p1445) target = $region100
        $region99: #{vqvae_matcha_forward.3} parent=11 // pred_region
          %s1449 = ssub.s32 16, 16
          %1450 = vsyncadd [#allocation28], %s1449
          %s1452 = sshll.u32 [#allocation27], 4
          %s1453 = int_to_ptr.vmem [resolvable:$true] %s1452
          %1455 = dma.hbm_to_vmem [thread:$0]  %s59, 16, %s1453, [#allocation28]
        $region100: #{vqvae_matcha_forward.3} parent=11 // pred_fallthru
          _
        // Predicated region
        $region101: #{vqvae_matcha_forward.3} parent=11 // pred_check
          %p1456 = pneg %p813
        $region102: #{vqvae_matcha_forward.3} parent=11 // pred_check_branch
          %1458 = sbr.rel (%p1456) target = $region104
        $region103: #{vqvae_matcha_forward.3} parent=11 // pred_region
          %s1460 = ssub.s32 6144, 6144
          %1461 = vsyncadd [#allocation28], %s1460
          %s1462 = sshll.u32 [#allocation29], 4
          %s1463 = int_to_ptr.vmem [resolvable:$true] %s1462
          %1468 = dma.hbm_to_vmem [thread:$0]  %s61, 6144, %s1463, [#allocation28], 128, 128, 8
        $region104: #{vqvae_matcha_forward.3} parent=11 // pred_fallthru
          _
        // Predicated region
        $region105: #{vqvae_matcha_forward.3} parent=11 // pred_check
          %p1469 = pneg %p834
        $region106: #{vqvae_matcha_forward.3} parent=11 // pred_check_branch
          %1471 = sbr.rel (%p1469) target = $region108
        $region107: #{vqvae_matcha_forward.3} parent=11 // pred_region
          %s1473 = ssub.s32 16, 16
          %1474 = vsyncadd [#allocation31], %s1473
          %s1476 = sshll.u32 [#allocation30], 4
          %s1477 = int_to_ptr.vmem [resolvable:$true] %s1476
          %1479 = dma.hbm_to_vmem [thread:$0]  %s63, 16, %s1477, [#allocation31]
        $region108: #{vqvae_matcha_forward.3} parent=11 // pred_fallthru
          _
        // Predicated region
        $region109: #{vqvae_matcha_forward.3} parent=11 // pred_check
          %p1480 = pneg %p855
        $region110: #{vqvae_matcha_forward.3} parent=11 // pred_check_branch
          %1482 = sbr.rel (%p1480) target = $region112
        $region111: #{vqvae_matcha_forward.3} parent=11 // pred_region
          %s1484 = ssub.s32 6144, 6144
          %1485 = vsyncadd [#allocation31], %s1484
          %s1486 = sshll.u32 [#allocation32], 4
          %s1487 = int_to_ptr.vmem [resolvable:$true] %s1486
          %1492 = dma.hbm_to_vmem [thread:$0]  %s65, 6144, %s1487, [#allocation31], 128, 128, 8
        $region112: #{vqvae_matcha_forward.3} parent=11 // pred_fallthru
          _
        // Predicated region
        $region113: #{vqvae_matcha_forward.3} parent=11 // pred_check
          %p1493 = pneg %p876
        $region114: #{vqvae_matcha_forward.3} parent=11 // pred_check_branch
          %1495 = sbr.rel (%p1493) target = $region116
        $region115: #{vqvae_matcha_forward.3} parent=11 // pred_region
          %s1497 = ssub.s32 16, 16
          %1498 = vsyncadd [#allocation34], %s1497
          %s1500 = sshll.u32 [#allocation33], 4
          %s1501 = int_to_ptr.vmem [resolvable:$true] %s1500
          %1503 = dma.hbm_to_vmem [thread:$0]  %s67, 16, %s1501, [#allocation34]
        $region116: #{vqvae_matcha_forward.3} parent=11 // pred_fallthru
          _
        // Predicated region
        $region117: #{vqvae_matcha_forward.3} parent=11 // pred_check
          %p1504 = pneg %p897
        $region118: #{vqvae_matcha_forward.3} parent=11 // pred_check_branch
          %1506 = sbr.rel (%p1504) target = $region120
        $region119: #{vqvae_matcha_forward.3} parent=11 // pred_region
          _
        $region120: #{vqvae_matcha_forward.3} parent=11 // pred_fallthru
          _
        // Predicated region
        $region121: #{vqvae_matcha_forward.3} parent=11 // pred_check
          %p1507 = pneg %p918
        $region122: #{vqvae_matcha_forward.3} parent=11 // pred_check_branch
          %1509 = sbr.rel (%p1507) target = $region124
        $region123: #{vqvae_matcha_forward.3} parent=11 // pred_region
          %s1511 = ssub.s32 256, 256
          %1512 = vsyncadd [#allocation34], %s1511
          %s1513 = sshll.u32 [#allocation35], 4
          %s1514 = int_to_ptr.vmem [resolvable:$true] %s1513
          %1519 = dma.hbm_to_vmem [thread:$0]  %s71, 256, %s1514, [#allocation34], 128, 128, 8
        $region124: #{vqvae_matcha_forward.3} parent=11 // pred_fallthru
          _
        // Predicated region
        $region125: #{vqvae_matcha_forward.3} parent=11 // pred_check
          %p1520 = pneg %p939
        $region126: #{vqvae_matcha_forward.3} parent=11 // pred_check_branch
          %1522 = sbr.rel (%p1520) target = $region128
        $region127: #{vqvae_matcha_forward.3} parent=11 // pred_region
          %s1524 = ssub.s32 256, 256
          %1525 = vsyncadd [#allocation37], %s1524
          %s1526 = sshll.u32 [#allocation36], 4
          %s1527 = int_to_ptr.vmem [resolvable:$true] %s1526
          %1532 = dma.hbm_to_vmem [thread:$0]  %s73, 256, %s1527, [#allocation37], 128, 128, 8
        $region128: #{vqvae_matcha_forward.3} parent=11 // pred_fallthru
          _
        // Predicated region
        $region129: #{vqvae_matcha_forward.3} parent=11 // pred_check
          %p1533 = pneg %p960
        $region130: #{vqvae_matcha_forward.3} parent=11 // pred_check_branch
          %1535 = sbr.rel (%p1533) target = $region132
        $region131: #{vqvae_matcha_forward.3} parent=11 // pred_region
          %s1537 = ssub.s32 256, 256
          %1538 = vsyncadd [#allocation37], %s1537
          %s1539 = sshll.u32 [#allocation38], 4
          %s1540 = int_to_ptr.vmem [resolvable:$true] %s1539
          %1545 = dma.hbm_to_vmem [thread:$0]  %s75, 256, %s1540, [#allocation37], 128, 128, 8
        $region132: #{vqvae_matcha_forward.3} parent=11 // pred_fallthru
          _
        // Predicated region
        $region133: #{vqvae_matcha_forward.3} parent=11 // pred_check
          %p1546 = pneg %p981
        $region134: #{vqvae_matcha_forward.3} parent=11 // pred_check_branch
          %1548 = sbr.rel (%p1546) target = $region136
        $region135: #{vqvae_matcha_forward.3} parent=11 // pred_region
          _
        $region136: #{vqvae_matcha_forward.3} parent=11 // pred_fallthru
          _
        // Predicated region
        $region137: #{vqvae_matcha_forward.3} parent=11 // pred_check
          %p1549 = pneg %p1002
        $region138: #{vqvae_matcha_forward.3} parent=11 // pred_check_branch
          %1551 = sbr.rel (%p1549) target = $region140
        $region139: #{vqvae_matcha_forward.3} parent=11 // pred_region
          %s1553 = ssub.s32 16, 16
          %1554 = vsyncadd [#allocation40], %s1553
          %s1556 = sshll.u32 [#allocation39], 4
          %s1557 = int_to_ptr.vmem [resolvable:$true] %s1556
          %1559 = dma.hbm_to_vmem [thread:$0]  %s79, 16, %s1557, [#allocation40]
        $region140: #{vqvae_matcha_forward.3} parent=11 // pred_fallthru
          _
        // Predicated region
        $region141: #{vqvae_matcha_forward.3} parent=11 // pred_check
          %p1560 = pneg %p1023
        $region142: #{vqvae_matcha_forward.3} parent=11 // pred_check_branch
          %1562 = sbr.rel (%p1560) target = $region144
        $region143: #{vqvae_matcha_forward.3} parent=11 // pred_region
          %s1564 = ssub.s32 2048, 2048
          %1565 = vsyncadd [#allocation40], %s1564
          %s1566 = sshll.u32 [#allocation41], 4
          %s1567 = int_to_ptr.vmem [resolvable:$true] %s1566
          %1572 = dma.hbm_to_vmem [thread:$0]  %s81, 2048, %s1567, [#allocation40], 128, 128, 8
        $region144: #{vqvae_matcha_forward.3} parent=11 // pred_fallthru
          _
        // Predicated region
        $region145: #{vqvae_matcha_forward.3} parent=11 // pred_check
          %p1573 = pneg %p1044
        $region146: #{vqvae_matcha_forward.3} parent=11 // pred_check_branch
          %1575 = sbr.rel (%p1573) target = $region148
        $region147: #{vqvae_matcha_forward.3} parent=11 // pred_region
          %s1577 = ssub.s32 2048, 2048
          %1578 = vsyncadd [#allocation43], %s1577
          %s1579 = sshll.u32 [#allocation42], 4
          %s1580 = int_to_ptr.vmem [resolvable:$true] %s1579
          %1585 = dma.hbm_to_vmem [thread:$0]  %s83, 2048, %s1580, [#allocation43], 128, 128, 8
        $region148: #{vqvae_matcha_forward.3} parent=11 // pred_fallthru
          _
        // Predicated region
        $region149: #{vqvae_matcha_forward.3} parent=11 // pred_check
          %p1586 = pneg %p1065
        $region150: #{vqvae_matcha_forward.3} parent=11 // pred_check_branch
          %1588 = sbr.rel (%p1586) target = $region152
        $region151: #{vqvae_matcha_forward.3} parent=11 // pred_region
          %s1590 = ssub.s32 2048, 2048
          %1591 = vsyncadd [#allocation43], %s1590
          %s1592 = sshll.u32 [#allocation44], 4
          %s1593 = int_to_ptr.vmem [resolvable:$true] %s1592
          %1598 = dma.hbm_to_vmem [thread:$0]  %s85, 2048, %s1593, [#allocation43], 128, 128, 8
        $region152: #{vqvae_matcha_forward.3} parent=11 // pred_fallthru
          _
        // Predicated region
        $region153: #{vqvae_matcha_forward.3} parent=11 // pred_check
          %p1599 = pneg %p1086
        $region154: #{vqvae_matcha_forward.3} parent=11 // pred_check_branch
          %1601 = sbr.rel (%p1599) target = $region156
        $region155: #{vqvae_matcha_forward.3} parent=11 // pred_region
          _
        $region156: #{vqvae_matcha_forward.3} parent=11 // pred_fallthru
          _
        // Predicated region
        $region157: #{vqvae_matcha_forward.3} parent=11 // pred_check
          %p1602 = pneg %p1107
        $region158: #{vqvae_matcha_forward.3} parent=11 // pred_check_branch
          %1604 = sbr.rel (%p1602) target = $region160
        $region159: #{vqvae_matcha_forward.3} parent=11 // pred_region
          _
        $region160: #{vqvae_matcha_forward.3} parent=11 // pred_fallthru
          _
        // Predicated region
        $region161: #{vqvae_matcha_forward.3} parent=11 // pred_check
          %p1605 = pneg %p1128
        $region162: #{vqvae_matcha_forward.3} parent=11 // pred_check_branch
          %1607 = sbr.rel (%p1605) target = $region164
        $region163: #{vqvae_matcha_forward.3} parent=11 // pred_region
          %s1609 = ssub.s32 2048, 2048
          %1610 = vsyncadd [#allocation46], %s1609
          %s1611 = sshll.u32 [#allocation45], 4
          %s1612 = int_to_ptr.vmem [resolvable:$true] %s1611
          %1617 = dma.hbm_to_vmem [thread:$0]  %s91, 2048, %s1612, [#allocation46], 128, 128, 8
        $region164: #{vqvae_matcha_forward.3} parent=11 // pred_fallthru
          _
        // Predicated region
        $region165: #{vqvae_matcha_forward.3} parent=11 // pred_check
          %p1618 = pneg %p1149
        $region166: #{vqvae_matcha_forward.3} parent=11 // pred_check_branch
          %1620 = sbr.rel (%p1618) target = $region168
        $region167: #{vqvae_matcha_forward.3} parent=11 // pred_region
          _
        $region168: #{vqvae_matcha_forward.3} parent=11 // pred_fallthru
          _
      $region12: #{vqvae_matcha_forward.3} parent=5 // pred_fallthru
        _
      %p1621 = scmp.lt.s32.totalorder %s122, 2
      // Predicated region
      $region169: #{vqvae_matcha_forward.3} parent=5 // pred_check
        %p1622 = pneg %p1621
      $region170: #{vqvae_matcha_forward.3} parent=5 // pred_check_branch
        %1624 = sbr.rel (%p1622) target = $region172
      $region171: #{vqvae_matcha_forward.3} parent=5 // pred_region
        // Predicated region
        $region173: #{vqvae_matcha_forward.3} parent=171 // pred_check
          %p1625 = pneg %p142
        $region174: #{vqvae_matcha_forward.3} parent=171 // pred_check_branch
          %1627 = sbr.rel (%p1625) target = $region176
        $region175: #{vqvae_matcha_forward.3} parent=171 // pred_region
          %p1628 = scmp.lt.s32.totalorder %s122, 1
          %s1629 = scalar_select %p1628, %s122, 1
          %s1630 = smul.addr %s1629, 2
          %s1631 = smul.addr %s1630, 8
          %s1632 = scalar_lea.vmem %s1, %s1631
        $region176: #{vqvae_matcha_forward.3} parent=171 // pred_fallthru
          _
        // Predicated region
        $region177: #{vqvae_matcha_forward.3} parent=171 // pred_check
          %p1633 = pneg %p168
        $region178: #{vqvae_matcha_forward.3} parent=171 // pred_check_branch
          %1635 = sbr.rel (%p1633) target = $region180
        $region179: #{vqvae_matcha_forward.3} parent=171 // pred_region
          %p1636 = scmp.lt.s32.totalorder %s122, 1
          %s1637 = scalar_select %p1636, %s122, 1
          %s1638 = smul.addr %s1637, 2
          %s1639 = smul.addr %s1638, 8
          %s1640 = scalar_lea.vmem %s3, %s1639
        $region180: #{vqvae_matcha_forward.3} parent=171 // pred_fallthru
          _
        // Predicated region
        $region181: #{vqvae_matcha_forward.3} parent=171 // pred_check
          %p1641 = pneg %p194
        $region182: #{vqvae_matcha_forward.3} parent=171 // pred_check_branch
          %1643 = sbr.rel (%p1641) target = $region184
        $region183: #{vqvae_matcha_forward.3} parent=171 // pred_region
          %p1644 = scmp.lt.s32.totalorder %s122, 1
          %s1645 = scalar_select %p1644, %s122, 1
          %s1646 = scalar_lea.vmem %s5, %s1645
        $region184: #{vqvae_matcha_forward.3} parent=171 // pred_fallthru
          _
        // Predicated region
        $region185: #{vqvae_matcha_forward.3} parent=171 // pred_check
          %p1647 = pneg %p220
        $region186: #{vqvae_matcha_forward.3} parent=171 // pred_check_branch
          %1649 = sbr.rel (%p1647) target = $region188
        $region187: #{vqvae_matcha_forward.3} parent=171 // pred_region
          %p1650 = scmp.lt.s32.totalorder %s122, 1
          %s1651 = scalar_select %p1650, %s122, 1
          %s1652 = smul.addr %s1651, 2
          %s1653 = smul.addr %s1652, 8
          %s1654 = scalar_lea.vmem %s7, %s1653
        $region188: #{vqvae_matcha_forward.3} parent=171 // pred_fallthru
          _
        // Predicated region
        $region189: #{vqvae_matcha_forward.3} parent=171 // pred_check
          %p1655 = pneg %p246
        $region190: #{vqvae_matcha_forward.3} parent=171 // pred_check_branch
          %1657 = sbr.rel (%p1655) target = $region192
        $region191: #{vqvae_matcha_forward.3} parent=171 // pred_region
          %p1658 = scmp.lt.s32.totalorder %s122, 1
          %s1659 = scalar_select %p1658, %s122, 1
          %s1660 = smul.addr %s1659, 2
          %s1661 = smul.addr %s1660, 8
          %s1662 = scalar_lea.vmem %s9, %s1661
        $region192: #{vqvae_matcha_forward.3} parent=171 // pred_fallthru
          _
        // Predicated region
        $region193: #{vqvae_matcha_forward.3} parent=171 // pred_check
          %p1663 = pneg %p272
        $region194: #{vqvae_matcha_forward.3} parent=171 // pred_check_branch
          %1665 = sbr.rel (%p1663) target = $region196
        $region195: #{vqvae_matcha_forward.3} parent=171 // pred_region
          %p1666 = scmp.lt.s32.totalorder %s122, 1
          %s1667 = scalar_select %p1666, %s122, 1
          %s1668 = smul.addr %s1667, 2
          %s1669 = smul.addr %s1668, 8
          %s1670 = scalar_lea.vmem %s11, %s1669
        $region196: #{vqvae_matcha_forward.3} parent=171 // pred_fallthru
          _
        // Predicated region
        $region197: #{vqvae_matcha_forward.3} parent=171 // pred_check
          %p1671 = pneg %p298
        $region198: #{vqvae_matcha_forward.3} parent=171 // pred_check_branch
          %1673 = sbr.rel (%p1671) target = $region200
        $region199: #{vqvae_matcha_forward.3} parent=171 // pred_region
          %p1674 = scmp.lt.s32.totalorder %s122, 1
          %s1675 = scalar_select %p1674, %s122, 1
          %s1676 = smul.addr %s1675, 2
          %s1677 = smul.addr %s1676, 8
          %s1678 = scalar_lea.vmem %s13, %s1677
        $region200: #{vqvae_matcha_forward.3} parent=171 // pred_fallthru
          _
        // Predicated region
        $region201: #{vqvae_matcha_forward.3} parent=171 // pred_check
          %p1679 = pneg %p324
        $region202: #{vqvae_matcha_forward.3} parent=171 // pred_check_branch
          %1681 = sbr.rel (%p1679) target = $region204
        $region203: #{vqvae_matcha_forward.3} parent=171 // pred_region
          %p1682 = scmp.lt.s32.totalorder %s122, 1
          %s1683 = scalar_select %p1682, %s122, 1
          %s1684 = smul.addr %s1683, 2
          %s1685 = smul.addr %s1684, 8
          %s1686 = scalar_lea.vmem %s15, %s1685
        $region204: #{vqvae_matcha_forward.3} parent=171 // pred_fallthru
          _
      $region172: #{vqvae_matcha_forward.3} parent=5 // pred_fallthru
        _
      %p1687 = scmp.le.s32.totalorder 1, %s122
      %p1688 = scmp.lt.s32.totalorder %s122, 3
      %p1689 = pnand %p1687, %p1688
      %p1690 = pneg %p1689
      // Predicated region
      $region205: #{vqvae_matcha_forward.3} parent=5 // pred_check
        _
      $region206: #{vqvae_matcha_forward.3} parent=5 // pred_check_branch
        %1692 = sbr.rel (%p1689) target = $region208
      $region207: #{vqvae_matcha_forward.3} parent=5 // pred_region
        %s1693 = ssub.s32 %s122, 1
        // Predicated region
        $region209: #{vqvae_matcha_forward.3} parent=207 // pred_check
          %p1694 = pneg %p351
        $region210: #{vqvae_matcha_forward.3} parent=207 // pred_check_branch
          %1696 = sbr.rel (%p1694) target = $region212
        $region211: #{vqvae_matcha_forward.3} parent=207 // pred_region
          %1697 = dma.done [#allocation4], 32
        $region212: #{vqvae_matcha_forward.3} parent=207 // pred_fallthru
          _
        // Predicated region
        $region213: #{vqvae_matcha_forward.3} parent=207 // pred_check
          %p1698 = pneg %p372
        $region214: #{vqvae_matcha_forward.3} parent=207 // pred_check_branch
          %1700 = sbr.rel (%p1698) target = $region216
        $region215: #{vqvae_matcha_forward.3} parent=207 // pred_region
          %1701 = dma.done [#allocation3], 2048
        $region216: #{vqvae_matcha_forward.3} parent=207 // pred_fallthru
          _
        // Predicated region
        $region217: #{vqvae_matcha_forward.3} parent=207 // pred_check
          %p1702 = pneg %p393
        $region218: #{vqvae_matcha_forward.3} parent=207 // pred_check_branch
          %1704 = sbr.rel (%p1702) target = $region220
        $region219: #{vqvae_matcha_forward.3} parent=207 // pred_region
          %1705 = dma.done [#allocation7], 16
        $region220: #{vqvae_matcha_forward.3} parent=207 // pred_fallthru
          _
        // Predicated region
        $region221: #{vqvae_matcha_forward.3} parent=207 // pred_check
          %p1706 = pneg %p414
        $region222: #{vqvae_matcha_forward.3} parent=207 // pred_check_branch
          %1708 = sbr.rel (%p1706) target = $region224
        $region223: #{vqvae_matcha_forward.3} parent=207 // pred_region
          %1709 = dma.done [#allocation7], 16
        $region224: #{vqvae_matcha_forward.3} parent=207 // pred_fallthru
          _
        // Predicated region
        $region225: #{vqvae_matcha_forward.3} parent=207 // pred_check
          %p1710 = pneg %p435
        $region226: #{vqvae_matcha_forward.3} parent=207 // pred_check_branch
          %1712 = sbr.rel (%p1710) target = $region228
        $region227: #{vqvae_matcha_forward.3} parent=207 // pred_region
          %1713 = dma.done [#allocation10], 16
        $region228: #{vqvae_matcha_forward.3} parent=207 // pred_fallthru
          _
        // Predicated region
        $region229: #{vqvae_matcha_forward.3} parent=207 // pred_check
          %p1714 = pneg %p477
        $region230: #{vqvae_matcha_forward.3} parent=207 // pred_check_branch
          %1716 = sbr.rel (%p1714) target = $region232
        $region231: #{vqvae_matcha_forward.3} parent=207 // pred_region
          %1717 = dma.done [#allocation10], 16
        $region232: #{vqvae_matcha_forward.3} parent=207 // pred_fallthru
          _
        // Predicated region
        $region233: #{vqvae_matcha_forward.3} parent=207 // pred_check
          %p1718 = pneg %p498
        $region234: #{vqvae_matcha_forward.3} parent=207 // pred_check_branch
          %1720 = sbr.rel (%p1718) target = $region236
        $region235: #{vqvae_matcha_forward.3} parent=207 // pred_region
          %1721 = dma.done [#allocation13], 2048
        $region236: #{vqvae_matcha_forward.3} parent=207 // pred_fallthru
          _
        // Predicated region
        $region237: #{vqvae_matcha_forward.3} parent=207 // pred_check
          %p1722 = pneg %p519
        $region238: #{vqvae_matcha_forward.3} parent=207 // pred_check_branch
          %1724 = sbr.rel (%p1722) target = $region240
        $region239: #{vqvae_matcha_forward.3} parent=207 // pred_region
          %1725 = dma.done [#allocation13], 16
        $region240: #{vqvae_matcha_forward.3} parent=207 // pred_fallthru
          _
        // Predicated region
        $region241: #{vqvae_matcha_forward.3} parent=207 // pred_check
          %p1726 = pneg %p540
        $region242: #{vqvae_matcha_forward.3} parent=207 // pred_check_branch
          %1728 = sbr.rel (%p1726) target = $region244
        $region243: #{vqvae_matcha_forward.3} parent=207 // pred_region
          %1729 = dma.done [#allocation16], 16
        $region244: #{vqvae_matcha_forward.3} parent=207 // pred_fallthru
          _
        // Predicated region
        $region245: #{vqvae_matcha_forward.3} parent=207 // pred_check
          %p1730 = pneg %p624
        $region246: #{vqvae_matcha_forward.3} parent=207 // pred_check_branch
          %1732 = sbr.rel (%p1730) target = $region248
        $region247: #{vqvae_matcha_forward.3} parent=207 // pred_region
          %1733 = dma.done [#allocation16], 6144
        $region248: #{vqvae_matcha_forward.3} parent=207 // pred_fallthru
          _
        // Predicated region
        $region249: #{vqvae_matcha_forward.3} parent=207 // pred_check
          %p1734 = pneg %p645
        $region250: #{vqvae_matcha_forward.3} parent=207 // pred_check_branch
          %1736 = sbr.rel (%p1734) target = $region252
        $region251: #{vqvae_matcha_forward.3} parent=207 // pred_region
          %1737 = dma.done [#allocation19], 16
        $region252: #{vqvae_matcha_forward.3} parent=207 // pred_fallthru
          _
        // Predicated region
        $region253: #{vqvae_matcha_forward.3} parent=207 // pred_check
          %p1738 = pneg %p666
        $region254: #{vqvae_matcha_forward.3} parent=207 // pred_check_branch
          %1740 = sbr.rel (%p1738) target = $region256
        $region255: #{vqvae_matcha_forward.3} parent=207 // pred_region
          %1741 = dma.done [#allocation19], 6144
        $region256: #{vqvae_matcha_forward.3} parent=207 // pred_fallthru
          _
        // Predicated region
        $region257: #{vqvae_matcha_forward.3} parent=207 // pred_check
          %p1742 = pneg %p687
        $region258: #{vqvae_matcha_forward.3} parent=207 // pred_check_branch
          %1744 = sbr.rel (%p1742) target = $region260
        $region259: #{vqvae_matcha_forward.3} parent=207 // pred_region
          %1745 = dma.done [#allocation22], 16
        $region260: #{vqvae_matcha_forward.3} parent=207 // pred_fallthru
          _
        // Predicated region
        $region261: #{vqvae_matcha_forward.3} parent=207 // pred_check
          %p1746 = pneg %p708
        $region262: #{vqvae_matcha_forward.3} parent=207 // pred_check_branch
          %1748 = sbr.rel (%p1746) target = $region264
        $region263: #{vqvae_matcha_forward.3} parent=207 // pred_region
          %1749 = dma.done [#allocation22], 2048
        $region264: #{vqvae_matcha_forward.3} parent=207 // pred_fallthru
          _
        // Predicated region
        $region265: #{vqvae_matcha_forward.3} parent=207 // pred_check
          %p1750 = pneg %p729
        $region266: #{vqvae_matcha_forward.3} parent=207 // pred_check_branch
          %1752 = sbr.rel (%p1750) target = $region268
        $region267: #{vqvae_matcha_forward.3} parent=207 // pred_region
          %1753 = dma.done [#allocation25], 16
        $region268: #{vqvae_matcha_forward.3} parent=207 // pred_fallthru
          _
        // Predicated region
        $region269: #{vqvae_matcha_forward.3} parent=207 // pred_check
          %p1754 = pneg %p771
        $region270: #{vqvae_matcha_forward.3} parent=207 // pred_check_branch
          %1756 = sbr.rel (%p1754) target = $region272
        $region271: #{vqvae_matcha_forward.3} parent=207 // pred_region
          %1757 = dma.done [#allocation25], 2048
        $region272: #{vqvae_matcha_forward.3} parent=207 // pred_fallthru
          _
        // Predicated region
        $region273: #{vqvae_matcha_forward.3} parent=207 // pred_check
          %p1758 = pneg %p792
        $region274: #{vqvae_matcha_forward.3} parent=207 // pred_check_branch
          %1760 = sbr.rel (%p1758) target = $region276
        $region275: #{vqvae_matcha_forward.3} parent=207 // pred_region
          %1761 = dma.done [#allocation28], 16
        $region276: #{vqvae_matcha_forward.3} parent=207 // pred_fallthru
          _
        // Predicated region
        $region277: #{vqvae_matcha_forward.3} parent=207 // pred_check
          %p1762 = pneg %p813
        $region278: #{vqvae_matcha_forward.3} parent=207 // pred_check_branch
          %1764 = sbr.rel (%p1762) target = $region280
        $region279: #{vqvae_matcha_forward.3} parent=207 // pred_region
          %1765 = dma.done [#allocation28], 6144
        $region280: #{vqvae_matcha_forward.3} parent=207 // pred_fallthru
          _
        // Predicated region
        $region281: #{vqvae_matcha_forward.3} parent=207 // pred_check
          %p1766 = pneg %p834
        $region282: #{vqvae_matcha_forward.3} parent=207 // pred_check_branch
          %1768 = sbr.rel (%p1766) target = $region284
        $region283: #{vqvae_matcha_forward.3} parent=207 // pred_region
          %1769 = dma.done [#allocation31], 16
        $region284: #{vqvae_matcha_forward.3} parent=207 // pred_fallthru
          _
        // Predicated region
        $region285: #{vqvae_matcha_forward.3} parent=207 // pred_check
          %p1770 = pneg %p855
        $region286: #{vqvae_matcha_forward.3} parent=207 // pred_check_branch
          %1772 = sbr.rel (%p1770) target = $region288
        $region287: #{vqvae_matcha_forward.3} parent=207 // pred_region
          %1773 = dma.done [#allocation31], 6144
        $region288: #{vqvae_matcha_forward.3} parent=207 // pred_fallthru
          _
        // Predicated region
        $region289: #{vqvae_matcha_forward.3} parent=207 // pred_check
          %p1774 = pneg %p876
        $region290: #{vqvae_matcha_forward.3} parent=207 // pred_check_branch
          %1776 = sbr.rel (%p1774) target = $region292
        $region291: #{vqvae_matcha_forward.3} parent=207 // pred_region
          %1777 = dma.done [#allocation34], 16
        $region292: #{vqvae_matcha_forward.3} parent=207 // pred_fallthru
          _
        // Predicated region
        $region293: #{vqvae_matcha_forward.3} parent=207 // pred_check
          %p1778 = pneg %p918
        $region294: #{vqvae_matcha_forward.3} parent=207 // pred_check_branch
          %1780 = sbr.rel (%p1778) target = $region296
        $region295: #{vqvae_matcha_forward.3} parent=207 // pred_region
          %1781 = dma.done [#allocation34], 256
        $region296: #{vqvae_matcha_forward.3} parent=207 // pred_fallthru
          _
        // Predicated region
        $region297: #{vqvae_matcha_forward.3} parent=207 // pred_check
          %p1782 = pneg %p939
        $region298: #{vqvae_matcha_forward.3} parent=207 // pred_check_branch
          %1784 = sbr.rel (%p1782) target = $region300
        $region299: #{vqvae_matcha_forward.3} parent=207 // pred_region
          %1785 = dma.done [#allocation37], 256
        $region300: #{vqvae_matcha_forward.3} parent=207 // pred_fallthru
          _
        // Predicated region
        $region301: #{vqvae_matcha_forward.3} parent=207 // pred_check
          %p1786 = pneg %p960
        $region302: #{vqvae_matcha_forward.3} parent=207 // pred_check_branch
          %1788 = sbr.rel (%p1786) target = $region304
        $region303: #{vqvae_matcha_forward.3} parent=207 // pred_region
          %1789 = dma.done [#allocation37], 256
        $region304: #{vqvae_matcha_forward.3} parent=207 // pred_fallthru
          _
        // Predicated region
        $region305: #{vqvae_matcha_forward.3} parent=207 // pred_check
          %p1790 = pneg %p1002
        $region306: #{vqvae_matcha_forward.3} parent=207 // pred_check_branch
          %1792 = sbr.rel (%p1790) target = $region308
        $region307: #{vqvae_matcha_forward.3} parent=207 // pred_region
          %1793 = dma.done [#allocation40], 16
        $region308: #{vqvae_matcha_forward.3} parent=207 // pred_fallthru
          _
        // Predicated region
        $region309: #{vqvae_matcha_forward.3} parent=207 // pred_check
          %p1794 = pneg %p1023
        $region310: #{vqvae_matcha_forward.3} parent=207 // pred_check_branch
          %1796 = sbr.rel (%p1794) target = $region312
        $region311: #{vqvae_matcha_forward.3} parent=207 // pred_region
          %1797 = dma.done [#allocation40], 2048
        $region312: #{vqvae_matcha_forward.3} parent=207 // pred_fallthru
          _
        // Predicated region
        $region313: #{vqvae_matcha_forward.3} parent=207 // pred_check
          %p1798 = pneg %p1044
        $region314: #{vqvae_matcha_forward.3} parent=207 // pred_check_branch
          %1800 = sbr.rel (%p1798) target = $region316
        $region315: #{vqvae_matcha_forward.3} parent=207 // pred_region
          %1801 = dma.done [#allocation43], 2048
        $region316: #{vqvae_matcha_forward.3} parent=207 // pred_fallthru
          _
        // Predicated region
        $region317: #{vqvae_matcha_forward.3} parent=207 // pred_check
          %p1802 = pneg %p1065
        $region318: #{vqvae_matcha_forward.3} parent=207 // pred_check_branch
          %1804 = sbr.rel (%p1802) target = $region320
        $region319: #{vqvae_matcha_forward.3} parent=207 // pred_region
          %1805 = dma.done [#allocation43], 2048
        $region320: #{vqvae_matcha_forward.3} parent=207 // pred_fallthru
          _
        // Predicated region
        $region321: #{vqvae_matcha_forward.3} parent=207 // pred_check
          %p1806 = pneg %p1128
        $region322: #{vqvae_matcha_forward.3} parent=207 // pred_check_branch
          %1808 = sbr.rel (%p1806) target = $region324
        $region323: #{vqvae_matcha_forward.3} parent=207 // pred_region
          %1809 = dma.done [#allocation46], 2048
        $region324: #{vqvae_matcha_forward.3} parent=207 // pred_fallthru
          _
        %1810 = sfence
        %p1811 = scmp.lt.s32.totalorder %s127, 1
        %s1812 = scalar_select %p1811, %s127, 1
        %s1813 = smul.addr %s1812, 2
        %s1814 = smul.addr %s1813, 8
        %s1815 = scalar_lea.vmem %s1, %s1814
        %p1816 = pneg %p148
        %p1817 = pneg %p145
        %p1818 = scmp.lt.s32.totalorder %s127, 1
        %s1819 = scalar_select %p1818, %s127, 1
        %s1820 = smul.addr %s1819, 2
        %s1821 = smul.addr %s1820, 8
        %s1822 = scalar_lea.vmem %s3, %s1821
        %p1823 = pneg %p174
        %p1824 = pneg %p171
        %p1825 = scmp.lt.s32.totalorder %s127, 1
        %s1826 = scalar_select %p1825, %s127, 1
        %s1827 = scalar_lea.vmem %s5, %s1826
        %p1828 = pneg %p200
        %p1829 = pneg %p197
        %p1830 = scmp.lt.s32.totalorder %s127, 1
        %s1831 = scalar_select %p1830, %s127, 1
        %s1832 = smul.addr %s1831, 2
        %s1833 = smul.addr %s1832, 8
        %s1834 = scalar_lea.vmem %s7, %s1833
        %p1835 = pneg %p226
        %p1836 = pneg %p223
        %p1837 = scmp.lt.s32.totalorder %s127, 1
        %s1838 = scalar_select %p1837, %s127, 1
        %s1839 = smul.addr %s1838, 2
        %s1840 = smul.addr %s1839, 8
        %s1841 = scalar_lea.vmem %s9, %s1840
        %p1842 = pneg %p252
        %p1843 = pneg %p249
        %p1844 = scmp.lt.s32.totalorder %s127, 1
        %s1845 = scalar_select %p1844, %s127, 1
        %s1846 = smul.addr %s1845, 2
        %s1847 = smul.addr %s1846, 8
        %s1848 = scalar_lea.vmem %s11, %s1847
        %p1849 = pneg %p278
        %p1850 = pneg %p275
        %p1851 = scmp.lt.s32.totalorder %s127, 1
        %s1852 = scalar_select %p1851, %s127, 1
        %s1853 = smul.addr %s1852, 2
        %s1854 = smul.addr %s1853, 8
        %s1855 = scalar_lea.vmem %s13, %s1854
        %p1856 = pneg %p304
        %p1857 = pneg %p301
        %p1858 = scmp.lt.s32.totalorder %s127, 1
        %s1859 = scalar_select %p1858, %s127, 1
        %s1860 = smul.addr %s1859, 2
        %s1861 = smul.addr %s1860, 8
        %s1862 = scalar_lea.vmem %s15, %s1861
        %p1863 = pneg %p330
        %p1864 = pneg %p327
        %p1865 = pneg %p351
        %p1866 = pneg %p348
        %p1867 = pneg %p372
        %p1868 = pneg %p369
        %p1869 = pneg %p393
        %p1870 = pneg %p390
        %p1871 = pneg %p414
        %p1872 = pneg %p411
        %p1873 = pneg %p435
        %p1874 = pneg %p432
        %p1875 = pneg %p456
        %p1876 = pneg %p453
        %p1877 = pneg %p477
        %p1878 = pneg %p474
        %p1879 = pneg %p498
        %p1880 = pneg %p495
        %p1881 = pneg %p519
        %p1882 = pneg %p516
        %p1883 = pneg %p540
        %p1884 = pneg %p537
        %p1885 = pneg %p561
        %p1886 = pneg %p558
        %p1887 = pneg %p582
        %p1888 = pneg %p579
        %p1889 = pneg %p603
        %p1890 = pneg %p600
        %p1891 = pneg %p624
        %p1892 = pneg %p621
        %p1893 = pneg %p645
        %p1894 = pneg %p642
        %p1895 = pneg %p666
        %p1896 = pneg %p663
        %p1897 = pneg %p687
        %p1898 = pneg %p684
        %p1899 = pneg %p708
        %p1900 = pneg %p705
        %p1901 = pneg %p729
        %p1902 = pneg %p726
        %p1903 = pneg %p750
        %p1904 = pneg %p747
        %p1905 = pneg %p771
        %p1906 = pneg %p768
        %p1907 = pneg %p792
        %p1908 = pneg %p789
        %p1909 = pneg %p813
        %p1910 = pneg %p810
        %p1911 = pneg %p834
        %p1912 = pneg %p831
        %p1913 = pneg %p855
        %p1914 = pneg %p852
        %p1915 = pneg %p876
        %p1916 = pneg %p873
        %p1917 = pneg %p897
        %p1918 = pneg %p894
        %p1919 = pneg %p918
        %p1920 = pneg %p915
        %p1921 = pneg %p939
        %p1922 = pneg %p936
        %p1923 = pneg %p960
        %p1924 = pneg %p957
        %p1925 = pneg %p981
        %p1926 = pneg %p978
        %p1927 = pneg %p1002
        %p1928 = pneg %p999
        %p1929 = pneg %p1023
        %p1930 = pneg %p1020
        %p1931 = pneg %p1044
        %p1932 = pneg %p1041
        %p1933 = pneg %p1065
        %p1934 = pneg %p1062
        %p1935 = pneg %p1086
        %p1936 = pneg %p1083
        %p1937 = pneg %p1107
        %p1938 = pneg %p1104
        %p1939 = pneg %p1128
        %p1940 = pneg %p1125
        %p1941 = pneg %p1149
        %p1942 = pneg %p1146
        %p1943 = pneg %p1175
        %p1944 = pneg %p1172
        %p1945 = scmp.lt.s32.totalorder %s127, 1
        %s1946 = scalar_select %p1945, %s127, 1
        %s1947 = smul.addr %s1946, 2
        %s1948 = smul.addr %s1947, 8
        %s1949 = scalar_lea.vmem %s95, %s1948
        %p1950 = pneg %p1201
        %p1951 = pneg %p1198
        %p1952 = scmp.lt.s32.totalorder %s127, 1
        %s1953 = scalar_select %p1952, %s127, 1
        %s1954 = scalar_lea.vmem %s97, %s1953
        %p1955 = pneg %p1227
        %p1956 = pneg %p1224
        %p1957 = scmp.lt.s32.totalorder %s127, 1
        %s1958 = scalar_select %p1957, %s127, 1
        %s1959 = scalar_lea.vmem %s99, %s1958
        %p1960 = scmp.lt.s32.totalorder %s127, 1
        %s1961 = scalar_select %p1960, %s127, 1
        %s1962 = smul.addr %s1961, 2
        %s1963 = smul.addr %s1962, 8
        %s1964 = scalar_lea.vmem %s1, %s1963
        %p1965 = scmp.lt.s32.totalorder %s127, 1
        %s1966 = scalar_select %p1965, %s127, 1
        %s1967 = smul.addr %s1966, 2
        %s1968 = smul.addr %s1967, 8
        %s1969 = scalar_lea.vmem %s3, %s1968
        %p1970 = scmp.lt.s32.totalorder %s127, 1
        %s1971 = scalar_select %p1970, %s127, 1
        %s1972 = scalar_lea.vmem %s5, %s1971
        %p1973 = scmp.lt.s32.totalorder %s127, 1
        %s1974 = scalar_select %p1973, %s127, 1
        %s1975 = smul.addr %s1974, 2
        %s1976 = smul.addr %s1975, 8
        %s1977 = scalar_lea.vmem %s7, %s1976
        %p1978 = scmp.lt.s32.totalorder %s127, 1
        %s1979 = scalar_select %p1978, %s127, 1
        %s1980 = smul.addr %s1979, 2
        %s1981 = smul.addr %s1980, 8
        %s1982 = scalar_lea.vmem %s9, %s1981
        %p1983 = scmp.lt.s32.totalorder %s127, 1
        %s1984 = scalar_select %p1983, %s127, 1
        %s1985 = smul.addr %s1984, 2
        %s1986 = smul.addr %s1985, 8
        %s1987 = scalar_lea.vmem %s11, %s1986
        %p1988 = scmp.lt.s32.totalorder %s127, 1
        %s1989 = scalar_select %p1988, %s127, 1
        %s1990 = smul.addr %s1989, 2
        %s1991 = smul.addr %s1990, 8
        %s1992 = scalar_lea.vmem %s13, %s1991
        %p1993 = scmp.lt.s32.totalorder %s127, 1
        %s1994 = scalar_select %p1993, %s127, 1
        %s1995 = smul.addr %s1994, 2
        %s1996 = smul.addr %s1995, 8
        %s1997 = scalar_lea.vmem %s15, %s1996
        %p1998 = scmp.lt.s32.totalorder %s127, 1
        %s1999 = scalar_select %p1998, %s127, 1
        %s2000 = smul.addr %s1999, 2
        %s2001 = smul.addr %s2000, 8
        %s2002 = scalar_lea.vmem %s95, %s2001
        %p2003 = scmp.lt.s32.totalorder %s127, 1
        %s2004 = scalar_select %p2003, %s127, 1
        %s2005 = scalar_lea.vmem %s97, %s2004
        %p2006 = scmp.lt.s32.totalorder %s127, 1
        %s2007 = scalar_select %p2006, %s127, 1
        %s2008 = scalar_lea.vmem %s99, %s2007
        %s2009 = smul.u32 %s127, 128
        %s2010 = sld [smem:[#allocation2 + %s2009]]
        %v2011 = vld [vmem:[%s1972] sm:$0x1]
        %v2012 = vld [vmem:[#allocation5] sm:$0xff]
        %v2013 = vld [vmem:[#allocation5 + $0x8] sm:$0xff]
        %v2014 = vld [vmem:[#allocation5 + $0x10] sm:$0xff]
        %v2015 = vld [vmem:[#allocation5 + $0x18] sm:$0xff]
        %v2016 = vld [vmem:[#allocation5 + $0x20] sm:$0xff]
        %v2017 = vld [vmem:[#allocation5 + $0x28] sm:$0xff]
        %v2018 = vld [vmem:[#allocation5 + $0x30] sm:$0xff]
        %v2019 = vld [vmem:[#allocation5 + $0x38] sm:$0xff]
        %v2020 = vld [vmem:[#allocation5 + $0x40] sm:$0xff]
        %v2021 = vld [vmem:[#allocation5 + $0x48] sm:$0xff]
        %v2022 = vld [vmem:[#allocation5 + $0x50] sm:$0xff]
        %v2023 = vld [vmem:[#allocation5 + $0x58] sm:$0xff]
        %v2024 = vld [vmem:[#allocation5 + $0x60] sm:$0xff]
        %v2025 = vld [vmem:[#allocation5 + $0x68] sm:$0xff]
        %v2026 = vld [vmem:[#allocation5 + $0x70] sm:$0xff]
        %v2027 = vld [vmem:[#allocation5 + $0x78] sm:$0xff]
        %v2028 = vld [vmem:[#allocation6] sm:$0x1]
        %2029 = vmatprep.subr.mxu0 0.0
        %2030 = vmatpush1.msra.mxu0 %v2012
        %2031 = vmatprep.subr.mxu0 0.0
        %2032 = vmatpush1.msra.mxu0 %v2013
        %2033 = vmatprep.subr.mxu0 0.0
        %2034 = vmatpush1.msra.mxu0 %v2014
        %2035 = vmatprep.subr.mxu0 0.0
        %2036 = vmatpush1.msra.mxu0 %v2015
        %2037 = vmatprep.subr.mxu0 0.0
        %2038 = vmatpush1.msra.mxu0 %v2016
        %2039 = vmatprep.subr.mxu0 0.0
        %2040 = vmatpush1.msra.mxu0 %v2017
        %2041 = vmatprep.subr.mxu0 0.0
        %2042 = vmatpush1.msra.mxu0 %v2018
        %2043 = vmatprep.subr.mxu0 0.0
        %2044 = vmatpush1.msra.mxu0 %v2019
        %2045 = vmatprep.subr.mxu0 0.0
        %2046 = vmatpush1.msra.mxu0 %v2020
        %2047 = vmatprep.subr.mxu0 0.0
        %2048 = vmatpush1.msra.mxu0 %v2021
        %2049 = vmatprep.subr.mxu0 0.0
        %2050 = vmatpush1.msra.mxu0 %v2022
        %2051 = vmatprep.subr.mxu0 0.0
        %2052 = vmatpush1.msra.mxu0 %v2023
        %2053 = vmatprep.subr.mxu0 0.0
        %2054 = vmatpush1.msra.mxu0 %v2024
        %2055 = vmatprep.subr.mxu0 0.0
        %2056 = vmatpush1.msra.mxu0 %v2025
        %2057 = vmatprep.subr.mxu0 0.0
        %2058 = vmatpush1.msra.mxu0 %v2026
        %2059 = vmatprep.subr.mxu0 0.0
        %2060 = vmatpush1.msra.mxu0 %v2027
        %2061 = vmatprep.subr.mxu0 0.0
        %2062 = vmatpush1.msra.mxu0 0.0
        %2063 = vmatprep.subr.mxu0 0.0
        %2064 = vmatpush1.msra.mxu0 0.0
        %2065 = vmatprep.subr.mxu0 0.0
        %2066 = vmatpush1.msra.mxu0 0.0
        %2067 = vmatprep.subr.mxu0 0.0
        %2068 = vmatpush1.msra.mxu0 0.0
        %2069 = vmatprep.subr.mxu0 0.0
        %2070 = vmatpush1.msra.mxu0 0.0
        %2071 = vmatprep.subr.mxu0 0.0
        %2072 = vmatpush1.msra.mxu0 0.0
        %2073 = vmatprep.subr.mxu0 0.0
        %2074 = vmatpush1.msra.mxu0 0.0
        %2075 = vmatprep.subr.mxu0 0.0
        %2076 = vmatpush1.msra.mxu0 0.0
        %2077 = vmatprep.subr.mxu0 0.0
        %2078 = vmatpush1.msra.mxu0 0.0
        %2079 = vmatprep.subr.mxu0 0.0
        %2080 = vmatpush1.msra.mxu0 0.0
        %2081 = vmatprep.subr.mxu0 0.0
        %2082 = vmatpush1.msra.mxu0 0.0
        %2083 = vmatprep.subr.mxu0 0.0
        %2084 = vmatpush1.msra.mxu0 0.0
        %2085 = vmatprep.subr.mxu0 0.0
        %2086 = vmatpush1.msra.mxu0 0.0
        %2087 = vmatprep.subr.mxu0 0.0
        %2088 = vmatpush1.msra.mxu0 0.0
        %2089 = vmatprep.subr.mxu0 0.0
        %2090 = vmatpush1.msra.mxu0 0.0
        %2091 = vmatprep.subr.mxu0 0.0
        %2092 = vmatpush1.msra.mxu0 0.0
        %2093 = vmatprep.mubr.f32.mxu0 0.0
        %2094 = vmatmul.mubr.f32.gmra.mrb[0].mxu0 %v2011
        %v2095 = vpop.f32.mrb[0].mxu0
        %v2096 = vadd.f32 %v2028, %v2095
        %v2097 = vpop.f32.mrb[0].mxu0
        %2098 = vdwg.mxu0
        %v2099 = vmax.f32 %v2096, 0.0
        %v2100 = vld [vmem:[%s27] sm:$0xff]
        %v2101 = vld [vmem:[%s27 + $0x8] sm:$0xff]
        %v2102 = vld [vmem:[%s27 + $0x10] sm:$0xff]
        %v2103 = vld [vmem:[%s27 + $0x18] sm:$0xff]
        %v2104 = vld [vmem:[%s27 + $0x20] sm:$0xff]
        %v2105 = vld [vmem:[%s27 + $0x28] sm:$0xff]
        %v2106 = vld [vmem:[%s27 + $0x30] sm:$0xff]
        %v2107 = vld [vmem:[%s27 + $0x38] sm:$0xff]
        %v2108 = vld [vmem:[%s27 + $0x40] sm:$0xff]
        %v2109 = vld [vmem:[%s27 + $0x48] sm:$0xff]
        %v2110 = vld [vmem:[%s27 + $0x50] sm:$0xff]
        %v2111 = vld [vmem:[%s27 + $0x58] sm:$0xff]
        %v2112 = vld [vmem:[%s27 + $0x60] sm:$0xff]
        %v2113 = vld [vmem:[%s27 + $0x68] sm:$0xff]
        %v2114 = vld [vmem:[%s27 + $0x70] sm:$0xff]
        %v2115 = vld [vmem:[%s27 + $0x78] sm:$0xff]
        %v2116 = vld [vmem:[%s27 + $0x80] sm:$0xff]
        %v2117 = vld [vmem:[%s27 + $0x88] sm:$0xff]
        %v2118 = vld [vmem:[%s27 + $0x90] sm:$0xff]
        %v2119 = vld [vmem:[%s27 + $0x98] sm:$0xff]
        %v2120 = vld [vmem:[%s27 + $0xa0] sm:$0xff]
        %v2121 = vld [vmem:[%s27 + $0xa8] sm:$0xff]
        %v2122 = vld [vmem:[%s27 + $0xb0] sm:$0xff]
        %v2123 = vld [vmem:[%s27 + $0xb8] sm:$0xff]
        %v2124 = vld [vmem:[%s27 + $0xc0] sm:$0xff]
        %v2125 = vld [vmem:[%s27 + $0xc8] sm:$0xff]
        %v2126 = vld [vmem:[%s27 + $0xd0] sm:$0xff]
        %v2127 = vld [vmem:[%s27 + $0xd8] sm:$0xff]
        %v2128 = vld [vmem:[%s27 + $0xe0] sm:$0xff]
        %v2129 = vld [vmem:[%s27 + $0xe8] sm:$0xff]
        %v2130 = vld [vmem:[%s27 + $0xf0] sm:$0xff]
        %v2131 = vld [vmem:[%s27 + $0xf8] sm:$0xff]
        %2132 = vmatprep.subr.mxu0 %v2101
        %2133 = vmatpush1.msra.mxu0 %v2100
        %2134 = vmatprep.subr.mxu0 %v2103
        %2135 = vmatpush1.msra.mxu0 %v2102
        %2136 = vmatprep.subr.mxu0 %v2105
        %2137 = vmatpush1.msra.mxu0 %v2104
        %2138 = vmatprep.subr.mxu0 %v2107
        %2139 = vmatpush1.msra.mxu0 %v2106
        %2140 = vmatprep.subr.mxu0 %v2109
        %2141 = vmatpush1.msra.mxu0 %v2108
        %2142 = vmatprep.subr.mxu0 %v2111
        %2143 = vmatpush1.msra.mxu0 %v2110
        %2144 = vmatprep.subr.mxu0 %v2113
        %2145 = vmatpush1.msra.mxu0 %v2112
        %2146 = vmatprep.subr.mxu0 %v2115
        %2147 = vmatpush1.msra.mxu0 %v2114
        %2148 = vmatprep.subr.mxu0 %v2117
        %2149 = vmatpush1.msra.mxu0 %v2116
        %2150 = vmatprep.subr.mxu0 %v2119
        %2151 = vmatpush1.msra.mxu0 %v2118
        %2152 = vmatprep.subr.mxu0 %v2121
        %2153 = vmatpush1.msra.mxu0 %v2120
        %2154 = vmatprep.subr.mxu0 %v2123
        %2155 = vmatpush1.msra.mxu0 %v2122
        %2156 = vmatprep.subr.mxu0 %v2125
        %2157 = vmatpush1.msra.mxu0 %v2124
        %2158 = vmatprep.subr.mxu0 %v2127
        %2159 = vmatpush1.msra.mxu0 %v2126
        %2160 = vmatprep.subr.mxu0 %v2129
        %2161 = vmatpush1.msra.mxu0 %v2128
        %2162 = vmatprep.subr.mxu0 %v2131
        %2163 = vmatpush1.msra.mxu0 %v2130
        %2164 = vmatprep.subr.mxu0 0.0
        %2165 = vmatpush1.msra.mxu0 0.0
        %2166 = vmatprep.subr.mxu0 0.0
        %2167 = vmatpush1.msra.mxu0 0.0
        %2168 = vmatprep.subr.mxu0 0.0
        %2169 = vmatpush1.msra.mxu0 0.0
        %2170 = vmatprep.subr.mxu0 0.0
        %2171 = vmatpush1.msra.mxu0 0.0
        %2172 = vmatprep.subr.mxu0 0.0
        %2173 = vmatpush1.msra.mxu0 0.0
        %2174 = vmatprep.subr.mxu0 0.0
        %2175 = vmatpush1.msra.mxu0 0.0
        %2176 = vmatprep.subr.mxu0 0.0
        %2177 = vmatpush1.msra.mxu0 0.0
        %2178 = vmatprep.subr.mxu0 0.0
        %2179 = vmatpush1.msra.mxu0 0.0
        %2180 = vmatprep.subr.mxu0 0.0
        %2181 = vmatpush1.msra.mxu0 0.0
        %2182 = vmatprep.subr.mxu0 0.0
        %2183 = vmatpush1.msra.mxu0 0.0
        %2184 = vmatprep.subr.mxu0 0.0
        %2185 = vmatpush1.msra.mxu0 0.0
        %2186 = vmatprep.subr.mxu0 0.0
        %2187 = vmatpush1.msra.mxu0 0.0
        %2188 = vmatprep.subr.mxu0 0.0
        %2189 = vmatpush1.msra.mxu0 0.0
        %2190 = vmatprep.subr.mxu0 0.0
        %2191 = vmatpush1.msra.mxu0 0.0
        %2192 = vmatprep.subr.mxu0 0.0
        %2193 = vmatpush1.msra.mxu0 0.0
        %2194 = vmatprep.subr.mxu0 0.0
        %2195 = vmatpush1.msra.mxu0 0.0
        %2196 = vmatprep.mubr.f32.mxu0 0.0
        %2197 = vmatmul.mubr.f32.gmra.mrb[0].mxu0 %v2099
        %v2198 = vpop.f32.mrb[0].mxu0
        %v2199 = vadd.f32 0.0, %v2198
        %v2200 = vpop.f32.mrb[0].mxu0
        %v2201 = vadd.f32 0.0, %v2200
        %2202 = vdwg.mxu0
        %v2203 = vld [vmem:[#allocation11] sm:$0x1]
        %v2204 = vadd.f32 %v2199, %v2203
        %v2205 = vld [vmem:[%s1977] sm:$0xff]
        %v2206 = vld [vmem:[%s1977 + $0x8] sm:$0xff]
        %v2207 = vld [vmem:[#allocation8] sm:$0x1]
        %2209 = vset.pattern.permute.xlu0 0
        %2210 = vperm.xlu0 %2209, %v2205
        %v2211 = vpop.permute.xlu0 %2210
        %2214 = vset.pattern.permute.xlu0 0
        %2215 = vperm.xlu0 %2214, %v2206
        %v2216 = vpop.permute.xlu0 %2215
        %v2219 = vlaneseq
        %v2220 = vshrl.u32 %v2219, 7
        %v2221 = vsub.s32 0, %v2220
        %v2222 = vrot.slane %v2207, %v2221
        %v2224 = vmul.f32 %v2211, %v2222
        %v2225 = vmul.f32 %v2216, %v2222
        %v2226 = vld [vmem:[#allocation9] sm:$0x1]
        %v2228 = vlaneseq
        %v2229 = vshrl.u32 %v2228, 7
        %v2230 = vsub.s32 0, %v2229
        %v2231 = vrot.slane %v2226, %v2230
        %v2233 = vadd.f32 %v2224, %v2231
        %v2234 = vadd.f32 %v2225, %v2231
        %v2235 = vmax.f32 %v2233, 0.0
        %v2236 = vmax.f32 %v2234, 0.0
        %v2237 = vld [vmem:[%s1987] sm:$0xff]
        %v2238 = vld [vmem:[%s1987 + $0x8] sm:$0xff]
        %v2239 = vld [vmem:[#allocation12] sm:$0xff]
        %v2240 = vld [vmem:[#allocation12 + $0x8] sm:$0xff]
        %v2241 = vld [vmem:[#allocation12 + $0x10] sm:$0xff]
        %v2242 = vld [vmem:[#allocation12 + $0x18] sm:$0xff]
        %v2243 = vld [vmem:[#allocation12 + $0x20] sm:$0xff]
        %v2244 = vld [vmem:[#allocation12 + $0x28] sm:$0xff]
        %v2245 = vld [vmem:[#allocation12 + $0x30] sm:$0xff]
        %v2246 = vld [vmem:[#allocation12 + $0x38] sm:$0xff]
        %v2247 = vld [vmem:[#allocation12 + $0x40] sm:$0xff]
        %v2248 = vld [vmem:[#allocation12 + $0x48] sm:$0xff]
        %v2249 = vld [vmem:[#allocation12 + $0x50] sm:$0xff]
        %v2250 = vld [vmem:[#allocation12 + $0x58] sm:$0xff]
        %v2251 = vld [vmem:[#allocation12 + $0x60] sm:$0xff]
        %v2252 = vld [vmem:[#allocation12 + $0x68] sm:$0xff]
        %v2253 = vld [vmem:[#allocation12 + $0x70] sm:$0xff]
        %v2254 = vld [vmem:[#allocation12 + $0x78] sm:$0xff]
        %v2255 = vld [vmem:[%s1982] sm:$0xff]
        %v2256 = vld [vmem:[%s1982 + $0x8] sm:$0xff]
        %v2257 = vld [vmem:[#allocation14] sm:$0x1]
        %2259 = vset.pattern.permute.xlu0 0
        %2260 = vperm.xlu0 %2259, %v2255
        %v2261 = vpop.permute.xlu0 %2260
        %2264 = vset.pattern.permute.xlu0 0
        %2265 = vperm.xlu0 %2264, %v2256
        %v2266 = vpop.permute.xlu0 %2265
        %v2269 = vlaneseq
        %v2270 = vshrl.u32 %v2269, 7
        %v2271 = vsub.s32 0, %v2270
        %v2272 = vrot.slane %v2257, %v2271
        %v2274 = vmul.f32 %v2261, %v2272
        %v2275 = vmul.f32 %v2266, %v2272
        %2276 = vmatprep.subr.mxu0 0.0
        %2277 = vmatpush1.msra.mxu0 %v2239
        %2278 = vmatprep.subr.mxu0 0.0
        %2279 = vmatpush1.msra.mxu0 %v2240
        %2280 = vmatprep.subr.mxu0 0.0
        %2281 = vmatpush1.msra.mxu0 %v2241
        %2282 = vmatprep.subr.mxu0 0.0
        %2283 = vmatpush1.msra.mxu0 %v2242
        %2284 = vmatprep.subr.mxu0 0.0
        %2285 = vmatpush1.msra.mxu0 %v2243
        %2286 = vmatprep.subr.mxu0 0.0
        %2287 = vmatpush1.msra.mxu0 %v2244
        %2288 = vmatprep.subr.mxu0 0.0
        %2289 = vmatpush1.msra.mxu0 %v2245
        %2290 = vmatprep.subr.mxu0 0.0
        %2291 = vmatpush1.msra.mxu0 %v2246
        %2292 = vmatprep.subr.mxu0 0.0
        %2293 = vmatpush1.msra.mxu0 %v2247
        %2294 = vmatprep.subr.mxu0 0.0
        %2295 = vmatpush1.msra.mxu0 %v2248
        %2296 = vmatprep.subr.mxu0 0.0
        %2297 = vmatpush1.msra.mxu0 %v2249
        %2298 = vmatprep.subr.mxu0 0.0
        %2299 = vmatpush1.msra.mxu0 %v2250
        %2300 = vmatprep.subr.mxu0 0.0
        %2301 = vmatpush1.msra.mxu0 %v2251
        %2302 = vmatprep.subr.mxu0 0.0
        %2303 = vmatpush1.msra.mxu0 %v2252
        %2304 = vmatprep.subr.mxu0 0.0
        %2305 = vmatpush1.msra.mxu0 %v2253
        %2306 = vmatprep.subr.mxu0 0.0
        %2307 = vmatpush1.msra.mxu0 %v2254
        %2308 = vmatprep.subr.mxu0 0.0
        %2309 = vmatpush1.msra.mxu0 0.0
        %2310 = vmatprep.subr.mxu0 0.0
        %2311 = vmatpush1.msra.mxu0 0.0
        %2312 = vmatprep.subr.mxu0 0.0
        %2313 = vmatpush1.msra.mxu0 0.0
        %2314 = vmatprep.subr.mxu0 0.0
        %2315 = vmatpush1.msra.mxu0 0.0
        %2316 = vmatprep.subr.mxu0 0.0
        %2317 = vmatpush1.msra.mxu0 0.0
        %2318 = vmatprep.subr.mxu0 0.0
        %2319 = vmatpush1.msra.mxu0 0.0
        %2320 = vmatprep.subr.mxu0 0.0
        %2321 = vmatpush1.msra.mxu0 0.0
        %2322 = vmatprep.subr.mxu0 0.0
        %2323 = vmatpush1.msra.mxu0 0.0
        %2324 = vmatprep.subr.mxu0 0.0
        %2325 = vmatpush1.msra.mxu0 0.0
        %2326 = vmatprep.subr.mxu0 0.0
        %2327 = vmatpush1.msra.mxu0 0.0
        %2328 = vmatprep.subr.mxu0 0.0
        %2329 = vmatpush1.msra.mxu0 0.0
        %2330 = vmatprep.subr.mxu0 0.0
        %2331 = vmatpush1.msra.mxu0 0.0
        %2332 = vmatprep.subr.mxu0 0.0
        %2333 = vmatpush1.msra.mxu0 0.0
        %2334 = vmatprep.subr.mxu0 0.0
        %2335 = vmatpush1.msra.mxu0 0.0
        %2336 = vmatprep.subr.mxu0 0.0
        %2337 = vmatpush1.msra.mxu0 0.0
        %2338 = vmatprep.subr.mxu0 0.0
        %2339 = vmatpush1.msra.mxu0 0.0
        %2340 = vmatprep.mubr.f32.mxu0 0.0
        %2341 = vmatmul.mubr.f32.gmra.mrb[0].mxu0 %v2235
        %v2342 = vpop.f32.mrb[0].mxu0
        %v2343 = vadd.f32 %v2274, %v2342
        %v2344 = vpop.f32.mrb[0].mxu0
        %2345 = vmatprep.mubr.f32.mxu0 0.0
        %2346 = vmatmul.mubr.f32.gmra.mrb[0].mxu0 %v2236
        %v2347 = vpop.f32.mrb[0].mxu0
        %v2348 = vadd.f32 %v2275, %v2347
        %v2349 = vpop.f32.mrb[0].mxu0
        %2350 = vdwg.mxu0
        %2352 = vset.pattern.permute.xlu0 0
        %2353 = vperm.xlu0 %2352, %v2237
        %v2354 = vpop.permute.xlu0 %2353
        %2357 = vset.pattern.permute.xlu0 0
        %2358 = vperm.xlu0 %2357, %v2238
        %v2359 = vpop.permute.xlu0 %2358
        %v2361 = vmul.f32 %v2343, %v2354
        %v2362 = vmul.f32 %v2348, %v2359
        %v2363 = vlaneseq
        %v2364 = vshrl.u32 %v2363, 7
        %v2365 = vsub.s32 0, %v2364
        %v2366 = vrot.slane %v2201, %v2365
        %v2367 = vadd.f32 %v2366, %v2361
        %v2368 = vadd.f32 %v2366, %v2362
        %v2369 = vld [vmem:[#allocation15] sm:$0x1]
        %v2371 = vlaneseq
        %v2372 = vshrl.u32 %v2371, 7
        %v2373 = vsub.s32 0, %v2372
        %v2374 = vrot.slane %v2369, %v2373
        %v2376 = vadd.f32 %v2367, %v2374
        %v2377 = vadd.f32 %v2368, %v2374
        %v2378 = vmax.f32 %v2376, 0.0
        %v2379 = vmax.f32 %v2377, 0.0
        %v2380 = vmul.f32 %v2378, %v2354
        %v2381 = vmul.f32 %v2379, %v2359
        %v2382 = vld [vmem:[%s1969] sm:$0xff]
        %v2383 = vld [vmem:[%s1969 + $0x8] sm:$0xff]
        %v2384 = vld [vmem:[%s1964] sm:$0xff]
        %v2385 = vld [vmem:[%s1964 + $0x8] sm:$0xff]
        %2387 = vset.pattern.permute.xlu0 0
        %2388 = vperm.xlu0 %2387, %v2382
        %v2389 = vpop.permute.xlu0 %2388
        %2392 = vset.pattern.permute.xlu0 0
        %2393 = vperm.xlu0 %2392, %v2383
        %v2394 = vpop.permute.xlu0 %2393
        %v2396 = vmul.f32 %v2384, %v2389
        %v2397 = vmul.f32 %v2385, %v2394
        %v2398 = vrot.slane %v2396, 6
        %v2399 = vrot.slane %v2397, 6
        %v2400 = vlaneseq
        %v2401 = vshrl.u32 %v2400, 7
        %vm2402 = vcmp.lt.s32.totalorder %v2401, 2
        %v2403 = vsel %vm2402, %v2398, %v2399
        %v2404 = vsel %vm2402, %v2399, %v2398
        %v2405 = vld [vmem:[%s37] sm:$0xff]
        %v2406 = vld [vmem:[%s37 + $0x8] sm:$0xff]
        %2408 = vset.pattern.permute.xlu0 0
        %2409 = vperm.xlu0 %2408, %v2405
        %v2410 = vpop.permute.xlu0 %2409
        %2413 = vset.pattern.permute.xlu0 0
        %2414 = vperm.xlu0 %2413, %v2406
        %v2415 = vpop.permute.xlu0 %2414
        %v2417 = vmul.f32 %v2404, %v2410
        %v2418 = vmul.f32 %v2403, %v2415
        %v2419 = vld [vmem:[#allocation17] sm:$0xff]
        %v2420 = vld [vmem:[#allocation17 + $0x8] sm:$0xff]
        %v2421 = vld [vmem:[#allocation17 + $0x10] sm:$0xff]
        %v2422 = vld [vmem:[#allocation17 + $0x18] sm:$0xff]
        %v2423 = vld [vmem:[#allocation17 + $0x20] sm:$0xff]
        %v2424 = vld [vmem:[#allocation17 + $0x28] sm:$0xff]
        %v2425 = vld [vmem:[#allocation17 + $0x30] sm:$0xff]
        %v2426 = vld [vmem:[#allocation17 + $0x38] sm:$0xff]
        %v2427 = vld [vmem:[#allocation17 + $0x40] sm:$0xff]
        %v2428 = vld [vmem:[#allocation17 + $0x48] sm:$0xff]
        %v2429 = vld [vmem:[#allocation17 + $0x50] sm:$0xff]
        %v2430 = vld [vmem:[#allocation17 + $0x58] sm:$0xff]
        %v2431 = vld [vmem:[#allocation17 + $0x60] sm:$0xff]
        %v2432 = vld [vmem:[#allocation17 + $0x68] sm:$0xff]
        %v2433 = vld [vmem:[#allocation17 + $0x70] sm:$0xff]
        %v2434 = vld [vmem:[#allocation17 + $0x78] sm:$0xff]
        %s2435 = scalar_lea.vmem [#allocation17], 128
        %v2436 = vld [vmem:[%s2435] sm:$0xff]
        %v2437 = vld [vmem:[%s2435 + $0x8] sm:$0xff]
        %v2438 = vld [vmem:[%s2435 + $0x10] sm:$0xff]
        %v2439 = vld [vmem:[%s2435 + $0x18] sm:$0xff]
        %v2440 = vld [vmem:[%s2435 + $0x20] sm:$0xff]
        %v2441 = vld [vmem:[%s2435 + $0x28] sm:$0xff]
        %v2442 = vld [vmem:[%s2435 + $0x30] sm:$0xff]
        %v2443 = vld [vmem:[%s2435 + $0x38] sm:$0xff]
        %v2444 = vld [vmem:[%s2435 + $0x40] sm:$0xff]
        %v2445 = vld [vmem:[%s2435 + $0x48] sm:$0xff]
        %v2446 = vld [vmem:[%s2435 + $0x50] sm:$0xff]
        %v2447 = vld [vmem:[%s2435 + $0x58] sm:$0xff]
        %v2448 = vld [vmem:[%s2435 + $0x60] sm:$0xff]
        %v2449 = vld [vmem:[%s2435 + $0x68] sm:$0xff]
        %v2450 = vld [vmem:[%s2435 + $0x70] sm:$0xff]
        %v2451 = vld [vmem:[%s2435 + $0x78] sm:$0xff]
        %2452 = vmatprep.subr.mxu0 0.0
        %2453 = vmatpush1.msra.mxu0 %v2436
        %2454 = vmatprep.subr.mxu0 0.0
        %2455 = vmatpush1.msra.mxu0 %v2437
        %2456 = vmatprep.subr.mxu0 0.0
        %2457 = vmatpush1.msra.mxu0 %v2438
        %2458 = vmatprep.subr.mxu0 0.0
        %2459 = vmatpush1.msra.mxu0 %v2439
        %2460 = vmatprep.subr.mxu0 0.0
        %2461 = vmatpush1.msra.mxu0 %v2440
        %2462 = vmatprep.subr.mxu0 0.0
        %2463 = vmatpush1.msra.mxu0 %v2441
        %2464 = vmatprep.subr.mxu0 0.0
        %2465 = vmatpush1.msra.mxu0 %v2442
        %2466 = vmatprep.subr.mxu0 0.0
        %2467 = vmatpush1.msra.mxu0 %v2443
        %2468 = vmatprep.subr.mxu0 0.0
        %2469 = vmatpush1.msra.mxu0 %v2444
        %2470 = vmatprep.subr.mxu0 0.0
        %2471 = vmatpush1.msra.mxu0 %v2445
        %2472 = vmatprep.subr.mxu0 0.0
        %2473 = vmatpush1.msra.mxu0 %v2446
        %2474 = vmatprep.subr.mxu0 0.0
        %2475 = vmatpush1.msra.mxu0 %v2447
        %2476 = vmatprep.subr.mxu0 0.0
        %2477 = vmatpush1.msra.mxu0 %v2448
        %2478 = vmatprep.subr.mxu0 0.0
        %2479 = vmatpush1.msra.mxu0 %v2449
        %2480 = vmatprep.subr.mxu0 0.0
        %2481 = vmatpush1.msra.mxu0 %v2450
        %2482 = vmatprep.subr.mxu0 0.0
        %2483 = vmatpush1.msra.mxu0 %v2451
        %2484 = vmatprep.subr.mxu0 0.0
        %2485 = vmatpush1.msra.mxu0 0.0
        %2486 = vmatprep.subr.mxu0 0.0
        %2487 = vmatpush1.msra.mxu0 0.0
        %2488 = vmatprep.subr.mxu0 0.0
        %2489 = vmatpush1.msra.mxu0 0.0
        %2490 = vmatprep.subr.mxu0 0.0
        %2491 = vmatpush1.msra.mxu0 0.0
        %2492 = vmatprep.subr.mxu0 0.0
        %2493 = vmatpush1.msra.mxu0 0.0
        %2494 = vmatprep.subr.mxu0 0.0
        %2495 = vmatpush1.msra.mxu0 0.0
        %2496 = vmatprep.subr.mxu0 0.0
        %2497 = vmatpush1.msra.mxu0 0.0
        %2498 = vmatprep.subr.mxu0 0.0
        %2499 = vmatpush1.msra.mxu0 0.0
        %2500 = vmatprep.subr.mxu0 0.0
        %2501 = vmatpush1.msra.mxu0 0.0
        %2502 = vmatprep.subr.mxu0 0.0
        %2503 = vmatpush1.msra.mxu0 0.0
        %2504 = vmatprep.subr.mxu0 0.0
        %2505 = vmatpush1.msra.mxu0 0.0
        %2506 = vmatprep.subr.mxu0 0.0
        %2507 = vmatpush1.msra.mxu0 0.0
        %2508 = vmatprep.subr.mxu0 0.0
        %2509 = vmatpush1.msra.mxu0 0.0
        %2510 = vmatprep.subr.mxu0 0.0
        %2511 = vmatpush1.msra.mxu0 0.0
        %2512 = vmatprep.subr.mxu0 0.0
        %2513 = vmatpush1.msra.mxu0 0.0
        %2514 = vmatprep.subr.mxu0 0.0
        %2515 = vmatpush1.msra.mxu0 0.0
        %2516 = vmatprep.mubr.f32.mxu0 0.0
        %2517 = vmatmul.mubr.f32.gmra.mrb[0].mxu0 %v2396
        %v2518 = vpop.f32.mrb[0].mxu0
        %v2519 = vadd.f32 0.0, %v2518
        %v2520 = vpop.f32.mrb[0].mxu0
        %2521 = vmatprep.mubr.f32.mxu0 0.0
        %2522 = vmatmul.mubr.f32.gmra.mrb[0].mxu0 %v2397
        %v2523 = vpop.f32.mrb[0].mxu0
        %v2524 = vadd.f32 0.0, %v2523
        %v2525 = vpop.f32.mrb[0].mxu0
        %2526 = vdwg.mxu0
        %2527 = vmatprep.subr.mxu0 0.0
        %2528 = vmatpush1.msra.mxu0 %v2419
        %2529 = vmatprep.subr.mxu0 0.0
        %2530 = vmatpush1.msra.mxu0 %v2420
        %2531 = vmatprep.subr.mxu0 0.0
        %2532 = vmatpush1.msra.mxu0 %v2421
        %2533 = vmatprep.subr.mxu0 0.0
        %2534 = vmatpush1.msra.mxu0 %v2422
        %2535 = vmatprep.subr.mxu0 0.0
        %2536 = vmatpush1.msra.mxu0 %v2423
        %2537 = vmatprep.subr.mxu0 0.0
        %2538 = vmatpush1.msra.mxu0 %v2424
        %2539 = vmatprep.subr.mxu0 0.0
        %2540 = vmatpush1.msra.mxu0 %v2425
        %2541 = vmatprep.subr.mxu0 0.0
        %2542 = vmatpush1.msra.mxu0 %v2426
        %2543 = vmatprep.subr.mxu0 0.0
        %2544 = vmatpush1.msra.mxu0 %v2427
        %2545 = vmatprep.subr.mxu0 0.0
        %2546 = vmatpush1.msra.mxu0 %v2428
        %2547 = vmatprep.subr.mxu0 0.0
        %2548 = vmatpush1.msra.mxu0 %v2429
        %2549 = vmatprep.subr.mxu0 0.0
        %2550 = vmatpush1.msra.mxu0 %v2430
        %2551 = vmatprep.subr.mxu0 0.0
        %2552 = vmatpush1.msra.mxu0 %v2431
        %2553 = vmatprep.subr.mxu0 0.0
        %2554 = vmatpush1.msra.mxu0 %v2432
        %2555 = vmatprep.subr.mxu0 0.0
        %2556 = vmatpush1.msra.mxu0 %v2433
        %2557 = vmatprep.subr.mxu0 0.0
        %2558 = vmatpush1.msra.mxu0 %v2434
        %2559 = vmatprep.subr.mxu0 0.0
        %2560 = vmatpush1.msra.mxu0 0.0
        %2561 = vmatprep.subr.mxu0 0.0
        %2562 = vmatpush1.msra.mxu0 0.0
        %2563 = vmatprep.subr.mxu0 0.0
        %2564 = vmatpush1.msra.mxu0 0.0
        %2565 = vmatprep.subr.mxu0 0.0
        %2566 = vmatpush1.msra.mxu0 0.0
        %2567 = vmatprep.subr.mxu0 0.0
        %2568 = vmatpush1.msra.mxu0 0.0
        %2569 = vmatprep.subr.mxu0 0.0
        %2570 = vmatpush1.msra.mxu0 0.0
        %2571 = vmatprep.subr.mxu0 0.0
        %2572 = vmatpush1.msra.mxu0 0.0
        %2573 = vmatprep.subr.mxu0 0.0
        %2574 = vmatpush1.msra.mxu0 0.0
        %2575 = vmatprep.subr.mxu0 0.0
        %2576 = vmatpush1.msra.mxu0 0.0
        %2577 = vmatprep.subr.mxu0 0.0
        %2578 = vmatpush1.msra.mxu0 0.0
        %2579 = vmatprep.subr.mxu0 0.0
        %2580 = vmatpush1.msra.mxu0 0.0
        %2581 = vmatprep.subr.mxu0 0.0
        %2582 = vmatpush1.msra.mxu0 0.0
        %2583 = vmatprep.subr.mxu0 0.0
        %2584 = vmatpush1.msra.mxu0 0.0
        %2585 = vmatprep.subr.mxu0 0.0
        %2586 = vmatpush1.msra.mxu0 0.0
        %2587 = vmatprep.subr.mxu0 0.0
        %2588 = vmatpush1.msra.mxu0 0.0
        %2589 = vmatprep.subr.mxu0 0.0
        %2590 = vmatpush1.msra.mxu0 0.0
        %2591 = vmatprep.mubr.f32.mxu0 0.0
        %2592 = vmatmul.mubr.f32.gmra.mrb[0].mxu0 %v2417
        %v2593 = vpop.f32.mrb[0].mxu0
        %v2594 = vadd.f32 %v2519, %v2593
        %v2595 = vpop.f32.mrb[0].mxu0
        %2596 = vmatprep.mubr.f32.mxu0 0.0
        %2597 = vmatmul.mubr.f32.gmra.mrb[0].mxu0 %v2418
        %v2598 = vpop.f32.mrb[0].mxu0
        %v2599 = vadd.f32 %v2524, %v2598
        %v2600 = vpop.f32.mrb[0].mxu0
        %2601 = vdwg.mxu0
        %v2602 = vrot.slane %v2396, 2
        %v2603 = vrot.slane %v2397, 2
        %vm2604 = vcmp.lt.s32.totalorder %v2401, 6
        %v2605 = vsel %vm2604, %v2602, %v2603
        %v2606 = vsel %vm2604, %v2603, %v2602
        %s2607 = scalar_lea.vmem %s37, 32
        %v2608 = vld [vmem:[%s2607] sm:$0xff]
        %v2609 = vld [vmem:[%s2607 + $0x8] sm:$0xff]
        %2611 = vset.pattern.permute.xlu0 0
        %2612 = vperm.xlu0 %2611, %v2608
        %v2613 = vpop.permute.xlu0 %2612
        %2616 = vset.pattern.permute.xlu0 0
        %2617 = vperm.xlu0 %2616, %v2609
        %v2618 = vpop.permute.xlu0 %2617
        %v2620 = vmul.f32 %v2605, %v2613
        %v2621 = vmul.f32 %v2606, %v2618
        %s2622 = scalar_lea.vmem [#allocation17], 256
        %v2623 = vld [vmem:[%s2622] sm:$0xff]
        %v2624 = vld [vmem:[%s2622 + $0x8] sm:$0xff]
        %v2625 = vld [vmem:[%s2622 + $0x10] sm:$0xff]
        %v2626 = vld [vmem:[%s2622 + $0x18] sm:$0xff]
        %v2627 = vld [vmem:[%s2622 + $0x20] sm:$0xff]
        %v2628 = vld [vmem:[%s2622 + $0x28] sm:$0xff]
        %v2629 = vld [vmem:[%s2622 + $0x30] sm:$0xff]
        %v2630 = vld [vmem:[%s2622 + $0x38] sm:$0xff]
        %v2631 = vld [vmem:[%s2622 + $0x40] sm:$0xff]
        %v2632 = vld [vmem:[%s2622 + $0x48] sm:$0xff]
        %v2633 = vld [vmem:[%s2622 + $0x50] sm:$0xff]
        %v2634 = vld [vmem:[%s2622 + $0x58] sm:$0xff]
        %v2635 = vld [vmem:[%s2622 + $0x60] sm:$0xff]
        %v2636 = vld [vmem:[%s2622 + $0x68] sm:$0xff]
        %v2637 = vld [vmem:[%s2622 + $0x70] sm:$0xff]
        %v2638 = vld [vmem:[%s2622 + $0x78] sm:$0xff]
        %2639 = vmatprep.subr.mxu0 0.0
        %2640 = vmatpush1.msra.mxu0 %v2623
        %2641 = vmatprep.subr.mxu0 0.0
        %2642 = vmatpush1.msra.mxu0 %v2624
        %2643 = vmatprep.subr.mxu0 0.0
        %2644 = vmatpush1.msra.mxu0 %v2625
        %2645 = vmatprep.subr.mxu0 0.0
        %2646 = vmatpush1.msra.mxu0 %v2626
        %2647 = vmatprep.subr.mxu0 0.0
        %2648 = vmatpush1.msra.mxu0 %v2627
        %2649 = vmatprep.subr.mxu0 0.0
        %2650 = vmatpush1.msra.mxu0 %v2628
        %2651 = vmatprep.subr.mxu0 0.0
        %2652 = vmatpush1.msra.mxu0 %v2629
        %2653 = vmatprep.subr.mxu0 0.0
        %2654 = vmatpush1.msra.mxu0 %v2630
        %2655 = vmatprep.subr.mxu0 0.0
        %2656 = vmatpush1.msra.mxu0 %v2631
        %2657 = vmatprep.subr.mxu0 0.0
        %2658 = vmatpush1.msra.mxu0 %v2632
        %2659 = vmatprep.subr.mxu0 0.0
        %2660 = vmatpush1.msra.mxu0 %v2633
        %2661 = vmatprep.subr.mxu0 0.0
        %2662 = vmatpush1.msra.mxu0 %v2634
        %2663 = vmatprep.subr.mxu0 0.0
        %2664 = vmatpush1.msra.mxu0 %v2635
        %2665 = vmatprep.subr.mxu0 0.0
        %2666 = vmatpush1.msra.mxu0 %v2636
        %2667 = vmatprep.subr.mxu0 0.0
        %2668 = vmatpush1.msra.mxu0 %v2637
        %2669 = vmatprep.subr.mxu0 0.0
        %2670 = vmatpush1.msra.mxu0 %v2638
        %2671 = vmatprep.subr.mxu0 0.0
        %2672 = vmatpush1.msra.mxu0 0.0
        %2673 = vmatprep.subr.mxu0 0.0
        %2674 = vmatpush1.msra.mxu0 0.0
        %2675 = vmatprep.subr.mxu0 0.0
        %2676 = vmatpush1.msra.mxu0 0.0
        %2677 = vmatprep.subr.mxu0 0.0
        %2678 = vmatpush1.msra.mxu0 0.0
        %2679 = vmatprep.subr.mxu0 0.0
        %2680 = vmatpush1.msra.mxu0 0.0
        %2681 = vmatprep.subr.mxu0 0.0
        %2682 = vmatpush1.msra.mxu0 0.0
        %2683 = vmatprep.subr.mxu0 0.0
        %2684 = vmatpush1.msra.mxu0 0.0
        %2685 = vmatprep.subr.mxu0 0.0
        %2686 = vmatpush1.msra.mxu0 0.0
        %2687 = vmatprep.subr.mxu0 0.0
        %2688 = vmatpush1.msra.mxu0 0.0
        %2689 = vmatprep.subr.mxu0 0.0
        %2690 = vmatpush1.msra.mxu0 0.0
        %2691 = vmatprep.subr.mxu0 0.0
        %2692 = vmatpush1.msra.mxu0 0.0
        %2693 = vmatprep.subr.mxu0 0.0
        %2694 = vmatpush1.msra.mxu0 0.0
        %2695 = vmatprep.subr.mxu0 0.0
        %2696 = vmatpush1.msra.mxu0 0.0
        %2697 = vmatprep.subr.mxu0 0.0
        %2698 = vmatpush1.msra.mxu0 0.0
        %2699 = vmatprep.subr.mxu0 0.0
        %2700 = vmatpush1.msra.mxu0 0.0
        %2701 = vmatprep.subr.mxu0 0.0
        %2702 = vmatpush1.msra.mxu0 0.0
        %2703 = vmatprep.mubr.f32.mxu0 0.0
        %2704 = vmatmul.mubr.f32.gmra.mrb[0].mxu0 %v2620
        %v2705 = vpop.f32.mrb[0].mxu0
        %v2706 = vadd.f32 0.0, %v2705
        %v2707 = vpop.f32.mrb[0].mxu0
        %2708 = vmatprep.mubr.f32.mxu0 0.0
        %2709 = vmatmul.mubr.f32.gmra.mrb[0].mxu0 %v2621
        %v2710 = vpop.f32.mrb[0].mxu0
        %v2711 = vadd.f32 0.0, %v2710
        %v2712 = vpop.f32.mrb[0].mxu0
        %2713 = vdwg.mxu0
        %v2714 = vadd.f32 %v2594, %v2706
        %v2715 = vadd.f32 %v2599, %v2711
        %v2716 = vld [vmem:[#allocation18] sm:$0x1]
        %v2718 = vlaneseq
        %v2719 = vshrl.u32 %v2718, 7
        %v2720 = vsub.s32 0, %v2719
        %v2721 = vrot.slane %v2716, %v2720
        %v2723 = vadd.f32 %v2714, %v2721
        %v2724 = vadd.f32 %v2715, %v2721
        %v2725 = vmax.f32 %v2723, 0.0
        %v2726 = vmax.f32 %v2724, 0.0
        %v2727 = vlaneseq
        %v2728 = vshrl.u32 %v2727, 7
        %v2729 = vsub.s32 0, %v2728
        %v2730 = vrot.slane %v2204, %v2729
        %v2731 = vadd.f32 %v2725, %v2730
        %v2732 = vadd.f32 %v2726, %v2730
        %v2733 = vrot.slane %v2731, 4
        %v2734 = vrot.slane %v2732, 4
        %vm2735 = vcmp.lt.s32.totalorder %v2401, 4
        %v2736 = vsel %vm2735, %v2733, %v2734
        %v2737 = vsel %vm2735, %v2734, %v2733
        %v2738 = vld [vmem:[%s39] sm:$0xff]
        %v2739 = vld [vmem:[%s39 + $0x8] sm:$0xff]
        %2741 = vset.pattern.permute.xlu0 0
        %2742 = vperm.xlu0 %2741, %v2738
        %v2743 = vpop.permute.xlu0 %2742
        %2746 = vset.pattern.permute.xlu0 0
        %2747 = vperm.xlu0 %2746, %v2739
        %v2748 = vpop.permute.xlu0 %2747
        %v2750 = vmul.f32 %v2737, %v2743
        %v2751 = vmul.f32 %v2736, %v2748
        %v2752 = vld [vmem:[#allocation20] sm:$0xff]
        %v2753 = vld [vmem:[#allocation20 + $0x8] sm:$0xff]
        %v2754 = vld [vmem:[#allocation20 + $0x10] sm:$0xff]
        %v2755 = vld [vmem:[#allocation20 + $0x18] sm:$0xff]
        %v2756 = vld [vmem:[#allocation20 + $0x20] sm:$0xff]
        %v2757 = vld [vmem:[#allocation20 + $0x28] sm:$0xff]
        %v2758 = vld [vmem:[#allocation20 + $0x30] sm:$0xff]
        %v2759 = vld [vmem:[#allocation20 + $0x38] sm:$0xff]
        %v2760 = vld [vmem:[#allocation20 + $0x40] sm:$0xff]
        %v2761 = vld [vmem:[#allocation20 + $0x48] sm:$0xff]
        %v2762 = vld [vmem:[#allocation20 + $0x50] sm:$0xff]
        %v2763 = vld [vmem:[#allocation20 + $0x58] sm:$0xff]
        %v2764 = vld [vmem:[#allocation20 + $0x60] sm:$0xff]
        %v2765 = vld [vmem:[#allocation20 + $0x68] sm:$0xff]
        %v2766 = vld [vmem:[#allocation20 + $0x70] sm:$0xff]
        %v2767 = vld [vmem:[#allocation20 + $0x78] sm:$0xff]
        %s2768 = scalar_lea.vmem [#allocation20], 128
        %v2769 = vld [vmem:[%s2768] sm:$0xff]
        %v2770 = vld [vmem:[%s2768 + $0x8] sm:$0xff]
        %v2771 = vld [vmem:[%s2768 + $0x10] sm:$0xff]
        %v2772 = vld [vmem:[%s2768 + $0x18] sm:$0xff]
        %v2773 = vld [vmem:[%s2768 + $0x20] sm:$0xff]
        %v2774 = vld [vmem:[%s2768 + $0x28] sm:$0xff]
        %v2775 = vld [vmem:[%s2768 + $0x30] sm:$0xff]
        %v2776 = vld [vmem:[%s2768 + $0x38] sm:$0xff]
        %v2777 = vld [vmem:[%s2768 + $0x40] sm:$0xff]
        %v2778 = vld [vmem:[%s2768 + $0x48] sm:$0xff]
        %v2779 = vld [vmem:[%s2768 + $0x50] sm:$0xff]
        %v2780 = vld [vmem:[%s2768 + $0x58] sm:$0xff]
        %v2781 = vld [vmem:[%s2768 + $0x60] sm:$0xff]
        %v2782 = vld [vmem:[%s2768 + $0x68] sm:$0xff]
        %v2783 = vld [vmem:[%s2768 + $0x70] sm:$0xff]
        %v2784 = vld [vmem:[%s2768 + $0x78] sm:$0xff]
        %2785 = vmatprep.subr.mxu0 0.0
        %2786 = vmatpush1.msra.mxu0 %v2769
        %2787 = vmatprep.subr.mxu0 0.0
        %2788 = vmatpush1.msra.mxu0 %v2770
        %2789 = vmatprep.subr.mxu0 0.0
        %2790 = vmatpush1.msra.mxu0 %v2771
        %2791 = vmatprep.subr.mxu0 0.0
        %2792 = vmatpush1.msra.mxu0 %v2772
        %2793 = vmatprep.subr.mxu0 0.0
        %2794 = vmatpush1.msra.mxu0 %v2773
        %2795 = vmatprep.subr.mxu0 0.0
        %2796 = vmatpush1.msra.mxu0 %v2774
        %2797 = vmatprep.subr.mxu0 0.0
        %2798 = vmatpush1.msra.mxu0 %v2775
        %2799 = vmatprep.subr.mxu0 0.0
        %2800 = vmatpush1.msra.mxu0 %v2776
        %2801 = vmatprep.subr.mxu0 0.0
        %2802 = vmatpush1.msra.mxu0 %v2777
        %2803 = vmatprep.subr.mxu0 0.0
        %2804 = vmatpush1.msra.mxu0 %v2778
        %2805 = vmatprep.subr.mxu0 0.0
        %2806 = vmatpush1.msra.mxu0 %v2779
        %2807 = vmatprep.subr.mxu0 0.0
        %2808 = vmatpush1.msra.mxu0 %v2780
        %2809 = vmatprep.subr.mxu0 0.0
        %2810 = vmatpush1.msra.mxu0 %v2781
        %2811 = vmatprep.subr.mxu0 0.0
        %2812 = vmatpush1.msra.mxu0 %v2782
        %2813 = vmatprep.subr.mxu0 0.0
        %2814 = vmatpush1.msra.mxu0 %v2783
        %2815 = vmatprep.subr.mxu0 0.0
        %2816 = vmatpush1.msra.mxu0 %v2784
        %2817 = vmatprep.subr.mxu0 0.0
        %2818 = vmatpush1.msra.mxu0 0.0
        %2819 = vmatprep.subr.mxu0 0.0
        %2820 = vmatpush1.msra.mxu0 0.0
        %2821 = vmatprep.subr.mxu0 0.0
        %2822 = vmatpush1.msra.mxu0 0.0
        %2823 = vmatprep.subr.mxu0 0.0
        %2824 = vmatpush1.msra.mxu0 0.0
        %2825 = vmatprep.subr.mxu0 0.0
        %2826 = vmatpush1.msra.mxu0 0.0
        %2827 = vmatprep.subr.mxu0 0.0
        %2828 = vmatpush1.msra.mxu0 0.0
        %2829 = vmatprep.subr.mxu0 0.0
        %2830 = vmatpush1.msra.mxu0 0.0
        %2831 = vmatprep.subr.mxu0 0.0
        %2832 = vmatpush1.msra.mxu0 0.0
        %2833 = vmatprep.subr.mxu0 0.0
        %2834 = vmatpush1.msra.mxu0 0.0
        %2835 = vmatprep.subr.mxu0 0.0
        %2836 = vmatpush1.msra.mxu0 0.0
        %2837 = vmatprep.subr.mxu0 0.0
        %2838 = vmatpush1.msra.mxu0 0.0
        %2839 = vmatprep.subr.mxu0 0.0
        %2840 = vmatpush1.msra.mxu0 0.0
        %2841 = vmatprep.subr.mxu0 0.0
        %2842 = vmatpush1.msra.mxu0 0.0
        %2843 = vmatprep.subr.mxu0 0.0
        %2844 = vmatpush1.msra.mxu0 0.0
        %2845 = vmatprep.subr.mxu0 0.0
        %2846 = vmatpush1.msra.mxu0 0.0
        %2847 = vmatprep.subr.mxu0 0.0
        %2848 = vmatpush1.msra.mxu0 0.0
        %2849 = vmatprep.mubr.f32.mxu0 0.0
        %2850 = vmatmul.mubr.f32.gmra.mrb[0].mxu0 %v2731
        %v2851 = vpop.f32.mrb[0].mxu0
        %v2852 = vadd.f32 0.0, %v2851
        %v2853 = vpop.f32.mrb[0].mxu0
        %2854 = vmatprep.mubr.f32.mxu0 0.0
        %2855 = vmatmul.mubr.f32.gmra.mrb[0].mxu0 %v2732
        %v2856 = vpop.f32.mrb[0].mxu0
        %v2857 = vadd.f32 0.0, %v2856
        %v2858 = vpop.f32.mrb[0].mxu0
        %2859 = vdwg.mxu0
        %2860 = vmatprep.subr.mxu0 0.0
        %2861 = vmatpush1.msra.mxu0 %v2752
        %2862 = vmatprep.subr.mxu0 0.0
        %2863 = vmatpush1.msra.mxu0 %v2753
        %2864 = vmatprep.subr.mxu0 0.0
        %2865 = vmatpush1.msra.mxu0 %v2754
        %2866 = vmatprep.subr.mxu0 0.0
        %2867 = vmatpush1.msra.mxu0 %v2755
        %2868 = vmatprep.subr.mxu0 0.0
        %2869 = vmatpush1.msra.mxu0 %v2756
        %2870 = vmatprep.subr.mxu0 0.0
        %2871 = vmatpush1.msra.mxu0 %v2757
        %2872 = vmatprep.subr.mxu0 0.0
        %2873 = vmatpush1.msra.mxu0 %v2758
        %2874 = vmatprep.subr.mxu0 0.0
        %2875 = vmatpush1.msra.mxu0 %v2759
        %2876 = vmatprep.subr.mxu0 0.0
        %2877 = vmatpush1.msra.mxu0 %v2760
        %2878 = vmatprep.subr.mxu0 0.0
        %2879 = vmatpush1.msra.mxu0 %v2761
        %2880 = vmatprep.subr.mxu0 0.0
        %2881 = vmatpush1.msra.mxu0 %v2762
        %2882 = vmatprep.subr.mxu0 0.0
        %2883 = vmatpush1.msra.mxu0 %v2763
        %2884 = vmatprep.subr.mxu0 0.0
        %2885 = vmatpush1.msra.mxu0 %v2764
        %2886 = vmatprep.subr.mxu0 0.0
        %2887 = vmatpush1.msra.mxu0 %v2765
        %2888 = vmatprep.subr.mxu0 0.0
        %2889 = vmatpush1.msra.mxu0 %v2766
        %2890 = vmatprep.subr.mxu0 0.0
        %2891 = vmatpush1.msra.mxu0 %v2767
        %2892 = vmatprep.subr.mxu0 0.0
        %2893 = vmatpush1.msra.mxu0 0.0
        %2894 = vmatprep.subr.mxu0 0.0
        %2895 = vmatpush1.msra.mxu0 0.0
        %2896 = vmatprep.subr.mxu0 0.0
        %2897 = vmatpush1.msra.mxu0 0.0
        %2898 = vmatprep.subr.mxu0 0.0
        %2899 = vmatpush1.msra.mxu0 0.0
        %2900 = vmatprep.subr.mxu0 0.0
        %2901 = vmatpush1.msra.mxu0 0.0
        %2902 = vmatprep.subr.mxu0 0.0
        %2903 = vmatpush1.msra.mxu0 0.0
        %2904 = vmatprep.subr.mxu0 0.0
        %2905 = vmatpush1.msra.mxu0 0.0
        %2906 = vmatprep.subr.mxu0 0.0
        %2907 = vmatpush1.msra.mxu0 0.0
        %2908 = vmatprep.subr.mxu0 0.0
        %2909 = vmatpush1.msra.mxu0 0.0
        %2910 = vmatprep.subr.mxu0 0.0
        %2911 = vmatpush1.msra.mxu0 0.0
        %2912 = vmatprep.subr.mxu0 0.0
        %2913 = vmatpush1.msra.mxu0 0.0
        %2914 = vmatprep.subr.mxu0 0.0
        %2915 = vmatpush1.msra.mxu0 0.0
        %2916 = vmatprep.subr.mxu0 0.0
        %2917 = vmatpush1.msra.mxu0 0.0
        %2918 = vmatprep.subr.mxu0 0.0
        %2919 = vmatpush1.msra.mxu0 0.0
        %2920 = vmatprep.subr.mxu0 0.0
        %2921 = vmatpush1.msra.mxu0 0.0
        %2922 = vmatprep.subr.mxu0 0.0
        %2923 = vmatpush1.msra.mxu0 0.0
        %2924 = vmatprep.mubr.f32.mxu0 0.0
        %2925 = vmatmul.mubr.f32.gmra.mrb[0].mxu0 %v2750
        %v2926 = vpop.f32.mrb[0].mxu0
        %v2927 = vadd.f32 %v2852, %v2926
        %v2928 = vpop.f32.mrb[0].mxu0
        %2929 = vmatprep.mubr.f32.mxu0 0.0
        %2930 = vmatmul.mubr.f32.gmra.mrb[0].mxu0 %v2751
        %v2931 = vpop.f32.mrb[0].mxu0
        %v2932 = vadd.f32 %v2857, %v2931
        %v2933 = vpop.f32.mrb[0].mxu0
        %2934 = vdwg.mxu0
        %s2935 = scalar_lea.vmem %s39, 32
        %v2936 = vld [vmem:[%s2935] sm:$0xff]
        %v2937 = vld [vmem:[%s2935 + $0x8] sm:$0xff]
        %2939 = vset.pattern.permute.xlu0 0
        %2940 = vperm.xlu0 %2939, %v2936
        %v2941 = vpop.permute.xlu0 %2940
        %2944 = vset.pattern.permute.xlu0 0
        %2945 = vperm.xlu0 %2944, %v2937
        %v2946 = vpop.permute.xlu0 %2945
        %v2948 = vmul.f32 %v2736, %v2941
        %v2949 = vmul.f32 %v2737, %v2946
        %s2950 = scalar_lea.vmem [#allocation20], 256
        %v2951 = vld [vmem:[%s2950] sm:$0xff]
        %v2952 = vld [vmem:[%s2950 + $0x8] sm:$0xff]
        %v2953 = vld [vmem:[%s2950 + $0x10] sm:$0xff]
        %v2954 = vld [vmem:[%s2950 + $0x18] sm:$0xff]
        %v2955 = vld [vmem:[%s2950 + $0x20] sm:$0xff]
        %v2956 = vld [vmem:[%s2950 + $0x28] sm:$0xff]
        %v2957 = vld [vmem:[%s2950 + $0x30] sm:$0xff]
        %v2958 = vld [vmem:[%s2950 + $0x38] sm:$0xff]
        %v2959 = vld [vmem:[%s2950 + $0x40] sm:$0xff]
        %v2960 = vld [vmem:[%s2950 + $0x48] sm:$0xff]
        %v2961 = vld [vmem:[%s2950 + $0x50] sm:$0xff]
        %v2962 = vld [vmem:[%s2950 + $0x58] sm:$0xff]
        %v2963 = vld [vmem:[%s2950 + $0x60] sm:$0xff]
        %v2964 = vld [vmem:[%s2950 + $0x68] sm:$0xff]
        %v2965 = vld [vmem:[%s2950 + $0x70] sm:$0xff]
        %v2966 = vld [vmem:[%s2950 + $0x78] sm:$0xff]
        %2967 = vmatprep.subr.mxu0 0.0
        %2968 = vmatpush1.msra.mxu0 %v2951
        %2969 = vmatprep.subr.mxu0 0.0
        %2970 = vmatpush1.msra.mxu0 %v2952
        %2971 = vmatprep.subr.mxu0 0.0
        %2972 = vmatpush1.msra.mxu0 %v2953
        %2973 = vmatprep.subr.mxu0 0.0
        %2974 = vmatpush1.msra.mxu0 %v2954
        %2975 = vmatprep.subr.mxu0 0.0
        %2976 = vmatpush1.msra.mxu0 %v2955
        %2977 = vmatprep.subr.mxu0 0.0
        %2978 = vmatpush1.msra.mxu0 %v2956
        %2979 = vmatprep.subr.mxu0 0.0
        %2980 = vmatpush1.msra.mxu0 %v2957
        %2981 = vmatprep.subr.mxu0 0.0
        %2982 = vmatpush1.msra.mxu0 %v2958
        %2983 = vmatprep.subr.mxu0 0.0
        %2984 = vmatpush1.msra.mxu0 %v2959
        %2985 = vmatprep.subr.mxu0 0.0
        %2986 = vmatpush1.msra.mxu0 %v2960
        %2987 = vmatprep.subr.mxu0 0.0
        %2988 = vmatpush1.msra.mxu0 %v2961
        %2989 = vmatprep.subr.mxu0 0.0
        %2990 = vmatpush1.msra.mxu0 %v2962
        %2991 = vmatprep.subr.mxu0 0.0
        %2992 = vmatpush1.msra.mxu0 %v2963
        %2993 = vmatprep.subr.mxu0 0.0
        %2994 = vmatpush1.msra.mxu0 %v2964
        %2995 = vmatprep.subr.mxu0 0.0
        %2996 = vmatpush1.msra.mxu0 %v2965
        %2997 = vmatprep.subr.mxu0 0.0
        %2998 = vmatpush1.msra.mxu0 %v2966
        %2999 = vmatprep.subr.mxu0 0.0
        %3000 = vmatpush1.msra.mxu0 0.0
        %3001 = vmatprep.subr.mxu0 0.0
        %3002 = vmatpush1.msra.mxu0 0.0
        %3003 = vmatprep.subr.mxu0 0.0
        %3004 = vmatpush1.msra.mxu0 0.0
        %3005 = vmatprep.subr.mxu0 0.0
        %3006 = vmatpush1.msra.mxu0 0.0
        %3007 = vmatprep.subr.mxu0 0.0
        %3008 = vmatpush1.msra.mxu0 0.0
        %3009 = vmatprep.subr.mxu0 0.0
        %3010 = vmatpush1.msra.mxu0 0.0
        %3011 = vmatprep.subr.mxu0 0.0
        %3012 = vmatpush1.msra.mxu0 0.0
        %3013 = vmatprep.subr.mxu0 0.0
        %3014 = vmatpush1.msra.mxu0 0.0
        %3015 = vmatprep.subr.mxu0 0.0
        %3016 = vmatpush1.msra.mxu0 0.0
        %3017 = vmatprep.subr.mxu0 0.0
        %3018 = vmatpush1.msra.mxu0 0.0
        %3019 = vmatprep.subr.mxu0 0.0
        %3020 = vmatpush1.msra.mxu0 0.0
        %3021 = vmatprep.subr.mxu0 0.0
        %3022 = vmatpush1.msra.mxu0 0.0
        %3023 = vmatprep.subr.mxu0 0.0
        %3024 = vmatpush1.msra.mxu0 0.0
        %3025 = vmatprep.subr.mxu0 0.0
        %3026 = vmatpush1.msra.mxu0 0.0
        %3027 = vmatprep.subr.mxu0 0.0
        %3028 = vmatpush1.msra.mxu0 0.0
        %3029 = vmatprep.subr.mxu0 0.0
        %3030 = vmatpush1.msra.mxu0 0.0
        %3031 = vmatprep.mubr.f32.mxu0 0.0
        %3032 = vmatmul.mubr.f32.gmra.mrb[0].mxu0 %v2948
        %v3033 = vpop.f32.mrb[0].mxu0
        %v3034 = vadd.f32 0.0, %v3033
        %v3035 = vpop.f32.mrb[0].mxu0
        %3036 = vmatprep.mubr.f32.mxu0 0.0
        %3037 = vmatmul.mubr.f32.gmra.mrb[0].mxu0 %v2949
        %v3038 = vpop.f32.mrb[0].mxu0
        %v3039 = vadd.f32 0.0, %v3038
        %v3040 = vpop.f32.mrb[0].mxu0
        %3041 = vdwg.mxu0
        %v3042 = vadd.f32 %v2927, %v3034
        %v3043 = vadd.f32 %v2932, %v3039
        %v3044 = vld [vmem:[#allocation21] sm:$0x1]
        %v3046 = vlaneseq
        %v3047 = vshrl.u32 %v3046, 7
        %v3048 = vsub.s32 0, %v3047
        %v3049 = vrot.slane %v3044, %v3048
        %v3051 = vadd.f32 %v3042, %v3049
        %v3052 = vadd.f32 %v3043, %v3049
        %v3053 = vmax.f32 %v3051, 0.0
        %v3054 = vmax.f32 %v3052, 0.0
        %v3055 = vld [vmem:[#allocation23] sm:$0xff]
        %v3056 = vld [vmem:[#allocation23 + $0x8] sm:$0xff]
        %v3057 = vld [vmem:[#allocation23 + $0x10] sm:$0xff]
        %v3058 = vld [vmem:[#allocation23 + $0x18] sm:$0xff]
        %v3059 = vld [vmem:[#allocation23 + $0x20] sm:$0xff]
        %v3060 = vld [vmem:[#allocation23 + $0x28] sm:$0xff]
        %v3061 = vld [vmem:[#allocation23 + $0x30] sm:$0xff]
        %v3062 = vld [vmem:[#allocation23 + $0x38] sm:$0xff]
        %v3063 = vld [vmem:[#allocation23 + $0x40] sm:$0xff]
        %v3064 = vld [vmem:[#allocation23 + $0x48] sm:$0xff]
        %v3065 = vld [vmem:[#allocation23 + $0x50] sm:$0xff]
        %v3066 = vld [vmem:[#allocation23 + $0x58] sm:$0xff]
        %v3067 = vld [vmem:[#allocation23 + $0x60] sm:$0xff]
        %v3068 = vld [vmem:[#allocation23 + $0x68] sm:$0xff]
        %v3069 = vld [vmem:[#allocation23 + $0x70] sm:$0xff]
        %v3070 = vld [vmem:[#allocation23 + $0x78] sm:$0xff]
        %v3071 = vld [vmem:[#allocation24] sm:$0x1]
        %v3073 = vlaneseq
        %v3074 = vshrl.u32 %v3073, 7
        %v3075 = vsub.s32 0, %v3074
        %v3076 = vrot.slane %v3071, %v3075
        %3078 = vmatprep.subr.mxu0 0.0
        %3079 = vmatpush1.msra.mxu0 %v3055
        %3080 = vmatprep.subr.mxu0 0.0
        %3081 = vmatpush1.msra.mxu0 %v3056
        %3082 = vmatprep.subr.mxu0 0.0
        %3083 = vmatpush1.msra.mxu0 %v3057
        %3084 = vmatprep.subr.mxu0 0.0
        %3085 = vmatpush1.msra.mxu0 %v3058
        %3086 = vmatprep.subr.mxu0 0.0
        %3087 = vmatpush1.msra.mxu0 %v3059
        %3088 = vmatprep.subr.mxu0 0.0
        %3089 = vmatpush1.msra.mxu0 %v3060
        %3090 = vmatprep.subr.mxu0 0.0
        %3091 = vmatpush1.msra.mxu0 %v3061
        %3092 = vmatprep.subr.mxu0 0.0
        %3093 = vmatpush1.msra.mxu0 %v3062
        %3094 = vmatprep.subr.mxu0 0.0
        %3095 = vmatpush1.msra.mxu0 %v3063
        %3096 = vmatprep.subr.mxu0 0.0
        %3097 = vmatpush1.msra.mxu0 %v3064
        %3098 = vmatprep.subr.mxu0 0.0
        %3099 = vmatpush1.msra.mxu0 %v3065
        %3100 = vmatprep.subr.mxu0 0.0
        %3101 = vmatpush1.msra.mxu0 %v3066
        %3102 = vmatprep.subr.mxu0 0.0
        %3103 = vmatpush1.msra.mxu0 %v3067
        %3104 = vmatprep.subr.mxu0 0.0
        %3105 = vmatpush1.msra.mxu0 %v3068
        %3106 = vmatprep.subr.mxu0 0.0
        %3107 = vmatpush1.msra.mxu0 %v3069
        %3108 = vmatprep.subr.mxu0 0.0
        %3109 = vmatpush1.msra.mxu0 %v3070
        %3110 = vmatprep.subr.mxu0 0.0
        %3111 = vmatpush1.msra.mxu0 0.0
        %3112 = vmatprep.subr.mxu0 0.0
        %3113 = vmatpush1.msra.mxu0 0.0
        %3114 = vmatprep.subr.mxu0 0.0
        %3115 = vmatpush1.msra.mxu0 0.0
        %3116 = vmatprep.subr.mxu0 0.0
        %3117 = vmatpush1.msra.mxu0 0.0
        %3118 = vmatprep.subr.mxu0 0.0
        %3119 = vmatpush1.msra.mxu0 0.0
        %3120 = vmatprep.subr.mxu0 0.0
        %3121 = vmatpush1.msra.mxu0 0.0
        %3122 = vmatprep.subr.mxu0 0.0
        %3123 = vmatpush1.msra.mxu0 0.0
        %3124 = vmatprep.subr.mxu0 0.0
        %3125 = vmatpush1.msra.mxu0 0.0
        %3126 = vmatprep.subr.mxu0 0.0
        %3127 = vmatpush1.msra.mxu0 0.0
        %3128 = vmatprep.subr.mxu0 0.0
        %3129 = vmatpush1.msra.mxu0 0.0
        %3130 = vmatprep.subr.mxu0 0.0
        %3131 = vmatpush1.msra.mxu0 0.0
        %3132 = vmatprep.subr.mxu0 0.0
        %3133 = vmatpush1.msra.mxu0 0.0
        %3134 = vmatprep.subr.mxu0 0.0
        %3135 = vmatpush1.msra.mxu0 0.0
        %3136 = vmatprep.subr.mxu0 0.0
        %3137 = vmatpush1.msra.mxu0 0.0
        %3138 = vmatprep.subr.mxu0 0.0
        %3139 = vmatpush1.msra.mxu0 0.0
        %3140 = vmatprep.subr.mxu0 0.0
        %3141 = vmatpush1.msra.mxu0 0.0
        %3142 = vmatprep.mubr.f32.mxu0 0.0
        %3143 = vmatmul.mubr.f32.gmra.mrb[0].mxu0 %v3053
        %v3144 = vpop.f32.mrb[0].mxu0
        %v3145 = vadd.f32 %v3076, %v3144
        %v3146 = vpop.f32.mrb[0].mxu0
        %3147 = vmatprep.mubr.f32.mxu0 0.0
        %3148 = vmatmul.mubr.f32.gmra.mrb[0].mxu0 %v3054
        %v3149 = vpop.f32.mrb[0].mxu0
        %v3150 = vadd.f32 %v3076, %v3149
        %v3151 = vpop.f32.mrb[0].mxu0
        %3152 = vdwg.mxu0
        %v3153 = vmul.f32 %v3145, %v2389
        %v3154 = vmul.f32 %v3150, %v2394
        %v3155 = vld [vmem:[%s55] sm:$0xff]
        %v3156 = vld [vmem:[%s55 + $0x8] sm:$0xff]
        %v3157 = vld [vmem:[%s55 + $0x10] sm:$0xff]
        %v3158 = vld [vmem:[%s55 + $0x18] sm:$0xff]
        %v3159 = vmul.f32 %v3153, %v3153
        %v3160 = vmul.f32 %v3154, %v3154
        %3161 = vadd.xlane.f32.xlu0 %v3159
        %v3162 = vpop.xlane.xlu0 %3161
        %3163 = vadd.xlane.f32.xlu0 %v3160
        %v3164 = vpop.xlane.xlu0 %3163
        %v3165 = vmul.f32 %v3155, %v3155
        %v3166 = vmul.f32 %v3156, %v3156
        %v3167 = vmul.f32 %v3157, %v3157
        %v3168 = vmul.f32 %v3158, %v3158
        %3169 = vadd.xlane.f32.xlu0 %v3165
        %v3170 = vpop.xlane.xlu0 %3169
        %3171 = vadd.xlane.f32.xlu0 %v3166
        %v3172 = vpop.xlane.xlu0 %3171
        %3173 = vadd.xlane.f32.xlu0 %v3167
        %v3174 = vpop.xlane.xlu0 %3173
        %3175 = vadd.xlane.f32.xlu0 %v3168
        %v3176 = vpop.xlane.xlu0 %3175
        %3177 = vmatprep.subr.mxu0 0.0
        %3178 = vmatpush1.xpose.msra.mxu0 %v3155
        %3179 = vmatprep.subr.mxu0 0.0
        %3180 = vmatpush1.xpose.msra.mxu0 %v3156
        %3181 = vmatprep.subr.mxu0 0.0
        %3182 = vmatpush1.xpose.msra.mxu0 %v3157
        %3183 = vmatprep.subr.mxu0 0.0
        %3184 = vmatpush1.xpose.msra.mxu0 %v3158
        %3185 = vmatprep.subr.mxu0 0.0
        %3186 = vmatpush1.xpose.msra.mxu0 0.0
        %3187 = vmatprep.subr.mxu0 0.0
        %3188 = vmatpush1.xpose.msra.mxu0 0.0
        %3189 = vmatprep.subr.mxu0 0.0
        %3190 = vmatpush1.xpose.msra.mxu0 0.0
        %3191 = vmatprep.subr.mxu0 0.0
        %3192 = vmatpush1.xpose.msra.mxu0 0.0
        %3193 = vmatprep.subr.mxu0 0.0
        %3194 = vmatpush1.xpose.msra.mxu0 0.0
        %3195 = vmatprep.subr.mxu0 0.0
        %3196 = vmatpush1.xpose.msra.mxu0 0.0
        %3197 = vmatprep.subr.mxu0 0.0
        %3198 = vmatpush1.xpose.msra.mxu0 0.0
        %3199 = vmatprep.subr.mxu0 0.0
        %3200 = vmatpush1.xpose.msra.mxu0 0.0
        %3201 = vmatprep.subr.mxu0 0.0
        %3202 = vmatpush1.xpose.msra.mxu0 0.0
        %3203 = vmatprep.subr.mxu0 0.0
        %3204 = vmatpush1.xpose.msra.mxu0 0.0
        %3205 = vmatprep.subr.mxu0 0.0
        %3206 = vmatpush1.xpose.msra.mxu0 0.0
        %3207 = vmatprep.subr.mxu0 0.0
        %3208 = vmatpush1.xpose.msra.mxu0 0.0
        %3209 = vmatprep.subr.mxu0 0.0
        %3210 = vmatpush1.xpose.msra.mxu0 0.0
        %3211 = vmatprep.subr.mxu0 0.0
        %3212 = vmatpush1.xpose.msra.mxu0 0.0
        %3213 = vmatprep.subr.mxu0 0.0
        %3214 = vmatpush1.xpose.msra.mxu0 0.0
        %3215 = vmatprep.subr.mxu0 0.0
        %3216 = vmatpush1.xpose.msra.mxu0 0.0
        %3217 = vmatprep.subr.mxu0 0.0
        %3218 = vmatpush1.xpose.msra.mxu0 0.0
        %3219 = vmatprep.subr.mxu0 0.0
        %3220 = vmatpush1.xpose.msra.mxu0 0.0
        %3221 = vmatprep.subr.mxu0 0.0
        %3222 = vmatpush1.xpose.msra.mxu0 0.0
        %3223 = vmatprep.subr.mxu0 0.0
        %3224 = vmatpush1.xpose.msra.mxu0 0.0
        %3225 = vmatprep.subr.mxu0 0.0
        %3226 = vmatpush1.xpose.msra.mxu0 0.0
        %3227 = vmatprep.subr.mxu0 0.0
        %3228 = vmatpush1.xpose.msra.mxu0 0.0
        %3229 = vmatprep.subr.mxu0 0.0
        %3230 = vmatpush1.xpose.msra.mxu0 0.0
        %3231 = vmatprep.subr.mxu0 0.0
        %3232 = vmatpush1.xpose.msra.mxu0 0.0
        %3233 = vmatprep.subr.mxu0 0.0
        %3234 = vmatpush1.xpose.msra.mxu0 0.0
        %3235 = vmatprep.subr.mxu0 0.0
        %3236 = vmatpush1.xpose.msra.mxu0 0.0
        %3237 = vmatprep.subr.mxu0 0.0
        %3238 = vmatpush1.xpose.msra.mxu0 0.0
        %3239 = vmatprep.subr.mxu0 0.0
        %3240 = vmatpush1.xpose.msra.mxu0 0.0
        %3241 = vmatprep.mubr.f32.mxu0 0.0
        %3242 = vmatmul.mubr.f32.gmra.mrb[0].mxu0 %v3153
        %v3243 = vpop.f32.mrb[0].mxu0
        %v3244 = vadd.f32 0.0, %v3243
        %v3245 = vpop.f32.mrb[0].mxu0
        %3246 = vmatprep.mubr.f32.mxu0 0.0
        %3247 = vmatmul.mubr.f32.gmra.mrb[0].mxu0 %v3154
        %v3248 = vpop.f32.mrb[0].mxu0
        %v3249 = vadd.f32 0.0, %v3248
        %v3250 = vpop.f32.mrb[0].mxu0
        %3251 = vdwg.mxu0
        %v3252 = vmul.f32 %v3244, 2.0
        %v3253 = vmul.f32 %v3249, 2.0
        %v3254 = vsub.f32 %v3162, %v3252
        %v3255 = vsub.f32 %v3164, %v3253
        %v3260 = vlaneseq
        %v3261 = vand.u32 %v3260, 127
        %v3262 = vlaneseq
        %v3263 = vshrl.u32 %v3262, 7
        %v3264 = vsub.s32 %v3261, %v3263
        %v3265 = vrot.slane %v3170, %v3264
        %v3266 = vadd.s32 %v3261, 4294967288
        %v3267 = vlaneseq
        %v3268 = vshrl.u32 %v3267, 7
        %v3269 = vsub.s32 %v3266, %v3268
        %v3270 = vrot.slane %v3172, %v3269
        %vm3271 = vcmask 130112
        %v3272 = vsel %vm3271, %v3270, %v3265
        %v3273 = vadd.s32 %v3261, 4294967280
        %v3274 = vlaneseq
        %v3275 = vshrl.u32 %v3274, 7
        %v3276 = vsub.s32 %v3273, %v3275
        %v3277 = vrot.slane %v3174, %v3276
        %vm3278 = vcmask 195712
        %v3279 = vsel %vm3278, %v3277, %v3272
        %v3280 = vadd.s32 %v3261, 4294967272
        %v3281 = vlaneseq
        %v3282 = vshrl.u32 %v3281, 7
        %v3283 = vsub.s32 %v3280, %v3282
        %v3284 = vrot.slane %v3176, %v3283
        %vm3285 = vcmask 261312
        %v3286 = vsel %vm3285, %v3284, %v3279
        %vm3287 = vcmask 1042434
        %v3288 = vsel %vm3287, %v3286, %v3286
        %vm3289 = vcmask 1043459
        %v3290 = vsel %vm3289, %v3286, %v3288
        %vm3291 = vcmask 1044484
        %v3292 = vsel %vm3291, %v3286, %v3290
        %vm3293 = vcmask 1045509
        %v3294 = vsel %vm3293, %v3286, %v3292
        %vm3295 = vcmask 1046534
        %v3296 = vsel %vm3295, %v3286, %v3294
        %vm3297 = vcmask 1047559
        %v3298 = vsel %vm3297, %v3286, %v3296
        %v3300 = vadd.f32 %v3254, %v3298
        %v3301 = vadd.f32 %v3255, %v3298
        %vm3302 = vcmask 261120
        %v3303 = vsel %vm3302, %v3300, inf
        %3304 = vmin.xlane.f32.xlu0 %v3303
        %v3305 = vpop.xlane.xlu0 %3304
        %v3306 = vsel %vm3302, %v3301, inf
        %3307 = vmin.xlane.f32.xlu0 %v3306
        %v3308 = vpop.xlane.xlu0 %3307
        %vm3309 = vcmp.le.f32.partialorder %v3300, %v3305
        %vm3310 = vcmp.le.f32.partialorder %v3301, %v3308
        %v3311 = vsel %vm3309, %v3261, 32
        %v3312 = vsel %vm3310, %v3261, 32
        %v3313 = vsel %vm3302, %v3311, 2147483647
        %v3314 = vand.u32 %v3313, 65535
        %v3315 = vshra.s32 %v3313, 16
        %v3316 = vcvt.s32.f32 %v3314
        %v3317 = vcvt.s32.f32 %v3315
        %3318 = vmin.xlane.f32.xlu0 %v3317
        %v3319 = vpop.xlane.xlu0 %3318
        %vm3320 = vcmp.eq.f32.partialorder %v3317, %v3319
        %v3321 = vsel %vm3320, %v3316, inf
        %3322 = vmin.xlane.f32.xlu0 %v3321
        %v3323 = vpop.xlane.xlu0 %3322
        %v3324 = vcvt.f32.s32 %v3323
        %v3325 = vcvt.f32.s32 %v3319
        %v3326 = vshll.u32 %v3325, 16
        %v3327 = vadd.s32 %v3326, %v3324
        %v3328 = vsel %vm3302, %v3312, 2147483647
        %v3329 = vand.u32 %v3328, 65535
        %v3330 = vshra.s32 %v3328, 16
        %v3331 = vcvt.s32.f32 %v3329
        %v3332 = vcvt.s32.f32 %v3330
        %3333 = vmin.xlane.f32.xlu0 %v3332
        %v3334 = vpop.xlane.xlu0 %3333
        %vm3335 = vcmp.eq.f32.partialorder %v3332, %v3334
        %v3336 = vsel %vm3335, %v3331, inf
        %3337 = vmin.xlane.f32.xlu0 %v3336
        %v3338 = vpop.xlane.xlu0 %3337
        %v3339 = vcvt.f32.s32 %v3338
        %v3340 = vcvt.f32.s32 %v3334
        %v3341 = vshll.u32 %v3340, 16
        %v3342 = vadd.s32 %v3341, %v3339
        %vm3343 = vcmp.eq.s32.totalorder %v3261, %v3327
        %vm3344 = vcmp.eq.s32.totalorder %v3261, %v3342
        %v3345 = vsel %vm3343, 1, 0
        %v3346 = vsel %vm3344, 1, 0
        %v3347 = vcvt.s32.f32 %v3345
        %v3348 = vcvt.s32.f32 %v3346
        %v3350 = vsel %vm3302, %v3347, 0
        %v3353 = vsel %vm3302, %v3348, 0
        %3355 = vmatprep.subr.mxu0 0.0
        %3356 = vmatpush1.msra.mxu0 %v3155
        %3357 = vmatprep.subr.mxu0 0.0
        %3358 = vmatpush1.msra.mxu0 %v3156
        %3359 = vmatprep.subr.mxu0 0.0
        %3360 = vmatpush1.msra.mxu0 %v3157
        %3361 = vmatprep.subr.mxu0 0.0
        %3362 = vmatpush1.msra.mxu0 %v3158
        %3363 = vmatprep.subr.mxu0 0.0
        %3364 = vmatpush1.msra.mxu0 0.0
        %3365 = vmatprep.subr.mxu0 0.0
        %3366 = vmatpush1.msra.mxu0 0.0
        %3367 = vmatprep.subr.mxu0 0.0
        %3368 = vmatpush1.msra.mxu0 0.0
        %3369 = vmatprep.subr.mxu0 0.0
        %3370 = vmatpush1.msra.mxu0 0.0
        %3371 = vmatprep.subr.mxu0 0.0
        %3372 = vmatpush1.msra.mxu0 0.0
        %3373 = vmatprep.subr.mxu0 0.0
        %3374 = vmatpush1.msra.mxu0 0.0
        %3375 = vmatprep.subr.mxu0 0.0
        %3376 = vmatpush1.msra.mxu0 0.0
        %3377 = vmatprep.subr.mxu0 0.0
        %3378 = vmatpush1.msra.mxu0 0.0
        %3379 = vmatprep.subr.mxu0 0.0
        %3380 = vmatpush1.msra.mxu0 0.0
        %3381 = vmatprep.subr.mxu0 0.0
        %3382 = vmatpush1.msra.mxu0 0.0
        %3383 = vmatprep.subr.mxu0 0.0
        %3384 = vmatpush1.msra.mxu0 0.0
        %3385 = vmatprep.subr.mxu0 0.0
        %3386 = vmatpush1.msra.mxu0 0.0
        %3387 = vmatprep.subr.mxu0 0.0
        %3388 = vmatpush1.msra.mxu0 0.0
        %3389 = vmatprep.subr.mxu0 0.0
        %3390 = vmatpush1.msra.mxu0 0.0
        %3391 = vmatprep.subr.mxu0 0.0
        %3392 = vmatpush1.msra.mxu0 0.0
        %3393 = vmatprep.subr.mxu0 0.0
        %3394 = vmatpush1.msra.mxu0 0.0
        %3395 = vmatprep.subr.mxu0 0.0
        %3396 = vmatpush1.msra.mxu0 0.0
        %3397 = vmatprep.subr.mxu0 0.0
        %3398 = vmatpush1.msra.mxu0 0.0
        %3399 = vmatprep.subr.mxu0 0.0
        %3400 = vmatpush1.msra.mxu0 0.0
        %3401 = vmatprep.subr.mxu0 0.0
        %3402 = vmatpush1.msra.mxu0 0.0
        %3403 = vmatprep.subr.mxu0 0.0
        %3404 = vmatpush1.msra.mxu0 0.0
        %3405 = vmatprep.subr.mxu0 0.0
        %3406 = vmatpush1.msra.mxu0 0.0
        %3407 = vmatprep.subr.mxu0 0.0
        %3408 = vmatpush1.msra.mxu0 0.0
        %3409 = vmatprep.subr.mxu0 0.0
        %3410 = vmatpush1.msra.mxu0 0.0
        %3411 = vmatprep.subr.mxu0 0.0
        %3412 = vmatpush1.msra.mxu0 0.0
        %3413 = vmatprep.subr.mxu0 0.0
        %3414 = vmatpush1.msra.mxu0 0.0
        %3415 = vmatprep.subr.mxu0 0.0
        %3416 = vmatpush1.msra.mxu0 0.0
        %3417 = vmatprep.subr.mxu0 0.0
        %3418 = vmatpush1.msra.mxu0 0.0
        %3419 = vmatprep.mubr.f32.mxu0 0.0
        %3420 = vmatmul.mubr.f32.gmra.mrb[0].mxu0 %v3350
        %v3421 = vpop.f32.mrb[0].mxu0
        %v3422 = vadd.f32 0.0, %v3421
        %v3423 = vpop.f32.mrb[0].mxu0
        %3424 = vmatprep.mubr.f32.mxu0 0.0
        %3425 = vmatmul.mubr.f32.gmra.mrb[0].mxu0 %v3353
        %v3426 = vpop.f32.mrb[0].mxu0
        %v3427 = vadd.f32 0.0, %v3426
        %v3428 = vpop.f32.mrb[0].mxu0
        %3429 = vdwg.mxu0
        %v3430 = vmul.f32 %v3422, %v2389
        %v3431 = vmul.f32 %v3427, %v2394
        %v3432 = vsub.f32 %v3430, %v3153
        %v3433 = vsub.f32 %v3431, %v3154
        %v3434 = vmul.f32 %v3432, %v3432
        %v3435 = vmul.f32 %v3433, %v3433
        %v3436 = vadd.f32 %v3434, %v3435
        %3437 = vadd.xlane.f32.xlu0 %v3436
        %v3438 = vpop.xlane.xlu0 %3437
        %v3439 = vrot.slane %v3438, 4
        %v3440 = vadd.f32 %v3438, %v3439
        %v3441 = vrot.slane %v3440, 2
        %v3442 = vadd.f32 %v3440, %v3441
        %v3443 = vrot.slane %v3442, 1
        %v3444 = vadd.f32 %v3442, %v3443
        %s3445 = vtos %v3444
        %v3446 = vstv %s3445
        %3447 = vst [vmem:[%s2005] sm:$0x1] %v3446
        %v3448 = vld [vmem:[#allocation26] sm:$0xff]
        %v3449 = vld [vmem:[#allocation26 + $0x8] sm:$0xff]
        %v3450 = vld [vmem:[#allocation26 + $0x10] sm:$0xff]
        %v3451 = vld [vmem:[#allocation26 + $0x18] sm:$0xff]
        %v3452 = vld [vmem:[#allocation26 + $0x20] sm:$0xff]
        %v3453 = vld [vmem:[#allocation26 + $0x28] sm:$0xff]
        %v3454 = vld [vmem:[#allocation26 + $0x30] sm:$0xff]
        %v3455 = vld [vmem:[#allocation26 + $0x38] sm:$0xff]
        %v3456 = vld [vmem:[#allocation26 + $0x40] sm:$0xff]
        %v3457 = vld [vmem:[#allocation26 + $0x48] sm:$0xff]
        %v3458 = vld [vmem:[#allocation26 + $0x50] sm:$0xff]
        %v3459 = vld [vmem:[#allocation26 + $0x58] sm:$0xff]
        %v3460 = vld [vmem:[#allocation26 + $0x60] sm:$0xff]
        %v3461 = vld [vmem:[#allocation26 + $0x68] sm:$0xff]
        %v3462 = vld [vmem:[#allocation26 + $0x70] sm:$0xff]
        %v3463 = vld [vmem:[#allocation26 + $0x78] sm:$0xff]
        %v3464 = vld [vmem:[#allocation27] sm:$0x1]
        %v3466 = vlaneseq
        %v3467 = vshrl.u32 %v3466, 7
        %v3468 = vsub.s32 0, %v3467
        %v3469 = vrot.slane %v3464, %v3468
        %3471 = vmatprep.subr.mxu0 0.0
        %3472 = vmatpush1.msra.mxu0 %v3448
        %3473 = vmatprep.subr.mxu0 0.0
        %3474 = vmatpush1.msra.mxu0 %v3449
        %3475 = vmatprep.subr.mxu0 0.0
        %3476 = vmatpush1.msra.mxu0 %v3450
        %3477 = vmatprep.subr.mxu0 0.0
        %3478 = vmatpush1.msra.mxu0 %v3451
        %3479 = vmatprep.subr.mxu0 0.0
        %3480 = vmatpush1.msra.mxu0 %v3452
        %3481 = vmatprep.subr.mxu0 0.0
        %3482 = vmatpush1.msra.mxu0 %v3453
        %3483 = vmatprep.subr.mxu0 0.0
        %3484 = vmatpush1.msra.mxu0 %v3454
        %3485 = vmatprep.subr.mxu0 0.0
        %3486 = vmatpush1.msra.mxu0 %v3455
        %3487 = vmatprep.subr.mxu0 0.0
        %3488 = vmatpush1.msra.mxu0 %v3456
        %3489 = vmatprep.subr.mxu0 0.0
        %3490 = vmatpush1.msra.mxu0 %v3457
        %3491 = vmatprep.subr.mxu0 0.0
        %3492 = vmatpush1.msra.mxu0 %v3458
        %3493 = vmatprep.subr.mxu0 0.0
        %3494 = vmatpush1.msra.mxu0 %v3459
        %3495 = vmatprep.subr.mxu0 0.0
        %3496 = vmatpush1.msra.mxu0 %v3460
        %3497 = vmatprep.subr.mxu0 0.0
        %3498 = vmatpush1.msra.mxu0 %v3461
        %3499 = vmatprep.subr.mxu0 0.0
        %3500 = vmatpush1.msra.mxu0 %v3462
        %3501 = vmatprep.subr.mxu0 0.0
        %3502 = vmatpush1.msra.mxu0 %v3463
        %3503 = vmatprep.subr.mxu0 0.0
        %3504 = vmatpush1.msra.mxu0 0.0
        %3505 = vmatprep.subr.mxu0 0.0
        %3506 = vmatpush1.msra.mxu0 0.0
        %3507 = vmatprep.subr.mxu0 0.0
        %3508 = vmatpush1.msra.mxu0 0.0
        %3509 = vmatprep.subr.mxu0 0.0
        %3510 = vmatpush1.msra.mxu0 0.0
        %3511 = vmatprep.subr.mxu0 0.0
        %3512 = vmatpush1.msra.mxu0 0.0
        %3513 = vmatprep.subr.mxu0 0.0
        %3514 = vmatpush1.msra.mxu0 0.0
        %3515 = vmatprep.subr.mxu0 0.0
        %3516 = vmatpush1.msra.mxu0 0.0
        %3517 = vmatprep.subr.mxu0 0.0
        %3518 = vmatpush1.msra.mxu0 0.0
        %3519 = vmatprep.subr.mxu0 0.0
        %3520 = vmatpush1.msra.mxu0 0.0
        %3521 = vmatprep.subr.mxu0 0.0
        %3522 = vmatpush1.msra.mxu0 0.0
        %3523 = vmatprep.subr.mxu0 0.0
        %3524 = vmatpush1.msra.mxu0 0.0
        %3525 = vmatprep.subr.mxu0 0.0
        %3526 = vmatpush1.msra.mxu0 0.0
        %3527 = vmatprep.subr.mxu0 0.0
        %3528 = vmatpush1.msra.mxu0 0.0
        %3529 = vmatprep.subr.mxu0 0.0
        %3530 = vmatpush1.msra.mxu0 0.0
        %3531 = vmatprep.subr.mxu0 0.0
        %3532 = vmatpush1.msra.mxu0 0.0
        %3533 = vmatprep.subr.mxu0 0.0
        %3534 = vmatpush1.msra.mxu0 0.0
        %3535 = vmatprep.mubr.f32.mxu0 0.0
        %3536 = vmatmul.mubr.f32.gmra.mrb[0].mxu0 %v3430
        %v3537 = vpop.f32.mrb[0].mxu0
        %v3538 = vadd.f32 %v3469, %v3537
        %v3539 = vpop.f32.mrb[0].mxu0
        %3540 = vmatprep.mubr.f32.mxu0 0.0
        %3541 = vmatmul.mubr.f32.gmra.mrb[0].mxu0 %v3431
        %v3542 = vpop.f32.mrb[0].mxu0
        %v3543 = vadd.f32 %v3469, %v3542
        %v3544 = vpop.f32.mrb[0].mxu0
        %3545 = vdwg.mxu0
        %v3546 = vmax.f32 %v3538, 0.0
        %v3547 = vmax.f32 %v3543, 0.0
        %v3548 = vrot.slane %v3546, 4
        %v3549 = vrot.slane %v3547, 4
        %v3550 = vsel %vm2735, %v3548, %v3549
        %v3551 = vsel %vm2735, %v3549, %v3548
        %v3552 = vld [vmem:[%s39] sm:$0xff]
        %v3553 = vld [vmem:[%s39 + $0x8] sm:$0xff]
        %3555 = vset.pattern.permute.xlu0 0
        %3556 = vperm.xlu0 %3555, %v3552
        %v3557 = vpop.permute.xlu0 %3556
        %3560 = vset.pattern.permute.xlu0 0
        %3561 = vperm.xlu0 %3560, %v3553
        %v3562 = vpop.permute.xlu0 %3561
        %v3564 = vmul.f32 %v3551, %v3557
        %v3565 = vmul.f32 %v3550, %v3562
        %v3566 = vld [vmem:[#allocation29] sm:$0xff]
        %v3567 = vld [vmem:[#allocation29 + $0x8] sm:$0xff]
        %v3568 = vld [vmem:[#allocation29 + $0x10] sm:$0xff]
        %v3569 = vld [vmem:[#allocation29 + $0x18] sm:$0xff]
        %v3570 = vld [vmem:[#allocation29 + $0x20] sm:$0xff]
        %v3571 = vld [vmem:[#allocation29 + $0x28] sm:$0xff]
        %v3572 = vld [vmem:[#allocation29 + $0x30] sm:$0xff]
        %v3573 = vld [vmem:[#allocation29 + $0x38] sm:$0xff]
        %v3574 = vld [vmem:[#allocation29 + $0x40] sm:$0xff]
        %v3575 = vld [vmem:[#allocation29 + $0x48] sm:$0xff]
        %v3576 = vld [vmem:[#allocation29 + $0x50] sm:$0xff]
        %v3577 = vld [vmem:[#allocation29 + $0x58] sm:$0xff]
        %v3578 = vld [vmem:[#allocation29 + $0x60] sm:$0xff]
        %v3579 = vld [vmem:[#allocation29 + $0x68] sm:$0xff]
        %v3580 = vld [vmem:[#allocation29 + $0x70] sm:$0xff]
        %v3581 = vld [vmem:[#allocation29 + $0x78] sm:$0xff]
        %s3582 = scalar_lea.vmem [#allocation29], 128
        %v3583 = vld [vmem:[%s3582] sm:$0xff]
        %v3584 = vld [vmem:[%s3582 + $0x8] sm:$0xff]
        %v3585 = vld [vmem:[%s3582 + $0x10] sm:$0xff]
        %v3586 = vld [vmem:[%s3582 + $0x18] sm:$0xff]
        %v3587 = vld [vmem:[%s3582 + $0x20] sm:$0xff]
        %v3588 = vld [vmem:[%s3582 + $0x28] sm:$0xff]
        %v3589 = vld [vmem:[%s3582 + $0x30] sm:$0xff]
        %v3590 = vld [vmem:[%s3582 + $0x38] sm:$0xff]
        %v3591 = vld [vmem:[%s3582 + $0x40] sm:$0xff]
        %v3592 = vld [vmem:[%s3582 + $0x48] sm:$0xff]
        %v3593 = vld [vmem:[%s3582 + $0x50] sm:$0xff]
        %v3594 = vld [vmem:[%s3582 + $0x58] sm:$0xff]
        %v3595 = vld [vmem:[%s3582 + $0x60] sm:$0xff]
        %v3596 = vld [vmem:[%s3582 + $0x68] sm:$0xff]
        %v3597 = vld [vmem:[%s3582 + $0x70] sm:$0xff]
        %v3598 = vld [vmem:[%s3582 + $0x78] sm:$0xff]
        %3599 = vmatprep.subr.mxu0 0.0
        %3600 = vmatpush1.msra.mxu0 %v3583
        %3601 = vmatprep.subr.mxu0 0.0
        %3602 = vmatpush1.msra.mxu0 %v3584
        %3603 = vmatprep.subr.mxu0 0.0
        %3604 = vmatpush1.msra.mxu0 %v3585
        %3605 = vmatprep.subr.mxu0 0.0
        %3606 = vmatpush1.msra.mxu0 %v3586
        %3607 = vmatprep.subr.mxu0 0.0
        %3608 = vmatpush1.msra.mxu0 %v3587
        %3609 = vmatprep.subr.mxu0 0.0
        %3610 = vmatpush1.msra.mxu0 %v3588
        %3611 = vmatprep.subr.mxu0 0.0
        %3612 = vmatpush1.msra.mxu0 %v3589
        %3613 = vmatprep.subr.mxu0 0.0
        %3614 = vmatpush1.msra.mxu0 %v3590
        %3615 = vmatprep.subr.mxu0 0.0
        %3616 = vmatpush1.msra.mxu0 %v3591
        %3617 = vmatprep.subr.mxu0 0.0
        %3618 = vmatpush1.msra.mxu0 %v3592
        %3619 = vmatprep.subr.mxu0 0.0
        %3620 = vmatpush1.msra.mxu0 %v3593
        %3621 = vmatprep.subr.mxu0 0.0
        %3622 = vmatpush1.msra.mxu0 %v3594
        %3623 = vmatprep.subr.mxu0 0.0
        %3624 = vmatpush1.msra.mxu0 %v3595
        %3625 = vmatprep.subr.mxu0 0.0
        %3626 = vmatpush1.msra.mxu0 %v3596
        %3627 = vmatprep.subr.mxu0 0.0
        %3628 = vmatpush1.msra.mxu0 %v3597
        %3629 = vmatprep.subr.mxu0 0.0
        %3630 = vmatpush1.msra.mxu0 %v3598
        %3631 = vmatprep.subr.mxu0 0.0
        %3632 = vmatpush1.msra.mxu0 0.0
        %3633 = vmatprep.subr.mxu0 0.0
        %3634 = vmatpush1.msra.mxu0 0.0
        %3635 = vmatprep.subr.mxu0 0.0
        %3636 = vmatpush1.msra.mxu0 0.0
        %3637 = vmatprep.subr.mxu0 0.0
        %3638 = vmatpush1.msra.mxu0 0.0
        %3639 = vmatprep.subr.mxu0 0.0
        %3640 = vmatpush1.msra.mxu0 0.0
        %3641 = vmatprep.subr.mxu0 0.0
        %3642 = vmatpush1.msra.mxu0 0.0
        %3643 = vmatprep.subr.mxu0 0.0
        %3644 = vmatpush1.msra.mxu0 0.0
        %3645 = vmatprep.subr.mxu0 0.0
        %3646 = vmatpush1.msra.mxu0 0.0
        %3647 = vmatprep.subr.mxu0 0.0
        %3648 = vmatpush1.msra.mxu0 0.0
        %3649 = vmatprep.subr.mxu0 0.0
        %3650 = vmatpush1.msra.mxu0 0.0
        %3651 = vmatprep.subr.mxu0 0.0
        %3652 = vmatpush1.msra.mxu0 0.0
        %3653 = vmatprep.subr.mxu0 0.0
        %3654 = vmatpush1.msra.mxu0 0.0
        %3655 = vmatprep.subr.mxu0 0.0
        %3656 = vmatpush1.msra.mxu0 0.0
        %3657 = vmatprep.subr.mxu0 0.0
        %3658 = vmatpush1.msra.mxu0 0.0
        %3659 = vmatprep.subr.mxu0 0.0
        %3660 = vmatpush1.msra.mxu0 0.0
        %3661 = vmatprep.subr.mxu0 0.0
        %3662 = vmatpush1.msra.mxu0 0.0
        %3663 = vmatprep.mubr.f32.mxu0 0.0
        %3664 = vmatmul.mubr.f32.gmra.mrb[0].mxu0 %v3546
        %v3665 = vpop.f32.mrb[0].mxu0
        %v3666 = vadd.f32 0.0, %v3665
        %v3667 = vpop.f32.mrb[0].mxu0
        %3668 = vmatprep.mubr.f32.mxu0 0.0
        %3669 = vmatmul.mubr.f32.gmra.mrb[0].mxu0 %v3547
        %v3670 = vpop.f32.mrb[0].mxu0
        %v3671 = vadd.f32 0.0, %v3670
        %v3672 = vpop.f32.mrb[0].mxu0
        %3673 = vdwg.mxu0
        %3674 = vmatprep.subr.mxu0 0.0
        %3675 = vmatpush1.msra.mxu0 %v3566
        %3676 = vmatprep.subr.mxu0 0.0
        %3677 = vmatpush1.msra.mxu0 %v3567
        %3678 = vmatprep.subr.mxu0 0.0
        %3679 = vmatpush1.msra.mxu0 %v3568
        %3680 = vmatprep.subr.mxu0 0.0
        %3681 = vmatpush1.msra.mxu0 %v3569
        %3682 = vmatprep.subr.mxu0 0.0
        %3683 = vmatpush1.msra.mxu0 %v3570
        %3684 = vmatprep.subr.mxu0 0.0
        %3685 = vmatpush1.msra.mxu0 %v3571
        %3686 = vmatprep.subr.mxu0 0.0
        %3687 = vmatpush1.msra.mxu0 %v3572
        %3688 = vmatprep.subr.mxu0 0.0
        %3689 = vmatpush1.msra.mxu0 %v3573
        %3690 = vmatprep.subr.mxu0 0.0
        %3691 = vmatpush1.msra.mxu0 %v3574
        %3692 = vmatprep.subr.mxu0 0.0
        %3693 = vmatpush1.msra.mxu0 %v3575
        %3694 = vmatprep.subr.mxu0 0.0
        %3695 = vmatpush1.msra.mxu0 %v3576
        %3696 = vmatprep.subr.mxu0 0.0
        %3697 = vmatpush1.msra.mxu0 %v3577
        %3698 = vmatprep.subr.mxu0 0.0
        %3699 = vmatpush1.msra.mxu0 %v3578
        %3700 = vmatprep.subr.mxu0 0.0
        %3701 = vmatpush1.msra.mxu0 %v3579
        %3702 = vmatprep.subr.mxu0 0.0
        %3703 = vmatpush1.msra.mxu0 %v3580
        %3704 = vmatprep.subr.mxu0 0.0
        %3705 = vmatpush1.msra.mxu0 %v3581
        %3706 = vmatprep.subr.mxu0 0.0
        %3707 = vmatpush1.msra.mxu0 0.0
        %3708 = vmatprep.subr.mxu0 0.0
        %3709 = vmatpush1.msra.mxu0 0.0
        %3710 = vmatprep.subr.mxu0 0.0
        %3711 = vmatpush1.msra.mxu0 0.0
        %3712 = vmatprep.subr.mxu0 0.0
        %3713 = vmatpush1.msra.mxu0 0.0
        %3714 = vmatprep.subr.mxu0 0.0
        %3715 = vmatpush1.msra.mxu0 0.0
        %3716 = vmatprep.subr.mxu0 0.0
        %3717 = vmatpush1.msra.mxu0 0.0
        %3718 = vmatprep.subr.mxu0 0.0
        %3719 = vmatpush1.msra.mxu0 0.0
        %3720 = vmatprep.subr.mxu0 0.0
        %3721 = vmatpush1.msra.mxu0 0.0
        %3722 = vmatprep.subr.mxu0 0.0
        %3723 = vmatpush1.msra.mxu0 0.0
        %3724 = vmatprep.subr.mxu0 0.0
        %3725 = vmatpush1.msra.mxu0 0.0
        %3726 = vmatprep.subr.mxu0 0.0
        %3727 = vmatpush1.msra.mxu0 0.0
        %3728 = vmatprep.subr.mxu0 0.0
        %3729 = vmatpush1.msra.mxu0 0.0
        %3730 = vmatprep.subr.mxu0 0.0
        %3731 = vmatpush1.msra.mxu0 0.0
        %3732 = vmatprep.subr.mxu0 0.0
        %3733 = vmatpush1.msra.mxu0 0.0
        %3734 = vmatprep.subr.mxu0 0.0
        %3735 = vmatpush1.msra.mxu0 0.0
        %3736 = vmatprep.subr.mxu0 0.0
        %3737 = vmatpush1.msra.mxu0 0.0
        %3738 = vmatprep.mubr.f32.mxu0 0.0
        %3739 = vmatmul.mubr.f32.gmra.mrb[0].mxu0 %v3564
        %v3740 = vpop.f32.mrb[0].mxu0
        %v3741 = vadd.f32 %v3666, %v3740
        %v3742 = vpop.f32.mrb[0].mxu0
        %3743 = vmatprep.mubr.f32.mxu0 0.0
        %3744 = vmatmul.mubr.f32.gmra.mrb[0].mxu0 %v3565
        %v3745 = vpop.f32.mrb[0].mxu0
        %v3746 = vadd.f32 %v3671, %v3745
        %v3747 = vpop.f32.mrb[0].mxu0
        %3748 = vdwg.mxu0
        %v3749 = vld [vmem:[%s2935] sm:$0xff]
        %v3750 = vld [vmem:[%s2935 + $0x8] sm:$0xff]
        %3752 = vset.pattern.permute.xlu0 0
        %3753 = vperm.xlu0 %3752, %v3749
        %v3754 = vpop.permute.xlu0 %3753
        %3757 = vset.pattern.permute.xlu0 0
        %3758 = vperm.xlu0 %3757, %v3750
        %v3759 = vpop.permute.xlu0 %3758
        %v3761 = vmul.f32 %v3550, %v3754
        %v3762 = vmul.f32 %v3551, %v3759
        %s3763 = scalar_lea.vmem [#allocation29], 256
        %v3764 = vld [vmem:[%s3763] sm:$0xff]
        %v3765 = vld [vmem:[%s3763 + $0x8] sm:$0xff]
        %v3766 = vld [vmem:[%s3763 + $0x10] sm:$0xff]
        %v3767 = vld [vmem:[%s3763 + $0x18] sm:$0xff]
        %v3768 = vld [vmem:[%s3763 + $0x20] sm:$0xff]
        %v3769 = vld [vmem:[%s3763 + $0x28] sm:$0xff]
        %v3770 = vld [vmem:[%s3763 + $0x30] sm:$0xff]
        %v3771 = vld [vmem:[%s3763 + $0x38] sm:$0xff]
        %v3772 = vld [vmem:[%s3763 + $0x40] sm:$0xff]
        %v3773 = vld [vmem:[%s3763 + $0x48] sm:$0xff]
        %v3774 = vld [vmem:[%s3763 + $0x50] sm:$0xff]
        %v3775 = vld [vmem:[%s3763 + $0x58] sm:$0xff]
        %v3776 = vld [vmem:[%s3763 + $0x60] sm:$0xff]
        %v3777 = vld [vmem:[%s3763 + $0x68] sm:$0xff]
        %v3778 = vld [vmem:[%s3763 + $0x70] sm:$0xff]
        %v3779 = vld [vmem:[%s3763 + $0x78] sm:$0xff]
        %3780 = vmatprep.subr.mxu0 0.0
        %3781 = vmatpush1.msra.mxu0 %v3764
        %3782 = vmatprep.subr.mxu0 0.0
        %3783 = vmatpush1.msra.mxu0 %v3765
        %3784 = vmatprep.subr.mxu0 0.0
        %3785 = vmatpush1.msra.mxu0 %v3766
        %3786 = vmatprep.subr.mxu0 0.0
        %3787 = vmatpush1.msra.mxu0 %v3767
        %3788 = vmatprep.subr.mxu0 0.0
        %3789 = vmatpush1.msra.mxu0 %v3768
        %3790 = vmatprep.subr.mxu0 0.0
        %3791 = vmatpush1.msra.mxu0 %v3769
        %3792 = vmatprep.subr.mxu0 0.0
        %3793 = vmatpush1.msra.mxu0 %v3770
        %3794 = vmatprep.subr.mxu0 0.0
        %3795 = vmatpush1.msra.mxu0 %v3771
        %3796 = vmatprep.subr.mxu0 0.0
        %3797 = vmatpush1.msra.mxu0 %v3772
        %3798 = vmatprep.subr.mxu0 0.0
        %3799 = vmatpush1.msra.mxu0 %v3773
        %3800 = vmatprep.subr.mxu0 0.0
        %3801 = vmatpush1.msra.mxu0 %v3774
        %3802 = vmatprep.subr.mxu0 0.0
        %3803 = vmatpush1.msra.mxu0 %v3775
        %3804 = vmatprep.subr.mxu0 0.0
        %3805 = vmatpush1.msra.mxu0 %v3776
        %3806 = vmatprep.subr.mxu0 0.0
        %3807 = vmatpush1.msra.mxu0 %v3777
        %3808 = vmatprep.subr.mxu0 0.0
        %3809 = vmatpush1.msra.mxu0 %v3778
        %3810 = vmatprep.subr.mxu0 0.0
        %3811 = vmatpush1.msra.mxu0 %v3779
        %3812 = vmatprep.subr.mxu0 0.0
        %3813 = vmatpush1.msra.mxu0 0.0
        %3814 = vmatprep.subr.mxu0 0.0
        %3815 = vmatpush1.msra.mxu0 0.0
        %3816 = vmatprep.subr.mxu0 0.0
        %3817 = vmatpush1.msra.mxu0 0.0
        %3818 = vmatprep.subr.mxu0 0.0
        %3819 = vmatpush1.msra.mxu0 0.0
        %3820 = vmatprep.subr.mxu0 0.0
        %3821 = vmatpush1.msra.mxu0 0.0
        %3822 = vmatprep.subr.mxu0 0.0
        %3823 = vmatpush1.msra.mxu0 0.0
        %3824 = vmatprep.subr.mxu0 0.0
        %3825 = vmatpush1.msra.mxu0 0.0
        %3826 = vmatprep.subr.mxu0 0.0
        %3827 = vmatpush1.msra.mxu0 0.0
        %3828 = vmatprep.subr.mxu0 0.0
        %3829 = vmatpush1.msra.mxu0 0.0
        %3830 = vmatprep.subr.mxu0 0.0
        %3831 = vmatpush1.msra.mxu0 0.0
        %3832 = vmatprep.subr.mxu0 0.0
        %3833 = vmatpush1.msra.mxu0 0.0
        %3834 = vmatprep.subr.mxu0 0.0
        %3835 = vmatpush1.msra.mxu0 0.0
        %3836 = vmatprep.subr.mxu0 0.0
        %3837 = vmatpush1.msra.mxu0 0.0
        %3838 = vmatprep.subr.mxu0 0.0
        %3839 = vmatpush1.msra.mxu0 0.0
        %3840 = vmatprep.subr.mxu0 0.0
        %3841 = vmatpush1.msra.mxu0 0.0
        %3842 = vmatprep.subr.mxu0 0.0
        %3843 = vmatpush1.msra.mxu0 0.0
        %3844 = vmatprep.mubr.f32.mxu0 0.0
        %3845 = vmatmul.mubr.f32.gmra.mrb[0].mxu0 %v3761
        %v3846 = vpop.f32.mrb[0].mxu0
        %v3847 = vadd.f32 0.0, %v3846
        %v3848 = vpop.f32.mrb[0].mxu0
        %3849 = vmatprep.mubr.f32.mxu0 0.0
        %3850 = vmatmul.mubr.f32.gmra.mrb[0].mxu0 %v3762
        %v3851 = vpop.f32.mrb[0].mxu0
        %v3852 = vadd.f32 0.0, %v3851
        %v3853 = vpop.f32.mrb[0].mxu0
        %3854 = vdwg.mxu0
        %v3855 = vadd.f32 %v3741, %v3847
        %v3856 = vadd.f32 %v3746, %v3852
        %v3857 = vld [vmem:[#allocation30] sm:$0x1]
        %v3859 = vlaneseq
        %v3860 = vshrl.u32 %v3859, 7
        %v3861 = vsub.s32 0, %v3860
        %v3862 = vrot.slane %v3857, %v3861
        %v3864 = vadd.f32 %v3855, %v3862
        %v3865 = vadd.f32 %v3856, %v3862
        %v3866 = vmax.f32 %v3864, 0.0
        %v3867 = vmax.f32 %v3865, 0.0
        %v3868 = vrot.slane %v3866, 6
        %v3869 = vrot.slane %v3867, 6
        %v3870 = vsel %vm2402, %v3868, %v3869
        %v3871 = vsel %vm2402, %v3869, %v3868
        %v3872 = vld [vmem:[%s37] sm:$0xff]
        %v3873 = vld [vmem:[%s37 + $0x8] sm:$0xff]
        %3875 = vset.pattern.permute.xlu0 0
        %3876 = vperm.xlu0 %3875, %v3872
        %v3877 = vpop.permute.xlu0 %3876
        %3880 = vset.pattern.permute.xlu0 0
        %3881 = vperm.xlu0 %3880, %v3873
        %v3882 = vpop.permute.xlu0 %3881
        %v3884 = vmul.f32 %v3871, %v3877
        %v3885 = vmul.f32 %v3870, %v3882
        %v3886 = vld [vmem:[#allocation32] sm:$0xff]
        %v3887 = vld [vmem:[#allocation32 + $0x8] sm:$0xff]
        %v3888 = vld [vmem:[#allocation32 + $0x10] sm:$0xff]
        %v3889 = vld [vmem:[#allocation32 + $0x18] sm:$0xff]
        %v3890 = vld [vmem:[#allocation32 + $0x20] sm:$0xff]
        %v3891 = vld [vmem:[#allocation32 + $0x28] sm:$0xff]
        %v3892 = vld [vmem:[#allocation32 + $0x30] sm:$0xff]
        %v3893 = vld [vmem:[#allocation32 + $0x38] sm:$0xff]
        %v3894 = vld [vmem:[#allocation32 + $0x40] sm:$0xff]
        %v3895 = vld [vmem:[#allocation32 + $0x48] sm:$0xff]
        %v3896 = vld [vmem:[#allocation32 + $0x50] sm:$0xff]
        %v3897 = vld [vmem:[#allocation32 + $0x58] sm:$0xff]
        %v3898 = vld [vmem:[#allocation32 + $0x60] sm:$0xff]
        %v3899 = vld [vmem:[#allocation32 + $0x68] sm:$0xff]
        %v3900 = vld [vmem:[#allocation32 + $0x70] sm:$0xff]
        %v3901 = vld [vmem:[#allocation32 + $0x78] sm:$0xff]
        %s3902 = scalar_lea.vmem [#allocation32], 128
        %v3903 = vld [vmem:[%s3902] sm:$0xff]
        %v3904 = vld [vmem:[%s3902 + $0x8] sm:$0xff]
        %v3905 = vld [vmem:[%s3902 + $0x10] sm:$0xff]
        %v3906 = vld [vmem:[%s3902 + $0x18] sm:$0xff]
        %v3907 = vld [vmem:[%s3902 + $0x20] sm:$0xff]
        %v3908 = vld [vmem:[%s3902 + $0x28] sm:$0xff]
        %v3909 = vld [vmem:[%s3902 + $0x30] sm:$0xff]
        %v3910 = vld [vmem:[%s3902 + $0x38] sm:$0xff]
        %v3911 = vld [vmem:[%s3902 + $0x40] sm:$0xff]
        %v3912 = vld [vmem:[%s3902 + $0x48] sm:$0xff]
        %v3913 = vld [vmem:[%s3902 + $0x50] sm:$0xff]
        %v3914 = vld [vmem:[%s3902 + $0x58] sm:$0xff]
        %v3915 = vld [vmem:[%s3902 + $0x60] sm:$0xff]
        %v3916 = vld [vmem:[%s3902 + $0x68] sm:$0xff]
        %v3917 = vld [vmem:[%s3902 + $0x70] sm:$0xff]
        %v3918 = vld [vmem:[%s3902 + $0x78] sm:$0xff]
        %3919 = vmatprep.subr.mxu0 0.0
        %3920 = vmatpush1.msra.mxu0 %v3903
        %3921 = vmatprep.subr.mxu0 0.0
        %3922 = vmatpush1.msra.mxu0 %v3904
        %3923 = vmatprep.subr.mxu0 0.0
        %3924 = vmatpush1.msra.mxu0 %v3905
        %3925 = vmatprep.subr.mxu0 0.0
        %3926 = vmatpush1.msra.mxu0 %v3906
        %3927 = vmatprep.subr.mxu0 0.0
        %3928 = vmatpush1.msra.mxu0 %v3907
        %3929 = vmatprep.subr.mxu0 0.0
        %3930 = vmatpush1.msra.mxu0 %v3908
        %3931 = vmatprep.subr.mxu0 0.0
        %3932 = vmatpush1.msra.mxu0 %v3909
        %3933 = vmatprep.subr.mxu0 0.0
        %3934 = vmatpush1.msra.mxu0 %v3910
        %3935 = vmatprep.subr.mxu0 0.0
        %3936 = vmatpush1.msra.mxu0 %v3911
        %3937 = vmatprep.subr.mxu0 0.0
        %3938 = vmatpush1.msra.mxu0 %v3912
        %3939 = vmatprep.subr.mxu0 0.0
        %3940 = vmatpush1.msra.mxu0 %v3913
        %3941 = vmatprep.subr.mxu0 0.0
        %3942 = vmatpush1.msra.mxu0 %v3914
        %3943 = vmatprep.subr.mxu0 0.0
        %3944 = vmatpush1.msra.mxu0 %v3915
        %3945 = vmatprep.subr.mxu0 0.0
        %3946 = vmatpush1.msra.mxu0 %v3916
        %3947 = vmatprep.subr.mxu0 0.0
        %3948 = vmatpush1.msra.mxu0 %v3917
        %3949 = vmatprep.subr.mxu0 0.0
        %3950 = vmatpush1.msra.mxu0 %v3918
        %3951 = vmatprep.subr.mxu0 0.0
        %3952 = vmatpush1.msra.mxu0 0.0
        %3953 = vmatprep.subr.mxu0 0.0
        %3954 = vmatpush1.msra.mxu0 0.0
        %3955 = vmatprep.subr.mxu0 0.0
        %3956 = vmatpush1.msra.mxu0 0.0
        %3957 = vmatprep.subr.mxu0 0.0
        %3958 = vmatpush1.msra.mxu0 0.0
        %3959 = vmatprep.subr.mxu0 0.0
        %3960 = vmatpush1.msra.mxu0 0.0
        %3961 = vmatprep.subr.mxu0 0.0
        %3962 = vmatpush1.msra.mxu0 0.0
        %3963 = vmatprep.subr.mxu0 0.0
        %3964 = vmatpush1.msra.mxu0 0.0
        %3965 = vmatprep.subr.mxu0 0.0
        %3966 = vmatpush1.msra.mxu0 0.0
        %3967 = vmatprep.subr.mxu0 0.0
        %3968 = vmatpush1.msra.mxu0 0.0
        %3969 = vmatprep.subr.mxu0 0.0
        %3970 = vmatpush1.msra.mxu0 0.0
        %3971 = vmatprep.subr.mxu0 0.0
        %3972 = vmatpush1.msra.mxu0 0.0
        %3973 = vmatprep.subr.mxu0 0.0
        %3974 = vmatpush1.msra.mxu0 0.0
        %3975 = vmatprep.subr.mxu0 0.0
        %3976 = vmatpush1.msra.mxu0 0.0
        %3977 = vmatprep.subr.mxu0 0.0
        %3978 = vmatpush1.msra.mxu0 0.0
        %3979 = vmatprep.subr.mxu0 0.0
        %3980 = vmatpush1.msra.mxu0 0.0
        %3981 = vmatprep.subr.mxu0 0.0
        %3982 = vmatpush1.msra.mxu0 0.0
        %3983 = vmatprep.mubr.f32.mxu0 0.0
        %3984 = vmatmul.mubr.f32.gmra.mrb[0].mxu0 %v3866
        %v3985 = vpop.f32.mrb[0].mxu0
        %v3986 = vadd.f32 0.0, %v3985
        %v3987 = vpop.f32.mrb[0].mxu0
        %3988 = vmatprep.mubr.f32.mxu0 0.0
        %3989 = vmatmul.mubr.f32.gmra.mrb[0].mxu0 %v3867
        %v3990 = vpop.f32.mrb[0].mxu0
        %v3991 = vadd.f32 0.0, %v3990
        %v3992 = vpop.f32.mrb[0].mxu0
        %3993 = vdwg.mxu0
        %3994 = vmatprep.subr.mxu0 0.0
        %3995 = vmatpush1.msra.mxu0 %v3886
        %3996 = vmatprep.subr.mxu0 0.0
        %3997 = vmatpush1.msra.mxu0 %v3887
        %3998 = vmatprep.subr.mxu0 0.0
        %3999 = vmatpush1.msra.mxu0 %v3888
        %4000 = vmatprep.subr.mxu0 0.0
        %4001 = vmatpush1.msra.mxu0 %v3889
        %4002 = vmatprep.subr.mxu0 0.0
        %4003 = vmatpush1.msra.mxu0 %v3890
        %4004 = vmatprep.subr.mxu0 0.0
        %4005 = vmatpush1.msra.mxu0 %v3891
        %4006 = vmatprep.subr.mxu0 0.0
        %4007 = vmatpush1.msra.mxu0 %v3892
        %4008 = vmatprep.subr.mxu0 0.0
        %4009 = vmatpush1.msra.mxu0 %v3893
        %4010 = vmatprep.subr.mxu0 0.0
        %4011 = vmatpush1.msra.mxu0 %v3894
        %4012 = vmatprep.subr.mxu0 0.0
        %4013 = vmatpush1.msra.mxu0 %v3895
        %4014 = vmatprep.subr.mxu0 0.0
        %4015 = vmatpush1.msra.mxu0 %v3896
        %4016 = vmatprep.subr.mxu0 0.0
        %4017 = vmatpush1.msra.mxu0 %v3897
        %4018 = vmatprep.subr.mxu0 0.0
        %4019 = vmatpush1.msra.mxu0 %v3898
        %4020 = vmatprep.subr.mxu0 0.0
        %4021 = vmatpush1.msra.mxu0 %v3899
        %4022 = vmatprep.subr.mxu0 0.0
        %4023 = vmatpush1.msra.mxu0 %v3900
        %4024 = vmatprep.subr.mxu0 0.0
        %4025 = vmatpush1.msra.mxu0 %v3901
        %4026 = vmatprep.subr.mxu0 0.0
        %4027 = vmatpush1.msra.mxu0 0.0
        %4028 = vmatprep.subr.mxu0 0.0
        %4029 = vmatpush1.msra.mxu0 0.0
        %4030 = vmatprep.subr.mxu0 0.0
        %4031 = vmatpush1.msra.mxu0 0.0
        %4032 = vmatprep.subr.mxu0 0.0
        %4033 = vmatpush1.msra.mxu0 0.0
        %4034 = vmatprep.subr.mxu0 0.0
        %4035 = vmatpush1.msra.mxu0 0.0
        %4036 = vmatprep.subr.mxu0 0.0
        %4037 = vmatpush1.msra.mxu0 0.0
        %4038 = vmatprep.subr.mxu0 0.0
        %4039 = vmatpush1.msra.mxu0 0.0
        %4040 = vmatprep.subr.mxu0 0.0
        %4041 = vmatpush1.msra.mxu0 0.0
        %4042 = vmatprep.subr.mxu0 0.0
        %4043 = vmatpush1.msra.mxu0 0.0
        %4044 = vmatprep.subr.mxu0 0.0
        %4045 = vmatpush1.msra.mxu0 0.0
        %4046 = vmatprep.subr.mxu0 0.0
        %4047 = vmatpush1.msra.mxu0 0.0
        %4048 = vmatprep.subr.mxu0 0.0
        %4049 = vmatpush1.msra.mxu0 0.0
        %4050 = vmatprep.subr.mxu0 0.0
        %4051 = vmatpush1.msra.mxu0 0.0
        %4052 = vmatprep.subr.mxu0 0.0
        %4053 = vmatpush1.msra.mxu0 0.0
        %4054 = vmatprep.subr.mxu0 0.0
        %4055 = vmatpush1.msra.mxu0 0.0
        %4056 = vmatprep.subr.mxu0 0.0
        %4057 = vmatpush1.msra.mxu0 0.0
        %4058 = vmatprep.mubr.f32.mxu0 0.0
        %4059 = vmatmul.mubr.f32.gmra.mrb[0].mxu0 %v3884
        %v4060 = vpop.f32.mrb[0].mxu0
        %v4061 = vadd.f32 %v3986, %v4060
        %v4062 = vpop.f32.mrb[0].mxu0
        %4063 = vmatprep.mubr.f32.mxu0 0.0
        %4064 = vmatmul.mubr.f32.gmra.mrb[0].mxu0 %v3885
        %v4065 = vpop.f32.mrb[0].mxu0
        %v4066 = vadd.f32 %v3991, %v4065
        %v4067 = vpop.f32.mrb[0].mxu0
        %4068 = vdwg.mxu0
        %v4069 = vrot.slane %v3866, 2
        %v4070 = vrot.slane %v3867, 2
        %v4071 = vsel %vm2604, %v4069, %v4070
        %v4072 = vsel %vm2604, %v4070, %v4069
        %v4073 = vld [vmem:[%s2607] sm:$0xff]
        %v4074 = vld [vmem:[%s2607 + $0x8] sm:$0xff]
        %4076 = vset.pattern.permute.xlu0 0
        %4077 = vperm.xlu0 %4076, %v4073
        %v4078 = vpop.permute.xlu0 %4077
        %4081 = vset.pattern.permute.xlu0 0
        %4082 = vperm.xlu0 %4081, %v4074
        %v4083 = vpop.permute.xlu0 %4082
        %v4085 = vmul.f32 %v4071, %v4078
        %v4086 = vmul.f32 %v4072, %v4083
        %s4087 = scalar_lea.vmem [#allocation32], 256
        %v4088 = vld [vmem:[%s4087] sm:$0xff]
        %v4089 = vld [vmem:[%s4087 + $0x8] sm:$0xff]
        %v4090 = vld [vmem:[%s4087 + $0x10] sm:$0xff]
        %v4091 = vld [vmem:[%s4087 + $0x18] sm:$0xff]
        %v4092 = vld [vmem:[%s4087 + $0x20] sm:$0xff]
        %v4093 = vld [vmem:[%s4087 + $0x28] sm:$0xff]
        %v4094 = vld [vmem:[%s4087 + $0x30] sm:$0xff]
        %v4095 = vld [vmem:[%s4087 + $0x38] sm:$0xff]
        %v4096 = vld [vmem:[%s4087 + $0x40] sm:$0xff]
        %v4097 = vld [vmem:[%s4087 + $0x48] sm:$0xff]
        %v4098 = vld [vmem:[%s4087 + $0x50] sm:$0xff]
        %v4099 = vld [vmem:[%s4087 + $0x58] sm:$0xff]
        %v4100 = vld [vmem:[%s4087 + $0x60] sm:$0xff]
        %v4101 = vld [vmem:[%s4087 + $0x68] sm:$0xff]
        %v4102 = vld [vmem:[%s4087 + $0x70] sm:$0xff]
        %v4103 = vld [vmem:[%s4087 + $0x78] sm:$0xff]
        %4104 = vmatprep.subr.mxu0 0.0
        %4105 = vmatpush1.msra.mxu0 %v4088
        %4106 = vmatprep.subr.mxu0 0.0
        %4107 = vmatpush1.msra.mxu0 %v4089
        %4108 = vmatprep.subr.mxu0 0.0
        %4109 = vmatpush1.msra.mxu0 %v4090
        %4110 = vmatprep.subr.mxu0 0.0
        %4111 = vmatpush1.msra.mxu0 %v4091
        %4112 = vmatprep.subr.mxu0 0.0
        %4113 = vmatpush1.msra.mxu0 %v4092
        %4114 = vmatprep.subr.mxu0 0.0
        %4115 = vmatpush1.msra.mxu0 %v4093
        %4116 = vmatprep.subr.mxu0 0.0
        %4117 = vmatpush1.msra.mxu0 %v4094
        %4118 = vmatprep.subr.mxu0 0.0
        %4119 = vmatpush1.msra.mxu0 %v4095
        %4120 = vmatprep.subr.mxu0 0.0
        %4121 = vmatpush1.msra.mxu0 %v4096
        %4122 = vmatprep.subr.mxu0 0.0
        %4123 = vmatpush1.msra.mxu0 %v4097
        %4124 = vmatprep.subr.mxu0 0.0
        %4125 = vmatpush1.msra.mxu0 %v4098
        %4126 = vmatprep.subr.mxu0 0.0
        %4127 = vmatpush1.msra.mxu0 %v4099
        %4128 = vmatprep.subr.mxu0 0.0
        %4129 = vmatpush1.msra.mxu0 %v4100
        %4130 = vmatprep.subr.mxu0 0.0
        %4131 = vmatpush1.msra.mxu0 %v4101
        %4132 = vmatprep.subr.mxu0 0.0
        %4133 = vmatpush1.msra.mxu0 %v4102
        %4134 = vmatprep.subr.mxu0 0.0
        %4135 = vmatpush1.msra.mxu0 %v4103
        %4136 = vmatprep.subr.mxu0 0.0
        %4137 = vmatpush1.msra.mxu0 0.0
        %4138 = vmatprep.subr.mxu0 0.0
        %4139 = vmatpush1.msra.mxu0 0.0
        %4140 = vmatprep.subr.mxu0 0.0
        %4141 = vmatpush1.msra.mxu0 0.0
        %4142 = vmatprep.subr.mxu0 0.0
        %4143 = vmatpush1.msra.mxu0 0.0
        %4144 = vmatprep.subr.mxu0 0.0
        %4145 = vmatpush1.msra.mxu0 0.0
        %4146 = vmatprep.subr.mxu0 0.0
        %4147 = vmatpush1.msra.mxu0 0.0
        %4148 = vmatprep.subr.mxu0 0.0
        %4149 = vmatpush1.msra.mxu0 0.0
        %4150 = vmatprep.subr.mxu0 0.0
        %4151 = vmatpush1.msra.mxu0 0.0
        %4152 = vmatprep.subr.mxu0 0.0
        %4153 = vmatpush1.msra.mxu0 0.0
        %4154 = vmatprep.subr.mxu0 0.0
        %4155 = vmatpush1.msra.mxu0 0.0
        %4156 = vmatprep.subr.mxu0 0.0
        %4157 = vmatpush1.msra.mxu0 0.0
        %4158 = vmatprep.subr.mxu0 0.0
        %4159 = vmatpush1.msra.mxu0 0.0
        %4160 = vmatprep.subr.mxu0 0.0
        %4161 = vmatpush1.msra.mxu0 0.0
        %4162 = vmatprep.subr.mxu0 0.0
        %4163 = vmatpush1.msra.mxu0 0.0
        %4164 = vmatprep.subr.mxu0 0.0
        %4165 = vmatpush1.msra.mxu0 0.0
        %4166 = vmatprep.subr.mxu0 0.0
        %4167 = vmatpush1.msra.mxu0 0.0
        %4168 = vmatprep.mubr.f32.mxu0 0.0
        %4169 = vmatmul.mubr.f32.gmra.mrb[0].mxu0 %v4085
        %v4170 = vpop.f32.mrb[0].mxu0
        %v4171 = vadd.f32 0.0, %v4170
        %v4172 = vpop.f32.mrb[0].mxu0
        %4173 = vmatprep.mubr.f32.mxu0 0.0
        %4174 = vmatmul.mubr.f32.gmra.mrb[0].mxu0 %v4086
        %v4175 = vpop.f32.mrb[0].mxu0
        %v4176 = vadd.f32 0.0, %v4175
        %v4177 = vpop.f32.mrb[0].mxu0
        %4178 = vdwg.mxu0
        %v4179 = vadd.f32 %v4061, %v4171
        %v4180 = vadd.f32 %v4066, %v4176
        %v4181 = vld [vmem:[#allocation33] sm:$0x1]
        %v4183 = vlaneseq
        %v4184 = vshrl.u32 %v4183, 7
        %v4185 = vsub.s32 0, %v4184
        %v4186 = vrot.slane %v4181, %v4185
        %v4188 = vadd.f32 %v4179, %v4186
        %v4189 = vadd.f32 %v4180, %v4186
        %v4190 = vmul.f32 %v4188, %v2389
        %v4191 = vmul.f32 %v4189, %v2394
        %4192 = vst [vmem:[%s2002] sm:$0xff] %v4190
        %4193 = vst [vmem:[%s2002 + $0x8] sm:$0xff] %v4191
        %v4194 = vld [vmem:[%s69] sm:$0xff]
        %v4195 = vld [vmem:[%s69 + $0x8] sm:$0xff]
        %vm4196 = vcmask 130048
        %v4198 = vsel %vm4196, %v4194, 0
        %v4201 = vsel %vm4196, %v4195, 0
        %4203 = vmatprep.subr.mxu0 0.0
        %4204 = vmatpush1.msra.mxu0 %v3430
        %4205 = vmatprep.subr.mxu0 0.0
        %4206 = vmatpush1.msra.mxu0 %v3431
        %4207 = vmatprep.subr.mxu0 0.0
        %4208 = vmatpush1.msra.mxu0 0.0
        %4209 = vmatprep.subr.mxu0 0.0
        %4210 = vmatpush1.msra.mxu0 0.0
        %4211 = vmatprep.subr.mxu0 0.0
        %4212 = vmatpush1.msra.mxu0 0.0
        %4213 = vmatprep.subr.mxu0 0.0
        %4214 = vmatpush1.msra.mxu0 0.0
        %4215 = vmatprep.subr.mxu0 0.0
        %4216 = vmatpush1.msra.mxu0 0.0
        %4217 = vmatprep.subr.mxu0 0.0
        %4218 = vmatpush1.msra.mxu0 0.0
        %4219 = vmatprep.subr.mxu0 0.0
        %4220 = vmatpush1.msra.mxu0 0.0
        %4221 = vmatprep.subr.mxu0 0.0
        %4222 = vmatpush1.msra.mxu0 0.0
        %4223 = vmatprep.subr.mxu0 0.0
        %4224 = vmatpush1.msra.mxu0 0.0
        %4225 = vmatprep.subr.mxu0 0.0
        %4226 = vmatpush1.msra.mxu0 0.0
        %4227 = vmatprep.subr.mxu0 0.0
        %4228 = vmatpush1.msra.mxu0 0.0
        %4229 = vmatprep.subr.mxu0 0.0
        %4230 = vmatpush1.msra.mxu0 0.0
        %4231 = vmatprep.subr.mxu0 0.0
        %4232 = vmatpush1.msra.mxu0 0.0
        %4233 = vmatprep.subr.mxu0 0.0
        %4234 = vmatpush1.msra.mxu0 0.0
        %4235 = vmatprep.subr.mxu0 0.0
        %4236 = vmatpush1.msra.mxu0 0.0
        %4237 = vmatprep.subr.mxu0 0.0
        %4238 = vmatpush1.msra.mxu0 0.0
        %4239 = vmatprep.subr.mxu0 0.0
        %4240 = vmatpush1.msra.mxu0 0.0
        %4241 = vmatprep.subr.mxu0 0.0
        %4242 = vmatpush1.msra.mxu0 0.0
        %4243 = vmatprep.subr.mxu0 0.0
        %4244 = vmatpush1.msra.mxu0 0.0
        %4245 = vmatprep.subr.mxu0 0.0
        %4246 = vmatpush1.msra.mxu0 0.0
        %4247 = vmatprep.subr.mxu0 0.0
        %4248 = vmatpush1.msra.mxu0 0.0
        %4249 = vmatprep.subr.mxu0 0.0
        %4250 = vmatpush1.msra.mxu0 0.0
        %4251 = vmatprep.subr.mxu0 0.0
        %4252 = vmatpush1.msra.mxu0 0.0
        %4253 = vmatprep.subr.mxu0 0.0
        %4254 = vmatpush1.msra.mxu0 0.0
        %4255 = vmatprep.subr.mxu0 0.0
        %4256 = vmatpush1.msra.mxu0 0.0
        %4257 = vmatprep.subr.mxu0 0.0
        %4258 = vmatpush1.msra.mxu0 0.0
        %4259 = vmatprep.subr.mxu0 0.0
        %4260 = vmatpush1.msra.mxu0 0.0
        %4261 = vmatprep.subr.mxu0 0.0
        %4262 = vmatpush1.msra.mxu0 0.0
        %4263 = vmatprep.subr.mxu0 0.0
        %4264 = vmatpush1.msra.mxu0 0.0
        %4265 = vmatprep.subr.mxu0 0.0
        %4266 = vmatpush1.msra.mxu0 0.0
        %4267 = vmatprep.mubr.f32.mxu0 0.0
        %4268 = vmatmul.mubr.f32.gmra.mrb[0].mxu0 %v4198
        %v4269 = vpop.f32.mrb[0].mxu0
        %v4270 = vadd.f32 0.0, %v4269
        %v4271 = vpop.f32.mrb[0].mxu0
        %4272 = vmatprep.mubr.f32.mxu0 0.0
        %4273 = vmatmul.mubr.f32.gmra.mrb[0].mxu0 %v4201
        %v4274 = vpop.f32.mrb[0].mxu0
        %v4275 = vadd.f32 0.0, %v4274
        %v4276 = vpop.f32.mrb[0].mxu0
        %4277 = vdwg.mxu0
        %v4278 = vmul.f32 %v4270, %v2354
        %v4279 = vmul.f32 %v4275, %v2359
        %4280 = vrot.lane.b32.xlu0 %v4278, 8
        %v4281 = vpop.permute.xlu0 %4280
        %4282 = vrot.lane.b32.xlu0 %v4279, 8
        %v4283 = vpop.permute.xlu0 %4282
        %4284 = vrot.lane.b32.xlu0 %v4278, 120
        %v4285 = vpop.permute.xlu0 %4284
        %4286 = vrot.lane.b32.xlu0 %v4279, 120
        %v4287 = vpop.permute.xlu0 %4286
        %v4288 = vld [vmem:[#allocation35] sm:$0xff]
        %v4289 = vld [vmem:[#allocation35 + $0x8] sm:$0xff]
        %v4290 = vmul.f32 %v4278, %v4288
        %v4291 = vmul.f32 %v4279, %v4289
        %v4292 = vld [vmem:[#allocation36] sm:$0xff]
        %v4293 = vld [vmem:[#allocation36 + $0x8] sm:$0xff]
        %v4294 = vmul.f32 %v4281, %v4292
        %v4295 = vmul.f32 %v4283, %v4293
        %v4296 = vadd.f32 %v4290, %v4294
        %v4297 = vadd.f32 %v4291, %v4295
        %v4298 = vld [vmem:[#allocation38] sm:$0xff]
        %v4299 = vld [vmem:[#allocation38 + $0x8] sm:$0xff]
        %v4300 = vmul.f32 %v4285, %v4298
        %v4301 = vmul.f32 %v4287, %v4299
        %v4302 = vadd.f32 %v4296, %v4300
        %v4303 = vadd.f32 %v4297, %v4301
        %v4304 = vrot.slane %v4302, 6
        %v4305 = vrot.slane %v4303, 6
        %v4306 = vsel %vm2402, %v4304, %v4305
        %v4307 = vsel %vm2402, %v4305, %v4304
        %v4308 = vld [vmem:[%s41] sm:$0xff]
        %v4309 = vld [vmem:[%s41 + $0x8] sm:$0xff]
        %4311 = vset.pattern.permute.xlu0 0
        %4312 = vperm.xlu0 %4311, %v4308
        %v4313 = vpop.permute.xlu0 %4312
        %4316 = vset.pattern.permute.xlu0 0
        %4317 = vperm.xlu0 %4316, %v4309
        %v4318 = vpop.permute.xlu0 %4317
        %v4320 = vmul.f32 %v4307, %v4313
        %v4321 = vmul.f32 %v4306, %v4318
        %v4322 = vld [vmem:[%s77] sm:$0xff]
        %v4323 = vld [vmem:[%s77 + $0x8] sm:$0xff]
        %v4324 = vld [vmem:[%s77 + $0x10] sm:$0xff]
        %v4325 = vld [vmem:[%s77 + $0x18] sm:$0xff]
        %v4326 = vld [vmem:[%s77 + $0x20] sm:$0xff]
        %v4327 = vld [vmem:[%s77 + $0x28] sm:$0xff]
        %v4328 = vld [vmem:[%s77 + $0x30] sm:$0xff]
        %v4329 = vld [vmem:[%s77 + $0x38] sm:$0xff]
        %v4330 = vld [vmem:[%s77 + $0x40] sm:$0xff]
        %v4331 = vld [vmem:[%s77 + $0x48] sm:$0xff]
        %v4332 = vld [vmem:[%s77 + $0x50] sm:$0xff]
        %v4333 = vld [vmem:[%s77 + $0x58] sm:$0xff]
        %v4334 = vld [vmem:[%s77 + $0x60] sm:$0xff]
        %v4335 = vld [vmem:[%s77 + $0x68] sm:$0xff]
        %v4336 = vld [vmem:[%s77 + $0x70] sm:$0xff]
        %v4337 = vld [vmem:[%s77 + $0x78] sm:$0xff]
        %v4338 = vrot.slane %v4302, 7
        %v4339 = vrot.slane %v4303, 7
        %vm4340 = vcmp.lt.s32.totalorder %v2401, 1
        %v4341 = vsel %vm4340, %v4338, %v4339
        %v4342 = vsel %vm4340, %v4339, %v4338
        %s4343 = scalar_lea.vmem %s41, 16
        %v4344 = vld [vmem:[%s4343] sm:$0xff]
        %v4345 = vld [vmem:[%s4343 + $0x8] sm:$0xff]
        %4347 = vset.pattern.permute.xlu0 0
        %4348 = vperm.xlu0 %4347, %v4344
        %v4349 = vpop.permute.xlu0 %4348
        %4352 = vset.pattern.permute.xlu0 0
        %4353 = vperm.xlu0 %4352, %v4345
        %v4354 = vpop.permute.xlu0 %4353
        %v4356 = vmul.f32 %v4342, %v4349
        %v4357 = vmul.f32 %v4341, %v4354
        %s4358 = scalar_lea.vmem %s77, 128
        %v4359 = vld [vmem:[%s4358] sm:$0xff]
        %v4360 = vld [vmem:[%s4358 + $0x8] sm:$0xff]
        %v4361 = vld [vmem:[%s4358 + $0x10] sm:$0xff]
        %v4362 = vld [vmem:[%s4358 + $0x18] sm:$0xff]
        %v4363 = vld [vmem:[%s4358 + $0x20] sm:$0xff]
        %v4364 = vld [vmem:[%s4358 + $0x28] sm:$0xff]
        %v4365 = vld [vmem:[%s4358 + $0x30] sm:$0xff]
        %v4366 = vld [vmem:[%s4358 + $0x38] sm:$0xff]
        %v4367 = vld [vmem:[%s4358 + $0x40] sm:$0xff]
        %v4368 = vld [vmem:[%s4358 + $0x48] sm:$0xff]
        %v4369 = vld [vmem:[%s4358 + $0x50] sm:$0xff]
        %v4370 = vld [vmem:[%s4358 + $0x58] sm:$0xff]
        %v4371 = vld [vmem:[%s4358 + $0x60] sm:$0xff]
        %v4372 = vld [vmem:[%s4358 + $0x68] sm:$0xff]
        %v4373 = vld [vmem:[%s4358 + $0x70] sm:$0xff]
        %v4374 = vld [vmem:[%s4358 + $0x78] sm:$0xff]
        %4375 = vmatprep.subr.mxu0 0.0
        %4376 = vmatpush1.msra.mxu0 %v4359
        %4377 = vmatprep.subr.mxu0 0.0
        %4378 = vmatpush1.msra.mxu0 %v4360
        %4379 = vmatprep.subr.mxu0 0.0
        %4380 = vmatpush1.msra.mxu0 %v4361
        %4381 = vmatprep.subr.mxu0 0.0
        %4382 = vmatpush1.msra.mxu0 %v4362
        %4383 = vmatprep.subr.mxu0 0.0
        %4384 = vmatpush1.msra.mxu0 %v4363
        %4385 = vmatprep.subr.mxu0 0.0
        %4386 = vmatpush1.msra.mxu0 %v4364
        %4387 = vmatprep.subr.mxu0 0.0
        %4388 = vmatpush1.msra.mxu0 %v4365
        %4389 = vmatprep.subr.mxu0 0.0
        %4390 = vmatpush1.msra.mxu0 %v4366
        %4391 = vmatprep.subr.mxu0 0.0
        %4392 = vmatpush1.msra.mxu0 %v4367
        %4393 = vmatprep.subr.mxu0 0.0
        %4394 = vmatpush1.msra.mxu0 %v4368
        %4395 = vmatprep.subr.mxu0 0.0
        %4396 = vmatpush1.msra.mxu0 %v4369
        %4397 = vmatprep.subr.mxu0 0.0
        %4398 = vmatpush1.msra.mxu0 %v4370
        %4399 = vmatprep.subr.mxu0 0.0
        %4400 = vmatpush1.msra.mxu0 %v4371
        %4401 = vmatprep.subr.mxu0 0.0
        %4402 = vmatpush1.msra.mxu0 %v4372
        %4403 = vmatprep.subr.mxu0 0.0
        %4404 = vmatpush1.msra.mxu0 %v4373
        %4405 = vmatprep.subr.mxu0 0.0
        %4406 = vmatpush1.msra.mxu0 %v4374
        %4407 = vmatprep.subr.mxu0 0.0
        %4408 = vmatpush1.msra.mxu0 0.0
        %4409 = vmatprep.subr.mxu0 0.0
        %4410 = vmatpush1.msra.mxu0 0.0
        %4411 = vmatprep.subr.mxu0 0.0
        %4412 = vmatpush1.msra.mxu0 0.0
        %4413 = vmatprep.subr.mxu0 0.0
        %4414 = vmatpush1.msra.mxu0 0.0
        %4415 = vmatprep.subr.mxu0 0.0
        %4416 = vmatpush1.msra.mxu0 0.0
        %4417 = vmatprep.subr.mxu0 0.0
        %4418 = vmatpush1.msra.mxu0 0.0
        %4419 = vmatprep.subr.mxu0 0.0
        %4420 = vmatpush1.msra.mxu0 0.0
        %4421 = vmatprep.subr.mxu0 0.0
        %4422 = vmatpush1.msra.mxu0 0.0
        %4423 = vmatprep.subr.mxu0 0.0
        %4424 = vmatpush1.msra.mxu0 0.0
        %4425 = vmatprep.subr.mxu0 0.0
        %4426 = vmatpush1.msra.mxu0 0.0
        %4427 = vmatprep.subr.mxu0 0.0
        %4428 = vmatpush1.msra.mxu0 0.0
        %4429 = vmatprep.subr.mxu0 0.0
        %4430 = vmatpush1.msra.mxu0 0.0
        %4431 = vmatprep.subr.mxu0 0.0
        %4432 = vmatpush1.msra.mxu0 0.0
        %4433 = vmatprep.subr.mxu0 0.0
        %4434 = vmatpush1.msra.mxu0 0.0
        %4435 = vmatprep.subr.mxu0 0.0
        %4436 = vmatpush1.msra.mxu0 0.0
        %4437 = vmatprep.subr.mxu0 0.0
        %4438 = vmatpush1.msra.mxu0 0.0
        %4439 = vmatprep.mubr.f32.mxu0 0.0
        %4440 = vmatmul.mubr.f32.gmra.mrb[0].mxu0 %v4356
        %v4441 = vpop.f32.mrb[0].mxu0
        %v4442 = vadd.f32 0.0, %v4441
        %v4443 = vpop.f32.mrb[0].mxu0
        %4444 = vmatprep.mubr.f32.mxu0 0.0
        %4445 = vmatmul.mubr.f32.gmra.mrb[0].mxu0 %v4357
        %v4446 = vpop.f32.mrb[0].mxu0
        %v4447 = vadd.f32 0.0, %v4446
        %v4448 = vpop.f32.mrb[0].mxu0
        %4449 = vdwg.mxu0
        %4450 = vmatprep.subr.mxu0 0.0
        %4451 = vmatpush1.msra.mxu0 %v4322
        %4452 = vmatprep.subr.mxu0 0.0
        %4453 = vmatpush1.msra.mxu0 %v4323
        %4454 = vmatprep.subr.mxu0 0.0
        %4455 = vmatpush1.msra.mxu0 %v4324
        %4456 = vmatprep.subr.mxu0 0.0
        %4457 = vmatpush1.msra.mxu0 %v4325
        %4458 = vmatprep.subr.mxu0 0.0
        %4459 = vmatpush1.msra.mxu0 %v4326
        %4460 = vmatprep.subr.mxu0 0.0
        %4461 = vmatpush1.msra.mxu0 %v4327
        %4462 = vmatprep.subr.mxu0 0.0
        %4463 = vmatpush1.msra.mxu0 %v4328
        %4464 = vmatprep.subr.mxu0 0.0
        %4465 = vmatpush1.msra.mxu0 %v4329
        %4466 = vmatprep.subr.mxu0 0.0
        %4467 = vmatpush1.msra.mxu0 %v4330
        %4468 = vmatprep.subr.mxu0 0.0
        %4469 = vmatpush1.msra.mxu0 %v4331
        %4470 = vmatprep.subr.mxu0 0.0
        %4471 = vmatpush1.msra.mxu0 %v4332
        %4472 = vmatprep.subr.mxu0 0.0
        %4473 = vmatpush1.msra.mxu0 %v4333
        %4474 = vmatprep.subr.mxu0 0.0
        %4475 = vmatpush1.msra.mxu0 %v4334
        %4476 = vmatprep.subr.mxu0 0.0
        %4477 = vmatpush1.msra.mxu0 %v4335
        %4478 = vmatprep.subr.mxu0 0.0
        %4479 = vmatpush1.msra.mxu0 %v4336
        %4480 = vmatprep.subr.mxu0 0.0
        %4481 = vmatpush1.msra.mxu0 %v4337
        %4482 = vmatprep.subr.mxu0 0.0
        %4483 = vmatpush1.msra.mxu0 0.0
        %4484 = vmatprep.subr.mxu0 0.0
        %4485 = vmatpush1.msra.mxu0 0.0
        %4486 = vmatprep.subr.mxu0 0.0
        %4487 = vmatpush1.msra.mxu0 0.0
        %4488 = vmatprep.subr.mxu0 0.0
        %4489 = vmatpush1.msra.mxu0 0.0
        %4490 = vmatprep.subr.mxu0 0.0
        %4491 = vmatpush1.msra.mxu0 0.0
        %4492 = vmatprep.subr.mxu0 0.0
        %4493 = vmatpush1.msra.mxu0 0.0
        %4494 = vmatprep.subr.mxu0 0.0
        %4495 = vmatpush1.msra.mxu0 0.0
        %4496 = vmatprep.subr.mxu0 0.0
        %4497 = vmatpush1.msra.mxu0 0.0
        %4498 = vmatprep.subr.mxu0 0.0
        %4499 = vmatpush1.msra.mxu0 0.0
        %4500 = vmatprep.subr.mxu0 0.0
        %4501 = vmatpush1.msra.mxu0 0.0
        %4502 = vmatprep.subr.mxu0 0.0
        %4503 = vmatpush1.msra.mxu0 0.0
        %4504 = vmatprep.subr.mxu0 0.0
        %4505 = vmatpush1.msra.mxu0 0.0
        %4506 = vmatprep.subr.mxu0 0.0
        %4507 = vmatpush1.msra.mxu0 0.0
        %4508 = vmatprep.subr.mxu0 0.0
        %4509 = vmatpush1.msra.mxu0 0.0
        %4510 = vmatprep.subr.mxu0 0.0
        %4511 = vmatpush1.msra.mxu0 0.0
        %4512 = vmatprep.subr.mxu0 0.0
        %4513 = vmatpush1.msra.mxu0 0.0
        %4514 = vmatprep.mubr.f32.mxu0 0.0
        %4515 = vmatmul.mubr.f32.gmra.mrb[0].mxu0 %v4320
        %v4516 = vpop.f32.mrb[0].mxu0
        %v4517 = vadd.f32 %v4442, %v4516
        %v4518 = vpop.f32.mrb[0].mxu0
        %4519 = vmatprep.mubr.f32.mxu0 0.0
        %4520 = vmatmul.mubr.f32.gmra.mrb[0].mxu0 %v4321
        %v4521 = vpop.f32.mrb[0].mxu0
        %v4522 = vadd.f32 %v4447, %v4521
        %v4523 = vpop.f32.mrb[0].mxu0
        %4524 = vdwg.mxu0
        %s4525 = scalar_lea.vmem %s77, 256
        %v4526 = vld [vmem:[%s4525] sm:$0xff]
        %v4527 = vld [vmem:[%s4525 + $0x8] sm:$0xff]
        %v4528 = vld [vmem:[%s4525 + $0x10] sm:$0xff]
        %v4529 = vld [vmem:[%s4525 + $0x18] sm:$0xff]
        %v4530 = vld [vmem:[%s4525 + $0x20] sm:$0xff]
        %v4531 = vld [vmem:[%s4525 + $0x28] sm:$0xff]
        %v4532 = vld [vmem:[%s4525 + $0x30] sm:$0xff]
        %v4533 = vld [vmem:[%s4525 + $0x38] sm:$0xff]
        %v4534 = vld [vmem:[%s4525 + $0x40] sm:$0xff]
        %v4535 = vld [vmem:[%s4525 + $0x48] sm:$0xff]
        %v4536 = vld [vmem:[%s4525 + $0x50] sm:$0xff]
        %v4537 = vld [vmem:[%s4525 + $0x58] sm:$0xff]
        %v4538 = vld [vmem:[%s4525 + $0x60] sm:$0xff]
        %v4539 = vld [vmem:[%s4525 + $0x68] sm:$0xff]
        %v4540 = vld [vmem:[%s4525 + $0x70] sm:$0xff]
        %v4541 = vld [vmem:[%s4525 + $0x78] sm:$0xff]
        %4542 = vmatprep.subr.mxu0 0.0
        %4543 = vmatpush1.msra.mxu0 %v4526
        %4544 = vmatprep.subr.mxu0 0.0
        %4545 = vmatpush1.msra.mxu0 %v4527
        %4546 = vmatprep.subr.mxu0 0.0
        %4547 = vmatpush1.msra.mxu0 %v4528
        %4548 = vmatprep.subr.mxu0 0.0
        %4549 = vmatpush1.msra.mxu0 %v4529
        %4550 = vmatprep.subr.mxu0 0.0
        %4551 = vmatpush1.msra.mxu0 %v4530
        %4552 = vmatprep.subr.mxu0 0.0
        %4553 = vmatpush1.msra.mxu0 %v4531
        %4554 = vmatprep.subr.mxu0 0.0
        %4555 = vmatpush1.msra.mxu0 %v4532
        %4556 = vmatprep.subr.mxu0 0.0
        %4557 = vmatpush1.msra.mxu0 %v4533
        %4558 = vmatprep.subr.mxu0 0.0
        %4559 = vmatpush1.msra.mxu0 %v4534
        %4560 = vmatprep.subr.mxu0 0.0
        %4561 = vmatpush1.msra.mxu0 %v4535
        %4562 = vmatprep.subr.mxu0 0.0
        %4563 = vmatpush1.msra.mxu0 %v4536
        %4564 = vmatprep.subr.mxu0 0.0
        %4565 = vmatpush1.msra.mxu0 %v4537
        %4566 = vmatprep.subr.mxu0 0.0
        %4567 = vmatpush1.msra.mxu0 %v4538
        %4568 = vmatprep.subr.mxu0 0.0
        %4569 = vmatpush1.msra.mxu0 %v4539
        %4570 = vmatprep.subr.mxu0 0.0
        %4571 = vmatpush1.msra.mxu0 %v4540
        %4572 = vmatprep.subr.mxu0 0.0
        %4573 = vmatpush1.msra.mxu0 %v4541
        %4574 = vmatprep.subr.mxu0 0.0
        %4575 = vmatpush1.msra.mxu0 0.0
        %4576 = vmatprep.subr.mxu0 0.0
        %4577 = vmatpush1.msra.mxu0 0.0
        %4578 = vmatprep.subr.mxu0 0.0
        %4579 = vmatpush1.msra.mxu0 0.0
        %4580 = vmatprep.subr.mxu0 0.0
        %4581 = vmatpush1.msra.mxu0 0.0
        %4582 = vmatprep.subr.mxu0 0.0
        %4583 = vmatpush1.msra.mxu0 0.0
        %4584 = vmatprep.subr.mxu0 0.0
        %4585 = vmatpush1.msra.mxu0 0.0
        %4586 = vmatprep.subr.mxu0 0.0
        %4587 = vmatpush1.msra.mxu0 0.0
        %4588 = vmatprep.subr.mxu0 0.0
        %4589 = vmatpush1.msra.mxu0 0.0
        %4590 = vmatprep.subr.mxu0 0.0
        %4591 = vmatpush1.msra.mxu0 0.0
        %4592 = vmatprep.subr.mxu0 0.0
        %4593 = vmatpush1.msra.mxu0 0.0
        %4594 = vmatprep.subr.mxu0 0.0
        %4595 = vmatpush1.msra.mxu0 0.0
        %4596 = vmatprep.subr.mxu0 0.0
        %4597 = vmatpush1.msra.mxu0 0.0
        %4598 = vmatprep.subr.mxu0 0.0
        %4599 = vmatpush1.msra.mxu0 0.0
        %4600 = vmatprep.subr.mxu0 0.0
        %4601 = vmatpush1.msra.mxu0 0.0
        %4602 = vmatprep.subr.mxu0 0.0
        %4603 = vmatpush1.msra.mxu0 0.0
        %4604 = vmatprep.subr.mxu0 0.0
        %4605 = vmatpush1.msra.mxu0 0.0
        %4606 = vmatprep.mubr.f32.mxu0 0.0
        %4607 = vmatmul.mubr.f32.gmra.mrb[0].mxu0 %v4302
        %v4608 = vpop.f32.mrb[0].mxu0
        %v4609 = vadd.f32 0.0, %v4608
        %v4610 = vpop.f32.mrb[0].mxu0
        %4611 = vmatprep.mubr.f32.mxu0 0.0
        %4612 = vmatmul.mubr.f32.gmra.mrb[0].mxu0 %v4303
        %v4613 = vpop.f32.mrb[0].mxu0
        %v4614 = vadd.f32 0.0, %v4613
        %v4615 = vpop.f32.mrb[0].mxu0
        %4616 = vdwg.mxu0
        %v4617 = vadd.f32 %v4517, %v4609
        %v4618 = vadd.f32 %v4522, %v4614
        %v4619 = vrot.slane %v4302, 1
        %v4620 = vrot.slane %v4303, 1
        %vm4621 = vcmp.lt.s32.totalorder %v2401, 7
        %v4622 = vsel %vm4621, %v4619, %v4620
        %v4623 = vsel %vm4621, %v4620, %v4619
        %s4624 = scalar_lea.vmem %s41, 48
        %v4625 = vld [vmem:[%s4624] sm:$0xff]
        %v4626 = vld [vmem:[%s4624 + $0x8] sm:$0xff]
        %4628 = vset.pattern.permute.xlu0 0
        %4629 = vperm.xlu0 %4628, %v4625
        %v4630 = vpop.permute.xlu0 %4629
        %4633 = vset.pattern.permute.xlu0 0
        %4634 = vperm.xlu0 %4633, %v4626
        %v4635 = vpop.permute.xlu0 %4634
        %v4637 = vmul.f32 %v4622, %v4630
        %v4638 = vmul.f32 %v4623, %v4635
        %s4639 = scalar_lea.vmem %s77, 384
        %v4640 = vld [vmem:[%s4639] sm:$0xff]
        %v4641 = vld [vmem:[%s4639 + $0x8] sm:$0xff]
        %v4642 = vld [vmem:[%s4639 + $0x10] sm:$0xff]
        %v4643 = vld [vmem:[%s4639 + $0x18] sm:$0xff]
        %v4644 = vld [vmem:[%s4639 + $0x20] sm:$0xff]
        %v4645 = vld [vmem:[%s4639 + $0x28] sm:$0xff]
        %v4646 = vld [vmem:[%s4639 + $0x30] sm:$0xff]
        %v4647 = vld [vmem:[%s4639 + $0x38] sm:$0xff]
        %v4648 = vld [vmem:[%s4639 + $0x40] sm:$0xff]
        %v4649 = vld [vmem:[%s4639 + $0x48] sm:$0xff]
        %v4650 = vld [vmem:[%s4639 + $0x50] sm:$0xff]
        %v4651 = vld [vmem:[%s4639 + $0x58] sm:$0xff]
        %v4652 = vld [vmem:[%s4639 + $0x60] sm:$0xff]
        %v4653 = vld [vmem:[%s4639 + $0x68] sm:$0xff]
        %v4654 = vld [vmem:[%s4639 + $0x70] sm:$0xff]
        %v4655 = vld [vmem:[%s4639 + $0x78] sm:$0xff]
        %4656 = vmatprep.subr.mxu0 0.0
        %4657 = vmatpush1.msra.mxu0 %v4640
        %4658 = vmatprep.subr.mxu0 0.0
        %4659 = vmatpush1.msra.mxu0 %v4641
        %4660 = vmatprep.subr.mxu0 0.0
        %4661 = vmatpush1.msra.mxu0 %v4642
        %4662 = vmatprep.subr.mxu0 0.0
        %4663 = vmatpush1.msra.mxu0 %v4643
        %4664 = vmatprep.subr.mxu0 0.0
        %4665 = vmatpush1.msra.mxu0 %v4644
        %4666 = vmatprep.subr.mxu0 0.0
        %4667 = vmatpush1.msra.mxu0 %v4645
        %4668 = vmatprep.subr.mxu0 0.0
        %4669 = vmatpush1.msra.mxu0 %v4646
        %4670 = vmatprep.subr.mxu0 0.0
        %4671 = vmatpush1.msra.mxu0 %v4647
        %4672 = vmatprep.subr.mxu0 0.0
        %4673 = vmatpush1.msra.mxu0 %v4648
        %4674 = vmatprep.subr.mxu0 0.0
        %4675 = vmatpush1.msra.mxu0 %v4649
        %4676 = vmatprep.subr.mxu0 0.0
        %4677 = vmatpush1.msra.mxu0 %v4650
        %4678 = vmatprep.subr.mxu0 0.0
        %4679 = vmatpush1.msra.mxu0 %v4651
        %4680 = vmatprep.subr.mxu0 0.0
        %4681 = vmatpush1.msra.mxu0 %v4652
        %4682 = vmatprep.subr.mxu0 0.0
        %4683 = vmatpush1.msra.mxu0 %v4653
        %4684 = vmatprep.subr.mxu0 0.0
        %4685 = vmatpush1.msra.mxu0 %v4654
        %4686 = vmatprep.subr.mxu0 0.0
        %4687 = vmatpush1.msra.mxu0 %v4655
        %4688 = vmatprep.subr.mxu0 0.0
        %4689 = vmatpush1.msra.mxu0 0.0
        %4690 = vmatprep.subr.mxu0 0.0
        %4691 = vmatpush1.msra.mxu0 0.0
        %4692 = vmatprep.subr.mxu0 0.0
        %4693 = vmatpush1.msra.mxu0 0.0
        %4694 = vmatprep.subr.mxu0 0.0
        %4695 = vmatpush1.msra.mxu0 0.0
        %4696 = vmatprep.subr.mxu0 0.0
        %4697 = vmatpush1.msra.mxu0 0.0
        %4698 = vmatprep.subr.mxu0 0.0
        %4699 = vmatpush1.msra.mxu0 0.0
        %4700 = vmatprep.subr.mxu0 0.0
        %4701 = vmatpush1.msra.mxu0 0.0
        %4702 = vmatprep.subr.mxu0 0.0
        %4703 = vmatpush1.msra.mxu0 0.0
        %4704 = vmatprep.subr.mxu0 0.0
        %4705 = vmatpush1.msra.mxu0 0.0
        %4706 = vmatprep.subr.mxu0 0.0
        %4707 = vmatpush1.msra.mxu0 0.0
        %4708 = vmatprep.subr.mxu0 0.0
        %4709 = vmatpush1.msra.mxu0 0.0
        %4710 = vmatprep.subr.mxu0 0.0
        %4711 = vmatpush1.msra.mxu0 0.0
        %4712 = vmatprep.subr.mxu0 0.0
        %4713 = vmatpush1.msra.mxu0 0.0
        %4714 = vmatprep.subr.mxu0 0.0
        %4715 = vmatpush1.msra.mxu0 0.0
        %4716 = vmatprep.subr.mxu0 0.0
        %4717 = vmatpush1.msra.mxu0 0.0
        %4718 = vmatprep.subr.mxu0 0.0
        %4719 = vmatpush1.msra.mxu0 0.0
        %4720 = vmatprep.mubr.f32.mxu0 0.0
        %4721 = vmatmul.mubr.f32.gmra.mrb[0].mxu0 %v4637
        %v4722 = vpop.f32.mrb[0].mxu0
        %v4723 = vadd.f32 0.0, %v4722
        %v4724 = vpop.f32.mrb[0].mxu0
        %4725 = vmatprep.mubr.f32.mxu0 0.0
        %4726 = vmatmul.mubr.f32.gmra.mrb[0].mxu0 %v4638
        %v4727 = vpop.f32.mrb[0].mxu0
        %v4728 = vadd.f32 0.0, %v4727
        %v4729 = vpop.f32.mrb[0].mxu0
        %4730 = vdwg.mxu0
        %v4731 = vadd.f32 %v4617, %v4723
        %v4732 = vadd.f32 %v4618, %v4728
        %v4733 = vrot.slane %v4302, 2
        %v4734 = vrot.slane %v4303, 2
        %v4735 = vsel %vm2604, %v4733, %v4734
        %v4736 = vsel %vm2604, %v4734, %v4733
        %s4737 = scalar_lea.vmem %s41, 64
        %v4738 = vld [vmem:[%s4737] sm:$0xff]
        %v4739 = vld [vmem:[%s4737 + $0x8] sm:$0xff]
        %4741 = vset.pattern.permute.xlu0 0
        %4742 = vperm.xlu0 %4741, %v4738
        %v4743 = vpop.permute.xlu0 %4742
        %4746 = vset.pattern.permute.xlu0 0
        %4747 = vperm.xlu0 %4746, %v4739
        %v4748 = vpop.permute.xlu0 %4747
        %v4750 = vmul.f32 %v4735, %v4743
        %v4751 = vmul.f32 %v4736, %v4748
        %s4752 = scalar_lea.vmem %s77, 512
        %v4753 = vld [vmem:[%s4752] sm:$0xff]
        %v4754 = vld [vmem:[%s4752 + $0x8] sm:$0xff]
        %v4755 = vld [vmem:[%s4752 + $0x10] sm:$0xff]
        %v4756 = vld [vmem:[%s4752 + $0x18] sm:$0xff]
        %v4757 = vld [vmem:[%s4752 + $0x20] sm:$0xff]
        %v4758 = vld [vmem:[%s4752 + $0x28] sm:$0xff]
        %v4759 = vld [vmem:[%s4752 + $0x30] sm:$0xff]
        %v4760 = vld [vmem:[%s4752 + $0x38] sm:$0xff]
        %v4761 = vld [vmem:[%s4752 + $0x40] sm:$0xff]
        %v4762 = vld [vmem:[%s4752 + $0x48] sm:$0xff]
        %v4763 = vld [vmem:[%s4752 + $0x50] sm:$0xff]
        %v4764 = vld [vmem:[%s4752 + $0x58] sm:$0xff]
        %v4765 = vld [vmem:[%s4752 + $0x60] sm:$0xff]
        %v4766 = vld [vmem:[%s4752 + $0x68] sm:$0xff]
        %v4767 = vld [vmem:[%s4752 + $0x70] sm:$0xff]
        %v4768 = vld [vmem:[%s4752 + $0x78] sm:$0xff]
        %4769 = vmatprep.subr.mxu0 0.0
        %4770 = vmatpush1.msra.mxu0 %v4753
        %4771 = vmatprep.subr.mxu0 0.0
        %4772 = vmatpush1.msra.mxu0 %v4754
        %4773 = vmatprep.subr.mxu0 0.0
        %4774 = vmatpush1.msra.mxu0 %v4755
        %4775 = vmatprep.subr.mxu0 0.0
        %4776 = vmatpush1.msra.mxu0 %v4756
        %4777 = vmatprep.subr.mxu0 0.0
        %4778 = vmatpush1.msra.mxu0 %v4757
        %4779 = vmatprep.subr.mxu0 0.0
        %4780 = vmatpush1.msra.mxu0 %v4758
        %4781 = vmatprep.subr.mxu0 0.0
        %4782 = vmatpush1.msra.mxu0 %v4759
        %4783 = vmatprep.subr.mxu0 0.0
        %4784 = vmatpush1.msra.mxu0 %v4760
        %4785 = vmatprep.subr.mxu0 0.0
        %4786 = vmatpush1.msra.mxu0 %v4761
        %4787 = vmatprep.subr.mxu0 0.0
        %4788 = vmatpush1.msra.mxu0 %v4762
        %4789 = vmatprep.subr.mxu0 0.0
        %4790 = vmatpush1.msra.mxu0 %v4763
        %4791 = vmatprep.subr.mxu0 0.0
        %4792 = vmatpush1.msra.mxu0 %v4764
        %4793 = vmatprep.subr.mxu0 0.0
        %4794 = vmatpush1.msra.mxu0 %v4765
        %4795 = vmatprep.subr.mxu0 0.0
        %4796 = vmatpush1.msra.mxu0 %v4766
        %4797 = vmatprep.subr.mxu0 0.0
        %4798 = vmatpush1.msra.mxu0 %v4767
        %4799 = vmatprep.subr.mxu0 0.0
        %4800 = vmatpush1.msra.mxu0 %v4768
        %4801 = vmatprep.subr.mxu0 0.0
        %4802 = vmatpush1.msra.mxu0 0.0
        %4803 = vmatprep.subr.mxu0 0.0
        %4804 = vmatpush1.msra.mxu0 0.0
        %4805 = vmatprep.subr.mxu0 0.0
        %4806 = vmatpush1.msra.mxu0 0.0
        %4807 = vmatprep.subr.mxu0 0.0
        %4808 = vmatpush1.msra.mxu0 0.0
        %4809 = vmatprep.subr.mxu0 0.0
        %4810 = vmatpush1.msra.mxu0 0.0
        %4811 = vmatprep.subr.mxu0 0.0
        %4812 = vmatpush1.msra.mxu0 0.0
        %4813 = vmatprep.subr.mxu0 0.0
        %4814 = vmatpush1.msra.mxu0 0.0
        %4815 = vmatprep.subr.mxu0 0.0
        %4816 = vmatpush1.msra.mxu0 0.0
        %4817 = vmatprep.subr.mxu0 0.0
        %4818 = vmatpush1.msra.mxu0 0.0
        %4819 = vmatprep.subr.mxu0 0.0
        %4820 = vmatpush1.msra.mxu0 0.0
        %4821 = vmatprep.subr.mxu0 0.0
        %4822 = vmatpush1.msra.mxu0 0.0
        %4823 = vmatprep.subr.mxu0 0.0
        %4824 = vmatpush1.msra.mxu0 0.0
        %4825 = vmatprep.subr.mxu0 0.0
        %4826 = vmatpush1.msra.mxu0 0.0
        %4827 = vmatprep.subr.mxu0 0.0
        %4828 = vmatpush1.msra.mxu0 0.0
        %4829 = vmatprep.subr.mxu0 0.0
        %4830 = vmatpush1.msra.mxu0 0.0
        %4831 = vmatprep.subr.mxu0 0.0
        %4832 = vmatpush1.msra.mxu0 0.0
        %4833 = vmatprep.mubr.f32.mxu0 0.0
        %4834 = vmatmul.mubr.f32.gmra.mrb[0].mxu0 %v4750
        %v4835 = vpop.f32.mrb[0].mxu0
        %v4836 = vadd.f32 0.0, %v4835
        %v4837 = vpop.f32.mrb[0].mxu0
        %4838 = vmatprep.mubr.f32.mxu0 0.0
        %4839 = vmatmul.mubr.f32.gmra.mrb[0].mxu0 %v4751
        %v4840 = vpop.f32.mrb[0].mxu0
        %v4841 = vadd.f32 0.0, %v4840
        %v4842 = vpop.f32.mrb[0].mxu0
        %4843 = vdwg.mxu0
        %v4844 = vadd.f32 %v4731, %v4836
        %v4845 = vadd.f32 %v4732, %v4841
        %v4846 = vld [vmem:[#allocation39] sm:$0x1]
        %v4848 = vlaneseq
        %v4849 = vshrl.u32 %v4848, 7
        %v4850 = vsub.s32 0, %v4849
        %v4851 = vrot.slane %v4846, %v4850
        %v4853 = vadd.f32 %v4844, %v4851
        %v4854 = vadd.f32 %v4845, %v4851
        %v4855 = vmul.f32 %v4853, %v2354
        %v4856 = vmul.f32 %v4854, %v2359
        %v4857 = vld [vmem:[%s1992] sm:$0xff]
        %v4858 = vld [vmem:[%s1992 + $0x8] sm:$0xff]
        %v4859 = vld [vmem:[%s1997] sm:$0xff]
        %v4860 = vld [vmem:[%s1997 + $0x8] sm:$0xff]
        %s4861 = smul.f32 %s2010, 0.9999
        %s4862 = ssub.f32 1.0, %s4861
        %v4863 = vstv %s4862
        %v4864 = vmul.f32 %v4863, %v4859
        %v4865 = vmul.f32 %v4863, %v4860
        %v4866 = vstv %s2010
        %v4867 = vmul.f32 %v4866, %v4857
        %v4868 = vmul.f32 %v4866, %v4858
        %v4869 = vadd.f32 %v4864, %v4867
        %v4870 = vadd.f32 %v4865, %v4868
        %v4871 = vmul.f32 %v4859, 0.9999
        %v4872 = vmul.f32 %v4860, 0.9999
        %v4873 = vsub.f32 %v4857, %v4871
        %v4874 = vsub.f32 %v4858, %v4872
        %v4875 = vld [vmem:[#allocation41] sm:$0xff]
        %v4876 = vld [vmem:[#allocation41 + $0x8] sm:$0xff]
        %v4877 = vld [vmem:[#allocation41 + $0x10] sm:$0xff]
        %v4878 = vld [vmem:[#allocation41 + $0x18] sm:$0xff]
        %v4879 = vld [vmem:[#allocation41 + $0x20] sm:$0xff]
        %v4880 = vld [vmem:[#allocation41 + $0x28] sm:$0xff]
        %v4881 = vld [vmem:[#allocation41 + $0x30] sm:$0xff]
        %v4882 = vld [vmem:[#allocation41 + $0x38] sm:$0xff]
        %v4883 = vld [vmem:[#allocation41 + $0x40] sm:$0xff]
        %v4884 = vld [vmem:[#allocation41 + $0x48] sm:$0xff]
        %v4885 = vld [vmem:[#allocation41 + $0x50] sm:$0xff]
        %v4886 = vld [vmem:[#allocation41 + $0x58] sm:$0xff]
        %v4887 = vld [vmem:[#allocation41 + $0x60] sm:$0xff]
        %v4888 = vld [vmem:[#allocation41 + $0x68] sm:$0xff]
        %v4889 = vld [vmem:[#allocation41 + $0x70] sm:$0xff]
        %v4890 = vld [vmem:[#allocation41 + $0x78] sm:$0xff]
        %v4891 = vld [vmem:[#allocation42] sm:$0xff]
        %v4892 = vld [vmem:[#allocation42 + $0x8] sm:$0xff]
        %v4893 = vld [vmem:[#allocation42 + $0x10] sm:$0xff]
        %v4894 = vld [vmem:[#allocation42 + $0x18] sm:$0xff]
        %v4895 = vld [vmem:[#allocation42 + $0x20] sm:$0xff]
        %v4896 = vld [vmem:[#allocation42 + $0x28] sm:$0xff]
        %v4897 = vld [vmem:[#allocation42 + $0x30] sm:$0xff]
        %v4898 = vld [vmem:[#allocation42 + $0x38] sm:$0xff]
        %v4899 = vld [vmem:[#allocation42 + $0x40] sm:$0xff]
        %v4900 = vld [vmem:[#allocation42 + $0x48] sm:$0xff]
        %v4901 = vld [vmem:[#allocation42 + $0x50] sm:$0xff]
        %v4902 = vld [vmem:[#allocation42 + $0x58] sm:$0xff]
        %v4903 = vld [vmem:[#allocation42 + $0x60] sm:$0xff]
        %v4904 = vld [vmem:[#allocation42 + $0x68] sm:$0xff]
        %v4905 = vld [vmem:[#allocation42 + $0x70] sm:$0xff]
        %v4906 = vld [vmem:[#allocation42 + $0x78] sm:$0xff]
        %4907 = vmatprep.subr.mxu0 0.0
        %4908 = vmatpush1.msra.mxu0 %v4891
        %4909 = vmatprep.subr.mxu0 0.0
        %4910 = vmatpush1.msra.mxu0 %v4892
        %4911 = vmatprep.subr.mxu0 0.0
        %4912 = vmatpush1.msra.mxu0 %v4893
        %4913 = vmatprep.subr.mxu0 0.0
        %4914 = vmatpush1.msra.mxu0 %v4894
        %4915 = vmatprep.subr.mxu0 0.0
        %4916 = vmatpush1.msra.mxu0 %v4895
        %4917 = vmatprep.subr.mxu0 0.0
        %4918 = vmatpush1.msra.mxu0 %v4896
        %4919 = vmatprep.subr.mxu0 0.0
        %4920 = vmatpush1.msra.mxu0 %v4897
        %4921 = vmatprep.subr.mxu0 0.0
        %4922 = vmatpush1.msra.mxu0 %v4898
        %4923 = vmatprep.subr.mxu0 0.0
        %4924 = vmatpush1.msra.mxu0 %v4899
        %4925 = vmatprep.subr.mxu0 0.0
        %4926 = vmatpush1.msra.mxu0 %v4900
        %4927 = vmatprep.subr.mxu0 0.0
        %4928 = vmatpush1.msra.mxu0 %v4901
        %4929 = vmatprep.subr.mxu0 0.0
        %4930 = vmatpush1.msra.mxu0 %v4902
        %4931 = vmatprep.subr.mxu0 0.0
        %4932 = vmatpush1.msra.mxu0 %v4903
        %4933 = vmatprep.subr.mxu0 0.0
        %4934 = vmatpush1.msra.mxu0 %v4904
        %4935 = vmatprep.subr.mxu0 0.0
        %4936 = vmatpush1.msra.mxu0 %v4905
        %4937 = vmatprep.subr.mxu0 0.0
        %4938 = vmatpush1.msra.mxu0 %v4906
        %4939 = vmatprep.subr.mxu0 0.0
        %4940 = vmatpush1.msra.mxu0 0.0
        %4941 = vmatprep.subr.mxu0 0.0
        %4942 = vmatpush1.msra.mxu0 0.0
        %4943 = vmatprep.subr.mxu0 0.0
        %4944 = vmatpush1.msra.mxu0 0.0
        %4945 = vmatprep.subr.mxu0 0.0
        %4946 = vmatpush1.msra.mxu0 0.0
        %4947 = vmatprep.subr.mxu0 0.0
        %4948 = vmatpush1.msra.mxu0 0.0
        %4949 = vmatprep.subr.mxu0 0.0
        %4950 = vmatpush1.msra.mxu0 0.0
        %4951 = vmatprep.subr.mxu0 0.0
        %4952 = vmatpush1.msra.mxu0 0.0
        %4953 = vmatprep.subr.mxu0 0.0
        %4954 = vmatpush1.msra.mxu0 0.0
        %4955 = vmatprep.subr.mxu0 0.0
        %4956 = vmatpush1.msra.mxu0 0.0
        %4957 = vmatprep.subr.mxu0 0.0
        %4958 = vmatpush1.msra.mxu0 0.0
        %4959 = vmatprep.subr.mxu0 0.0
        %4960 = vmatpush1.msra.mxu0 0.0
        %4961 = vmatprep.subr.mxu0 0.0
        %4962 = vmatpush1.msra.mxu0 0.0
        %4963 = vmatprep.subr.mxu0 0.0
        %4964 = vmatpush1.msra.mxu0 0.0
        %4965 = vmatprep.subr.mxu0 0.0
        %4966 = vmatpush1.msra.mxu0 0.0
        %4967 = vmatprep.subr.mxu0 0.0
        %4968 = vmatpush1.msra.mxu0 0.0
        %4969 = vmatprep.subr.mxu0 0.0
        %4970 = vmatpush1.msra.mxu0 0.0
        %4971 = vmatprep.mubr.f32.mxu0 0.0
        %4972 = vmatmul.mubr.f32.gmra.mrb[0].mxu0 %v4855
        %v4973 = vpop.f32.mrb[0].mxu0
        %v4974 = vadd.f32 0.0, %v4973
        %v4975 = vpop.f32.mrb[0].mxu0
        %4976 = vmatprep.mubr.f32.mxu0 0.0
        %4977 = vmatmul.mubr.f32.gmra.mrb[0].mxu0 %v4856
        %v4978 = vpop.f32.mrb[0].mxu0
        %v4979 = vadd.f32 0.0, %v4978
        %v4980 = vpop.f32.mrb[0].mxu0
        %4981 = vdwg.mxu0
        %4982 = vmatprep.subr.mxu0 0.0
        %4983 = vmatpush1.msra.mxu0 %v4875
        %4984 = vmatprep.subr.mxu0 0.0
        %4985 = vmatpush1.msra.mxu0 %v4876
        %4986 = vmatprep.subr.mxu0 0.0
        %4987 = vmatpush1.msra.mxu0 %v4877
        %4988 = vmatprep.subr.mxu0 0.0
        %4989 = vmatpush1.msra.mxu0 %v4878
        %4990 = vmatprep.subr.mxu0 0.0
        %4991 = vmatpush1.msra.mxu0 %v4879
        %4992 = vmatprep.subr.mxu0 0.0
        %4993 = vmatpush1.msra.mxu0 %v4880
        %4994 = vmatprep.subr.mxu0 0.0
        %4995 = vmatpush1.msra.mxu0 %v4881
        %4996 = vmatprep.subr.mxu0 0.0
        %4997 = vmatpush1.msra.mxu0 %v4882
        %4998 = vmatprep.subr.mxu0 0.0
        %4999 = vmatpush1.msra.mxu0 %v4883
        %5000 = vmatprep.subr.mxu0 0.0
        %5001 = vmatpush1.msra.mxu0 %v4884
        %5002 = vmatprep.subr.mxu0 0.0
        %5003 = vmatpush1.msra.mxu0 %v4885
        %5004 = vmatprep.subr.mxu0 0.0
        %5005 = vmatpush1.msra.mxu0 %v4886
        %5006 = vmatprep.subr.mxu0 0.0
        %5007 = vmatpush1.msra.mxu0 %v4887
        %5008 = vmatprep.subr.mxu0 0.0
        %5009 = vmatpush1.msra.mxu0 %v4888
        %5010 = vmatprep.subr.mxu0 0.0
        %5011 = vmatpush1.msra.mxu0 %v4889
        %5012 = vmatprep.subr.mxu0 0.0
        %5013 = vmatpush1.msra.mxu0 %v4890
        %5014 = vmatprep.subr.mxu0 0.0
        %5015 = vmatpush1.msra.mxu0 0.0
        %5016 = vmatprep.subr.mxu0 0.0
        %5017 = vmatpush1.msra.mxu0 0.0
        %5018 = vmatprep.subr.mxu0 0.0
        %5019 = vmatpush1.msra.mxu0 0.0
        %5020 = vmatprep.subr.mxu0 0.0
        %5021 = vmatpush1.msra.mxu0 0.0
        %5022 = vmatprep.subr.mxu0 0.0
        %5023 = vmatpush1.msra.mxu0 0.0
        %5024 = vmatprep.subr.mxu0 0.0
        %5025 = vmatpush1.msra.mxu0 0.0
        %5026 = vmatprep.subr.mxu0 0.0
        %5027 = vmatpush1.msra.mxu0 0.0
        %5028 = vmatprep.subr.mxu0 0.0
        %5029 = vmatpush1.msra.mxu0 0.0
        %5030 = vmatprep.subr.mxu0 0.0
        %5031 = vmatpush1.msra.mxu0 0.0
        %5032 = vmatprep.subr.mxu0 0.0
        %5033 = vmatpush1.msra.mxu0 0.0
        %5034 = vmatprep.subr.mxu0 0.0
        %5035 = vmatpush1.msra.mxu0 0.0
        %5036 = vmatprep.subr.mxu0 0.0
        %5037 = vmatpush1.msra.mxu0 0.0
        %5038 = vmatprep.subr.mxu0 0.0
        %5039 = vmatpush1.msra.mxu0 0.0
        %5040 = vmatprep.subr.mxu0 0.0
        %5041 = vmatpush1.msra.mxu0 0.0
        %5042 = vmatprep.subr.mxu0 0.0
        %5043 = vmatpush1.msra.mxu0 0.0
        %5044 = vmatprep.subr.mxu0 0.0
        %5045 = vmatpush1.msra.mxu0 0.0
        %5046 = vmatprep.mubr.f32.mxu0 0.0
        %5047 = vmatmul.mubr.f32.gmra.mrb[0].mxu0 %v4869
        %v5048 = vpop.f32.mrb[0].mxu0
        %v5049 = vadd.f32 %v4974, %v5048
        %v5050 = vpop.f32.mrb[0].mxu0
        %5051 = vmatprep.mubr.f32.mxu0 0.0
        %5052 = vmatmul.mubr.f32.gmra.mrb[0].mxu0 %v4870
        %v5053 = vpop.f32.mrb[0].mxu0
        %v5054 = vadd.f32 %v4979, %v5053
        %v5055 = vpop.f32.mrb[0].mxu0
        %5056 = vdwg.mxu0
        %v5057 = vld [vmem:[#allocation44] sm:$0xff]
        %v5058 = vld [vmem:[#allocation44 + $0x8] sm:$0xff]
        %v5059 = vld [vmem:[#allocation44 + $0x10] sm:$0xff]
        %v5060 = vld [vmem:[#allocation44 + $0x18] sm:$0xff]
        %v5061 = vld [vmem:[#allocation44 + $0x20] sm:$0xff]
        %v5062 = vld [vmem:[#allocation44 + $0x28] sm:$0xff]
        %v5063 = vld [vmem:[#allocation44 + $0x30] sm:$0xff]
        %v5064 = vld [vmem:[#allocation44 + $0x38] sm:$0xff]
        %v5065 = vld [vmem:[#allocation44 + $0x40] sm:$0xff]
        %v5066 = vld [vmem:[#allocation44 + $0x48] sm:$0xff]
        %v5067 = vld [vmem:[#allocation44 + $0x50] sm:$0xff]
        %v5068 = vld [vmem:[#allocation44 + $0x58] sm:$0xff]
        %v5069 = vld [vmem:[#allocation44 + $0x60] sm:$0xff]
        %v5070 = vld [vmem:[#allocation44 + $0x68] sm:$0xff]
        %v5071 = vld [vmem:[#allocation44 + $0x70] sm:$0xff]
        %v5072 = vld [vmem:[#allocation44 + $0x78] sm:$0xff]
        %5073 = vmatprep.subr.mxu0 0.0
        %5074 = vmatpush1.msra.mxu0 %v5057
        %5075 = vmatprep.subr.mxu0 0.0
        %5076 = vmatpush1.msra.mxu0 %v5058
        %5077 = vmatprep.subr.mxu0 0.0
        %5078 = vmatpush1.msra.mxu0 %v5059
        %5079 = vmatprep.subr.mxu0 0.0
        %5080 = vmatpush1.msra.mxu0 %v5060
        %5081 = vmatprep.subr.mxu0 0.0
        %5082 = vmatpush1.msra.mxu0 %v5061
        %5083 = vmatprep.subr.mxu0 0.0
        %5084 = vmatpush1.msra.mxu0 %v5062
        %5085 = vmatprep.subr.mxu0 0.0
        %5086 = vmatpush1.msra.mxu0 %v5063
        %5087 = vmatprep.subr.mxu0 0.0
        %5088 = vmatpush1.msra.mxu0 %v5064
        %5089 = vmatprep.subr.mxu0 0.0
        %5090 = vmatpush1.msra.mxu0 %v5065
        %5091 = vmatprep.subr.mxu0 0.0
        %5092 = vmatpush1.msra.mxu0 %v5066
        %5093 = vmatprep.subr.mxu0 0.0
        %5094 = vmatpush1.msra.mxu0 %v5067
        %5095 = vmatprep.subr.mxu0 0.0
        %5096 = vmatpush1.msra.mxu0 %v5068
        %5097 = vmatprep.subr.mxu0 0.0
        %5098 = vmatpush1.msra.mxu0 %v5069
        %5099 = vmatprep.subr.mxu0 0.0
        %5100 = vmatpush1.msra.mxu0 %v5070
        %5101 = vmatprep.subr.mxu0 0.0
        %5102 = vmatpush1.msra.mxu0 %v5071
        %5103 = vmatprep.subr.mxu0 0.0
        %5104 = vmatpush1.msra.mxu0 %v5072
        %5105 = vmatprep.subr.mxu0 0.0
        %5106 = vmatpush1.msra.mxu0 0.0
        %5107 = vmatprep.subr.mxu0 0.0
        %5108 = vmatpush1.msra.mxu0 0.0
        %5109 = vmatprep.subr.mxu0 0.0
        %5110 = vmatpush1.msra.mxu0 0.0
        %5111 = vmatprep.subr.mxu0 0.0
        %5112 = vmatpush1.msra.mxu0 0.0
        %5113 = vmatprep.subr.mxu0 0.0
        %5114 = vmatpush1.msra.mxu0 0.0
        %5115 = vmatprep.subr.mxu0 0.0
        %5116 = vmatpush1.msra.mxu0 0.0
        %5117 = vmatprep.subr.mxu0 0.0
        %5118 = vmatpush1.msra.mxu0 0.0
        %5119 = vmatprep.subr.mxu0 0.0
        %5120 = vmatpush1.msra.mxu0 0.0
        %5121 = vmatprep.subr.mxu0 0.0
        %5122 = vmatpush1.msra.mxu0 0.0
        %5123 = vmatprep.subr.mxu0 0.0
        %5124 = vmatpush1.msra.mxu0 0.0
        %5125 = vmatprep.subr.mxu0 0.0
        %5126 = vmatpush1.msra.mxu0 0.0
        %5127 = vmatprep.subr.mxu0 0.0
        %5128 = vmatpush1.msra.mxu0 0.0
        %5129 = vmatprep.subr.mxu0 0.0
        %5130 = vmatpush1.msra.mxu0 0.0
        %5131 = vmatprep.subr.mxu0 0.0
        %5132 = vmatpush1.msra.mxu0 0.0
        %5133 = vmatprep.subr.mxu0 0.0
        %5134 = vmatpush1.msra.mxu0 0.0
        %5135 = vmatprep.subr.mxu0 0.0
        %5136 = vmatpush1.msra.mxu0 0.0
        %5137 = vmatprep.mubr.f32.mxu0 0.0
        %5138 = vmatmul.mubr.f32.gmra.mrb[0].mxu0 %v2380
        %v5139 = vpop.f32.mrb[0].mxu0
        %v5140 = vadd.f32 0.0, %v5139
        %v5141 = vpop.f32.mrb[0].mxu0
        %5142 = vmatprep.mubr.f32.mxu0 0.0
        %5143 = vmatmul.mubr.f32.gmra.mrb[0].mxu0 %v2381
        %v5144 = vpop.f32.mrb[0].mxu0
        %v5145 = vadd.f32 0.0, %v5144
        %v5146 = vpop.f32.mrb[0].mxu0
        %5147 = vdwg.mxu0
        %v5148 = vadd.f32 %v5049, %v5140
        %v5149 = vadd.f32 %v5054, %v5145
        %v5150 = vld [vmem:[%s87] sm:$0x1]
        %v5151 = vmul.f32 %v4866, %v5150
        %v5153 = vlaneseq
        %v5154 = vshrl.u32 %v5153, 7
        %v5155 = vsub.s32 0, %v5154
        %v5156 = vrot.slane %v5151, %v5155
        %v5158 = vadd.f32 %v5148, %v5156
        %v5159 = vadd.f32 %v5149, %v5156
        %v5160 = vld [vmem:[%s89] sm:$0x1]
        %v5162 = vlaneseq
        %v5163 = vshrl.u32 %v5162, 7
        %v5164 = vsub.s32 0, %v5163
        %v5165 = vrot.slane %v5160, %v5164
        %v5167 = vadd.f32 %v5158, %v5165
        %v5168 = vadd.f32 %v5159, %v5165
        %v5169 = vmax.f32 %v5167, 0.0
        %v5170 = vmax.f32 %v5168, 0.0
        %v5171 = vld [vmem:[#allocation45] sm:$0xff]
        %v5172 = vld [vmem:[#allocation45 + $0x8] sm:$0xff]
        %v5173 = vld [vmem:[#allocation45 + $0x10] sm:$0xff]
        %v5174 = vld [vmem:[#allocation45 + $0x18] sm:$0xff]
        %v5175 = vld [vmem:[#allocation45 + $0x20] sm:$0xff]
        %v5176 = vld [vmem:[#allocation45 + $0x28] sm:$0xff]
        %v5177 = vld [vmem:[#allocation45 + $0x30] sm:$0xff]
        %v5178 = vld [vmem:[#allocation45 + $0x38] sm:$0xff]
        %v5179 = vld [vmem:[#allocation45 + $0x40] sm:$0xff]
        %v5180 = vld [vmem:[#allocation45 + $0x48] sm:$0xff]
        %v5181 = vld [vmem:[#allocation45 + $0x50] sm:$0xff]
        %v5182 = vld [vmem:[#allocation45 + $0x58] sm:$0xff]
        %v5183 = vld [vmem:[#allocation45 + $0x60] sm:$0xff]
        %v5184 = vld [vmem:[#allocation45 + $0x68] sm:$0xff]
        %v5185 = vld [vmem:[#allocation45 + $0x70] sm:$0xff]
        %v5186 = vld [vmem:[#allocation45 + $0x78] sm:$0xff]
        %v5187 = vld [vmem:[%s93] sm:$0x1]
        %v5189 = vlaneseq
        %v5190 = vshrl.u32 %v5189, 7
        %v5191 = vsub.s32 0, %v5190
        %v5192 = vrot.slane %v5187, %v5191
        %5194 = vmatprep.subr.mxu0 0.0
        %5195 = vmatpush1.msra.mxu0 %v5171
        %5196 = vmatprep.subr.mxu0 0.0
        %5197 = vmatpush1.msra.mxu0 %v5172
        %5198 = vmatprep.subr.mxu0 0.0
        %5199 = vmatpush1.msra.mxu0 %v5173
        %5200 = vmatprep.subr.mxu0 0.0
        %5201 = vmatpush1.msra.mxu0 %v5174
        %5202 = vmatprep.subr.mxu0 0.0
        %5203 = vmatpush1.msra.mxu0 %v5175
        %5204 = vmatprep.subr.mxu0 0.0
        %5205 = vmatpush1.msra.mxu0 %v5176
        %5206 = vmatprep.subr.mxu0 0.0
        %5207 = vmatpush1.msra.mxu0 %v5177
        %5208 = vmatprep.subr.mxu0 0.0
        %5209 = vmatpush1.msra.mxu0 %v5178
        %5210 = vmatprep.subr.mxu0 0.0
        %5211 = vmatpush1.msra.mxu0 %v5179
        %5212 = vmatprep.subr.mxu0 0.0
        %5213 = vmatpush1.msra.mxu0 %v5180
        %5214 = vmatprep.subr.mxu0 0.0
        %5215 = vmatpush1.msra.mxu0 %v5181
        %5216 = vmatprep.subr.mxu0 0.0
        %5217 = vmatpush1.msra.mxu0 %v5182
        %5218 = vmatprep.subr.mxu0 0.0
        %5219 = vmatpush1.msra.mxu0 %v5183
        %5220 = vmatprep.subr.mxu0 0.0
        %5221 = vmatpush1.msra.mxu0 %v5184
        %5222 = vmatprep.subr.mxu0 0.0
        %5223 = vmatpush1.msra.mxu0 %v5185
        %5224 = vmatprep.subr.mxu0 0.0
        %5225 = vmatpush1.msra.mxu0 %v5186
        %5226 = vmatprep.subr.mxu0 0.0
        %5227 = vmatpush1.msra.mxu0 0.0
        %5228 = vmatprep.subr.mxu0 0.0
        %5229 = vmatpush1.msra.mxu0 0.0
        %5230 = vmatprep.subr.mxu0 0.0
        %5231 = vmatpush1.msra.mxu0 0.0
        %5232 = vmatprep.subr.mxu0 0.0
        %5233 = vmatpush1.msra.mxu0 0.0
        %5234 = vmatprep.subr.mxu0 0.0
        %5235 = vmatpush1.msra.mxu0 0.0
        %5236 = vmatprep.subr.mxu0 0.0
        %5237 = vmatpush1.msra.mxu0 0.0
        %5238 = vmatprep.subr.mxu0 0.0
        %5239 = vmatpush1.msra.mxu0 0.0
        %5240 = vmatprep.subr.mxu0 0.0
        %5241 = vmatpush1.msra.mxu0 0.0
        %5242 = vmatprep.subr.mxu0 0.0
        %5243 = vmatpush1.msra.mxu0 0.0
        %5244 = vmatprep.subr.mxu0 0.0
        %5245 = vmatpush1.msra.mxu0 0.0
        %5246 = vmatprep.subr.mxu0 0.0
        %5247 = vmatpush1.msra.mxu0 0.0
        %5248 = vmatprep.subr.mxu0 0.0
        %5249 = vmatpush1.msra.mxu0 0.0
        %5250 = vmatprep.subr.mxu0 0.0
        %5251 = vmatpush1.msra.mxu0 0.0
        %5252 = vmatprep.subr.mxu0 0.0
        %5253 = vmatpush1.msra.mxu0 0.0
        %5254 = vmatprep.subr.mxu0 0.0
        %5255 = vmatpush1.msra.mxu0 0.0
        %5256 = vmatprep.subr.mxu0 0.0
        %5257 = vmatpush1.msra.mxu0 0.0
        %5258 = vmatprep.mubr.f32.mxu0 0.0
        %5259 = vmatmul.mubr.f32.gmra.mrb[0].mxu0 %v5169
        %v5260 = vpop.f32.mrb[0].mxu0
        %v5261 = vadd.f32 %v5192, %v5260
        %v5262 = vpop.f32.mrb[0].mxu0
        %5263 = vmatprep.mubr.f32.mxu0 0.0
        %5264 = vmatmul.mubr.f32.gmra.mrb[0].mxu0 %v5170
        %v5265 = vpop.f32.mrb[0].mxu0
        %v5266 = vadd.f32 %v5192, %v5265
        %v5267 = vpop.f32.mrb[0].mxu0
        %5268 = vdwg.mxu0
        %v5269 = vsub.f32 %v5261, %v4873
        %v5270 = vsub.f32 %v5266, %v4874
        %v5271 = vmul.f32 %v5269, %v2354
        %v5272 = vmul.f32 %v5270, %v2359
        %v5273 = vmul.f32 %v5271, %v5271
        %v5274 = vmul.f32 %v5272, %v5272
        %v5275 = vadd.f32 %v5273, %v5274
        %5276 = vadd.xlane.f32.xlu0 %v5275
        %v5277 = vpop.xlane.xlu0 %5276
        %v5278 = vrot.slane %v5277, 4
        %v5279 = vadd.f32 %v5277, %v5278
        %v5280 = vrot.slane %v5279, 2
        %v5281 = vadd.f32 %v5279, %v5280
        %v5282 = vrot.slane %v5281, 1
        %v5283 = vadd.f32 %v5281, %v5282
        %s5284 = vtos %v5283
        %v5285 = vstv %s5284
        %5286 = vst [vmem:[%s2008] sm:$0x1] %v5285
        %p5287 = scmp.lt.s32.totalorder %s127, 1
        %s5288 = scalar_select %p5287, %s127, 1
        %s5289 = smul.addr %s5288, 2
        %s5290 = smul.addr %s5289, 8
        %s5291 = scalar_lea.vmem %s95, %s5290
        %p5292 = scmp.lt.s32.totalorder %s127, 1
        %s5293 = scalar_select %p5292, %s127, 1
        %s5294 = scalar_lea.vmem %s97, %s5293
        %p5295 = scmp.lt.s32.totalorder %s127, 1
        %s5296 = scalar_select %p5295, %s127, 1
        %s5297 = scalar_lea.vmem %s99, %s5296
        // Predicated region
        $region325: #{vqvae_matcha_forward.3} parent=207 // pred_check
          %p5298 = pneg %p1172
        $region326: #{vqvae_matcha_forward.3} parent=207 // pred_check_branch
          %5300 = sbr.rel (%p5298) target = $region328
        $region327: #{vqvae_matcha_forward.3} parent=207 // pred_region
          _
        $region328: #{vqvae_matcha_forward.3} parent=207 // pred_fallthru
          _
        // Predicated region
        $region329: #{vqvae_matcha_forward.3} parent=207 // pred_check
          %p5301 = pneg %p1198
        $region330: #{vqvae_matcha_forward.3} parent=207 // pred_check_branch
          %5303 = sbr.rel (%p5301) target = $region332
        $region331: #{vqvae_matcha_forward.3} parent=207 // pred_region
          _
        $region332: #{vqvae_matcha_forward.3} parent=207 // pred_fallthru
          _
        // Predicated region
        $region333: #{vqvae_matcha_forward.3} parent=207 // pred_check
          %p5304 = pneg %p1224
        $region334: #{vqvae_matcha_forward.3} parent=207 // pred_check_branch
          %5306 = sbr.rel (%p5304) target = $region336
        $region335: #{vqvae_matcha_forward.3} parent=207 // pred_region
          _
        $region336: #{vqvae_matcha_forward.3} parent=207 // pred_fallthru
          _
      $region208: #{vqvae_matcha_forward.3} parent=5 // pred_fallthru
        _
      %p5307 = scmp.le.s32.totalorder 2, %s122
      // Predicated region
      $region337: #{vqvae_matcha_forward.3} parent=5 // pred_check
        %p5308 = pneg %p5307
      $region338: #{vqvae_matcha_forward.3} parent=5 // pred_check_branch
        %5310 = sbr.rel (%p5308) target = $region340
      $region339: #{vqvae_matcha_forward.3} parent=5 // pred_region
        %s5311 = ssub.s32 %s122, 2
        // Predicated region
        $region341: #{vqvae_matcha_forward.3} parent=339 // pred_check
          %p5312 = pneg %p1178
        $region342: #{vqvae_matcha_forward.3} parent=339 // pred_check_branch
          %5314 = sbr.rel (%p5312) target = $region344
        $region343: #{vqvae_matcha_forward.3} parent=339 // pred_region
          %p5315 = scmp.lt.s32.totalorder %s128, 1
          %s5316 = scalar_select %p5315, %s128, 1
          %s5317 = smul.addr %s5316, 2
          %s5318 = smul.addr %s5317, 8
          %s5319 = scalar_lea.vmem %s95, %s5318
        $region344: #{vqvae_matcha_forward.3} parent=339 // pred_fallthru
          _
        // Predicated region
        $region345: #{vqvae_matcha_forward.3} parent=339 // pred_check
          %p5320 = pneg %p1204
        $region346: #{vqvae_matcha_forward.3} parent=339 // pred_check_branch
          %5322 = sbr.rel (%p5320) target = $region348
        $region347: #{vqvae_matcha_forward.3} parent=339 // pred_region
          %p5323 = scmp.lt.s32.totalorder %s128, 1
          %s5324 = scalar_select %p5323, %s128, 1
          %s5325 = scalar_lea.vmem %s97, %s5324
        $region348: #{vqvae_matcha_forward.3} parent=339 // pred_fallthru
          _
        // Predicated region
        $region349: #{vqvae_matcha_forward.3} parent=339 // pred_check
          %p5326 = pneg %p1230
        $region350: #{vqvae_matcha_forward.3} parent=339 // pred_check_branch
          %5328 = sbr.rel (%p5326) target = $region352
        $region351: #{vqvae_matcha_forward.3} parent=339 // pred_region
          %p5329 = scmp.lt.s32.totalorder %s128, 1
          %s5330 = scalar_select %p5329, %s128, 1
          %s5331 = scalar_lea.vmem %s99, %s5330
        $region352: #{vqvae_matcha_forward.3} parent=339 // pred_fallthru
          _
      $region340: #{vqvae_matcha_forward.3} parent=5 // pred_fallthru
        _
    $region6: #{vqvae_matcha_forward.3} parent=1 // loop_footer
      %s126 = sadd.s32 1, %s122
    $region7: #{vqvae_matcha_forward.3} parent=1 // loop_footer_branch
      %121 = sbr.rel target = $region3
    $region8: #{vqvae_matcha_forward.3} parent=1 // loop_exit
      _
    %5332 = vsyncpa [#allocation3], 1
    %s5333 = scalar_lea.sflag [#allocation3], 1
    %5334 = vsyncpa %s5333, 1
    %5335 = vsyncpa [#allocation7], 1
    %5336 = vsyncpa [#allocation10], 1
    %5337 = vsyncpa [#allocation13], 1
    %5338 = vsyncpa [#allocation16], 1
    %5339 = vsyncpa [#allocation19], 1
    %5340 = vsyncpa [#allocation22], 1
    %5341 = vsyncpa [#allocation25], 1
    %5342 = vsyncpa [#allocation28], 1
    %5343 = vsyncpa [#allocation31], 1
    %5344 = vsyncpa [#allocation34], 1
    %5345 = vsyncpa [#allocation37], 1
    %5346 = vsyncpa [#allocation40], 1
    %5347 = vsyncpa [#allocation43], 1
    %5348 = vsyncpa [#allocation46], 1
    %5349 = vsyncpa [#allocation4], 1
    %s5350 = scalar_lea.sflag [#allocation4], 1
    %5351 = vsyncpa %s5350, 1

</llo_original>
